<compile_context>
chip_gen: v7x
topology: tpu7x:2x2x1
jax: 0.10.0
libtpu: 0.0.40
codegen_flags: <defaults>
</compile_context>

<pallas_src>
import functools

import jax
import jax.numpy as jnp
from jax import lax
from jax.experimental import pallas as pl
from jax.experimental.pallas import tpu as pltpu


_ROW_TILE = 512                   # ~85% of HBM roofline; fits v5e's 16 MiB scoped default
_VMEM_LIMIT = 48 * 1024 * 1024    # explicit scoped-VMEM limit (below v7x's 64 MiB physical)
_COL0 = 8                         # sublane-aligned column offset of the halo-scratch interior
_MXU_DTYPE = jnp.bfloat16         # MXU operand dtype (accumulation stays f32)


def _round_up(x, m):
    return ((x + m - 1) // m) * m


def _row_tiling(m):
    tm = min(_ROW_TILE, _round_up(m, 16))
    grid = pl.cdiv(m, tm)
    return tm, grid, grid * tm


# ----------------------------------------------------------------------------
# Pallas kernels
# ----------------------------------------------------------------------------
def _matmul_stats_kernel(x_ref, w_ref, b_ref, o_ref, s_ref, ss_ref, *, valid_rows):
    """y = x @ w + b (bf16 MXU, f32 acc); accumulates per-channel sum(y), sum(y*y)."""
    @pl.when(pl.program_id(0) == 0)
    def _():
        s_ref[...] = jnp.zeros_like(s_ref)
        ss_ref[...] = jnp.zeros_like(ss_ref)

    y = jnp.dot(x_ref[...], w_ref[...], preferred_element_type=jnp.float32)
    y = y + b_ref[...]
    o_ref[...] = y.astype(o_ref.dtype)

    tm = x_ref.shape[0]
    row = pl.program_id(0) * tm + lax.broadcasted_iota(jnp.int32, (tm, 1), 0)
    ym = jnp.where(row < valid_rows, y, 0.0)      # mask padded tail rows out of the stats
    s_ref[...] += jnp.sum(ym, axis=0, keepdims=True)
    ss_ref[...] += jnp.sum(ym * ym, axis=0, keepdims=True)


def _bn_relu_matmul_stats_kernel(x_ref, scale_ref, shift_ref, w_ref, b_ref,
                                 o_ref, s_ref, ss_ref, *, valid_rows):
    """y = relu(x*scale + shift) @ w + b; BN math in f32, matmul on bf16 operands."""
    @pl.when(pl.program_id(0) == 0)
    def _():
        s_ref[...] = jnp.zeros_like(s_ref)
        ss_ref[...] = jnp.zeros_like(ss_ref)

    a = jnp.maximum(
        x_ref[...].astype(jnp.float32) * scale_ref[...] + shift_ref[...], 0.0)
    y = jnp.dot(a.astype(_MXU_DTYPE), w_ref[...],
                preferred_element_type=jnp.float32)
    y = y + b_ref[...]
    o_ref[...] = y.astype(o_ref.dtype)

    tm = x_ref.shape[0]
    row = pl.program_id(0) * tm + lax.broadcasted_iota(jnp.int32, (tm, 1), 0)
    ym = jnp.where(row < valid_rows, y, 0.0)
    s_ref[...] += jnp.sum(ym, axis=0, keepdims=True)
    ss_ref[...] += jnp.sum(ym * ym, axis=0, keepdims=True)


def _bn_relu_kernel(x_ref, scale_ref, shift_ref, o_ref):
    """y = relu(x*scale + shift) on large flattened row tiles (f32 math/output)."""
    o_ref[...] = jnp.maximum(
        x_ref[...].astype(jnp.float32) * scale_ref[...] + shift_ref[...],
        0.0).astype(o_ref.dtype)


def _deconv_bn_relu_kernel(y_ref, scale_ref, shift_ref, w_ref, b_ref,
                           o_ref, s_ref, ss_ref, pad_ref, sc_ref, *, H, W, C):
    """Fused BN1-affine + ReLU + ConvTranspose2d(k=4, s=2, p=1) + BN2 stats.

    One image per grid step.  The 2x-upsampled output is computed per output
    parity (ry, rx) as a 2x2-tap stencil over the zero-padded activated input:
      y[2m+ry, 2n+rx] = b + sum_{a,b in {0,1}}
                        xp[m+ry+a, n+rx+b, :] @ w[:, :, 3-ry-2a, 3-rx-2b]
    Each tap is an (H*W, C) @ (C, C) bf16 MXU matmul with f32 accumulation.
    The three W-shifted copies of xp are pre-built once per image so every tap
    read is a sublane-aligned leading-dim slice.
    """
    @pl.when(pl.program_id(0) == 0)
    def _():
        s_ref[...] = jnp.zeros_like(s_ref)
        ss_ref[...] = jnp.zeros_like(ss_ref)
        # Zero the padded scratch once; halo cells are never overwritten, so
        # they stay zero for all subsequent (serial, "arbitrary") grid steps.
        pad_ref[...] = jnp.zeros_like(pad_ref)

    # BN1 affine + ReLU (f32), written into the interior of the padded scratch
    # (row offset 1, sublane-aligned column offset _COL0).
    a1 = jnp.maximum(
        y_ref[0].astype(jnp.float32) * scale_ref[...] + shift_ref[...], 0.0)
    pad_ref[1:H + 1, _COL0:_COL0 + W, :] = a1

    # Pre-build the three W-shifted copies once per image (2 unaligned window
    # reads total, instead of ~10 unaligned per-tap slices), cast to bf16.
    for s in range(3):
        c0 = _COL0 - 1 + s
        sc_ref[s] = pad_ref[:, c0:c0 + W, :].astype(_MXU_DTYPE)

    bias = b_ref[...]                                    # (1, C) f32
    for p, (ry, rx) in enumerate(((0, 0), (0, 1), (1, 0), (1, 1))):
        acc = None
        for a in (0, 1):
            for b in (0, 1):
                t = p * 4 + a * 2 + b
                patch = sc_ref[rx + b, ry + a:ry + a + H]       # (H, W, C) bf16, aligned
                d = jnp.dot(patch.reshape(H * W, C), w_ref[t],
                            preferred_element_type=jnp.float32)
                acc = d if acc is None else acc + d             # first-tap init (no memset)
        y = acc + bias
        o_ref[0, p] = y.reshape(H, W, C).astype(o_ref.dtype)
        s_ref[...] += jnp.sum(y, axis=0, keepdims=True)
        ss_ref[...] += jnp.sum(y * y, axis=0, keepdims=True)


# ----------------------------------------------------------------------------
# pallas_call wrappers
# ----------------------------------------------------------------------------
def _matmul_stats(x, w, b):
    m, k = x.shape
    c = w.shape[1]
    tm, grid, m_pad = _row_tiling(m)
    if m_pad != m:
        x = jnp.pad(x, ((0, m_pad - m), (0, 0)))
    y, s, ss = pl.pallas_call(
        functools.partial(_matmul_stats_kernel, valid_rows=m),
        out_shape=(jax.ShapeDtypeStruct((m_pad, c), x.dtype),
                   jax.ShapeDtypeStruct((1, c), jnp.float32),
                   jax.ShapeDtypeStruct((1, c), jnp.float32)),
        grid_spec=pltpu.PrefetchScalarGridSpec(
            num_scalar_prefetch=0,
            grid=(grid,),
            in_specs=[pl.BlockSpec((tm, k), lambda i: (i, 0)),
                      pl.BlockSpec((k, c), lambda i: (0, 0)),
                      pl.BlockSpec((1, c), lambda i: (0, 0))],
            out_specs=(pl.BlockSpec((tm, c), lambda i: (i, 0)),
                       pl.BlockSpec((1, c), lambda i: (0, 0)),
                       pl.BlockSpec((1, c), lambda i: (0, 0)))),
        compiler_params=pltpu.CompilerParams(
            dimension_semantics=("arbitrary",),      # resident stats accumulators
            vmem_limit_bytes=_VMEM_LIMIT),
    )(x, w, b.reshape(1, c))
    if m_pad != m:
        y = y[:m]
    return y, s, ss


def _bn_relu_matmul_stats(x, scale, shift, w, b):
    m, k = x.shape
    c = w.shape[1]
    tm, grid, m_pad = _row_tiling(m)
    if m_pad != m:
        x = jnp.pad(x, ((0, m_pad - m), (0, 0)))
    y, s, ss = pl.pallas_call(
        functools.partial(_bn_relu_matmul_stats_kernel, valid_rows=m),
        out_shape=(jax.ShapeDtypeStruct((m_pad, c), x.dtype),
                   jax.ShapeDtypeStruct((1, c), jnp.float32),
                   jax.ShapeDtypeStruct((1, c), jnp.float32)),
        grid_spec=pltpu.PrefetchScalarGridSpec(
            num_scalar_prefetch=0,
            grid=(grid,),
            in_specs=[pl.BlockSpec((tm, k), lambda i: (i, 0)),
                      pl.BlockSpec((1, k), lambda i: (0, 0)),
                      pl.BlockSpec((1, k), lambda i: (0, 0)),
                      pl.BlockSpec((k, c), lambda i: (0, 0)),
                      pl.BlockSpec((1, c), lambda i: (0, 0))],
            out_specs=(pl.BlockSpec((tm, c), lambda i: (i, 0)),
                       pl.BlockSpec((1, c), lambda i: (0, 0)),
                       pl.BlockSpec((1, c), lambda i: (0, 0)))),
        compiler_params=pltpu.CompilerParams(
            dimension_semantics=("arbitrary",),
            vmem_limit_bytes=_VMEM_LIMIT),
    )(x, scale, shift, w, b.reshape(1, c))
    if m_pad != m:
        y = y[:m]
    return y, s, ss


def _bn_relu(x, scale, shift):
    m, c = x.shape
    tm, grid, m_pad = _row_tiling(m)
    if m_pad != m:
        x = jnp.pad(x, ((0, m_pad - m), (0, 0)))
    y = pl.pallas_call(
        _bn_relu_kernel,
        out_shape=jax.ShapeDtypeStruct((m_pad, c), jnp.float32),
        grid_spec=pltpu.PrefetchScalarGridSpec(
            num_scalar_prefetch=0,
            grid=(grid,),
            in_specs=[pl.BlockSpec((tm, c), lambda i: (i, 0)),
                      pl.BlockSpec((1, c), lambda i: (0, 0)),
                      pl.BlockSpec((1, c), lambda i: (0, 0))],
            out_specs=pl.BlockSpec((tm, c), lambda i: (i, 0))),
        compiler_params=pltpu.CompilerParams(
            dimension_semantics=("parallel",),
            vmem_limit_bytes=_VMEM_LIMIT),
    )(x, scale, shift)
    if m_pad != m:
        y = y[:m]
    return y


def _deconv_bn_relu(y1_img, scale, shift, w_taps, bias):
    n, h, w, c = y1_img.shape
    kernel = functools.partial(_deconv_bn_relu_kernel, H=h, W=w, C=c)
    return pl.pallas_call(
        kernel,
        out_shape=(jax.ShapeDtypeStruct((n, 4, h, w, c), y1_img.dtype),
                   jax.ShapeDtypeStruct((1, c), jnp.float32),
                   jax.ShapeDtypeStruct((1, c), jnp.float32)),
        grid_spec=pltpu.PrefetchScalarGridSpec(
            num_scalar_prefetch=0,
            grid=(n,),
            in_specs=[pl.BlockSpec((1, h, w, c), lambda i: (i, 0, 0, 0)),
                      pl.BlockSpec((1, c), lambda i: (0, 0)),
                      pl.BlockSpec((1, c), lambda i: (0, 0)),
                      pl.BlockSpec((16, c, c), lambda i: (0, 0, 0)),
                      pl.BlockSpec((1, c), lambda i: (0, 0))],
            out_specs=(pl.BlockSpec((1, 4, h, w, c),
                                    lambda i: (i, 0, 0, 0, 0)),
                       pl.BlockSpec((1, c), lambda i: (0, 0)),
                       pl.BlockSpec((1, c), lambda i: (0, 0))),
            scratch_shapes=[pltpu.VMEM((h + 2, w + 16, c), jnp.float32),
                            pltpu.VMEM((3, h + 2, w, c), _MXU_DTYPE)]),
        compiler_params=pltpu.CompilerParams(
            dimension_semantics=("arbitrary",),
            vmem_limit_bytes=_VMEM_LIMIT),
    )(y1_img, scale, shift, w_taps, bias.reshape(1, c))


# ----------------------------------------------------------------------------
# Glue: BN scale/shift from in-kernel statistics, deconv weight taps
# ----------------------------------------------------------------------------
def _bn_scale_shift(s, ss, count, gamma, beta, eps):
    mean = s[0] / float(count)
    var = jnp.maximum(ss[0] / float(count) - mean * mean, 0.0)  # biased, 1-pass
    scale = gamma * lax.rsqrt(var + eps)
    shift = beta - mean * scale
    return scale.reshape(1, -1), shift.reshape(1, -1)


def _deconv_taps(w_dec):
    """PyTorch ConvTranspose2d weight (Cin, Cout, 4, 4) -> (16, Cin, Cout) taps.

    Tap index t = ((ry*2 + rx)*2 + a)*2 + b holds w[:, :, 3-ry-2a, 3-rx-2b].
    """
    taps = []
    for ry in (0, 1):
        for rx in (0, 1):
            for a in (0, 1):
                for b in (0, 1):
                    taps.append(w_dec[:, :, 3 - ry - 2 * a, 3 - rx - 2 * b])
    return jnp.stack(taps, axis=0)


# ----------------------------------------------------------------------------
# Full DecoderBlockLinkNet forward
# ----------------------------------------------------------------------------
def decoder_block_forward(x_nchw, params, *, eps=1e-5):
    n, cin, h, w = x_nchw.shape
    cmid = params["w1"].shape[0]
    cout = params["w3"].shape[0]

    # NCHW -> channels-last once at the API boundary, cast to bf16 (fused by XLA
    # with the transpose) so the kernel reads half the bytes.
    x_flat = jnp.transpose(x_nchw, (0, 2, 3, 1)).reshape(n * h * w, cin)
    x_flat = x_flat.astype(_MXU_DTYPE)

    # conv1 (1x1) + BN1 statistics.
    w1 = params["w1"][:, :, 0, 0].T.astype(_MXU_DTYPE)     # (Cin, Cmid)
    y1, s1, ss1 = _matmul_stats(x_flat, w1, params["b1"])
    scale1, shift1 = _bn_scale_shift(s1, ss1, n * h * w,
                                     params["g1"], params["be1"], eps)

    # BN1-affine + ReLU fused into the deconv kernel; emits BN2 statistics.
    w_taps = _deconv_taps(params["w2"]).astype(_MXU_DTYPE)  # (16, Cmid, Cmid)
    y2, s2, ss2 = _deconv_bn_relu(y1.reshape(n, h, w, cmid),
                                  scale1, shift1, w_taps, params["b2"])
    scale2, shift2 = _bn_scale_shift(s2, ss2, n * 4 * h * w,
                                     params["g2"], params["be2"], eps)

    # BN2-affine + ReLU fused into conv3 (1x1); emits BN3 statistics.
    # (the 1x1 conv commutes with the parity rearrangement of pixels)
    w3 = params["w3"][:, :, 0, 0].T.astype(_MXU_DTYPE)      # (Cmid, Cout)
    y3, s3, ss3 = _bn_relu_matmul_stats(y2.reshape(n * 4 * h * w, cmid),
                                        scale2, shift2, w3, params["b3"])
    scale3, shift3 = _bn_scale_shift(s3, ss3, n * 4 * h * w,
                                     params["g3"], params["be3"], eps)

    # Final BN3-affine + ReLU (f32 output).
    out = _bn_relu(y3, scale3, shift3)                      # (N*4*H*W, Cout)

    # De-interleave the deconv output parities and return to NCHW.
    out = out.reshape(n, 2, 2, h, w, cout)                  # (n, ry, rx, h, w, c)
    out = jnp.transpose(out, (0, 3, 1, 4, 2, 5)).reshape(n, 2 * h, 2 * w, cout)
    return jnp.transpose(out, (0, 3, 1, 2))


# ----------------------------------------------------------------------------
# Plain-JAX reference for validation
# ----------------------------------------------------------------------------
def decoder_block_reference(x, params, *, eps=1e-5):
    def bn_relu(y, gamma, beta):
        mean = jnp.mean(y, axis=(0, 2, 3), keepdims=True)
        var = jnp.mean((y - mean) ** 2, axis=(0, 2, 3), keepdims=True)
        yn = (y - mean) * lax.rsqrt(var + eps)
        yn = yn * gamma[None, :, None, None] + beta[None, :, None, None]
        return jnp.maximum(yn, 0.0)

    dn = ("NCHW", "OIHW", "NCHW")
    hp = lax.Precision.HIGHEST

    y = lax.conv_general_dilated(x, params["w1"], (1, 1), "VALID",
                                 dimension_numbers=dn, precision=hp)
    y = y + params["b1"][None, :, None, None]
    y = bn_relu(y, params["g1"], params["be1"])

    # ConvTranspose2d(k=4, s=2, p=1) == lhs-dilated conv with flipped kernel.
    w_t = jnp.flip(jnp.transpose(params["w2"], (1, 0, 2, 3)), axis=(2, 3))
    y = lax.conv_general_dilated(y, w_t, (1, 1),
                                 padding=((2, 2), (2, 2)), lhs_dilation=(2, 2),
                                 dimension_numbers=dn, precision=hp)
    y = y + params["b2"][None, :, None, None]
    y = bn_relu(y, params["g2"], params["be2"])

    y = lax.conv_general_dilated(y, params["w3"], (1, 1), "VALID",
                                 dimension_numbers=dn, precision=hp)
    y = y + params["b3"][None, :, None, None]
    y = bn_relu(y, params["g3"], params["be3"])
    return y


# ----------------------------------------------------------------------------
# Deterministic parameter init (PyTorch-style shapes / uniform bounds)
# ----------------------------------------------------------------------------
def init_params(key, in_channels, n_filters):
    cmid = in_channels // 4
    ks = jax.random.split(key, 6)

    def u(k, shape, fan_in):
        bound = float(fan_in) ** -0.5
        return jax.random.uniform(k, shape, jnp.float32, -bound, bound)

    return {
        # conv1: 1x1, in_channels -> in_channels // 4   (weight OIHW)
        "w1": u(ks[0], (cmid, in_channels, 1, 1), in_channels),
        "b1": u(ks[1], (cmid,), in_channels),
        "g1": jnp.ones((cmid,), jnp.float32),
        "be1": jnp.zeros((cmid,), jnp.float32),
        # deconv2: ConvTranspose2d(cmid, cmid, 4, stride=2, padding=1)
        # (weight shape: in_channels, out_channels, kH, kW)
        "w2": u(ks[2], (cmid, cmid, 4, 4), cmid * 16),
        "b2": u(ks[3], (cmid,), cmid * 16),
        "g2": jnp.ones((cmid,), jnp.float32),
        "be2": jnp.zeros((cmid,), jnp.float32),
        # conv3: 1x1, cmid -> n_filters
        "w3": u(ks[4], (n_filters, cmid, 1, 1), cmid),
        "b3": u(ks[5], (n_filters,), cmid),
        "g3": jnp.ones((n_filters,), jnp.float32),
        "be3": jnp.zeros((n_filters,), jnp.float32),
    }


if __name__ == "__main__":
    key = jax.random.PRNGKey(0)
    k_x, k_p = jax.random.split(key)

    N, in_channels, H, W = 2, 16, 16, 16
    n_filters = 8
    x = jax.random.normal(k_x, (N, in_channels, H, W), jnp.float32)
    params = init_params(k_p, in_channels, n_filters)

    fwd = jax.jit(decoder_block_forward)
    out = jax.block_until_ready(fwd(x, params))
    assert out.shape == (N, n_filters, 2 * H, 2 * W), out.shape

    ref = decoder_block_reference(x, params)
    max_err = float(jnp.max(jnp.abs(out - ref)))
    # bf16 MXU operands / bf16-stored activations -> a few-percent tolerance.
    assert jnp.allclose(out, ref, atol=6e-2, rtol=6e-2), f"max abs err {max_err}"

    print("KERNEL_OK")
</pallas_src>

<mosaic_0001>
module attributes {stable_mosaic.version = 11 : i64} {
  func.func @_deconv_bn_relu_kernel(%arg0: i32, %arg1: memref<1x16x16x4xbf16, #tpu.memory_space<vmem>>, %arg2: memref<1x4xf32, #tpu.memory_space<vmem>>, %arg3: memref<1x4xf32, #tpu.memory_space<vmem>>, %arg4: memref<16x4x4xbf16, #tpu.memory_space<vmem>>, %arg5: memref<1x4xf32, #tpu.memory_space<vmem>>, %arg6: memref<1x4x16x16x4xbf16, #tpu.memory_space<vmem>>, %arg7: memref<1x4xf32, #tpu.memory_space<vmem>>, %arg8: memref<1x4xf32, #tpu.memory_space<vmem>>, %arg9: memref<18x32x4xf32, #tpu.memory_space<vmem>>, %arg10: memref<3x18x16x4xbf16, #tpu.memory_space<vmem>>) attributes {dimension_semantics = [#tpu.dimension_semantics<arbitrary>], iteration_bounds = array<i64: 2>, scalar_prefetch = 0 : i64, scratch_operands = 2 : i64, tpu.core_type = #tpu.core_type<tc>, window_params = [{transform_indices = @transform_0, window_bounds = array<i64: 1, 16, 16, 4>}, {pipeline_mode = #tpu.pipeline_mode<synchronous>, transform_indices = @transform_1, window_bounds = array<i64: 1, 4>}, {pipeline_mode = #tpu.pipeline_mode<synchronous>, transform_indices = @transform_2, window_bounds = array<i64: 1, 4>}, {pipeline_mode = #tpu.pipeline_mode<synchronous>, transform_indices = @transform_3, window_bounds = array<i64: 16, 4, 4>}, {pipeline_mode = #tpu.pipeline_mode<synchronous>, transform_indices = @transform_4, window_bounds = array<i64: 1, 4>}, {transform_indices = @transform_5, window_bounds = array<i64: 1, 4, 16, 16, 4>}, {pipeline_mode = #tpu.pipeline_mode<synchronous>, transform_indices = @transform_6, window_bounds = array<i64: 1, 4>}, {pipeline_mode = #tpu.pipeline_mode<synchronous>, transform_indices = @transform_7, window_bounds = array<i64: 1, 4>}]} {
    %c0_i32 = arith.constant 0 : i32
    %0 = arith.cmpi eq, %arg0, %c0_i32 : i32
    %1 = arith.extui %0 : i1 to i32
    %c0_i32_0 = arith.constant 0 : i32
    %2 = arith.cmpi ne, %1, %c0_i32_0 : i32
    scf.if %2 {
      %cst_207 = arith.constant 0.000000e+00 : f32
      %213 = vector.broadcast %cst_207 : f32 to vector<1x4xf32>
      %c0_208 = arith.constant 0 : index
      %c0_209 = arith.constant 0 : index
      %214 = vector.load %arg7[%c0_208, %c0_209] : memref<1x4xf32, #tpu.memory_space<vmem>>, vector<1x4xf32>
      tpu.vector_store %arg7[%c0_208, %c0_209], %213 {strides = array<i32>} : memref<1x4xf32, #tpu.memory_space<vmem>>, vector<1x4xf32>,
      %cst_210 = arith.constant 0.000000e+00 : f32
      %215 = vector.broadcast %cst_210 : f32 to vector<1x4xf32>
      %c0_211 = arith.constant 0 : index
      %c0_212 = arith.constant 0 : index
      %216 = vector.load %arg8[%c0_211, %c0_212] : memref<1x4xf32, #tpu.memory_space<vmem>>, vector<1x4xf32>
      tpu.vector_store %arg8[%c0_211, %c0_212], %215 {strides = array<i32>} : memref<1x4xf32, #tpu.memory_space<vmem>>, vector<1x4xf32>,
      %cst_213 = arith.constant 0.000000e+00 : f32
      %217 = vector.broadcast %cst_213 : f32 to vector<18x32x4xf32>
      %c0_214 = arith.constant 0 : index
      %c0_215 = arith.constant 0 : index
      %c0_216 = arith.constant 0 : index
      %218 = vector.load %arg9[%c0_214, %c0_215, %c0_216] : memref<18x32x4xf32, #tpu.memory_space<vmem>>, vector<18x32x4xf32>
      tpu.vector_store %arg9[%c0_214, %c0_215, %c0_216], %217 {strides = array<i32>} : memref<18x32x4xf32, #tpu.memory_space<vmem>>, vector<18x32x4xf32>,
    } else {
    }
    %c0 = arith.constant 0 : index
    %c0_1 = arith.constant 0 : index
    %c0_2 = arith.constant 0 : index
    %c0_3 = arith.constant 0 : index
    %3 = vector.load %arg1[%c0, %c0_1, %c0_2, %c0_3] : memref<1x16x16x4xbf16, #tpu.memory_space<vmem>>, vector<1x16x16x4xbf16>
    %4 = vector.shape_cast %3 : vector<1x16x16x4xbf16> to vector<16x16x4xbf16>
    %5 = arith.extf %4 : vector<16x16x4xbf16> to vector<16x16x4xf32>
    %c0_4 = arith.constant 0 : index
    %c0_5 = arith.constant 0 : index
    %6 = vector.load %arg2[%c0_4, %c0_5] : memref<1x4xf32, #tpu.memory_space<vmem>>, vector<1x4xf32>
    %7 = vector.shape_cast %6 : vector<1x4xf32> to vector<1x1x4xf32>
    %8 = vector.broadcast %7 : vector<1x1x4xf32> to vector<16x16x4xf32>
    %9 = arith.mulf %5, %8 : vector<16x16x4xf32>
    %c0_6 = arith.constant 0 : index
    %c0_7 = arith.constant 0 : index
    %10 = vector.load %arg3[%c0_6, %c0_7] : memref<1x4xf32, #tpu.memory_space<vmem>>, vector<1x4xf32>
    %11 = vector.shape_cast %10 : vector<1x4xf32> to vector<1x1x4xf32>
    %12 = vector.broadcast %11 : vector<1x1x4xf32> to vector<16x16x4xf32>
    %13 = arith.addf %9, %12 : vector<16x16x4xf32>
    %cst = arith.constant 0.000000e+00 : f32
    %14 = vector.broadcast %cst : f32 to vector<16x16x4xf32>
    %15 = arith.maximumf %13, %14 : vector<16x16x4xf32>
    %c1 = arith.constant 1 : index
    %c8 = arith.constant 8 : index
    %c0_8 = arith.constant 0 : index
    %16 = vector.load %arg9[%c1, %c8, %c0_8] : memref<18x32x4xf32, #tpu.memory_space<vmem>>, vector<16x16x4xf32>
    tpu.vector_store %arg9[%c1, %c8, %c0_8], %15 {strides = array<i32>} : memref<18x32x4xf32, #tpu.memory_space<vmem>>, vector<16x16x4xf32>,
    %c0_9 = arith.constant 0 : index
    %c7 = arith.constant 7 : index
    %c0_10 = arith.constant 0 : index
    %17 = vector.load %arg9[%c0_9, %c7, %c0_10] : memref<18x32x4xf32, #tpu.memory_space<vmem>>, vector<18x16x4xf32>
    %18 = arith.truncf %17 : vector<18x16x4xf32> to vector<18x16x4xbf16>
    %c0_11 = arith.constant 0 : index
    %c0_12 = arith.constant 0 : index
    %c0_13 = arith.constant 0 : index
    %c0_14 = arith.constant 0 : index
    %19 = vector.load %arg10[%c0_11, %c0_12, %c0_13, %c0_14] : memref<3x18x16x4xbf16, #tpu.memory_space<vmem>>, vector<1x18x16x4xbf16>
    %20 = vector.shape_cast %19 : vector<1x18x16x4xbf16> to vector<18x16x4xbf16>
    %21 = vector.shape_cast %18 : vector<18x16x4xbf16> to vector<1x18x16x4xbf16>
    tpu.vector_store %arg10[%c0_11, %c0_12, %c0_13, %c0_14], %21 {strides = array<i32>} : memref<3x18x16x4xbf16, #tpu.memory_space<vmem>>, vector<1x18x16x4xbf16>,
    %c0_15 = arith.constant 0 : index
    %c8_16 = arith.constant 8 : index
    %c0_17 = arith.constant 0 : index
    %22 = vector.load %arg9[%c0_15, %c8_16, %c0_17] : memref<18x32x4xf32, #tpu.memory_space<vmem>>, vector<18x16x4xf32>
    %23 = arith.truncf %22 : vector<18x16x4xf32> to vector<18x16x4xbf16>
    %c1_18 = arith.constant 1 : index
    %c0_19 = arith.constant 0 : index
    %c0_20 = arith.constant 0 : index
    %c0_21 = arith.constant 0 : index
    %24 = vector.load %arg10[%c1_18, %c0_19, %c0_20, %c0_21] : memref<3x18x16x4xbf16, #tpu.memory_space<vmem>>, vector<1x18x16x4xbf16>
    %25 = vector.shape_cast %24 : vector<1x18x16x4xbf16> to vector<18x16x4xbf16>
    %26 = vector.shape_cast %23 : vector<18x16x4xbf16> to vector<1x18x16x4xbf16>
    tpu.vector_store %arg10[%c1_18, %c0_19, %c0_20, %c0_21], %26 {strides = array<i32>} : memref<3x18x16x4xbf16, #tpu.memory_space<vmem>>, vector<1x18x16x4xbf16>,
    %c0_22 = arith.constant 0 : index
    %c9 = arith.constant 9 : index
    %c0_23 = arith.constant 0 : index
    %27 = vector.load %arg9[%c0_22, %c9, %c0_23] : memref<18x32x4xf32, #tpu.memory_space<vmem>>, vector<18x16x4xf32>
    %28 = arith.truncf %27 : vector<18x16x4xf32> to vector<18x16x4xbf16>
    %c2 = arith.constant 2 : index
    %c0_24 = arith.constant 0 : index
    %c0_25 = arith.constant 0 : index
    %c0_26 = arith.constant 0 : index
    %29 = vector.load %arg10[%c2, %c0_24, %c0_25, %c0_26] : memref<3x18x16x4xbf16, #tpu.memory_space<vmem>>, vector<1x18x16x4xbf16>
    %30 = vector.shape_cast %29 : vector<1x18x16x4xbf16> to vector<18x16x4xbf16>
    %31 = vector.shape_cast %28 : vector<18x16x4xbf16> to vector<1x18x16x4xbf16>
    tpu.vector_store %arg10[%c2, %c0_24, %c0_25, %c0_26], %31 {strides = array<i32>} : memref<3x18x16x4xbf16, #tpu.memory_space<vmem>>, vector<1x18x16x4xbf16>,
    %c0_27 = arith.constant 0 : index
    %c0_28 = arith.constant 0 : index
    %32 = vector.load %arg5[%c0_27, %c0_28] : memref<1x4xf32, #tpu.memory_space<vmem>>, vector<1x4xf32>
    %c0_29 = arith.constant 0 : index
    %c0_30 = arith.constant 0 : index
    %c0_31 = arith.constant 0 : index
    %c0_32 = arith.constant 0 : index
    %33 = vector.load %arg10[%c0_29, %c0_30, %c0_31, %c0_32] : memref<3x18x16x4xbf16, #tpu.memory_space<vmem>>, vector<1x16x16x4xbf16>
    %34 = vector.shape_cast %33 : vector<1x16x16x4xbf16> to vector<16x16x4xbf16>
    %35 = vector.shape_cast %34 : vector<16x16x4xbf16> to vector<256x4xbf16>
    %c0_33 = arith.constant 0 : index
    %c0_34 = arith.constant 0 : index
    %c0_35 = arith.constant 0 : index
    %36 = vector.load %arg4[%c0_33, %c0_34, %c0_35] : memref<16x4x4xbf16, #tpu.memory_space<vmem>>, vector<1x4x4xbf16>
    %37 = vector.shape_cast %36 : vector<1x4x4xbf16> to vector<4x4xbf16>
    %cst_36 = arith.constant dense<0.000000e+00> : vector<256x4xf32>
    %38 = tpu.matmul %35, %37, %cst_36 {dimension_numbers = #tpu.dot_dimension_numbers<[1], [0], [0], [1], [0, 0, 1, 1], [], []>} : vector<256x4xbf16>, vector<4x4xbf16>, vector<256x4xf32> -> vector<256x4xf32>
    %c1_37 = arith.constant 1 : index
    %c0_38 = arith.constant 0 : index
    %c0_39 = arith.constant 0 : index
    %c0_40 = arith.constant 0 : index
    %39 = vector.load %arg10[%c1_37, %c0_38, %c0_39, %c0_40] : memref<3x18x16x4xbf16, #tpu.memory_space<vmem>>, vector<1x16x16x4xbf16>
    %40 = vector.shape_cast %39 : vector<1x16x16x4xbf16> to vector<16x16x4xbf16>
    %41 = vector.shape_cast %40 : vector<16x16x4xbf16> to vector<256x4xbf16>
    %c1_41 = arith.constant 1 : index
    %c0_42 = arith.constant 0 : index
    %c0_43 = arith.constant 0 : index
    %42 = vector.load %arg4[%c1_41, %c0_42, %c0_43] : memref<16x4x4xbf16, #tpu.memory_space<vmem>>, vector<1x4x4xbf16>
    %43 = vector.shape_cast %42 : vector<1x4x4xbf16> to vector<4x4xbf16>
    %cst_44 = arith.constant dense<0.000000e+00> : vector<256x4xf32>
    %44 = tpu.matmul %41, %43, %cst_44 {dimension_numbers = #tpu.dot_dimension_numbers<[1], [0], [0], [1], [0, 0, 1, 1], [], []>} : vector<256x4xbf16>, vector<4x4xbf16>, vector<256x4xf32> -> vector<256x4xf32>
    %45 = arith.addf %38, %44 : vector<256x4xf32>
    %c0_45 = arith.constant 0 : index
    %c1_46 = arith.constant 1 : index
    %c0_47 = arith.constant 0 : index
    %c0_48 = arith.constant 0 : index
    %46 = vector.load %arg10[%c0_45, %c1_46, %c0_47, %c0_48] : memref<3x18x16x4xbf16, #tpu.memory_space<vmem>>, vector<1x16x16x4xbf16>
    %47 = vector.shape_cast %46 : vector<1x16x16x4xbf16> to vector<16x16x4xbf16>
    %48 = vector.shape_cast %47 : vector<16x16x4xbf16> to vector<256x4xbf16>
    %c2_49 = arith.constant 2 : index
    %c0_50 = arith.constant 0 : index
    %c0_51 = arith.constant 0 : index
    %49 = vector.load %arg4[%c2_49, %c0_50, %c0_51] : memref<16x4x4xbf16, #tpu.memory_space<vmem>>, vector<1x4x4xbf16>
    %50 = vector.shape_cast %49 : vector<1x4x4xbf16> to vector<4x4xbf16>
    %cst_52 = arith.constant dense<0.000000e+00> : vector<256x4xf32>
    %51 = tpu.matmul %48, %50, %cst_52 {dimension_numbers = #tpu.dot_dimension_numbers<[1], [0], [0], [1], [0, 0, 1, 1], [], []>} : vector<256x4xbf16>, vector<4x4xbf16>, vector<256x4xf32> -> vector<256x4xf32>
    %52 = arith.addf %45, %51 : vector<256x4xf32>
    %c1_53 = arith.constant 1 : index
    %c1_54 = arith.constant 1 : index
    %c0_55 = arith.constant 0 : index
    %c0_56 = arith.constant 0 : index
    %53 = vector.load %arg10[%c1_53, %c1_54, %c0_55, %c0_56] : memref<3x18x16x4xbf16, #tpu.memory_space<vmem>>, vector<1x16x16x4xbf16>
    %54 = vector.shape_cast %53 : vector<1x16x16x4xbf16> to vector<16x16x4xbf16>
    %55 = vector.shape_cast %54 : vector<16x16x4xbf16> to vector<256x4xbf16>
    %c3 = arith.constant 3 : index
    %c0_57 = arith.constant 0 : index
    %c0_58 = arith.constant 0 : index
    %56 = vector.load %arg4[%c3, %c0_57, %c0_58] : memref<16x4x4xbf16, #tpu.memory_space<vmem>>, vector<1x4x4xbf16>
    %57 = vector.shape_cast %56 : vector<1x4x4xbf16> to vector<4x4xbf16>
    %cst_59 = arith.constant dense<0.000000e+00> : vector<256x4xf32>
    %58 = tpu.matmul %55, %57, %cst_59 {dimension_numbers = #tpu.dot_dimension_numbers<[1], [0], [0], [1], [0, 0, 1, 1], [], []>} : vector<256x4xbf16>, vector<4x4xbf16>, vector<256x4xf32> -> vector<256x4xf32>
    %59 = arith.addf %52, %58 : vector<256x4xf32>
    %60 = vector.broadcast %32 : vector<1x4xf32> to vector<256x4xf32>
    %61 = arith.addf %59, %60 : vector<256x4xf32>
    %62 = vector.shape_cast %61 : vector<256x4xf32> to vector<16x16x4xf32>
    %63 = arith.truncf %62 : vector<16x16x4xf32> to vector<16x16x4xbf16>
    %c0_60 = arith.constant 0 : index
    %c0_61 = arith.constant 0 : index
    %c0_62 = arith.constant 0 : index
    %c0_63 = arith.constant 0 : index
    %c0_64 = arith.constant 0 : index
    %64 = vector.load %arg6[%c0_60, %c0_61, %c0_62, %c0_63, %c0_64] : memref<1x4x16x16x4xbf16, #tpu.memory_space<vmem>>, vector<1x1x16x16x4xbf16>
    %65 = vector.shape_cast %64 : vector<1x1x16x16x4xbf16> to vector<16x16x4xbf16>
    %66 = vector.shape_cast %63 : vector<16x16x4xbf16> to vector<1x1x16x16x4xbf16>
    tpu.vector_store %arg6[%c0_60, %c0_61, %c0_62, %c0_63, %c0_64], %66 {strides = array<i32>} : memref<1x4x16x16x4xbf16, #tpu.memory_space<vmem>>, vector<1x1x16x16x4xbf16>,
    %c0_65 = arith.constant 0 : index
    %c0_66 = arith.constant 0 : index
    %67 = vector.load %arg7[%c0_65, %c0_66] : memref<1x4xf32, #tpu.memory_space<vmem>>, vector<1x4xf32>
    %cst_67 = arith.constant dense<0.000000e+00> : vector<4xf32>
    %68 = vector.multi_reduction <add>, %61, %cst_67 [0] : vector<256x4xf32> to vector<4xf32>
    %69 = vector.shape_cast %68 : vector<4xf32> to vector<1x4xf32>
    %70 = arith.addf %67, %69 : vector<1x4xf32>
    %c0_68 = arith.constant 0 : index
    %c0_69 = arith.constant 0 : index
    %71 = vector.load %arg7[%c0_68, %c0_69] : memref<1x4xf32, #tpu.memory_space<vmem>>, vector<1x4xf32>
    tpu.vector_store %arg7[%c0_68, %c0_69], %70 {strides = array<i32>} : memref<1x4xf32, #tpu.memory_space<vmem>>, vector<1x4xf32>,
    %c0_70 = arith.constant 0 : index
    %c0_71 = arith.constant 0 : index
    %72 = vector.load %arg8[%c0_70, %c0_71] : memref<1x4xf32, #tpu.memory_space<vmem>>, vector<1x4xf32>
    %73 = arith.mulf %61, %61 : vector<256x4xf32>
    %cst_72 = arith.constant dense<0.000000e+00> : vector<4xf32>
    %74 = vector.multi_reduction <add>, %73, %cst_72 [0] : vector<256x4xf32> to vector<4xf32>
    %75 = vector.shape_cast %74 : vector<4xf32> to vector<1x4xf32>
    %76 = arith.addf %72, %75 : vector<1x4xf32>
    %c0_73 = arith.constant 0 : index
    %c0_74 = arith.constant 0 : index
    %77 = vector.load %arg8[%c0_73, %c0_74] : memref<1x4xf32, #tpu.memory_space<vmem>>, vector<1x4xf32>
    tpu.vector_store %arg8[%c0_73, %c0_74], %76 {strides = array<i32>} : memref<1x4xf32, #tpu.memory_space<vmem>>, vector<1x4xf32>,
    %c1_75 = arith.constant 1 : index
    %c0_76 = arith.constant 0 : index
    %c0_77 = arith.constant 0 : index
    %c0_78 = arith.constant 0 : index
    %78 = vector.load %arg10[%c1_75, %c0_76, %c0_77, %c0_78] : memref<3x18x16x4xbf16, #tpu.memory_space<vmem>>, vector<1x16x16x4xbf16>
    %79 = vector.shape_cast %78 : vector<1x16x16x4xbf16> to vector<16x16x4xbf16>
    %80 = vector.shape_cast %79 : vector<16x16x4xbf16> to vector<256x4xbf16>
    %c4 = arith.constant 4 : index
    %c0_79 = arith.constant 0 : index
    %c0_80 = arith.constant 0 : index
    %81 = vector.load %arg4[%c4, %c0_79, %c0_80] : memref<16x4x4xbf16, #tpu.memory_space<vmem>>, vector<1x4x4xbf16>
    %82 = vector.shape_cast %81 : vector<1x4x4xbf16> to vector<4x4xbf16>
    %cst_81 = arith.constant dense<0.000000e+00> : vector<256x4xf32>
    %83 = tpu.matmul %80, %82, %cst_81 {dimension_numbers = #tpu.dot_dimension_numbers<[1], [0], [0], [1], [0, 0, 1, 1], [], []>} : vector<256x4xbf16>, vector<4x4xbf16>, vector<256x4xf32> -> vector<256x4xf32>
    %c2_82 = arith.constant 2 : index
    %c0_83 = arith.constant 0 : index
    %c0_84 = arith.constant 0 : index
    %c0_85 = arith.constant 0 : index
    %84 = vector.load %arg10[%c2_82, %c0_83, %c0_84, %c0_85] : memref<3x18x16x4xbf16, #tpu.memory_space<vmem>>, vector<1x16x16x4xbf16>
    %85 = vector.shape_cast %84 : vector<1x16x16x4xbf16> to vector<16x16x4xbf16>
    %86 = vector.shape_cast %85 : vector<16x16x4xbf16> to vector<256x4xbf16>
    %c5 = arith.constant 5 : index
    %c0_86 = arith.constant 0 : index
    %c0_87 = arith.constant 0 : index
    %87 = vector.load %arg4[%c5, %c0_86, %c0_87] : memref<16x4x4xbf16, #tpu.memory_space<vmem>>, vector<1x4x4xbf16>
    %88 = vector.shape_cast %87 : vector<1x4x4xbf16> to vector<4x4xbf16>
    %cst_88 = arith.constant dense<0.000000e+00> : vector<256x4xf32>
    %89 = tpu.matmul %86, %88, %cst_88 {dimension_numbers = #tpu.dot_dimension_numbers<[1], [0], [0], [1], [0, 0, 1, 1], [], []>} : vector<256x4xbf16>, vector<4x4xbf16>, vector<256x4xf32> -> vector<256x4xf32>
    %90 = arith.addf %83, %89 : vector<256x4xf32>
    %c1_89 = arith.constant 1 : index
    %c1_90 = arith.constant 1 : index
    %c0_91 = arith.constant 0 : index
    %c0_92 = arith.constant 0 : index
    %91 = vector.load %arg10[%c1_89, %c1_90, %c0_91, %c0_92] : memref<3x18x16x4xbf16, #tpu.memory_space<vmem>>, vector<1x16x16x4xbf16>
    %92 = vector.shape_cast %91 : vector<1x16x16x4xbf16> to vector<16x16x4xbf16>
    %93 = vector.shape_cast %92 : vector<16x16x4xbf16> to vector<256x4xbf16>
    %c6 = arith.constant 6 : index
    %c0_93 = arith.constant 0 : index
    %c0_94 = arith.constant 0 : index
    %94 = vector.load %arg4[%c6, %c0_93, %c0_94] : memref<16x4x4xbf16, #tpu.memory_space<vmem>>, vector<1x4x4xbf16>
    %95 = vector.shape_cast %94 : vector<1x4x4xbf16> to vector<4x4xbf16>
    %cst_95 = arith.constant dense<0.000000e+00> : vector<256x4xf32>
    %96 = tpu.matmul %93, %95, %cst_95 {dimension_numbers = #tpu.dot_dimension_numbers<[1], [0], [0], [1], [0, 0, 1, 1], [], []>} : vector<256x4xbf16>, vector<4x4xbf16>, vector<256x4xf32> -> vector<256x4xf32>
    %97 = arith.addf %90, %96 : vector<256x4xf32>
    %c2_96 = arith.constant 2 : index
    %c1_97 = arith.constant 1 : index
    %c0_98 = arith.constant 0 : index
    %c0_99 = arith.constant 0 : index
    %98 = vector.load %arg10[%c2_96, %c1_97, %c0_98, %c0_99] : memref<3x18x16x4xbf16, #tpu.memory_space<vmem>>, vector<1x16x16x4xbf16>
    %99 = vector.shape_cast %98 : vector<1x16x16x4xbf16> to vector<16x16x4xbf16>
    %100 = vector.shape_cast %99 : vector<16x16x4xbf16> to vector<256x4xbf16>
    %c7_100 = arith.constant 7 : index
    %c0_101 = arith.constant 0 : index
    %c0_102 = arith.constant 0 : index
    %101 = vector.load %arg4[%c7_100, %c0_101, %c0_102] : memref<16x4x4xbf16, #tpu.memory_space<vmem>>, vector<1x4x4xbf16>
    %102 = vector.shape_cast %101 : vector<1x4x4xbf16> to vector<4x4xbf16>
    %cst_103 = arith.constant dense<0.000000e+00> : vector<256x4xf32>
    %103 = tpu.matmul %100, %102, %cst_103 {dimension_numbers = #tpu.dot_dimension_numbers<[1], [0], [0], [1], [0, 0, 1, 1], [], []>} : vector<256x4xbf16>, vector<4x4xbf16>, vector<256x4xf32> -> vector<256x4xf32>
    %104 = arith.addf %97, %103 : vector<256x4xf32>
    %105 = vector.broadcast %32 : vector<1x4xf32> to vector<256x4xf32>
    %106 = arith.addf %104, %105 : vector<256x4xf32>
    %107 = vector.shape_cast %106 : vector<256x4xf32> to vector<16x16x4xf32>
    %108 = arith.truncf %107 : vector<16x16x4xf32> to vector<16x16x4xbf16>
    %c0_104 = arith.constant 0 : index
    %c1_105 = arith.constant 1 : index
    %c0_106 = arith.constant 0 : index
    %c0_107 = arith.constant 0 : index
    %c0_108 = arith.constant 0 : index
    %109 = vector.load %arg6[%c0_104, %c1_105, %c0_106, %c0_107, %c0_108] : memref<1x4x16x16x4xbf16, #tpu.memory_space<vmem>>, vector<1x1x16x16x4xbf16>
    %110 = vector.shape_cast %109 : vector<1x1x16x16x4xbf16> to vector<16x16x4xbf16>
    %111 = vector.shape_cast %108 : vector<16x16x4xbf16> to vector<1x1x16x16x4xbf16>
    tpu.vector_store %arg6[%c0_104, %c1_105, %c0_106, %c0_107, %c0_108], %111 {strides = array<i32>} : memref<1x4x16x16x4xbf16, #tpu.memory_space<vmem>>, vector<1x1x16x16x4xbf16>,
    %c0_109 = arith.constant 0 : index
    %c0_110 = arith.constant 0 : index
    %112 = vector.load %arg7[%c0_109, %c0_110] : memref<1x4xf32, #tpu.memory_space<vmem>>, vector<1x4xf32>
    %cst_111 = arith.constant dense<0.000000e+00> : vector<4xf32>
    %113 = vector.multi_reduction <add>, %106, %cst_111 [0] : vector<256x4xf32> to vector<4xf32>
    %114 = vector.shape_cast %113 : vector<4xf32> to vector<1x4xf32>
    %115 = arith.addf %112, %114 : vector<1x4xf32>
    %c0_112 = arith.constant 0 : index
    %c0_113 = arith.constant 0 : index
    %116 = vector.load %arg7[%c0_112, %c0_113] : memref<1x4xf32, #tpu.memory_space<vmem>>, vector<1x4xf32>
    tpu.vector_store %arg7[%c0_112, %c0_113], %115 {strides = array<i32>} : memref<1x4xf32, #tpu.memory_space<vmem>>, vector<1x4xf32>,
    %c0_114 = arith.constant 0 : index
    %c0_115 = arith.constant 0 : index
    %117 = vector.load %arg8[%c0_114, %c0_115] : memref<1x4xf32, #tpu.memory_space<vmem>>, vector<1x4xf32>
    %118 = arith.mulf %106, %106 : vector<256x4xf32>
    %cst_116 = arith.constant dense<0.000000e+00> : vector<4xf32>
    %119 = vector.multi_reduction <add>, %118, %cst_116 [0] : vector<256x4xf32> to vector<4xf32>
    %120 = vector.shape_cast %119 : vector<4xf32> to vector<1x4xf32>
    %121 = arith.addf %117, %120 : vector<1x4xf32>
    %c0_117 = arith.constant 0 : index
    %c0_118 = arith.constant 0 : index
    %122 = vector.load %arg8[%c0_117, %c0_118] : memref<1x4xf32, #tpu.memory_space<vmem>>, vector<1x4xf32>
    tpu.vector_store %arg8[%c0_117, %c0_118], %121 {strides = array<i32>} : memref<1x4xf32, #tpu.memory_space<vmem>>, vector<1x4xf32>,
    %c0_119 = arith.constant 0 : index
    %c1_120 = arith.constant 1 : index
    %c0_121 = arith.constant 0 : index
    %c0_122 = arith.constant 0 : index
    %123 = vector.load %arg10[%c0_119, %c1_120, %c0_121, %c0_122] : memref<3x18x16x4xbf16, #tpu.memory_space<vmem>>, vector<1x16x16x4xbf16>
    %124 = vector.shape_cast %123 : vector<1x16x16x4xbf16> to vector<16x16x4xbf16>
    %125 = vector.shape_cast %124 : vector<16x16x4xbf16> to vector<256x4xbf16>
    %c8_123 = arith.constant 8 : index
    %c0_124 = arith.constant 0 : index
    %c0_125 = arith.constant 0 : index
    %126 = vector.load %arg4[%c8_123, %c0_124, %c0_125] : memref<16x4x4xbf16, #tpu.memory_space<vmem>>, vector<1x4x4xbf16>
    %127 = vector.shape_cast %126 : vector<1x4x4xbf16> to vector<4x4xbf16>
    %cst_126 = arith.constant dense<0.000000e+00> : vector<256x4xf32>
    %128 = tpu.matmul %125, %127, %cst_126 {dimension_numbers = #tpu.dot_dimension_numbers<[1], [0], [0], [1], [0, 0, 1, 1], [], []>} : vector<256x4xbf16>, vector<4x4xbf16>, vector<256x4xf32> -> vector<256x4xf32>
    %c1_127 = arith.constant 1 : index
    %c1_128 = arith.constant 1 : index
    %c0_129 = arith.constant 0 : index
    %c0_130 = arith.constant 0 : index
    %129 = vector.load %arg10[%c1_127, %c1_128, %c0_129, %c0_130] : memref<3x18x16x4xbf16, #tpu.memory_space<vmem>>, vector<1x16x16x4xbf16>
    %130 = vector.shape_cast %129 : vector<1x16x16x4xbf16> to vector<16x16x4xbf16>
    %131 = vector.shape_cast %130 : vector<16x16x4xbf16> to vector<256x4xbf16>
    %c9_131 = arith.constant 9 : index
    %c0_132 = arith.constant 0 : index
    %c0_133 = arith.constant 0 : index
    %132 = vector.load %arg4[%c9_131, %c0_132, %c0_133] : memref<16x4x4xbf16, #tpu.memory_space<vmem>>, vector<1x4x4xbf16>
    %133 = vector.shape_cast %132 : vector<1x4x4xbf16> to vector<4x4xbf16>
    %cst_134 = arith.constant dense<0.000000e+00> : vector<256x4xf32>
    %134 = tpu.matmul %131, %133, %cst_134 {dimension_numbers = #tpu.dot_dimension_numbers<[1], [0], [0], [1], [0, 0, 1, 1], [], []>} : vector<256x4xbf16>, vector<4x4xbf16>, vector<256x4xf32> -> vector<256x4xf32>
    %135 = arith.addf %128, %134 : vector<256x4xf32>
    %c0_135 = arith.constant 0 : index
    %c2_136 = arith.constant 2 : index
    %c0_137 = arith.constant 0 : index
    %c0_138 = arith.constant 0 : index
    %136 = vector.load %arg10[%c0_135, %c2_136, %c0_137, %c0_138] : memref<3x18x16x4xbf16, #tpu.memory_space<vmem>>, vector<1x16x16x4xbf16>
    %137 = vector.shape_cast %136 : vector<1x16x16x4xbf16> to vector<16x16x4xbf16>
    %138 = vector.shape_cast %137 : vector<16x16x4xbf16> to vector<256x4xbf16>
    %c10 = arith.constant 10 : index
    %c0_139 = arith.constant 0 : index
    %c0_140 = arith.constant 0 : index
    %139 = vector.load %arg4[%c10, %c0_139, %c0_140] : memref<16x4x4xbf16, #tpu.memory_space<vmem>>, vector<1x4x4xbf16>
    %140 = vector.shape_cast %139 : vector<1x4x4xbf16> to vector<4x4xbf16>
    %cst_141 = arith.constant dense<0.000000e+00> : vector<256x4xf32>
    %141 = tpu.matmul %138, %140, %cst_141 {dimension_numbers = #tpu.dot_dimension_numbers<[1], [0], [0], [1], [0, 0, 1, 1], [], []>} : vector<256x4xbf16>, vector<4x4xbf16>, vector<256x4xf32> -> vector<256x4xf32>
    %142 = arith.addf %135, %141 : vector<256x4xf32>
    %c1_142 = arith.constant 1 : index
    %c2_143 = arith.constant 2 : index
    %c0_144 = arith.constant 0 : index
    %c0_145 = arith.constant 0 : index
    %143 = vector.load %arg10[%c1_142, %c2_143, %c0_144, %c0_145] : memref<3x18x16x4xbf16, #tpu.memory_space<vmem>>, vector<1x16x16x4xbf16>
    %144 = vector.shape_cast %143 : vector<1x16x16x4xbf16> to vector<16x16x4xbf16>
    %145 = vector.shape_cast %144 : vector<16x16x4xbf16> to vector<256x4xbf16>
    %c11 = arith.constant 11 : index
    %c0_146 = arith.constant 0 : index
    %c0_147 = arith.constant 0 : index
    %146 = vector.load %arg4[%c11, %c0_146, %c0_147] : memref<16x4x4xbf16, #tpu.memory_space<vmem>>, vector<1x4x4xbf16>
    %147 = vector.shape_cast %146 : vector<1x4x4xbf16> to vector<4x4xbf16>
    %cst_148 = arith.constant dense<0.000000e+00> : vector<256x4xf32>
    %148 = tpu.matmul %145, %147, %cst_148 {dimension_numbers = #tpu.dot_dimension_numbers<[1], [0], [0], [1], [0, 0, 1, 1], [], []>} : vector<256x4xbf16>, vector<4x4xbf16>, vector<256x4xf32> -> vector<256x4xf32>
    %149 = arith.addf %142, %148 : vector<256x4xf32>
    %150 = vector.broadcast %32 : vector<1x4xf32> to vector<256x4xf32>
    %151 = arith.addf %149, %150 : vector<256x4xf32>
    %152 = vector.shape_cast %151 : vector<256x4xf32> to vector<16x16x4xf32>
    %153 = arith.truncf %152 : vector<16x16x4xf32> to vector<16x16x4xbf16>
    %c0_149 = arith.constant 0 : index
    %c2_150 = arith.constant 2 : index
    %c0_151 = arith.constant 0 : index
    %c0_152 = arith.constant 0 : index
    %c0_153 = arith.constant 0 : index
    %154 = vector.load %arg6[%c0_149, %c2_150, %c0_151, %c0_152, %c0_153] : memref<1x4x16x16x4xbf16, #tpu.memory_space<vmem>>, vector<1x1x16x16x4xbf16>
    %155 = vector.shape_cast %154 : vector<1x1x16x16x4xbf16> to vector<16x16x4xbf16>
    %156 = vector.shape_cast %153 : vector<16x16x4xbf16> to vector<1x1x16x16x4xbf16>
    tpu.vector_store %arg6[%c0_149, %c2_150, %c0_151, %c0_152, %c0_153], %156 {strides = array<i32>} : memref<1x4x16x16x4xbf16, #tpu.memory_space<vmem>>, vector<1x1x16x16x4xbf16>,
    %c0_154 = arith.constant 0 : index
    %c0_155 = arith.constant 0 : index
    %157 = vector.load %arg7[%c0_154, %c0_155] : memref<1x4xf32, #tpu.memory_space<vmem>>, vector<1x4xf32>
    %cst_156 = arith.constant dense<0.000000e+00> : vector<4xf32>
    %158 = vector.multi_reduction <add>, %151, %cst_156 [0] : vector<256x4xf32> to vector<4xf32>
    %159 = vector.shape_cast %158 : vector<4xf32> to vector<1x4xf32>
    %160 = arith.addf %157, %159 : vector<1x4xf32>
    %c0_157 = arith.constant 0 : index
    %c0_158 = arith.constant 0 : index
    %161 = vector.load %arg7[%c0_157, %c0_158] : memref<1x4xf32, #tpu.memory_space<vmem>>, vector<1x4xf32>
    tpu.vector_store %arg7[%c0_157, %c0_158], %160 {strides = array<i32>} : memref<1x4xf32, #tpu.memory_space<vmem>>, vector<1x4xf32>,
    %c0_159 = arith.constant 0 : index
    %c0_160 = arith.constant 0 : index
    %162 = vector.load %arg8[%c0_159, %c0_160] : memref<1x4xf32, #tpu.memory_space<vmem>>, vector<1x4xf32>
    %163 = arith.mulf %151, %151 : vector<256x4xf32>
    %cst_161 = arith.constant dense<0.000000e+00> : vector<4xf32>
    %164 = vector.multi_reduction <add>, %163, %cst_161 [0] : vector<256x4xf32> to vector<4xf32>
    %165 = vector.shape_cast %164 : vector<4xf32> to vector<1x4xf32>
    %166 = arith.addf %162, %165 : vector<1x4xf32>
    %c0_162 = arith.constant 0 : index
    %c0_163 = arith.constant 0 : index
    %167 = vector.load %arg8[%c0_162, %c0_163] : memref<1x4xf32, #tpu.memory_space<vmem>>, vector<1x4xf32>
    tpu.vector_store %arg8[%c0_162, %c0_163], %166 {strides = array<i32>} : memref<1x4xf32, #tpu.memory_space<vmem>>, vector<1x4xf32>,
    %c1_164 = arith.constant 1 : index
    %c1_165 = arith.constant 1 : index
    %c0_166 = arith.constant 0 : index
    %c0_167 = arith.constant 0 : index
    %168 = vector.load %arg10[%c1_164, %c1_165, %c0_166, %c0_167] : memref<3x18x16x4xbf16, #tpu.memory_space<vmem>>, vector<1x16x16x4xbf16>
    %169 = vector.shape_cast %168 : vector<1x16x16x4xbf16> to vector<16x16x4xbf16>
    %170 = vector.shape_cast %169 : vector<16x16x4xbf16> to vector<256x4xbf16>
    %c12 = arith.constant 12 : index
    %c0_168 = arith.constant 0 : index
    %c0_169 = arith.constant 0 : index
    %171 = vector.load %arg4[%c12, %c0_168, %c0_169] : memref<16x4x4xbf16, #tpu.memory_space<vmem>>, vector<1x4x4xbf16>
    %172 = vector.shape_cast %171 : vector<1x4x4xbf16> to vector<4x4xbf16>
    %cst_170 = arith.constant dense<0.000000e+00> : vector<256x4xf32>
    %173 = tpu.matmul %170, %172, %cst_170 {dimension_numbers = #tpu.dot_dimension_numbers<[1], [0], [0], [1], [0, 0, 1, 1], [], []>} : vector<256x4xbf16>, vector<4x4xbf16>, vector<256x4xf32> -> vector<256x4xf32>
    %c2_171 = arith.constant 2 : index
    %c1_172 = arith.constant 1 : index
    %c0_173 = arith.constant 0 : index
    %c0_174 = arith.constant 0 : index
    %174 = vector.load %arg10[%c2_171, %c1_172, %c0_173, %c0_174] : memref<3x18x16x4xbf16, #tpu.memory_space<vmem>>, vector<1x16x16x4xbf16>
    %175 = vector.shape_cast %174 : vector<1x16x16x4xbf16> to vector<16x16x4xbf16>
    %176 = vector.shape_cast %175 : vector<16x16x4xbf16> to vector<256x4xbf16>
    %c13 = arith.constant 13 : index
    %c0_175 = arith.constant 0 : index
    %c0_176 = arith.constant 0 : index
    %177 = vector.load %arg4[%c13, %c0_175, %c0_176] : memref<16x4x4xbf16, #tpu.memory_space<vmem>>, vector<1x4x4xbf16>
    %178 = vector.shape_cast %177 : vector<1x4x4xbf16> to vector<4x4xbf16>
    %cst_177 = arith.constant dense<0.000000e+00> : vector<256x4xf32>
    %179 = tpu.matmul %176, %178, %cst_177 {dimension_numbers = #tpu.dot_dimension_numbers<[1], [0], [0], [1], [0, 0, 1, 1], [], []>} : vector<256x4xbf16>, vector<4x4xbf16>, vector<256x4xf32> -> vector<256x4xf32>
    %180 = arith.addf %173, %179 : vector<256x4xf32>
    %c1_178 = arith.constant 1 : index
    %c2_179 = arith.constant 2 : index
    %c0_180 = arith.constant 0 : index
    %c0_181 = arith.constant 0 : index
    %181 = vector.load %arg10[%c1_178, %c2_179, %c0_180, %c0_181] : memref<3x18x16x4xbf16, #tpu.memory_space<vmem>>, vector<1x16x16x4xbf16>
    %182 = vector.shape_cast %181 : vector<1x16x16x4xbf16> to vector<16x16x4xbf16>
    %183 = vector.shape_cast %182 : vector<16x16x4xbf16> to vector<256x4xbf16>
    %c14 = arith.constant 14 : index
    %c0_182 = arith.constant 0 : index
    %c0_183 = arith.constant 0 : index
    %184 = vector.load %arg4[%c14, %c0_182, %c0_183] : memref<16x4x4xbf16, #tpu.memory_space<vmem>>, vector<1x4x4xbf16>
    %185 = vector.shape_cast %184 : vector<1x4x4xbf16> to vector<4x4xbf16>
    %cst_184 = arith.constant dense<0.000000e+00> : vector<256x4xf32>
    %186 = tpu.matmul %183, %185, %cst_184 {dimension_numbers = #tpu.dot_dimension_numbers<[1], [0], [0], [1], [0, 0, 1, 1], [], []>} : vector<256x4xbf16>, vector<4x4xbf16>, vector<256x4xf32> -> vector<256x4xf32>
    %187 = arith.addf %180, %186 : vector<256x4xf32>
    %c2_185 = arith.constant 2 : index
    %c2_186 = arith.constant 2 : index
    %c0_187 = arith.constant 0 : index
    %c0_188 = arith.constant 0 : index
    %188 = vector.load %arg10[%c2_185, %c2_186, %c0_187, %c0_188] : memref<3x18x16x4xbf16, #tpu.memory_space<vmem>>, vector<1x16x16x4xbf16>
    %189 = vector.shape_cast %188 : vector<1x16x16x4xbf16> to vector<16x16x4xbf16>
    %190 = vector.shape_cast %189 : vector<16x16x4xbf16> to vector<256x4xbf16>
    %c15 = arith.constant 15 : index
    %c0_189 = arith.constant 0 : index
    %c0_190 = arith.constant 0 : index
    %191 = vector.load %arg4[%c15, %c0_189, %c0_190] : memref<16x4x4xbf16, #tpu.memory_space<vmem>>, vector<1x4x4xbf16>
    %192 = vector.shape_cast %191 : vector<1x4x4xbf16> to vector<4x4xbf16>
    %cst_191 = arith.constant dense<0.000000e+00> : vector<256x4xf32>
    %193 = tpu.matmul %190, %192, %cst_191 {dimension_numbers = #tpu.dot_dimension_numbers<[1], [0], [0], [1], [0, 0, 1, 1], [], []>} : vector<256x4xbf16>, vector<4x4xbf16>, vector<256x4xf32> -> vector<256x4xf32>
    %194 = arith.addf %187, %193 : vector<256x4xf32>
    %195 = vector.broadcast %32 : vector<1x4xf32> to vector<256x4xf32>
    %196 = arith.addf %194, %195 : vector<256x4xf32>
    %197 = vector.shape_cast %196 : vector<256x4xf32> to vector<16x16x4xf32>
    %198 = arith.truncf %197 : vector<16x16x4xf32> to vector<16x16x4xbf16>
    %c0_192 = arith.constant 0 : index
    %c3_193 = arith.constant 3 : index
    %c0_194 = arith.constant 0 : index
    %c0_195 = arith.constant 0 : index
    %c0_196 = arith.constant 0 : index
    %199 = vector.load %arg6[%c0_192, %c3_193, %c0_194, %c0_195, %c0_196] : memref<1x4x16x16x4xbf16, #tpu.memory_space<vmem>>, vector<1x1x16x16x4xbf16>
    %200 = vector.shape_cast %199 : vector<1x1x16x16x4xbf16> to vector<16x16x4xbf16>
    %201 = vector.shape_cast %198 : vector<16x16x4xbf16> to vector<1x1x16x16x4xbf16>
    tpu.vector_store %arg6[%c0_192, %c3_193, %c0_194, %c0_195, %c0_196], %201 {strides = array<i32>} : memref<1x4x16x16x4xbf16, #tpu.memory_space<vmem>>, vector<1x1x16x16x4xbf16>,
    %c0_197 = arith.constant 0 : index
    %c0_198 = arith.constant 0 : index
    %202 = vector.load %arg7[%c0_197, %c0_198] : memref<1x4xf32, #tpu.memory_space<vmem>>, vector<1x4xf32>
    %cst_199 = arith.constant dense<0.000000e+00> : vector<4xf32>
    %203 = vector.multi_reduction <add>, %196, %cst_199 [0] : vector<256x4xf32> to vector<4xf32>
    %204 = vector.shape_cast %203 : vector<4xf32> to vector<1x4xf32>
    %205 = arith.addf %202, %204 : vector<1x4xf32>
    %c0_200 = arith.constant 0 : index
    %c0_201 = arith.constant 0 : index
    %206 = vector.load %arg7[%c0_200, %c0_201] : memref<1x4xf32, #tpu.memory_space<vmem>>, vector<1x4xf32>
    tpu.vector_store %arg7[%c0_200, %c0_201], %205 {strides = array<i32>} : memref<1x4xf32, #tpu.memory_space<vmem>>, vector<1x4xf32>,
    %c0_202 = arith.constant 0 : index
    %c0_203 = arith.constant 0 : index
    %207 = vector.load %arg8[%c0_202, %c0_203] : memref<1x4xf32, #tpu.memory_space<vmem>>, vector<1x4xf32>
    %208 = arith.mulf %196, %196 : vector<256x4xf32>
    %cst_204 = arith.constant dense<0.000000e+00> : vector<4xf32>
    %209 = vector.multi_reduction <add>, %208, %cst_204 [0] : vector<256x4xf32> to vector<4xf32>
    %210 = vector.shape_cast %209 : vector<4xf32> to vector<1x4xf32>
    %211 = arith.addf %207, %210 : vector<1x4xf32>
    %c0_205 = arith.constant 0 : index
    %c0_206 = arith.constant 0 : index
    %212 = vector.load %arg8[%c0_205, %c0_206] : memref<1x4xf32, #tpu.memory_space<vmem>>, vector<1x4xf32>
    tpu.vector_store %arg8[%c0_205, %c0_206], %211 {strides = array<i32>} : memref<1x4xf32, #tpu.memory_space<vmem>>, vector<1x4xf32>,
    return
  }
  func.func @transform_0(%arg0: i32) -> (i32, i32, i32, i32) {
    %c0_i32 = arith.constant 0 : i32
    %c0_i32_0 = arith.constant 0 : i32
    %c0_i32_1 = arith.constant 0 : i32
    %c0_i32_2 = arith.constant 0 : i32
    return %arg0, %c0_i32, %c0_i32_0, %c0_i32_1 : i32, i32, i32, i32
  }
  func.func @transform_1(%arg0: i32) -> (i32, i32) {
    %c0_i32 = arith.constant 0 : i32
    %c0_i32_0 = arith.constant 0 : i32
    %c0_i32_1 = arith.constant 0 : i32
    return %c0_i32, %c0_i32_0 : i32, i32
  }
  func.func @transform_2(%arg0: i32) -> (i32, i32) {
    %c0_i32 = arith.constant 0 : i32
    %c0_i32_0 = arith.constant 0 : i32
    %c0_i32_1 = arith.constant 0 : i32
    return %c0_i32, %c0_i32_0 : i32, i32
  }
  func.func @transform_3(%arg0: i32) -> (i32, i32, i32) {
    %c0_i32 = arith.constant 0 : i32
    %c0_i32_0 = arith.constant 0 : i32
    %c0_i32_1 = arith.constant 0 : i32
    %c0_i32_2 = arith.constant 0 : i32
    return %c0_i32, %c0_i32_0, %c0_i32_1 : i32, i32, i32
  }
  func.func @transform_4(%arg0: i32) -> (i32, i32) {
    %c0_i32 = arith.constant 0 : i32
    %c0_i32_0 = arith.constant 0 : i32
    %c0_i32_1 = arith.constant 0 : i32
    return %c0_i32, %c0_i32_0 : i32, i32
  }
  func.func @transform_5(%arg0: i32) -> (i32, i32, i32, i32, i32) {
    %c0_i32 = arith.constant 0 : i32
    %c0_i32_0 = arith.constant 0 : i32
    %c0_i32_1 = arith.constant 0 : i32
    %c0_i32_2 = arith.constant 0 : i32
    %c0_i32_3 = arith.constant 0 : i32
    return %arg0, %c0_i32, %c0_i32_0, %c0_i32_1, %c0_i32_2 : i32, i32, i32, i32, i32
  }
  func.func @transform_6(%arg0: i32) -> (i32, i32) {
    %c0_i32 = arith.constant 0 : i32
    %c0_i32_0 = arith.constant 0 : i32
    %c0_i32_1 = arith.constant 0 : i32
    return %c0_i32, %c0_i32_0 : i32, i32
  }
  func.func @transform_7(%arg0: i32) -> (i32, i32) {
    %c0_i32 = arith.constant 0 : i32
    %c0_i32_0 = arith.constant 0 : i32
    %c0_i32_1 = arith.constant 0 : i32
    return %c0_i32, %c0_i32_0 : i32, i32
  }
}

module attributes {stable_mosaic.version = 11 : i64} {
  func.func @_matmul_stats_kernel(%arg0: i32, %arg1: memref<512x16xbf16, #tpu.memory_space<vmem>>, %arg2: memref<16x4xbf16, #tpu.memory_space<vmem>>, %arg3: memref<1x4xf32, #tpu.memory_space<vmem>>, %arg4: memref<512x4xbf16, #tpu.memory_space<vmem>>, %arg5: memref<1x4xf32, #tpu.memory_space<vmem>>, %arg6: memref<1x4xf32, #tpu.memory_space<vmem>>) attributes {dimension_semantics = [#tpu.dimension_semantics<arbitrary>], iteration_bounds = array<i64: 1>, scalar_prefetch = 0 : i64, scratch_operands = 0 : i64, tpu.core_type = #tpu.core_type<tc>, window_params = [{transform_indices = @transform_0, window_bounds = array<i64: 512, 16>}, {pipeline_mode = #tpu.pipeline_mode<synchronous>, transform_indices = @transform_1, window_bounds = array<i64: 16, 4>}, {pipeline_mode = #tpu.pipeline_mode<synchronous>, transform_indices = @transform_2, window_bounds = array<i64: 1, 4>}, {transform_indices = @transform_3, window_bounds = array<i64: 512, 4>}, {pipeline_mode = #tpu.pipeline_mode<synchronous>, transform_indices = @transform_4, window_bounds = array<i64: 1, 4>}, {pipeline_mode = #tpu.pipeline_mode<synchronous>, transform_indices = @transform_5, window_bounds = array<i64: 1, 4>}]} {
    %c0_i32 = arith.constant 0 : i32
    %0 = arith.cmpi eq, %arg0, %c0_i32 : i32
    %1 = arith.extui %0 : i1 to i32
    %c0_i32_0 = arith.constant 0 : i32
    %2 = arith.cmpi ne, %1, %c0_i32_0 : i32
    scf.if %2 {
      %cst_20 = arith.constant 0.000000e+00 : f32
      %32 = vector.broadcast %cst_20 : f32 to vector<1x4xf32>
      %c0_21 = arith.constant 0 : index
      %c0_22 = arith.constant 0 : index
      %33 = vector.load %arg5[%c0_21, %c0_22] : memref<1x4xf32, #tpu.memory_space<vmem>>, vector<1x4xf32>
      tpu.vector_store %arg5[%c0_21, %c0_22], %32 {strides = array<i32>} : memref<1x4xf32, #tpu.memory_space<vmem>>, vector<1x4xf32>,
      %cst_23 = arith.constant 0.000000e+00 : f32
      %34 = vector.broadcast %cst_23 : f32 to vector<1x4xf32>
      %c0_24 = arith.constant 0 : index
      %c0_25 = arith.constant 0 : index
      %35 = vector.load %arg6[%c0_24, %c0_25] : memref<1x4xf32, #tpu.memory_space<vmem>>, vector<1x4xf32>
      tpu.vector_store %arg6[%c0_24, %c0_25], %34 {strides = array<i32>} : memref<1x4xf32, #tpu.memory_space<vmem>>, vector<1x4xf32>,
    } else {
    }
    %c0 = arith.constant 0 : index
    %c0_1 = arith.constant 0 : index
    %3 = vector.load %arg1[%c0, %c0_1] : memref<512x16xbf16, #tpu.memory_space<vmem>>, vector<512x16xbf16>
    %c0_2 = arith.constant 0 : index
    %c0_3 = arith.constant 0 : index
    %4 = vector.load %arg2[%c0_2, %c0_3] : memref<16x4xbf16, #tpu.memory_space<vmem>>, vector<16x4xbf16>
    %cst = arith.constant dense<0.000000e+00> : vector<512x4xf32>
    %5 = tpu.matmul %3, %4, %cst {dimension_numbers = #tpu.dot_dimension_numbers<[1], [0], [0], [1], [0, 0, 1, 1], [], []>} : vector<512x16xbf16>, vector<16x4xbf16>, vector<512x4xf32> -> vector<512x4xf32>
    %c0_4 = arith.constant 0 : index
    %c0_5 = arith.constant 0 : index
    %6 = vector.load %arg3[%c0_4, %c0_5] : memref<1x4xf32, #tpu.memory_space<vmem>>, vector<1x4xf32>
    %7 = vector.broadcast %6 : vector<1x4xf32> to vector<512x4xf32>
    %8 = arith.addf %5, %7 : vector<512x4xf32>
    %9 = arith.truncf %8 : vector<512x4xf32> to vector<512x4xbf16>
    %c0_6 = arith.constant 0 : index
    %c0_7 = arith.constant 0 : index
    %10 = vector.load %arg4[%c0_6, %c0_7] : memref<512x4xbf16, #tpu.memory_space<vmem>>, vector<512x4xbf16>
    tpu.vector_store %arg4[%c0_6, %c0_7], %9 {strides = array<i32>} : memref<512x4xbf16, #tpu.memory_space<vmem>>, vector<512x4xbf16>,
    %c512_i32 = arith.constant 512 : i32
    %11 = arith.muli %arg0, %c512_i32 : i32
    %12 = tpu.iota {dimensions = array<i32: 0>} : vector<512x1xi32>
    %13 = vector.broadcast %11 : i32 to vector<512x1xi32>
    %14 = arith.addi %13, %12 : vector<512x1xi32>
    %c512_i32_8 = arith.constant 512 : i32
    %15 = vector.broadcast %c512_i32_8 : i32 to vector<512x1xi32>
    %16 = arith.cmpi slt, %14, %15 : vector<512x1xi32>
    %cst_9 = arith.constant 0.000000e+00 : f32
    %17 = vector.shape_cast %16 : vector<512x1xi1> to vector<512x1xi1>
    %18 = vector.broadcast %17 : vector<512x1xi1> to vector<512x4xi1>
    %19 = vector.broadcast %cst_9 : f32 to vector<512x4xf32>
    %20 = arith.select %18, %8, %19 : vector<512x4xi1>, vector<512x4xf32>
    %c0_10 = arith.constant 0 : index
    %c0_11 = arith.constant 0 : index
    %21 = vector.load %arg5[%c0_10, %c0_11] : memref<1x4xf32, #tpu.memory_space<vmem>>, vector<1x4xf32>
    %cst_12 = arith.constant dense<0.000000e+00> : vector<4xf32>
    %22 = vector.multi_reduction <add>, %20, %cst_12 [0] : vector<512x4xf32> to vector<4xf32>
    %23 = vector.shape_cast %22 : vector<4xf32> to vector<1x4xf32>
    %24 = arith.addf %21, %23 : vector<1x4xf32>
    %c0_13 = arith.constant 0 : index
    %c0_14 = arith.constant 0 : index
    %25 = vector.load %arg5[%c0_13, %c0_14] : memref<1x4xf32, #tpu.memory_space<vmem>>, vector<1x4xf32>
    tpu.vector_store %arg5[%c0_13, %c0_14], %24 {strides = array<i32>} : memref<1x4xf32, #tpu.memory_space<vmem>>, vector<1x4xf32>,
    %c0_15 = arith.constant 0 : index
    %c0_16 = arith.constant 0 : index
    %26 = vector.load %arg6[%c0_15, %c0_16] : memref<1x4xf32, #tpu.memory_space<vmem>>, vector<1x4xf32>
    %27 = arith.mulf %20, %20 : vector<512x4xf32>
    %cst_17 = arith.constant dense<0.000000e+00> : vector<4xf32>
    %28 = vector.multi_reduction <add>, %27, %cst_17 [0] : vector<512x4xf32> to vector<4xf32>
    %29 = vector.shape_cast %28 : vector<4xf32> to vector<1x4xf32>
    %30 = arith.addf %26, %29 : vector<1x4xf32>
    %c0_18 = arith.constant 0 : index
    %c0_19 = arith.constant 0 : index
    %31 = vector.load %arg6[%c0_18, %c0_19] : memref<1x4xf32, #tpu.memory_space<vmem>>, vector<1x4xf32>
    tpu.vector_store %arg6[%c0_18, %c0_19], %30 {strides = array<i32>} : memref<1x4xf32, #tpu.memory_space<vmem>>, vector<1x4xf32>,
    return
  }
  func.func @transform_0(%arg0: i32) -> (i32, i32) {
    %c0_i32 = arith.constant 0 : i32
    %c0_i32_0 = arith.constant 0 : i32
    return %arg0, %c0_i32 : i32, i32
  }
  func.func @transform_1(%arg0: i32) -> (i32, i32) {
    %c0_i32 = arith.constant 0 : i32
    %c0_i32_0 = arith.constant 0 : i32
    %c0_i32_1 = arith.constant 0 : i32
    return %c0_i32, %c0_i32_0 : i32, i32
  }
  func.func @transform_2(%arg0: i32) -> (i32, i32) {
    %c0_i32 = arith.constant 0 : i32
    %c0_i32_0 = arith.constant 0 : i32
    %c0_i32_1 = arith.constant 0 : i32
    return %c0_i32, %c0_i32_0 : i32, i32
  }
  func.func @transform_3(%arg0: i32) -> (i32, i32) {
    %c0_i32 = arith.constant 0 : i32
    %c0_i32_0 = arith.constant 0 : i32
    return %arg0, %c0_i32 : i32, i32
  }
  func.func @transform_4(%arg0: i32) -> (i32, i32) {
    %c0_i32 = arith.constant 0 : i32
    %c0_i32_0 = arith.constant 0 : i32
    %c0_i32_1 = arith.constant 0 : i32
    return %c0_i32, %c0_i32_0 : i32, i32
  }
  func.func @transform_5(%arg0: i32) -> (i32, i32) {
    %c0_i32 = arith.constant 0 : i32
    %c0_i32_0 = arith.constant 0 : i32
    %c0_i32_1 = arith.constant 0 : i32
    return %c0_i32, %c0_i32_0 : i32, i32
  }
}

module attributes {stable_mosaic.version = 11 : i64} {
  func.func @_bn_relu_matmul_stats_kernel(%arg0: i32, %arg1: memref<512x4xbf16, #tpu.memory_space<vmem>>, %arg2: memref<1x4xf32, #tpu.memory_space<vmem>>, %arg3: memref<1x4xf32, #tpu.memory_space<vmem>>, %arg4: memref<4x8xbf16, #tpu.memory_space<vmem>>, %arg5: memref<1x8xf32, #tpu.memory_space<vmem>>, %arg6: memref<512x8xbf16, #tpu.memory_space<vmem>>, %arg7: memref<1x8xf32, #tpu.memory_space<vmem>>, %arg8: memref<1x8xf32, #tpu.memory_space<vmem>>) attributes {dimension_semantics = [#tpu.dimension_semantics<arbitrary>], iteration_bounds = array<i64: 4>, scalar_prefetch = 0 : i64, scratch_operands = 0 : i64, tpu.core_type = #tpu.core_type<tc>, window_params = [{transform_indices = @transform_0, window_bounds = array<i64: 512, 4>}, {pipeline_mode = #tpu.pipeline_mode<synchronous>, transform_indices = @transform_1, window_bounds = array<i64: 1, 4>}, {pipeline_mode = #tpu.pipeline_mode<synchronous>, transform_indices = @transform_2, window_bounds = array<i64: 1, 4>}, {pipeline_mode = #tpu.pipeline_mode<synchronous>, transform_indices = @transform_3, window_bounds = array<i64: 4, 8>}, {pipeline_mode = #tpu.pipeline_mode<synchronous>, transform_indices = @transform_4, window_bounds = array<i64: 1, 8>}, {transform_indices = @transform_5, window_bounds = array<i64: 512, 8>}, {pipeline_mode = #tpu.pipeline_mode<synchronous>, transform_indices = @transform_6, window_bounds = array<i64: 1, 8>}, {pipeline_mode = #tpu.pipeline_mode<synchronous>, transform_indices = @transform_7, window_bounds = array<i64: 1, 8>}]} {
    %c0_i32 = arith.constant 0 : i32
    %0 = arith.cmpi eq, %arg0, %c0_i32 : i32
    %1 = arith.extui %0 : i1 to i32
    %c0_i32_0 = arith.constant 0 : i32
    %2 = arith.cmpi ne, %1, %c0_i32_0 : i32
    scf.if %2 {
      %cst_24 = arith.constant 0.000000e+00 : f32
      %42 = vector.broadcast %cst_24 : f32 to vector<1x8xf32>
      %c0_25 = arith.constant 0 : index
      %c0_26 = arith.constant 0 : index
      %43 = vector.load %arg7[%c0_25, %c0_26] : memref<1x8xf32, #tpu.memory_space<vmem>>, vector<1x8xf32>
      tpu.vector_store %arg7[%c0_25, %c0_26], %42 {strides = array<i32>} : memref<1x8xf32, #tpu.memory_space<vmem>>, vector<1x8xf32>,
      %cst_27 = arith.constant 0.000000e+00 : f32
      %44 = vector.broadcast %cst_27 : f32 to vector<1x8xf32>
      %c0_28 = arith.constant 0 : index
      %c0_29 = arith.constant 0 : index
      %45 = vector.load %arg8[%c0_28, %c0_29] : memref<1x8xf32, #tpu.memory_space<vmem>>, vector<1x8xf32>
      tpu.vector_store %arg8[%c0_28, %c0_29], %44 {strides = array<i32>} : memref<1x8xf32, #tpu.memory_space<vmem>>, vector<1x8xf32>,
    } else {
    }
    %c0 = arith.constant 0 : index
    %c0_1 = arith.constant 0 : index
    %3 = vector.load %arg1[%c0, %c0_1] : memref<512x4xbf16, #tpu.memory_space<vmem>>, vector<512x4xbf16>
    %4 = arith.extf %3 : vector<512x4xbf16> to vector<512x4xf32>
    %c0_2 = arith.constant 0 : index
    %c0_3 = arith.constant 0 : index
    %5 = vector.load %arg2[%c0_2, %c0_3] : memref<1x4xf32, #tpu.memory_space<vmem>>, vector<1x4xf32>
    %6 = vector.broadcast %5 : vector<1x4xf32> to vector<512x4xf32>
    %7 = arith.mulf %4, %6 : vector<512x4xf32>
    %c0_4 = arith.constant 0 : index
    %c0_5 = arith.constant 0 : index
    %8 = vector.load %arg3[%c0_4, %c0_5] : memref<1x4xf32, #tpu.memory_space<vmem>>, vector<1x4xf32>
    %9 = vector.broadcast %8 : vector<1x4xf32> to vector<512x4xf32>
    %10 = arith.addf %7, %9 : vector<512x4xf32>
    %cst = arith.constant 0.000000e+00 : f32
    %11 = vector.broadcast %cst : f32 to vector<512x4xf32>
    %12 = arith.maximumf %10, %11 : vector<512x4xf32>
    %13 = arith.truncf %12 : vector<512x4xf32> to vector<512x4xbf16>
    %c0_6 = arith.constant 0 : index
    %c0_7 = arith.constant 0 : index
    %14 = vector.load %arg4[%c0_6, %c0_7] : memref<4x8xbf16, #tpu.memory_space<vmem>>, vector<4x8xbf16>
    %cst_8 = arith.constant dense<0.000000e+00> : vector<512x8xf32>
    %15 = tpu.matmul %13, %14, %cst_8 {dimension_numbers = #tpu.dot_dimension_numbers<[1], [0], [0], [1], [0, 0, 1, 1], [], []>} : vector<512x4xbf16>, vector<4x8xbf16>, vector<512x8xf32> -> vector<512x8xf32>
    %c0_9 = arith.constant 0 : index
    %c0_10 = arith.constant 0 : index
    %16 = vector.load %arg5[%c0_9, %c0_10] : memref<1x8xf32, #tpu.memory_space<vmem>>, vector<1x8xf32>
    %17 = vector.broadcast %16 : vector<1x8xf32> to vector<512x8xf32>
    %18 = arith.addf %15, %17 : vector<512x8xf32>
    %19 = arith.truncf %18 : vector<512x8xf32> to vector<512x8xbf16>
    %c0_11 = arith.constant 0 : index
    %c0_12 = arith.constant 0 : index
    %20 = vector.load %arg6[%c0_11, %c0_12] : memref<512x8xbf16, #tpu.memory_space<vmem>>, vector<512x8xbf16>
    tpu.vector_store %arg6[%c0_11, %c0_12], %19 {strides = array<i32>} : memref<512x8xbf16, #tpu.memory_space<vmem>>, vector<512x8xbf16>,
    %c512_i32 = arith.constant 512 : i32
    %21 = arith.muli %arg0, %c512_i32 : i32
    %22 = tpu.iota {dimensions = array<i32: 0>} : vector<512x1xi32>
    %23 = vector.broadcast %21 : i32 to vector<512x1xi32>
    %24 = arith.addi %23, %22 : vector<512x1xi32>
    %c2048_i32 = arith.constant 2048 : i32
    %25 = vector.broadcast %c2048_i32 : i32 to vector<512x1xi32>
    %26 = arith.cmpi slt, %24, %25 : vector<512x1xi32>
    %cst_13 = arith.constant 0.000000e+00 : f32
    %27 = vector.shape_cast %26 : vector<512x1xi1> to vector<512x1xi1>
    %28 = vector.broadcast %27 : vector<512x1xi1> to vector<512x8xi1>
    %29 = vector.broadcast %cst_13 : f32 to vector<512x8xf32>
    %30 = arith.select %28, %18, %29 : vector<512x8xi1>, vector<512x8xf32>
    %c0_14 = arith.constant 0 : index
    %c0_15 = arith.constant 0 : index
    %31 = vector.load %arg7[%c0_14, %c0_15] : memref<1x8xf32, #tpu.memory_space<vmem>>, vector<1x8xf32>
    %cst_16 = arith.constant dense<0.000000e+00> : vector<8xf32>
    %32 = vector.multi_reduction <add>, %30, %cst_16 [0] : vector<512x8xf32> to vector<8xf32>
    %33 = vector.shape_cast %32 : vector<8xf32> to vector<1x8xf32>
    %34 = arith.addf %31, %33 : vector<1x8xf32>
    %c0_17 = arith.constant 0 : index
    %c0_18 = arith.constant 0 : index
    %35 = vector.load %arg7[%c0_17, %c0_18] : memref<1x8xf32, #tpu.memory_space<vmem>>, vector<1x8xf32>
    tpu.vector_store %arg7[%c0_17, %c0_18], %34 {strides = array<i32>} : memref<1x8xf32, #tpu.memory_space<vmem>>, vector<1x8xf32>,
    %c0_19 = arith.constant 0 : index
    %c0_20 = arith.constant 0 : index
    %36 = vector.load %arg8[%c0_19, %c0_20] : memref<1x8xf32, #tpu.memory_space<vmem>>, vector<1x8xf32>
    %37 = arith.mulf %30, %30 : vector<512x8xf32>
    %cst_21 = arith.constant dense<0.000000e+00> : vector<8xf32>
    %38 = vector.multi_reduction <add>, %37, %cst_21 [0] : vector<512x8xf32> to vector<8xf32>
    %39 = vector.shape_cast %38 : vector<8xf32> to vector<1x8xf32>
    %40 = arith.addf %36, %39 : vector<1x8xf32>
    %c0_22 = arith.constant 0 : index
    %c0_23 = arith.constant 0 : index
    %41 = vector.load %arg8[%c0_22, %c0_23] : memref<1x8xf32, #tpu.memory_space<vmem>>, vector<1x8xf32>
    tpu.vector_store %arg8[%c0_22, %c0_23], %40 {strides = array<i32>} : memref<1x8xf32, #tpu.memory_space<vmem>>, vector<1x8xf32>,
    return
  }
  func.func @transform_0(%arg0: i32) -> (i32, i32) {
    %c0_i32 = arith.constant 0 : i32
    %c0_i32_0 = arith.constant 0 : i32
    return %arg0, %c0_i32 : i32, i32
  }
  func.func @transform_1(%arg0: i32) -> (i32, i32) {
    %c0_i32 = arith.constant 0 : i32
    %c0_i32_0 = arith.constant 0 : i32
    %c0_i32_1 = arith.constant 0 : i32
    return %c0_i32, %c0_i32_0 : i32, i32
  }
  func.func @transform_2(%arg0: i32) -> (i32, i32) {
    %c0_i32 = arith.constant 0 : i32
    %c0_i32_0 = arith.constant 0 : i32
    %c0_i32_1 = arith.constant 0 : i32
    return %c0_i32, %c0_i32_0 : i32, i32
  }
  func.func @transform_3(%arg0: i32) -> (i32, i32) {
    %c0_i32 = arith.constant 0 : i32
    %c0_i32_0 = arith.constant 0 : i32
    %c0_i32_1 = arith.constant 0 : i32
    return %c0_i32, %c0_i32_0 : i32, i32
  }
  func.func @transform_4(%arg0: i32) -> (i32, i32) {
    %c0_i32 = arith.constant 0 : i32
    %c0_i32_0 = arith.constant 0 : i32
    %c0_i32_1 = arith.constant 0 : i32
    return %c0_i32, %c0_i32_0 : i32, i32
  }
  func.func @transform_5(%arg0: i32) -> (i32, i32) {
    %c0_i32 = arith.constant 0 : i32
    %c0_i32_0 = arith.constant 0 : i32
    return %arg0, %c0_i32 : i32, i32
  }
  func.func @transform_6(%arg0: i32) -> (i32, i32) {
    %c0_i32 = arith.constant 0 : i32
    %c0_i32_0 = arith.constant 0 : i32
    %c0_i32_1 = arith.constant 0 : i32
    return %c0_i32, %c0_i32_0 : i32, i32
  }
  func.func @transform_7(%arg0: i32) -> (i32, i32) {
    %c0_i32 = arith.constant 0 : i32
    %c0_i32_0 = arith.constant 0 : i32
    %c0_i32_1 = arith.constant 0 : i32
    return %c0_i32, %c0_i32_0 : i32, i32
  }
}

module attributes {stable_mosaic.version = 11 : i64} {
  func.func @_bn_relu_kernel(%arg0: i32, %arg1: memref<512x8xbf16, #tpu.memory_space<vmem>>, %arg2: memref<1x8xf32, #tpu.memory_space<vmem>>, %arg3: memref<1x8xf32, #tpu.memory_space<vmem>>, %arg4: memref<512x8xf32, #tpu.memory_space<vmem>>) attributes {dimension_semantics = [#tpu.dimension_semantics<parallel>], iteration_bounds = array<i64: 4>, scalar_prefetch = 0 : i64, scratch_operands = 0 : i64, tpu.core_type = #tpu.core_type<tc>, window_params = [{transform_indices = @transform_0, window_bounds = array<i64: 512, 8>}, {pipeline_mode = #tpu.pipeline_mode<synchronous>, transform_indices = @transform_1, window_bounds = array<i64: 1, 8>}, {pipeline_mode = #tpu.pipeline_mode<synchronous>, transform_indices = @transform_2, window_bounds = array<i64: 1, 8>}, {transform_indices = @transform_3, window_bounds = array<i64: 512, 8>}]} {
    %c0 = arith.constant 0 : index
    %c0_0 = arith.constant 0 : index
    %0 = vector.load %arg1[%c0, %c0_0] : memref<512x8xbf16, #tpu.memory_space<vmem>>, vector<512x8xbf16>
    %1 = arith.extf %0 : vector<512x8xbf16> to vector<512x8xf32>
    %c0_1 = arith.constant 0 : index
    %c0_2 = arith.constant 0 : index
    %2 = vector.load %arg2[%c0_1, %c0_2] : memref<1x8xf32, #tpu.memory_space<vmem>>, vector<1x8xf32>
    %3 = vector.broadcast %2 : vector<1x8xf32> to vector<512x8xf32>
    %4 = arith.mulf %1, %3 : vector<512x8xf32>
    %c0_3 = arith.constant 0 : index
    %c0_4 = arith.constant 0 : index
    %5 = vector.load %arg3[%c0_3, %c0_4] : memref<1x8xf32, #tpu.memory_space<vmem>>, vector<1x8xf32>
    %6 = vector.broadcast %5 : vector<1x8xf32> to vector<512x8xf32>
    %7 = arith.addf %4, %6 : vector<512x8xf32>
    %cst = arith.constant 0.000000e+00 : f32
    %8 = vector.broadcast %cst : f32 to vector<512x8xf32>
    %9 = arith.maximumf %7, %8 : vector<512x8xf32>
    %c0_5 = arith.constant 0 : index
    %c0_6 = arith.constant 0 : index
    %10 = vector.load %arg4[%c0_5, %c0_6] : memref<512x8xf32, #tpu.memory_space<vmem>>, vector<512x8xf32>
    tpu.vector_store %arg4[%c0_5, %c0_6], %9 {strides = array<i32>} : memref<512x8xf32, #tpu.memory_space<vmem>>, vector<512x8xf32>,
    return
  }
  func.func @transform_0(%arg0: i32) -> (i32, i32) {
    %c0_i32 = arith.constant 0 : i32
    %c0_i32_0 = arith.constant 0 : i32
    return %arg0, %c0_i32 : i32, i32
  }
  func.func @transform_1(%arg0: i32) -> (i32, i32) {
    %c0_i32 = arith.constant 0 : i32
    %c0_i32_0 = arith.constant 0 : i32
    %c0_i32_1 = arith.constant 0 : i32
    return %c0_i32, %c0_i32_0 : i32, i32
  }
  func.func @transform_2(%arg0: i32) -> (i32, i32) {
    %c0_i32 = arith.constant 0 : i32
    %c0_i32_0 = arith.constant 0 : i32
    %c0_i32_1 = arith.constant 0 : i32
    return %c0_i32, %c0_i32_0 : i32, i32
  }
  func.func @transform_3(%arg0: i32) -> (i32, i32) {
    %c0_i32 = arith.constant 0 : i32
    %c0_i32_0 = arith.constant 0 : i32
    return %arg0, %c0_i32 : i32, i32
  }
}

</mosaic_0001>

<llo_original>
// kernel: decoder_block_forward.4
$region0: #{decoder_block_forward.4}
  #allocation0 [shape = 'u32[]', space=smem, size = 0x4, offset = 0x4, fixed_abs, tag = 'smem constant byte address 0x4 - core index']
  #allocation1 [shape = 'u32[144,128]{1,0:T(1,128)}', space=vmem, size = 0x12000, scoped, tag = 'internal scratch']
  %s0 = inlined_call_operand.vmem [shape: bf16[512,16], index: 0, kind: input, shape index: {}]
  %s1 = inlined_call_operand.vmem [shape: bf16[16,4], index: 1, kind: input, shape index: {}]
  %s2 = inlined_call_operand.vmem [shape: f32[1,4], index: 2, kind: input, shape index: {}]
  %s3 = inlined_call_operand.vmem [shape: bf16[512,4], index: 3, kind: output, shape index: {0}]
  %s4 = inlined_call_operand.vmem [shape: f32[1,4], index: 4, kind: output, shape index: {1}]
  %s5 = inlined_call_operand.vmem [shape: f32[1,4], index: 5, kind: output, shape index: {2}]
  %6 = xla_tuple %s3, %s4, %s5
  %s7 = sld [smem:[#allocation0]]
  $region42: #{decoder_block_forward.4} parent=0
    _
  %s9 = ssub.s32 1, %s7
  %s10 = scalar_select 0, %s9, %s7
  // Predicated region
  $region2: #{decoder_block_forward.4} parent=0 // pred_check
    _
  $region3: #{decoder_block_forward.4} parent=0 // pred_check_branch
    %12 = sbr.rel (0) target = $region5
  $region4: #{decoder_block_forward.4} parent=0 // pred_region
    _
  $region5: #{decoder_block_forward.4} parent=0 // pred_fallthru
    _
  // Predicated region
  $region6: #{decoder_block_forward.4} parent=0 // pred_check
    _
  $region7: #{decoder_block_forward.4} parent=0 // pred_check_branch
    %14 = sbr.rel (0) target = $region9
  $region8: #{decoder_block_forward.4} parent=0 // pred_region
    _
  $region9: #{decoder_block_forward.4} parent=0 // pred_fallthru
    _
  // Predicated region
  $region10: #{decoder_block_forward.4} parent=0 // pred_check
    _
  $region11: #{decoder_block_forward.4} parent=0 // pred_check_branch
    %16 = sbr.rel (0) target = $region13
  $region12: #{decoder_block_forward.4} parent=0 // pred_region
    _
  $region13: #{decoder_block_forward.4} parent=0 // pred_fallthru
    _
  %p18 = scmp.eq.s32.totalorder 0, 0
  // Predicated region
  $region14: #{decoder_block_forward.4} parent=0 // pred_check
    %p19 = pneg %p18
  $region15: #{decoder_block_forward.4} parent=0 // pred_check_branch
    %21 = sbr.rel (%p19) target = $region17
  $region16: #{decoder_block_forward.4} parent=0 // pred_region
    %vm22 = vcmask 24576
    %23 = vst.msk [vmem:[%s4] sm:$0x1] %vm22, 0.0
    %24 = vst.msk [vmem:[%s5] sm:$0x1] %vm22, 0.0
  $region17: #{decoder_block_forward.4} parent=0 // pred_fallthru
    _
  %v25 = vld [vmem:[%s0] sm:$0xf]
  %v26 = vld [vmem:[%s0 + $0x4] sm:$0xf]
  %v27 = vld [vmem:[%s0 + $0x8] sm:$0xf]
  %v28 = vld [vmem:[%s0 + $0xc] sm:$0xf]
  %v29 = vld [vmem:[%s0 + $0x10] sm:$0xf]
  %v30 = vld [vmem:[%s0 + $0x14] sm:$0xf]
  %v31 = vld [vmem:[%s0 + $0x18] sm:$0xf]
  %v32 = vld [vmem:[%s0 + $0x1c] sm:$0xf]
  %v33 = vld [vmem:[%s0 + $0x20] sm:$0xf]
  %v34 = vld [vmem:[%s0 + $0x24] sm:$0xf]
  %v35 = vld [vmem:[%s0 + $0x28] sm:$0xf]
  %v36 = vld [vmem:[%s0 + $0x2c] sm:$0xf]
  %v37 = vld [vmem:[%s0 + $0x30] sm:$0xf]
  %v38 = vld [vmem:[%s0 + $0x34] sm:$0xf]
  %v39 = vld [vmem:[%s0 + $0x38] sm:$0xf]
  %v40 = vld [vmem:[%s0 + $0x3c] sm:$0xf]
  %v41 = vld [vmem:[%s0 + $0x40] sm:$0xf]
  %v42 = vld [vmem:[%s0 + $0x44] sm:$0xf]
  %v43 = vld [vmem:[%s0 + $0x48] sm:$0xf]
  %v44 = vld [vmem:[%s0 + $0x4c] sm:$0xf]
  %v45 = vld [vmem:[%s0 + $0x50] sm:$0xf]
  %v46 = vld [vmem:[%s0 + $0x54] sm:$0xf]
  %v47 = vld [vmem:[%s0 + $0x58] sm:$0xf]
  %v48 = vld [vmem:[%s0 + $0x5c] sm:$0xf]
  %v49 = vld [vmem:[%s0 + $0x60] sm:$0xf]
  %v50 = vld [vmem:[%s0 + $0x64] sm:$0xf]
  %v51 = vld [vmem:[%s0 + $0x68] sm:$0xf]
  %v52 = vld [vmem:[%s0 + $0x6c] sm:$0xf]
  %v53 = vld [vmem:[%s0 + $0x70] sm:$0xf]
  %v54 = vld [vmem:[%s0 + $0x74] sm:$0xf]
  %v55 = vld [vmem:[%s0 + $0x78] sm:$0xf]
  %v56 = vld [vmem:[%s0 + $0x7c] sm:$0xf]
  %v57 = vld [vmem:[%s0 + $0x80] sm:$0xf]
  %v58 = vld [vmem:[%s0 + $0x84] sm:$0xf]
  %v59 = vld [vmem:[%s0 + $0x88] sm:$0xf]
  %v60 = vld [vmem:[%s0 + $0x8c] sm:$0xf]
  %v61 = vld [vmem:[%s0 + $0x90] sm:$0xf]
  %v62 = vld [vmem:[%s0 + $0x94] sm:$0xf]
  %v63 = vld [vmem:[%s0 + $0x98] sm:$0xf]
  %v64 = vld [vmem:[%s0 + $0x9c] sm:$0xf]
  %v65 = vld [vmem:[%s0 + $0xa0] sm:$0xf]
  %v66 = vld [vmem:[%s0 + $0xa4] sm:$0xf]
  %v67 = vld [vmem:[%s0 + $0xa8] sm:$0xf]
  %v68 = vld [vmem:[%s0 + $0xac] sm:$0xf]
  %v69 = vld [vmem:[%s0 + $0xb0] sm:$0xf]
  %v70 = vld [vmem:[%s0 + $0xb4] sm:$0xf]
  %v71 = vld [vmem:[%s0 + $0xb8] sm:$0xf]
  %v72 = vld [vmem:[%s0 + $0xbc] sm:$0xf]
  %v73 = vld [vmem:[%s0 + $0xc0] sm:$0xf]
  %v74 = vld [vmem:[%s0 + $0xc4] sm:$0xf]
  %v75 = vld [vmem:[%s0 + $0xc8] sm:$0xf]
  %v76 = vld [vmem:[%s0 + $0xcc] sm:$0xf]
  %v77 = vld [vmem:[%s0 + $0xd0] sm:$0xf]
  %v78 = vld [vmem:[%s0 + $0xd4] sm:$0xf]
  %v79 = vld [vmem:[%s0 + $0xd8] sm:$0xf]
  %v80 = vld [vmem:[%s0 + $0xdc] sm:$0xf]
  %v81 = vld [vmem:[%s0 + $0xe0] sm:$0xf]
  %v82 = vld [vmem:[%s0 + $0xe4] sm:$0xf]
  %v83 = vld [vmem:[%s0 + $0xe8] sm:$0xf]
  %v84 = vld [vmem:[%s0 + $0xec] sm:$0xf]
  %v85 = vld [vmem:[%s0 + $0xf0] sm:$0xf]
  %v86 = vld [vmem:[%s0 + $0xf4] sm:$0xf]
  %v87 = vld [vmem:[%s0 + $0xf8] sm:$0xf]
  %v88 = vld [vmem:[%s0 + $0xfc] sm:$0xf]
  %v89 = vld [vmem:[%s1] sm:$0xf]
  %v90 = vld [vmem:[%s1 + $0x4] sm:$0xf]
  %v91 = vld [vmem:[%s2] sm:$0x1]
  %v93 = vlaneseq
  %v94 = vshrl.u32 %v93, 7
  %v95 = vsub.s32 0, %v94
  %v96 = vrot.slane %v91, %v95
  %v162 = vunpack.c.l.b16 %v25
  %v163 = vunpack.c.l.b16 %v26
  %v164 = vunpack.c.l.b16 %v27
  %v165 = vunpack.c.l.b16 %v28
  %v166 = vunpack.c.l.b16 %v29
  %v167 = vunpack.c.l.b16 %v30
  %v168 = vunpack.c.l.b16 %v31
  %v169 = vunpack.c.l.b16 %v32
  %v170 = vunpack.c.l.b16 %v33
  %v171 = vunpack.c.l.b16 %v34
  %v172 = vunpack.c.l.b16 %v35
  %v173 = vunpack.c.l.b16 %v36
  %v174 = vunpack.c.l.b16 %v37
  %v175 = vunpack.c.l.b16 %v38
  %v176 = vunpack.c.l.b16 %v39
  %v177 = vunpack.c.l.b16 %v40
  %v178 = vunpack.c.l.b16 %v41
  %v179 = vunpack.c.l.b16 %v42
  %v180 = vunpack.c.l.b16 %v43
  %v181 = vunpack.c.l.b16 %v44
  %v182 = vunpack.c.l.b16 %v45
  %v183 = vunpack.c.l.b16 %v46
  %v184 = vunpack.c.l.b16 %v47
  %v185 = vunpack.c.l.b16 %v48
  %v186 = vunpack.c.l.b16 %v49
  %v187 = vunpack.c.l.b16 %v50
  %v188 = vunpack.c.l.b16 %v51
  %v189 = vunpack.c.l.b16 %v52
  %v190 = vunpack.c.l.b16 %v53
  %v191 = vunpack.c.l.b16 %v54
  %v192 = vunpack.c.l.b16 %v55
  %v193 = vunpack.c.l.b16 %v56
  %v194 = vunpack.c.l.b16 %v57
  %v195 = vunpack.c.l.b16 %v58
  %v196 = vunpack.c.l.b16 %v59
  %v197 = vunpack.c.l.b16 %v60
  %v198 = vunpack.c.l.b16 %v61
  %v199 = vunpack.c.l.b16 %v62
  %v200 = vunpack.c.l.b16 %v63
  %v201 = vunpack.c.l.b16 %v64
  %v202 = vunpack.c.l.b16 %v65
  %v203 = vunpack.c.l.b16 %v66
  %v204 = vunpack.c.l.b16 %v67
  %v205 = vunpack.c.l.b16 %v68
  %v206 = vunpack.c.l.b16 %v69
  %v207 = vunpack.c.l.b16 %v70
  %v208 = vunpack.c.l.b16 %v71
  %v209 = vunpack.c.l.b16 %v72
  %v210 = vunpack.c.l.b16 %v73
  %v211 = vunpack.c.l.b16 %v74
  %v212 = vunpack.c.l.b16 %v75
  %v213 = vunpack.c.l.b16 %v76
  %v214 = vunpack.c.l.b16 %v77
  %v215 = vunpack.c.l.b16 %v78
  %v216 = vunpack.c.l.b16 %v79
  %v217 = vunpack.c.l.b16 %v80
  %v218 = vunpack.c.l.b16 %v81
  %v219 = vunpack.c.l.b16 %v82
  %v220 = vunpack.c.l.b16 %v83
  %v221 = vunpack.c.l.b16 %v84
  %v222 = vunpack.c.l.b16 %v85
  %v223 = vunpack.c.l.b16 %v86
  %v224 = vunpack.c.l.b16 %v87
  %v225 = vunpack.c.l.b16 %v88
  %v226 = vpack.c.b16 %v163, %v162
  %v227 = vpack.c.b16 %v165, %v164
  %v228 = vpack.c.b16 %v167, %v166
  %v229 = vpack.c.b16 %v169, %v168
  %v230 = vpack.c.b16 %v171, %v170
  %v231 = vpack.c.b16 %v173, %v172
  %v232 = vpack.c.b16 %v175, %v174
  %v233 = vpack.c.b16 %v177, %v176
  %v234 = vpack.c.b16 %v179, %v178
  %v235 = vpack.c.b16 %v181, %v180
  %v236 = vpack.c.b16 %v183, %v182
  %v237 = vpack.c.b16 %v185, %v184
  %v238 = vpack.c.b16 %v187, %v186
  %v239 = vpack.c.b16 %v189, %v188
  %v240 = vpack.c.b16 %v191, %v190
  %v241 = vpack.c.b16 %v193, %v192
  %v242 = vpack.c.b16 %v195, %v194
  %v243 = vpack.c.b16 %v197, %v196
  %v244 = vpack.c.b16 %v199, %v198
  %v245 = vpack.c.b16 %v201, %v200
  %v246 = vpack.c.b16 %v203, %v202
  %v247 = vpack.c.b16 %v205, %v204
  %v248 = vpack.c.b16 %v207, %v206
  %v249 = vpack.c.b16 %v209, %v208
  %v250 = vpack.c.b16 %v211, %v210
  %v251 = vpack.c.b16 %v213, %v212
  %v252 = vpack.c.b16 %v215, %v214
  %v253 = vpack.c.b16 %v217, %v216
  %v254 = vpack.c.b16 %v219, %v218
  %v255 = vpack.c.b16 %v221, %v220
  %v256 = vpack.c.b16 %v223, %v222
  %v257 = vpack.c.b16 %v225, %v224
  %v260 = vunpack.c.l.b16 %v89
  %v261 = vunpack.c.l.b16 %v90
  %v262 = vpack.c.b16 %v261, %v260
  %vm264 = vcmask 130048
  %v266 = vsel %vm264, %v226, 0
  %v269 = vsel %vm264, %v227, 0
  %v272 = vsel %vm264, %v228, 0
  %v275 = vsel %vm264, %v229, 0
  %v278 = vsel %vm264, %v230, 0
  %v281 = vsel %vm264, %v231, 0
  %v284 = vsel %vm264, %v232, 0
  %v287 = vsel %vm264, %v233, 0
  %v290 = vsel %vm264, %v234, 0
  %v293 = vsel %vm264, %v235, 0
  %v296 = vsel %vm264, %v236, 0
  %v299 = vsel %vm264, %v237, 0
  %v302 = vsel %vm264, %v238, 0
  %v305 = vsel %vm264, %v239, 0
  %v308 = vsel %vm264, %v240, 0
  %v311 = vsel %vm264, %v241, 0
  %v314 = vsel %vm264, %v242, 0
  %v317 = vsel %vm264, %v243, 0
  %v320 = vsel %vm264, %v244, 0
  %v323 = vsel %vm264, %v245, 0
  %v326 = vsel %vm264, %v246, 0
  %v329 = vsel %vm264, %v247, 0
  %v332 = vsel %vm264, %v248, 0
  %v335 = vsel %vm264, %v249, 0
  %v338 = vsel %vm264, %v250, 0
  %v341 = vsel %vm264, %v251, 0
  %v344 = vsel %vm264, %v252, 0
  %v347 = vsel %vm264, %v253, 0
  %v350 = vsel %vm264, %v254, 0
  %v353 = vsel %vm264, %v255, 0
  %v356 = vsel %vm264, %v256, 0
  %v359 = vsel %vm264, %v257, 0
  %361 = vmatprep.subr.bf16.mxu0 0
  %362 = vmatpush1.bf16.msra.mxu0 %v262
  %363 = vmatprep.subr.bf16.mxu0 0
  %364 = vmatpush1.bf16.msra.mxu0 0
  %365 = vmatprep.subr.bf16.mxu0 0
  %366 = vmatpush1.bf16.msra.mxu0 0
  %367 = vmatprep.subr.bf16.mxu0 0
  %368 = vmatpush1.bf16.msra.mxu0 0
  %369 = vmatprep.subr.bf16.mxu0 0
  %370 = vmatpush1.bf16.msra.mxu0 0
  %371 = vmatprep.subr.bf16.mxu0 0
  %372 = vmatpush1.bf16.msra.mxu0 0
  %373 = vmatprep.subr.bf16.mxu0 0
  %374 = vmatpush1.bf16.msra.mxu0 0
  %375 = vmatprep.subr.bf16.mxu0 0
  %376 = vmatpush1.bf16.msra.mxu0 0
  %377 = vmatprep.subr.bf16.mxu0 0
  %378 = vmatpush1.bf16.msra.mxu0 0
  %379 = vmatprep.subr.bf16.mxu0 0
  %380 = vmatpush1.bf16.msra.mxu0 0
  %381 = vmatprep.subr.bf16.mxu0 0
  %382 = vmatpush1.bf16.msra.mxu0 0
  %383 = vmatprep.subr.bf16.mxu0 0
  %384 = vmatpush1.bf16.msra.mxu0 0
  %385 = vmatprep.subr.bf16.mxu0 0
  %386 = vmatpush1.bf16.msra.mxu0 0
  %387 = vmatprep.subr.bf16.mxu0 0
  %388 = vmatpush1.bf16.msra.mxu0 0
  %389 = vmatprep.subr.bf16.mxu0 0
  %390 = vmatpush1.bf16.msra.mxu0 0
  %391 = vmatprep.subr.bf16.mxu0 0
  %392 = vmatpush1.bf16.msra.mxu0 0
  %393 = vmatprep.mubr.bf16.mxu0 0
  %394 = vmatmul.mubr.bf16.gmra.mrb[0].mxu0 %v266
  %v395 = vpop.f32.mrb[0].mxu0
  %v396 = vadd.f32 %v96, %v395
  %v397 = vpop.f32.mrb[0].mxu0
  %v398 = vpop.f32.mrb[0].mxu0
  %v399 = vadd.f32 %v96, %v398
  %v400 = vpop.f32.mrb[0].mxu0
  %401 = vmatprep.mubr.bf16.mxu0 0
  %402 = vmatmul.mubr.bf16.gmra.mrb[0].mxu0 %v269
  %v403 = vpop.f32.mrb[0].mxu0
  %v404 = vadd.f32 %v96, %v403
  %v405 = vpop.f32.mrb[0].mxu0
  %v406 = vpop.f32.mrb[0].mxu0
  %v407 = vadd.f32 %v96, %v406
  %v408 = vpop.f32.mrb[0].mxu0
  %409 = vmatprep.mubr.bf16.mxu0 0
  %410 = vmatmul.mubr.bf16.gmra.mrb[0].mxu0 %v272
  %v411 = vpop.f32.mrb[0].mxu0
  %v412 = vadd.f32 %v96, %v411
  %v413 = vpop.f32.mrb[0].mxu0
  %v414 = vpop.f32.mrb[0].mxu0
  %v415 = vadd.f32 %v96, %v414
  %v416 = vpop.f32.mrb[0].mxu0
  %417 = vmatprep.mubr.bf16.mxu0 0
  %418 = vmatmul.mubr.bf16.gmra.mrb[0].mxu0 %v275
  %v419 = vpop.f32.mrb[0].mxu0
  %v420 = vadd.f32 %v96, %v419
  %v421 = vpop.f32.mrb[0].mxu0
  %v422 = vpop.f32.mrb[0].mxu0
  %v423 = vadd.f32 %v96, %v422
  %v424 = vpop.f32.mrb[0].mxu0
  %425 = vmatprep.mubr.bf16.mxu0 0
  %426 = vmatmul.mubr.bf16.gmra.mrb[0].mxu0 %v278
  %v427 = vpop.f32.mrb[0].mxu0
  %v428 = vadd.f32 %v96, %v427
  %v429 = vpop.f32.mrb[0].mxu0
  %v430 = vpop.f32.mrb[0].mxu0
  %v431 = vadd.f32 %v96, %v430
  %v432 = vpop.f32.mrb[0].mxu0
  %433 = vmatprep.mubr.bf16.mxu0 0
  %434 = vmatmul.mubr.bf16.gmra.mrb[0].mxu0 %v281
  %v435 = vpop.f32.mrb[0].mxu0
  %v436 = vadd.f32 %v96, %v435
  %v437 = vpop.f32.mrb[0].mxu0
  %v438 = vpop.f32.mrb[0].mxu0
  %v439 = vadd.f32 %v96, %v438
  %v440 = vpop.f32.mrb[0].mxu0
  %441 = vmatprep.mubr.bf16.mxu0 0
  %442 = vmatmul.mubr.bf16.gmra.mrb[0].mxu0 %v284
  %v443 = vpop.f32.mrb[0].mxu0
  %v444 = vadd.f32 %v96, %v443
  %v445 = vpop.f32.mrb[0].mxu0
  %v446 = vpop.f32.mrb[0].mxu0
  %v447 = vadd.f32 %v96, %v446
  %v448 = vpop.f32.mrb[0].mxu0
  %449 = vmatprep.mubr.bf16.mxu0 0
  %450 = vmatmul.mubr.bf16.gmra.mrb[0].mxu0 %v287
  %v451 = vpop.f32.mrb[0].mxu0
  %v452 = vadd.f32 %v96, %v451
  %v453 = vpop.f32.mrb[0].mxu0
  %v454 = vpop.f32.mrb[0].mxu0
  %v455 = vadd.f32 %v96, %v454
  %v456 = vpop.f32.mrb[0].mxu0
  %457 = vmatprep.mubr.bf16.mxu0 0
  %458 = vmatmul.mubr.bf16.gmra.mrb[0].mxu0 %v290
  %v459 = vpop.f32.mrb[0].mxu0
  %v460 = vadd.f32 %v96, %v459
  %v461 = vpop.f32.mrb[0].mxu0
  %v462 = vpop.f32.mrb[0].mxu0
  %v463 = vadd.f32 %v96, %v462
  %v464 = vpop.f32.mrb[0].mxu0
  %465 = vmatprep.mubr.bf16.mxu0 0
  %466 = vmatmul.mubr.bf16.gmra.mrb[0].mxu0 %v293
  %v467 = vpop.f32.mrb[0].mxu0
  %v468 = vadd.f32 %v96, %v467
  %v469 = vpop.f32.mrb[0].mxu0
  %v470 = vpop.f32.mrb[0].mxu0
  %v471 = vadd.f32 %v96, %v470
  %v472 = vpop.f32.mrb[0].mxu0
  %473 = vmatprep.mubr.bf16.mxu0 0
  %474 = vmatmul.mubr.bf16.gmra.mrb[0].mxu0 %v296
  %v475 = vpop.f32.mrb[0].mxu0
  %v476 = vadd.f32 %v96, %v475
  %v477 = vpop.f32.mrb[0].mxu0
  %v478 = vpop.f32.mrb[0].mxu0
  %v479 = vadd.f32 %v96, %v478
  %v480 = vpop.f32.mrb[0].mxu0
  %481 = vmatprep.mubr.bf16.mxu0 0
  %482 = vmatmul.mubr.bf16.gmra.mrb[0].mxu0 %v299
  %v483 = vpop.f32.mrb[0].mxu0
  %v484 = vadd.f32 %v96, %v483
  %v485 = vpop.f32.mrb[0].mxu0
  %v486 = vpop.f32.mrb[0].mxu0
  %v487 = vadd.f32 %v96, %v486
  %v488 = vpop.f32.mrb[0].mxu0
  %489 = vmatprep.mubr.bf16.mxu0 0
  %490 = vmatmul.mubr.bf16.gmra.mrb[0].mxu0 %v302
  %v491 = vpop.f32.mrb[0].mxu0
  %v492 = vadd.f32 %v96, %v491
  %v493 = vpop.f32.mrb[0].mxu0
  %v494 = vpop.f32.mrb[0].mxu0
  %v495 = vadd.f32 %v96, %v494
  %v496 = vpop.f32.mrb[0].mxu0
  %497 = vmatprep.mubr.bf16.mxu0 0
  %498 = vmatmul.mubr.bf16.gmra.mrb[0].mxu0 %v305
  %v499 = vpop.f32.mrb[0].mxu0
  %v500 = vadd.f32 %v96, %v499
  %v501 = vpop.f32.mrb[0].mxu0
  %v502 = vpop.f32.mrb[0].mxu0
  %v503 = vadd.f32 %v96, %v502
  %v504 = vpop.f32.mrb[0].mxu0
  %505 = vmatprep.mubr.bf16.mxu0 0
  %506 = vmatmul.mubr.bf16.gmra.mrb[0].mxu0 %v308
  %v507 = vpop.f32.mrb[0].mxu0
  %v508 = vadd.f32 %v96, %v507
  %v509 = vpop.f32.mrb[0].mxu0
  %v510 = vpop.f32.mrb[0].mxu0
  %v511 = vadd.f32 %v96, %v510
  %v512 = vpop.f32.mrb[0].mxu0
  %513 = vmatprep.mubr.bf16.mxu0 0
  %514 = vmatmul.mubr.bf16.gmra.mrb[0].mxu0 %v311
  %v515 = vpop.f32.mrb[0].mxu0
  %v516 = vadd.f32 %v96, %v515
  %v517 = vpop.f32.mrb[0].mxu0
  %v518 = vpop.f32.mrb[0].mxu0
  %v519 = vadd.f32 %v96, %v518
  %v520 = vpop.f32.mrb[0].mxu0
  %521 = vmatprep.mubr.bf16.mxu0 0
  %522 = vmatmul.mubr.bf16.gmra.mrb[0].mxu0 %v314
  %v523 = vpop.f32.mrb[0].mxu0
  %v524 = vadd.f32 %v96, %v523
  %v525 = vpop.f32.mrb[0].mxu0
  %v526 = vpop.f32.mrb[0].mxu0
  %v527 = vadd.f32 %v96, %v526
  %v528 = vpop.f32.mrb[0].mxu0
  %529 = vmatprep.mubr.bf16.mxu0 0
  %530 = vmatmul.mubr.bf16.gmra.mrb[0].mxu0 %v317
  %v531 = vpop.f32.mrb[0].mxu0
  %v532 = vadd.f32 %v96, %v531
  %v533 = vpop.f32.mrb[0].mxu0
  %v534 = vpop.f32.mrb[0].mxu0
  %v535 = vadd.f32 %v96, %v534
  %v536 = vpop.f32.mrb[0].mxu0
  %537 = vmatprep.mubr.bf16.mxu0 0
  %538 = vmatmul.mubr.bf16.gmra.mrb[0].mxu0 %v320
  %v539 = vpop.f32.mrb[0].mxu0
  %v540 = vadd.f32 %v96, %v539
  %v541 = vpop.f32.mrb[0].mxu0
  %v542 = vpop.f32.mrb[0].mxu0
  %v543 = vadd.f32 %v96, %v542
  %v544 = vpop.f32.mrb[0].mxu0
  %545 = vmatprep.mubr.bf16.mxu0 0
  %546 = vmatmul.mubr.bf16.gmra.mrb[0].mxu0 %v323
  %v547 = vpop.f32.mrb[0].mxu0
  %v548 = vadd.f32 %v96, %v547
  %v549 = vpop.f32.mrb[0].mxu0
  %v550 = vpop.f32.mrb[0].mxu0
  %v551 = vadd.f32 %v96, %v550
  %v552 = vpop.f32.mrb[0].mxu0
  %553 = vmatprep.mubr.bf16.mxu0 0
  %554 = vmatmul.mubr.bf16.gmra.mrb[0].mxu0 %v326
  %v555 = vpop.f32.mrb[0].mxu0
  %v556 = vadd.f32 %v96, %v555
  %v557 = vpop.f32.mrb[0].mxu0
  %v558 = vpop.f32.mrb[0].mxu0
  %v559 = vadd.f32 %v96, %v558
  %v560 = vpop.f32.mrb[0].mxu0
  %561 = vmatprep.mubr.bf16.mxu0 0
  %562 = vmatmul.mubr.bf16.gmra.mrb[0].mxu0 %v329
  %v563 = vpop.f32.mrb[0].mxu0
  %v564 = vadd.f32 %v96, %v563
  %v565 = vpop.f32.mrb[0].mxu0
  %v566 = vpop.f32.mrb[0].mxu0
  %v567 = vadd.f32 %v96, %v566
  %v568 = vpop.f32.mrb[0].mxu0
  %569 = vmatprep.mubr.bf16.mxu0 0
  %570 = vmatmul.mubr.bf16.gmra.mrb[0].mxu0 %v332
  %v571 = vpop.f32.mrb[0].mxu0
  %v572 = vadd.f32 %v96, %v571
  %v573 = vpop.f32.mrb[0].mxu0
  %v574 = vpop.f32.mrb[0].mxu0
  %v575 = vadd.f32 %v96, %v574
  %v576 = vpop.f32.mrb[0].mxu0
  %577 = vmatprep.mubr.bf16.mxu0 0
  %578 = vmatmul.mubr.bf16.gmra.mrb[0].mxu0 %v335
  %v579 = vpop.f32.mrb[0].mxu0
  %v580 = vadd.f32 %v96, %v579
  %v581 = vpop.f32.mrb[0].mxu0
  %v582 = vpop.f32.mrb[0].mxu0
  %v583 = vadd.f32 %v96, %v582
  %v584 = vpop.f32.mrb[0].mxu0
  %585 = vmatprep.mubr.bf16.mxu0 0
  %586 = vmatmul.mubr.bf16.gmra.mrb[0].mxu0 %v338
  %v587 = vpop.f32.mrb[0].mxu0
  %v588 = vadd.f32 %v96, %v587
  %v589 = vpop.f32.mrb[0].mxu0
  %v590 = vpop.f32.mrb[0].mxu0
  %v591 = vadd.f32 %v96, %v590
  %v592 = vpop.f32.mrb[0].mxu0
  %593 = vmatprep.mubr.bf16.mxu0 0
  %594 = vmatmul.mubr.bf16.gmra.mrb[0].mxu0 %v341
  %v595 = vpop.f32.mrb[0].mxu0
  %v596 = vadd.f32 %v96, %v595
  %v597 = vpop.f32.mrb[0].mxu0
  %v598 = vpop.f32.mrb[0].mxu0
  %v599 = vadd.f32 %v96, %v598
  %v600 = vpop.f32.mrb[0].mxu0
  %601 = vmatprep.mubr.bf16.mxu0 0
  %602 = vmatmul.mubr.bf16.gmra.mrb[0].mxu0 %v344
  %v603 = vpop.f32.mrb[0].mxu0
  %v604 = vadd.f32 %v96, %v603
  %v605 = vpop.f32.mrb[0].mxu0
  %v606 = vpop.f32.mrb[0].mxu0
  %v607 = vadd.f32 %v96, %v606
  %v608 = vpop.f32.mrb[0].mxu0
  %609 = vmatprep.mubr.bf16.mxu0 0
  %610 = vmatmul.mubr.bf16.gmra.mrb[0].mxu0 %v347
  %v611 = vpop.f32.mrb[0].mxu0
  %v612 = vadd.f32 %v96, %v611
  %v613 = vpop.f32.mrb[0].mxu0
  %v614 = vpop.f32.mrb[0].mxu0
  %v615 = vadd.f32 %v96, %v614
  %v616 = vpop.f32.mrb[0].mxu0
  %617 = vmatprep.mubr.bf16.mxu0 0
  %618 = vmatmul.mubr.bf16.gmra.mrb[0].mxu0 %v350
  %v619 = vpop.f32.mrb[0].mxu0
  %v620 = vadd.f32 %v96, %v619
  %v621 = vpop.f32.mrb[0].mxu0
  %v622 = vpop.f32.mrb[0].mxu0
  %v623 = vadd.f32 %v96, %v622
  %v624 = vpop.f32.mrb[0].mxu0
  %625 = vmatprep.mubr.bf16.mxu0 0
  %626 = vmatmul.mubr.bf16.gmra.mrb[0].mxu0 %v353
  %v627 = vpop.f32.mrb[0].mxu0
  %v628 = vadd.f32 %v96, %v627
  %v629 = vpop.f32.mrb[0].mxu0
  %v630 = vpop.f32.mrb[0].mxu0
  %v631 = vadd.f32 %v96, %v630
  %v632 = vpop.f32.mrb[0].mxu0
  %633 = vmatprep.mubr.bf16.mxu0 0
  %634 = vmatmul.mubr.bf16.gmra.mrb[0].mxu0 %v356
  %v635 = vpop.f32.mrb[0].mxu0
  %v636 = vadd.f32 %v96, %v635
  %v637 = vpop.f32.mrb[0].mxu0
  %v638 = vpop.f32.mrb[0].mxu0
  %v639 = vadd.f32 %v96, %v638
  %v640 = vpop.f32.mrb[0].mxu0
  %641 = vmatprep.mubr.bf16.mxu0 0
  %642 = vmatmul.mubr.bf16.gmra.mrb[0].mxu0 %v359
  %v643 = vpop.f32.mrb[0].mxu0
  %v644 = vadd.f32 %v96, %v643
  %v645 = vpop.f32.mrb[0].mxu0
  %v646 = vpop.f32.mrb[0].mxu0
  %v647 = vadd.f32 %v96, %v646
  %v648 = vpop.f32.mrb[0].mxu0
  %649 = vdwg.mxu0
  %v650 = vpack.c.bf16 %v399, %v396
  %v651 = vpack.c.bf16 %v407, %v404
  %v652 = vpack.c.bf16 %v415, %v412
  %v653 = vpack.c.bf16 %v423, %v420
  %v654 = vpack.c.bf16 %v431, %v428
  %v655 = vpack.c.bf16 %v439, %v436
  %v656 = vpack.c.bf16 %v447, %v444
  %v657 = vpack.c.bf16 %v455, %v452
  %v658 = vpack.c.bf16 %v463, %v460
  %v659 = vpack.c.bf16 %v471, %v468
  %v660 = vpack.c.bf16 %v479, %v476
  %v661 = vpack.c.bf16 %v487, %v484
  %v662 = vpack.c.bf16 %v495, %v492
  %v663 = vpack.c.bf16 %v503, %v500
  %v664 = vpack.c.bf16 %v511, %v508
  %v665 = vpack.c.bf16 %v519, %v516
  %v666 = vpack.c.bf16 %v527, %v524
  %v667 = vpack.c.bf16 %v535, %v532
  %v668 = vpack.c.bf16 %v543, %v540
  %v669 = vpack.c.bf16 %v551, %v548
  %v670 = vpack.c.bf16 %v559, %v556
  %v671 = vpack.c.bf16 %v567, %v564
  %v672 = vpack.c.bf16 %v575, %v572
  %v673 = vpack.c.bf16 %v583, %v580
  %v674 = vpack.c.bf16 %v591, %v588
  %v675 = vpack.c.bf16 %v599, %v596
  %v676 = vpack.c.bf16 %v607, %v604
  %v677 = vpack.c.bf16 %v615, %v612
  %v678 = vpack.c.bf16 %v623, %v620
  %v679 = vpack.c.bf16 %v631, %v628
  %v680 = vpack.c.bf16 %v639, %v636
  %v681 = vpack.c.bf16 %v647, %v644
  %v714 = vunpack.c.l.b16 %v650
  %v715 = vunpack.c.h.b16 %v650
  %v716 = vunpack.c.l.b16 %v651
  %v717 = vunpack.c.h.b16 %v651
  %v718 = vunpack.c.l.b16 %v652
  %v719 = vunpack.c.h.b16 %v652
  %v720 = vunpack.c.l.b16 %v653
  %v721 = vunpack.c.h.b16 %v653
  %v722 = vunpack.c.l.b16 %v654
  %v723 = vunpack.c.h.b16 %v654
  %v724 = vunpack.c.l.b16 %v655
  %v725 = vunpack.c.h.b16 %v655
  %v726 = vunpack.c.l.b16 %v656
  %v727 = vunpack.c.h.b16 %v656
  %v728 = vunpack.c.l.b16 %v657
  %v729 = vunpack.c.h.b16 %v657
  %v730 = vunpack.c.l.b16 %v658
  %v731 = vunpack.c.h.b16 %v658
  %v732 = vunpack.c.l.b16 %v659
  %v733 = vunpack.c.h.b16 %v659
  %v734 = vunpack.c.l.b16 %v660
  %v735 = vunpack.c.h.b16 %v660
  %v736 = vunpack.c.l.b16 %v661
  %v737 = vunpack.c.h.b16 %v661
  %v738 = vunpack.c.l.b16 %v662
  %v739 = vunpack.c.h.b16 %v662
  %v740 = vunpack.c.l.b16 %v663
  %v741 = vunpack.c.h.b16 %v663
  %v742 = vunpack.c.l.b16 %v664
  %v743 = vunpack.c.h.b16 %v664
  %v744 = vunpack.c.l.b16 %v665
  %v745 = vunpack.c.h.b16 %v665
  %v746 = vunpack.c.l.b16 %v666
  %v747 = vunpack.c.h.b16 %v666
  %v748 = vunpack.c.l.b16 %v667
  %v749 = vunpack.c.h.b16 %v667
  %v750 = vunpack.c.l.b16 %v668
  %v751 = vunpack.c.h.b16 %v668
  %v752 = vunpack.c.l.b16 %v669
  %v753 = vunpack.c.h.b16 %v669
  %v754 = vunpack.c.l.b16 %v670
  %v755 = vunpack.c.h.b16 %v670
  %v756 = vunpack.c.l.b16 %v671
  %v757 = vunpack.c.h.b16 %v671
  %v758 = vunpack.c.l.b16 %v672
  %v759 = vunpack.c.h.b16 %v672
  %v760 = vunpack.c.l.b16 %v673
  %v761 = vunpack.c.h.b16 %v673
  %v762 = vunpack.c.l.b16 %v674
  %v763 = vunpack.c.h.b16 %v674
  %v764 = vunpack.c.l.b16 %v675
  %v765 = vunpack.c.h.b16 %v675
  %v766 = vunpack.c.l.b16 %v676
  %v767 = vunpack.c.h.b16 %v676
  %v768 = vunpack.c.l.b16 %v677
  %v769 = vunpack.c.h.b16 %v677
  %v770 = vunpack.c.l.b16 %v678
  %v771 = vunpack.c.h.b16 %v678
  %v772 = vunpack.c.l.b16 %v679
  %v773 = vunpack.c.h.b16 %v679
  %v774 = vunpack.c.l.b16 %v680
  %v775 = vunpack.c.h.b16 %v680
  %v776 = vunpack.c.l.b16 %v681
  %v777 = vunpack.c.h.b16 %v681
  %v778 = vpack.c.b16 %v714, %v714
  %v779 = vpack.c.b16 %v715, %v715
  %v780 = vpack.c.b16 %v716, %v716
  %v781 = vpack.c.b16 %v717, %v717
  %v782 = vpack.c.b16 %v718, %v718
  %v783 = vpack.c.b16 %v719, %v719
  %v784 = vpack.c.b16 %v720, %v720
  %v785 = vpack.c.b16 %v721, %v721
  %v786 = vpack.c.b16 %v722, %v722
  %v787 = vpack.c.b16 %v723, %v723
  %v788 = vpack.c.b16 %v724, %v724
  %v789 = vpack.c.b16 %v725, %v725
  %v790 = vpack.c.b16 %v726, %v726
  %v791 = vpack.c.b16 %v727, %v727
  %v792 = vpack.c.b16 %v728, %v728
  %v793 = vpack.c.b16 %v729, %v729
  %v794 = vpack.c.b16 %v730, %v730
  %v795 = vpack.c.b16 %v731, %v731
  %v796 = vpack.c.b16 %v732, %v732
  %v797 = vpack.c.b16 %v733, %v733
  %v798 = vpack.c.b16 %v734, %v734
  %v799 = vpack.c.b16 %v735, %v735
  %v800 = vpack.c.b16 %v736, %v736
  %v801 = vpack.c.b16 %v737, %v737
  %v802 = vpack.c.b16 %v738, %v738
  %v803 = vpack.c.b16 %v739, %v739
  %v804 = vpack.c.b16 %v740, %v740
  %v805 = vpack.c.b16 %v741, %v741
  %v806 = vpack.c.b16 %v742, %v742
  %v807 = vpack.c.b16 %v743, %v743
  %v808 = vpack.c.b16 %v744, %v744
  %v809 = vpack.c.b16 %v745, %v745
  %v810 = vpack.c.b16 %v746, %v746
  %v811 = vpack.c.b16 %v747, %v747
  %v812 = vpack.c.b16 %v748, %v748
  %v813 = vpack.c.b16 %v749, %v749
  %v814 = vpack.c.b16 %v750, %v750
  %v815 = vpack.c.b16 %v751, %v751
  %v816 = vpack.c.b16 %v752, %v752
  %v817 = vpack.c.b16 %v753, %v753
  %v818 = vpack.c.b16 %v754, %v754
  %v819 = vpack.c.b16 %v755, %v755
  %v820 = vpack.c.b16 %v756, %v756
  %v821 = vpack.c.b16 %v757, %v757
  %v822 = vpack.c.b16 %v758, %v758
  %v823 = vpack.c.b16 %v759, %v759
  %v824 = vpack.c.b16 %v760, %v760
  %v825 = vpack.c.b16 %v761, %v761
  %v826 = vpack.c.b16 %v762, %v762
  %v827 = vpack.c.b16 %v763, %v763
  %v828 = vpack.c.b16 %v764, %v764
  %v829 = vpack.c.b16 %v765, %v765
  %v830 = vpack.c.b16 %v766, %v766
  %v831 = vpack.c.b16 %v767, %v767
  %v832 = vpack.c.b16 %v768, %v768
  %v833 = vpack.c.b16 %v769, %v769
  %v834 = vpack.c.b16 %v770, %v770
  %v835 = vpack.c.b16 %v771, %v771
  %v836 = vpack.c.b16 %v772, %v772
  %v837 = vpack.c.b16 %v773, %v773
  %v838 = vpack.c.b16 %v774, %v774
  %v839 = vpack.c.b16 %v775, %v775
  %v840 = vpack.c.b16 %v776, %v776
  %v841 = vpack.c.b16 %v777, %v777
  %vm906 = vcmask 27648
  %907 = vst.msk [vmem:[%s3] sm:$0xf] %vm906, %v778
  %908 = vst.msk [vmem:[%s3 + $0x4] sm:$0xf] %vm906, %v779
  %909 = vst.msk [vmem:[%s3 + $0x8] sm:$0xf] %vm906, %v780
  %910 = vst.msk [vmem:[%s3 + $0xc] sm:$0xf] %vm906, %v781
  %911 = vst.msk [vmem:[%s3 + $0x10] sm:$0xf] %vm906, %v782
  %912 = vst.msk [vmem:[%s3 + $0x14] sm:$0xf] %vm906, %v783
  %913 = vst.msk [vmem:[%s3 + $0x18] sm:$0xf] %vm906, %v784
  %914 = vst.msk [vmem:[%s3 + $0x1c] sm:$0xf] %vm906, %v785
  %915 = vst.msk [vmem:[%s3 + $0x20] sm:$0xf] %vm906, %v786
  %916 = vst.msk [vmem:[%s3 + $0x24] sm:$0xf] %vm906, %v787
  %917 = vst.msk [vmem:[%s3 + $0x28] sm:$0xf] %vm906, %v788
  %918 = vst.msk [vmem:[%s3 + $0x2c] sm:$0xf] %vm906, %v789
  %919 = vst.msk [vmem:[%s3 + $0x30] sm:$0xf] %vm906, %v790
  %920 = vst.msk [vmem:[%s3 + $0x34] sm:$0xf] %vm906, %v791
  %921 = vst.msk [vmem:[%s3 + $0x38] sm:$0xf] %vm906, %v792
  %922 = vst.msk [vmem:[%s3 + $0x3c] sm:$0xf] %vm906, %v793
  %923 = vst.msk [vmem:[%s3 + $0x40] sm:$0xf] %vm906, %v794
  %924 = vst.msk [vmem:[%s3 + $0x44] sm:$0xf] %vm906, %v795
  %925 = vst.msk [vmem:[%s3 + $0x48] sm:$0xf] %vm906, %v796
  %926 = vst.msk [vmem:[%s3 + $0x4c] sm:$0xf] %vm906, %v797
  %927 = vst.msk [vmem:[%s3 + $0x50] sm:$0xf] %vm906, %v798
  %928 = vst.msk [vmem:[%s3 + $0x54] sm:$0xf] %vm906, %v799
  %929 = vst.msk [vmem:[%s3 + $0x58] sm:$0xf] %vm906, %v800
  %930 = vst.msk [vmem:[%s3 + $0x5c] sm:$0xf] %vm906, %v801
  %931 = vst.msk [vmem:[%s3 + $0x60] sm:$0xf] %vm906, %v802
  %932 = vst.msk [vmem:[%s3 + $0x64] sm:$0xf] %vm906, %v803
  %933 = vst.msk [vmem:[%s3 + $0x68] sm:$0xf] %vm906, %v804
  %934 = vst.msk [vmem:[%s3 + $0x6c] sm:$0xf] %vm906, %v805
  %935 = vst.msk [vmem:[%s3 + $0x70] sm:$0xf] %vm906, %v806
  %936 = vst.msk [vmem:[%s3 + $0x74] sm:$0xf] %vm906, %v807
  %937 = vst.msk [vmem:[%s3 + $0x78] sm:$0xf] %vm906, %v808
  %938 = vst.msk [vmem:[%s3 + $0x7c] sm:$0xf] %vm906, %v809
  %939 = vst.msk [vmem:[%s3 + $0x80] sm:$0xf] %vm906, %v810
  %940 = vst.msk [vmem:[%s3 + $0x84] sm:$0xf] %vm906, %v811
  %941 = vst.msk [vmem:[%s3 + $0x88] sm:$0xf] %vm906, %v812
  %942 = vst.msk [vmem:[%s3 + $0x8c] sm:$0xf] %vm906, %v813
  %943 = vst.msk [vmem:[%s3 + $0x90] sm:$0xf] %vm906, %v814
  %944 = vst.msk [vmem:[%s3 + $0x94] sm:$0xf] %vm906, %v815
  %945 = vst.msk [vmem:[%s3 + $0x98] sm:$0xf] %vm906, %v816
  %946 = vst.msk [vmem:[%s3 + $0x9c] sm:$0xf] %vm906, %v817
  %947 = vst.msk [vmem:[%s3 + $0xa0] sm:$0xf] %vm906, %v818
  %948 = vst.msk [vmem:[%s3 + $0xa4] sm:$0xf] %vm906, %v819
  %949 = vst.msk [vmem:[%s3 + $0xa8] sm:$0xf] %vm906, %v820
  %950 = vst.msk [vmem:[%s3 + $0xac] sm:$0xf] %vm906, %v821
  %951 = vst.msk [vmem:[%s3 + $0xb0] sm:$0xf] %vm906, %v822
  %952 = vst.msk [vmem:[%s3 + $0xb4] sm:$0xf] %vm906, %v823
  %953 = vst.msk [vmem:[%s3 + $0xb8] sm:$0xf] %vm906, %v824
  %954 = vst.msk [vmem:[%s3 + $0xbc] sm:$0xf] %vm906, %v825
  %955 = vst.msk [vmem:[%s3 + $0xc0] sm:$0xf] %vm906, %v826
  %956 = vst.msk [vmem:[%s3 + $0xc4] sm:$0xf] %vm906, %v827
  %957 = vst.msk [vmem:[%s3 + $0xc8] sm:$0xf] %vm906, %v828
  %958 = vst.msk [vmem:[%s3 + $0xcc] sm:$0xf] %vm906, %v829
  %959 = vst.msk [vmem:[%s3 + $0xd0] sm:$0xf] %vm906, %v830
  %960 = vst.msk [vmem:[%s3 + $0xd4] sm:$0xf] %vm906, %v831
  %961 = vst.msk [vmem:[%s3 + $0xd8] sm:$0xf] %vm906, %v832
  %962 = vst.msk [vmem:[%s3 + $0xdc] sm:$0xf] %vm906, %v833
  %963 = vst.msk [vmem:[%s3 + $0xe0] sm:$0xf] %vm906, %v834
  %964 = vst.msk [vmem:[%s3 + $0xe4] sm:$0xf] %vm906, %v835
  %965 = vst.msk [vmem:[%s3 + $0xe8] sm:$0xf] %vm906, %v836
  %966 = vst.msk [vmem:[%s3 + $0xec] sm:$0xf] %vm906, %v837
  %967 = vst.msk [vmem:[%s3 + $0xf0] sm:$0xf] %vm906, %v838
  %968 = vst.msk [vmem:[%s3 + $0xf4] sm:$0xf] %vm906, %v839
  %969 = vst.msk [vmem:[%s3 + $0xf8] sm:$0xf] %vm906, %v840
  %970 = vst.msk [vmem:[%s3 + $0xfc] sm:$0xf] %vm906, %v841
  %s971 = smul.u32 0, 512
  %v972 = vlaneseq
  %v973 = vshrl.u32 %v972, 7
  %v974 = vadd.s32 %v973, 8
  %v975 = vadd.s32 %v973, 16
  %v976 = vadd.s32 %v973, 24
  %v977 = vadd.s32 %v973, 32
  %v978 = vadd.s32 %v973, 40
  %v979 = vadd.s32 %v973, 48
  %v980 = vadd.s32 %v973, 56
  %v981 = vadd.s32 %v973, 64
  %v982 = vadd.s32 %v973, 72
  %v983 = vadd.s32 %v973, 80
  %v984 = vadd.s32 %v973, 88
  %v985 = vadd.s32 %v973, 96
  %v986 = vadd.s32 %v973, 104
  %v987 = vadd.s32 %v973, 112
  %v988 = vadd.s32 %v973, 120
  %v989 = vadd.s32 %v973, 128
  %v990 = vadd.s32 %v973, 136
  %v991 = vadd.s32 %v973, 144
  %v992 = vadd.s32 %v973, 152
  %v993 = vadd.s32 %v973, 160
  %v994 = vadd.s32 %v973, 168
  %v995 = vadd.s32 %v973, 176
  %v996 = vadd.s32 %v973, 184
  %v997 = vadd.s32 %v973, 192
  %v998 = vadd.s32 %v973, 200
  %v999 = vadd.s32 %v973, 208
  %v1000 = vadd.s32 %v973, 216
  %v1001 = vadd.s32 %v973, 224
  %v1002 = vadd.s32 %v973, 232
  %v1003 = vadd.s32 %v973, 240
  %v1004 = vadd.s32 %v973, 248
  %v1005 = vadd.s32 %v973, 256
  %v1006 = vadd.s32 %v973, 264
  %v1007 = vadd.s32 %v973, 272
  %v1008 = vadd.s32 %v973, 280
  %v1009 = vadd.s32 %v973, 288
  %v1010 = vadd.s32 %v973, 296
  %v1011 = vadd.s32 %v973, 304
  %v1012 = vadd.s32 %v973, 312
  %v1013 = vadd.s32 %v973, 320
  %v1014 = vadd.s32 %v973, 328
  %v1015 = vadd.s32 %v973, 336
  %v1016 = vadd.s32 %v973, 344
  %v1017 = vadd.s32 %v973, 352
  %v1018 = vadd.s32 %v973, 360
  %v1019 = vadd.s32 %v973, 368
  %v1020 = vadd.s32 %v973, 376
  %v1021 = vadd.s32 %v973, 384
  %v1022 = vadd.s32 %v973, 392
  %v1023 = vadd.s32 %v973, 400
  %v1024 = vadd.s32 %v973, 408
  %v1025 = vadd.s32 %v973, 416
  %v1026 = vadd.s32 %v973, 424
  %v1027 = vadd.s32 %v973, 432
  %v1028 = vadd.s32 %v973, 440
  %v1029 = vadd.s32 %v973, 448
  %v1030 = vadd.s32 %v973, 456
  %v1031 = vadd.s32 %v973, 464
  %v1032 = vadd.s32 %v973, 472
  %v1033 = vadd.s32 %v973, 480
  %v1034 = vadd.s32 %v973, 488
  %v1035 = vadd.s32 %v973, 496
  %v1036 = vadd.s32 %v973, 504
  %v1037 = vstv %s971
  %v1038 = vadd.s32 %v1037, %v973
  %v1039 = vadd.s32 %v1037, %v974
  %v1040 = vadd.s32 %v1037, %v975
  %v1041 = vadd.s32 %v1037, %v976
  %v1042 = vadd.s32 %v1037, %v977
  %v1043 = vadd.s32 %v1037, %v978
  %v1044 = vadd.s32 %v1037, %v979
  %v1045 = vadd.s32 %v1037, %v980
  %v1046 = vadd.s32 %v1037, %v981
  %v1047 = vadd.s32 %v1037, %v982
  %v1048 = vadd.s32 %v1037, %v983
  %v1049 = vadd.s32 %v1037, %v984
  %v1050 = vadd.s32 %v1037, %v985
  %v1051 = vadd.s32 %v1037, %v986
  %v1052 = vadd.s32 %v1037, %v987
  %v1053 = vadd.s32 %v1037, %v988
  %v1054 = vadd.s32 %v1037, %v989
  %v1055 = vadd.s32 %v1037, %v990
  %v1056 = vadd.s32 %v1037, %v991
  %v1057 = vadd.s32 %v1037, %v992
  %v1058 = vadd.s32 %v1037, %v993
  %v1059 = vadd.s32 %v1037, %v994
  %v1060 = vadd.s32 %v1037, %v995
  %v1061 = vadd.s32 %v1037, %v996
  %v1062 = vadd.s32 %v1037, %v997
  %v1063 = vadd.s32 %v1037, %v998
  %v1064 = vadd.s32 %v1037, %v999
  %v1065 = vadd.s32 %v1037, %v1000
  %v1066 = vadd.s32 %v1037, %v1001
  %v1067 = vadd.s32 %v1037, %v1002
  %v1068 = vadd.s32 %v1037, %v1003
  %v1069 = vadd.s32 %v1037, %v1004
  %v1070 = vadd.s32 %v1037, %v1005
  %v1071 = vadd.s32 %v1037, %v1006
  %v1072 = vadd.s32 %v1037, %v1007
  %v1073 = vadd.s32 %v1037, %v1008
  %v1074 = vadd.s32 %v1037, %v1009
  %v1075 = vadd.s32 %v1037, %v1010
  %v1076 = vadd.s32 %v1037, %v1011
  %v1077 = vadd.s32 %v1037, %v1012
  %v1078 = vadd.s32 %v1037, %v1013
  %v1079 = vadd.s32 %v1037, %v1014
  %v1080 = vadd.s32 %v1037, %v1015
  %v1081 = vadd.s32 %v1037, %v1016
  %v1082 = vadd.s32 %v1037, %v1017
  %v1083 = vadd.s32 %v1037, %v1018
  %v1084 = vadd.s32 %v1037, %v1019
  %v1085 = vadd.s32 %v1037, %v1020
  %v1086 = vadd.s32 %v1037, %v1021
  %v1087 = vadd.s32 %v1037, %v1022
  %v1088 = vadd.s32 %v1037, %v1023
  %v1089 = vadd.s32 %v1037, %v1024
  %v1090 = vadd.s32 %v1037, %v1025
  %v1091 = vadd.s32 %v1037, %v1026
  %v1092 = vadd.s32 %v1037, %v1027
  %v1093 = vadd.s32 %v1037, %v1028
  %v1094 = vadd.s32 %v1037, %v1029
  %v1095 = vadd.s32 %v1037, %v1030
  %v1096 = vadd.s32 %v1037, %v1031
  %v1097 = vadd.s32 %v1037, %v1032
  %v1098 = vadd.s32 %v1037, %v1033
  %v1099 = vadd.s32 %v1037, %v1034
  %v1100 = vadd.s32 %v1037, %v1035
  %v1101 = vadd.s32 %v1037, %v1036
  %vm1102 = vcmp.lt.s32.totalorder %v1038, 512
  %vm1103 = vcmp.lt.s32.totalorder %v1039, 512
  %vm1104 = vcmp.lt.s32.totalorder %v1040, 512
  %vm1105 = vcmp.lt.s32.totalorder %v1041, 512
  %vm1106 = vcmp.lt.s32.totalorder %v1042, 512
  %vm1107 = vcmp.lt.s32.totalorder %v1043, 512
  %vm1108 = vcmp.lt.s32.totalorder %v1044, 512
  %vm1109 = vcmp.lt.s32.totalorder %v1045, 512
  %vm1110 = vcmp.lt.s32.totalorder %v1046, 512
  %vm1111 = vcmp.lt.s32.totalorder %v1047, 512
  %vm1112 = vcmp.lt.s32.totalorder %v1048, 512
  %vm1113 = vcmp.lt.s32.totalorder %v1049, 512
  %vm1114 = vcmp.lt.s32.totalorder %v1050, 512
  %vm1115 = vcmp.lt.s32.totalorder %v1051, 512
  %vm1116 = vcmp.lt.s32.totalorder %v1052, 512
  %vm1117 = vcmp.lt.s32.totalorder %v1053, 512
  %vm1118 = vcmp.lt.s32.totalorder %v1054, 512
  %vm1119 = vcmp.lt.s32.totalorder %v1055, 512
  %vm1120 = vcmp.lt.s32.totalorder %v1056, 512
  %vm1121 = vcmp.lt.s32.totalorder %v1057, 512
  %vm1122 = vcmp.lt.s32.totalorder %v1058, 512
  %vm1123 = vcmp.lt.s32.totalorder %v1059, 512
  %vm1124 = vcmp.lt.s32.totalorder %v1060, 512
  %vm1125 = vcmp.lt.s32.totalorder %v1061, 512
  %vm1126 = vcmp.lt.s32.totalorder %v1062, 512
  %vm1127 = vcmp.lt.s32.totalorder %v1063, 512
  %vm1128 = vcmp.lt.s32.totalorder %v1064, 512
  %vm1129 = vcmp.lt.s32.totalorder %v1065, 512
  %vm1130 = vcmp.lt.s32.totalorder %v1066, 512
  %vm1131 = vcmp.lt.s32.totalorder %v1067, 512
  %vm1132 = vcmp.lt.s32.totalorder %v1068, 512
  %vm1133 = vcmp.lt.s32.totalorder %v1069, 512
  %vm1134 = vcmp.lt.s32.totalorder %v1070, 512
  %vm1135 = vcmp.lt.s32.totalorder %v1071, 512
  %vm1136 = vcmp.lt.s32.totalorder %v1072, 512
  %vm1137 = vcmp.lt.s32.totalorder %v1073, 512
  %vm1138 = vcmp.lt.s32.totalorder %v1074, 512
  %vm1139 = vcmp.lt.s32.totalorder %v1075, 512
  %vm1140 = vcmp.lt.s32.totalorder %v1076, 512
  %vm1141 = vcmp.lt.s32.totalorder %v1077, 512
  %vm1142 = vcmp.lt.s32.totalorder %v1078, 512
  %vm1143 = vcmp.lt.s32.totalorder %v1079, 512
  %vm1144 = vcmp.lt.s32.totalorder %v1080, 512
  %vm1145 = vcmp.lt.s32.totalorder %v1081, 512
  %vm1146 = vcmp.lt.s32.totalorder %v1082, 512
  %vm1147 = vcmp.lt.s32.totalorder %v1083, 512
  %vm1148 = vcmp.lt.s32.totalorder %v1084, 512
  %vm1149 = vcmp.lt.s32.totalorder %v1085, 512
  %vm1150 = vcmp.lt.s32.totalorder %v1086, 512
  %vm1151 = vcmp.lt.s32.totalorder %v1087, 512
  %vm1152 = vcmp.lt.s32.totalorder %v1088, 512
  %vm1153 = vcmp.lt.s32.totalorder %v1089, 512
  %vm1154 = vcmp.lt.s32.totalorder %v1090, 512
  %vm1155 = vcmp.lt.s32.totalorder %v1091, 512
  %vm1156 = vcmp.lt.s32.totalorder %v1092, 512
  %vm1157 = vcmp.lt.s32.totalorder %v1093, 512
  %vm1158 = vcmp.lt.s32.totalorder %v1094, 512
  %vm1159 = vcmp.lt.s32.totalorder %v1095, 512
  %vm1160 = vcmp.lt.s32.totalorder %v1096, 512
  %vm1161 = vcmp.lt.s32.totalorder %v1097, 512
  %vm1162 = vcmp.lt.s32.totalorder %v1098, 512
  %vm1163 = vcmp.lt.s32.totalorder %v1099, 512
  %vm1164 = vcmp.lt.s32.totalorder %v1100, 512
  %vm1165 = vcmp.lt.s32.totalorder %v1101, 512
  %v1166 = vsel %vm1102, 1, 0
  %v1167 = vsel %vm1103, 1, 0
  %v1168 = vsel %vm1104, 1, 0
  %v1169 = vsel %vm1105, 1, 0
  %v1170 = vsel %vm1106, 1, 0
  %v1171 = vsel %vm1107, 1, 0
  %v1172 = vsel %vm1108, 1, 0
  %v1173 = vsel %vm1109, 1, 0
  %v1174 = vsel %vm1110, 1, 0
  %v1175 = vsel %vm1111, 1, 0
  %v1176 = vsel %vm1112, 1, 0
  %v1177 = vsel %vm1113, 1, 0
  %v1178 = vsel %vm1114, 1, 0
  %v1179 = vsel %vm1115, 1, 0
  %v1180 = vsel %vm1116, 1, 0
  %v1181 = vsel %vm1117, 1, 0
  %v1182 = vsel %vm1118, 1, 0
  %v1183 = vsel %vm1119, 1, 0
  %v1184 = vsel %vm1120, 1, 0
  %v1185 = vsel %vm1121, 1, 0
  %v1186 = vsel %vm1122, 1, 0
  %v1187 = vsel %vm1123, 1, 0
  %v1188 = vsel %vm1124, 1, 0
  %v1189 = vsel %vm1125, 1, 0
  %v1190 = vsel %vm1126, 1, 0
  %v1191 = vsel %vm1127, 1, 0
  %v1192 = vsel %vm1128, 1, 0
  %v1193 = vsel %vm1129, 1, 0
  %v1194 = vsel %vm1130, 1, 0
  %v1195 = vsel %vm1131, 1, 0
  %v1196 = vsel %vm1132, 1, 0
  %v1197 = vsel %vm1133, 1, 0
  %v1198 = vsel %vm1134, 1, 0
  %v1199 = vsel %vm1135, 1, 0
  %v1200 = vsel %vm1136, 1, 0
  %v1201 = vsel %vm1137, 1, 0
  %v1202 = vsel %vm1138, 1, 0
  %v1203 = vsel %vm1139, 1, 0
  %v1204 = vsel %vm1140, 1, 0
  %v1205 = vsel %vm1141, 1, 0
  %v1206 = vsel %vm1142, 1, 0
  %v1207 = vsel %vm1143, 1, 0
  %v1208 = vsel %vm1144, 1, 0
  %v1209 = vsel %vm1145, 1, 0
  %v1210 = vsel %vm1146, 1, 0
  %v1211 = vsel %vm1147, 1, 0
  %v1212 = vsel %vm1148, 1, 0
  %v1213 = vsel %vm1149, 1, 0
  %v1214 = vsel %vm1150, 1, 0
  %v1215 = vsel %vm1151, 1, 0
  %v1216 = vsel %vm1152, 1, 0
  %v1217 = vsel %vm1153, 1, 0
  %v1218 = vsel %vm1154, 1, 0
  %v1219 = vsel %vm1155, 1, 0
  %v1220 = vsel %vm1156, 1, 0
  %v1221 = vsel %vm1157, 1, 0
  %v1222 = vsel %vm1158, 1, 0
  %v1223 = vsel %vm1159, 1, 0
  %v1224 = vsel %vm1160, 1, 0
  %v1225 = vsel %vm1161, 1, 0
  %v1226 = vsel %vm1162, 1, 0
  %v1227 = vsel %vm1163, 1, 0
  %v1228 = vsel %vm1164, 1, 0
  %v1229 = vsel %vm1165, 1, 0
  %vm1230 = vcmp.eq.s32.totalorder %v1166, 1
  %vm1231 = vcmp.eq.s32.totalorder %v1167, 1
  %vm1232 = vcmp.eq.s32.totalorder %v1168, 1
  %vm1233 = vcmp.eq.s32.totalorder %v1169, 1
  %vm1234 = vcmp.eq.s32.totalorder %v1170, 1
  %vm1235 = vcmp.eq.s32.totalorder %v1171, 1
  %vm1236 = vcmp.eq.s32.totalorder %v1172, 1
  %vm1237 = vcmp.eq.s32.totalorder %v1173, 1
  %vm1238 = vcmp.eq.s32.totalorder %v1174, 1
  %vm1239 = vcmp.eq.s32.totalorder %v1175, 1
  %vm1240 = vcmp.eq.s32.totalorder %v1176, 1
  %vm1241 = vcmp.eq.s32.totalorder %v1177, 1
  %vm1242 = vcmp.eq.s32.totalorder %v1178, 1
  %vm1243 = vcmp.eq.s32.totalorder %v1179, 1
  %vm1244 = vcmp.eq.s32.totalorder %v1180, 1
  %vm1245 = vcmp.eq.s32.totalorder %v1181, 1
  %vm1246 = vcmp.eq.s32.totalorder %v1182, 1
  %vm1247 = vcmp.eq.s32.totalorder %v1183, 1
  %vm1248 = vcmp.eq.s32.totalorder %v1184, 1
  %vm1249 = vcmp.eq.s32.totalorder %v1185, 1
  %vm1250 = vcmp.eq.s32.totalorder %v1186, 1
  %vm1251 = vcmp.eq.s32.totalorder %v1187, 1
  %vm1252 = vcmp.eq.s32.totalorder %v1188, 1
  %vm1253 = vcmp.eq.s32.totalorder %v1189, 1
  %vm1254 = vcmp.eq.s32.totalorder %v1190, 1
  %vm1255 = vcmp.eq.s32.totalorder %v1191, 1
  %vm1256 = vcmp.eq.s32.totalorder %v1192, 1
  %vm1257 = vcmp.eq.s32.totalorder %v1193, 1
  %vm1258 = vcmp.eq.s32.totalorder %v1194, 1
  %vm1259 = vcmp.eq.s32.totalorder %v1195, 1
  %vm1260 = vcmp.eq.s32.totalorder %v1196, 1
  %vm1261 = vcmp.eq.s32.totalorder %v1197, 1
  %vm1262 = vcmp.eq.s32.totalorder %v1198, 1
  %vm1263 = vcmp.eq.s32.totalorder %v1199, 1
  %vm1264 = vcmp.eq.s32.totalorder %v1200, 1
  %vm1265 = vcmp.eq.s32.totalorder %v1201, 1
  %vm1266 = vcmp.eq.s32.totalorder %v1202, 1
  %vm1267 = vcmp.eq.s32.totalorder %v1203, 1
  %vm1268 = vcmp.eq.s32.totalorder %v1204, 1
  %vm1269 = vcmp.eq.s32.totalorder %v1205, 1
  %vm1270 = vcmp.eq.s32.totalorder %v1206, 1
  %vm1271 = vcmp.eq.s32.totalorder %v1207, 1
  %vm1272 = vcmp.eq.s32.totalorder %v1208, 1
  %vm1273 = vcmp.eq.s32.totalorder %v1209, 1
  %vm1274 = vcmp.eq.s32.totalorder %v1210, 1
  %vm1275 = vcmp.eq.s32.totalorder %v1211, 1
  %vm1276 = vcmp.eq.s32.totalorder %v1212, 1
  %vm1277 = vcmp.eq.s32.totalorder %v1213, 1
  %vm1278 = vcmp.eq.s32.totalorder %v1214, 1
  %vm1279 = vcmp.eq.s32.totalorder %v1215, 1
  %vm1280 = vcmp.eq.s32.totalorder %v1216, 1
  %vm1281 = vcmp.eq.s32.totalorder %v1217, 1
  %vm1282 = vcmp.eq.s32.totalorder %v1218, 1
  %vm1283 = vcmp.eq.s32.totalorder %v1219, 1
  %vm1284 = vcmp.eq.s32.totalorder %v1220, 1
  %vm1285 = vcmp.eq.s32.totalorder %v1221, 1
  %vm1286 = vcmp.eq.s32.totalorder %v1222, 1
  %vm1287 = vcmp.eq.s32.totalorder %v1223, 1
  %vm1288 = vcmp.eq.s32.totalorder %v1224, 1
  %vm1289 = vcmp.eq.s32.totalorder %v1225, 1
  %vm1290 = vcmp.eq.s32.totalorder %v1226, 1
  %vm1291 = vcmp.eq.s32.totalorder %v1227, 1
  %vm1292 = vcmp.eq.s32.totalorder %v1228, 1
  %vm1293 = vcmp.eq.s32.totalorder %v1229, 1
  %v1294 = vsel %vm1230, %v396, 0.0
  %v1295 = vsel %vm1231, %v399, 0.0
  %v1296 = vsel %vm1232, %v404, 0.0
  %v1297 = vsel %vm1233, %v407, 0.0
  %v1298 = vsel %vm1234, %v412, 0.0
  %v1299 = vsel %vm1235, %v415, 0.0
  %v1300 = vsel %vm1236, %v420, 0.0
  %v1301 = vsel %vm1237, %v423, 0.0
  %v1302 = vsel %vm1238, %v428, 0.0
  %v1303 = vsel %vm1239, %v431, 0.0
  %v1304 = vsel %vm1240, %v436, 0.0
  %v1305 = vsel %vm1241, %v439, 0.0
  %v1306 = vsel %vm1242, %v444, 0.0
  %v1307 = vsel %vm1243, %v447, 0.0
  %v1308 = vsel %vm1244, %v452, 0.0
  %v1309 = vsel %vm1245, %v455, 0.0
  %v1310 = vsel %vm1246, %v460, 0.0
  %v1311 = vsel %vm1247, %v463, 0.0
  %v1312 = vsel %vm1248, %v468, 0.0
  %v1313 = vsel %vm1249, %v471, 0.0
  %v1314 = vsel %vm1250, %v476, 0.0
  %v1315 = vsel %vm1251, %v479, 0.0
  %v1316 = vsel %vm1252, %v484, 0.0
  %v1317 = vsel %vm1253, %v487, 0.0
  %v1318 = vsel %vm1254, %v492, 0.0
  %v1319 = vsel %vm1255, %v495, 0.0
  %v1320 = vsel %vm1256, %v500, 0.0
  %v1321 = vsel %vm1257, %v503, 0.0
  %v1322 = vsel %vm1258, %v508, 0.0
  %v1323 = vsel %vm1259, %v511, 0.0
  %v1324 = vsel %vm1260, %v516, 0.0
  %v1325 = vsel %vm1261, %v519, 0.0
  %v1326 = vsel %vm1262, %v524, 0.0
  %v1327 = vsel %vm1263, %v527, 0.0
  %v1328 = vsel %vm1264, %v532, 0.0
  %v1329 = vsel %vm1265, %v535, 0.0
  %v1330 = vsel %vm1266, %v540, 0.0
  %v1331 = vsel %vm1267, %v543, 0.0
  %v1332 = vsel %vm1268, %v548, 0.0
  %v1333 = vsel %vm1269, %v551, 0.0
  %v1334 = vsel %vm1270, %v556, 0.0
  %v1335 = vsel %vm1271, %v559, 0.0
  %v1336 = vsel %vm1272, %v564, 0.0
  %v1337 = vsel %vm1273, %v567, 0.0
  %v1338 = vsel %vm1274, %v572, 0.0
  %v1339 = vsel %vm1275, %v575, 0.0
  %v1340 = vsel %vm1276, %v580, 0.0
  %v1341 = vsel %vm1277, %v583, 0.0
  %v1342 = vsel %vm1278, %v588, 0.0
  %v1343 = vsel %vm1279, %v591, 0.0
  %v1344 = vsel %vm1280, %v596, 0.0
  %v1345 = vsel %vm1281, %v599, 0.0
  %v1346 = vsel %vm1282, %v604, 0.0
  %v1347 = vsel %vm1283, %v607, 0.0
  %v1348 = vsel %vm1284, %v612, 0.0
  %v1349 = vsel %vm1285, %v615, 0.0
  %v1350 = vsel %vm1286, %v620, 0.0
  %v1351 = vsel %vm1287, %v623, 0.0
  %v1352 = vsel %vm1288, %v628, 0.0
  %v1353 = vsel %vm1289, %v631, 0.0
  %v1354 = vsel %vm1290, %v636, 0.0
  %v1355 = vsel %vm1291, %v639, 0.0
  %v1356 = vsel %vm1292, %v644, 0.0
  %v1357 = vsel %vm1293, %v647, 0.0
  %v1358 = vld [vmem:[%s4] sm:$0x1]
  %vm1359 = vcmask 31744
  %v1360 = vsel %vm1359, %v1294, 0.0
  %v1361 = vsel %vm1359, %v1295, 0.0
  %v1362 = vadd.f32 %v1360, %v1361
  %v1363 = vsel %vm1359, %v1296, 0.0
  %v1364 = vadd.f32 %v1362, %v1363
  %v1365 = vsel %vm1359, %v1297, 0.0
  %v1366 = vadd.f32 %v1364, %v1365
  %v1367 = vsel %vm1359, %v1298, 0.0
  %v1368 = vadd.f32 %v1366, %v1367
  %v1369 = vsel %vm1359, %v1299, 0.0
  %v1370 = vadd.f32 %v1368, %v1369
  %v1371 = vsel %vm1359, %v1300, 0.0
  %v1372 = vadd.f32 %v1370, %v1371
  %v1373 = vsel %vm1359, %v1301, 0.0
  %v1374 = vadd.f32 %v1372, %v1373
  %v1375 = vsel %vm1359, %v1302, 0.0
  %v1376 = vadd.f32 %v1374, %v1375
  %v1377 = vsel %vm1359, %v1303, 0.0
  %v1378 = vadd.f32 %v1376, %v1377
  %v1379 = vsel %vm1359, %v1304, 0.0
  %v1380 = vadd.f32 %v1378, %v1379
  %v1381 = vsel %vm1359, %v1305, 0.0
  %v1382 = vadd.f32 %v1380, %v1381
  %v1383 = vsel %vm1359, %v1306, 0.0
  %v1384 = vadd.f32 %v1382, %v1383
  %v1385 = vsel %vm1359, %v1307, 0.0
  %v1386 = vadd.f32 %v1384, %v1385
  %v1387 = vsel %vm1359, %v1308, 0.0
  %v1388 = vadd.f32 %v1386, %v1387
  %v1389 = vsel %vm1359, %v1309, 0.0
  %v1390 = vadd.f32 %v1388, %v1389
  %v1391 = vsel %vm1359, %v1310, 0.0
  %v1392 = vadd.f32 %v1390, %v1391
  %v1393 = vsel %vm1359, %v1311, 0.0
  %v1394 = vadd.f32 %v1392, %v1393
  %v1395 = vsel %vm1359, %v1312, 0.0
  %v1396 = vadd.f32 %v1394, %v1395
  %v1397 = vsel %vm1359, %v1313, 0.0
  %v1398 = vadd.f32 %v1396, %v1397
  %v1399 = vsel %vm1359, %v1314, 0.0
  %v1400 = vadd.f32 %v1398, %v1399
  %v1401 = vsel %vm1359, %v1315, 0.0
  %v1402 = vadd.f32 %v1400, %v1401
  %v1403 = vsel %vm1359, %v1316, 0.0
  %v1404 = vadd.f32 %v1402, %v1403
  %v1405 = vsel %vm1359, %v1317, 0.0
  %v1406 = vadd.f32 %v1404, %v1405
  %v1407 = vsel %vm1359, %v1318, 0.0
  %v1408 = vadd.f32 %v1406, %v1407
  %v1409 = vsel %vm1359, %v1319, 0.0
  %v1410 = vadd.f32 %v1408, %v1409
  %v1411 = vsel %vm1359, %v1320, 0.0
  %v1412 = vadd.f32 %v1410, %v1411
  %v1413 = vsel %vm1359, %v1321, 0.0
  %v1414 = vadd.f32 %v1412, %v1413
  %v1415 = vsel %vm1359, %v1322, 0.0
  %v1416 = vadd.f32 %v1414, %v1415
  %v1417 = vsel %vm1359, %v1323, 0.0
  %v1418 = vadd.f32 %v1416, %v1417
  %v1419 = vsel %vm1359, %v1324, 0.0
  %v1420 = vadd.f32 %v1418, %v1419
  %v1421 = vsel %vm1359, %v1325, 0.0
  %v1422 = vadd.f32 %v1420, %v1421
  %v1423 = vsel %vm1359, %v1326, 0.0
  %v1424 = vadd.f32 %v1422, %v1423
  %v1425 = vsel %vm1359, %v1327, 0.0
  %v1426 = vadd.f32 %v1424, %v1425
  %v1427 = vsel %vm1359, %v1328, 0.0
  %v1428 = vadd.f32 %v1426, %v1427
  %v1429 = vsel %vm1359, %v1329, 0.0
  %v1430 = vadd.f32 %v1428, %v1429
  %v1431 = vsel %vm1359, %v1330, 0.0
  %v1432 = vadd.f32 %v1430, %v1431
  %v1433 = vsel %vm1359, %v1331, 0.0
  %v1434 = vadd.f32 %v1432, %v1433
  %v1435 = vsel %vm1359, %v1332, 0.0
  %v1436 = vadd.f32 %v1434, %v1435
  %v1437 = vsel %vm1359, %v1333, 0.0
  %v1438 = vadd.f32 %v1436, %v1437
  %v1439 = vsel %vm1359, %v1334, 0.0
  %v1440 = vadd.f32 %v1438, %v1439
  %v1441 = vsel %vm1359, %v1335, 0.0
  %v1442 = vadd.f32 %v1440, %v1441
  %v1443 = vsel %vm1359, %v1336, 0.0
  %v1444 = vadd.f32 %v1442, %v1443
  %v1445 = vsel %vm1359, %v1337, 0.0
  %v1446 = vadd.f32 %v1444, %v1445
  %v1447 = vsel %vm1359, %v1338, 0.0
  %v1448 = vadd.f32 %v1446, %v1447
  %v1449 = vsel %vm1359, %v1339, 0.0
  %v1450 = vadd.f32 %v1448, %v1449
  %v1451 = vsel %vm1359, %v1340, 0.0
  %v1452 = vadd.f32 %v1450, %v1451
  %v1453 = vsel %vm1359, %v1341, 0.0
  %v1454 = vadd.f32 %v1452, %v1453
  %v1455 = vsel %vm1359, %v1342, 0.0
  %v1456 = vadd.f32 %v1454, %v1455
  %v1457 = vsel %vm1359, %v1343, 0.0
  %v1458 = vadd.f32 %v1456, %v1457
  %v1459 = vsel %vm1359, %v1344, 0.0
  %v1460 = vadd.f32 %v1458, %v1459
  %v1461 = vsel %vm1359, %v1345, 0.0
  %v1462 = vadd.f32 %v1460, %v1461
  %v1463 = vsel %vm1359, %v1346, 0.0
  %v1464 = vadd.f32 %v1462, %v1463
  %v1465 = vsel %vm1359, %v1347, 0.0
  %v1466 = vadd.f32 %v1464, %v1465
  %v1467 = vsel %vm1359, %v1348, 0.0
  %v1468 = vadd.f32 %v1466, %v1467
  %v1469 = vsel %vm1359, %v1349, 0.0
  %v1470 = vadd.f32 %v1468, %v1469
  %v1471 = vsel %vm1359, %v1350, 0.0
  %v1472 = vadd.f32 %v1470, %v1471
  %v1473 = vsel %vm1359, %v1351, 0.0
  %v1474 = vadd.f32 %v1472, %v1473
  %v1475 = vsel %vm1359, %v1352, 0.0
  %v1476 = vadd.f32 %v1474, %v1475
  %v1477 = vsel %vm1359, %v1353, 0.0
  %v1478 = vadd.f32 %v1476, %v1477
  %v1479 = vsel %vm1359, %v1354, 0.0
  %v1480 = vadd.f32 %v1478, %v1479
  %v1481 = vsel %vm1359, %v1355, 0.0
  %v1482 = vadd.f32 %v1480, %v1481
  %v1483 = vsel %vm1359, %v1356, 0.0
  %v1484 = vadd.f32 %v1482, %v1483
  %v1485 = vsel %vm1359, %v1357, 0.0
  %v1486 = vadd.f32 %v1484, %v1485
  %v1487 = vrot.slane %v1486, 4
  %v1488 = vadd.f32 %v1486, %v1487
  %v1489 = vrot.slane %v1488, 2
  %v1490 = vadd.f32 %v1488, %v1489
  %v1491 = vrot.slane %v1490, 1
  %v1492 = vadd.f32 %v1490, %v1491
  %v1493 = vadd.f32 %v1358, %v1492
  %vm1494 = vcmask 24576
  %1495 = vst.msk [vmem:[%s4] sm:$0x1] %vm1494, %v1493
  %v1496 = vld [vmem:[%s5] sm:$0x1]
  %v1497 = vmul.f32 %v1294, %v1294
  %v1498 = vmul.f32 %v1295, %v1295
  %v1499 = vmul.f32 %v1296, %v1296
  %v1500 = vmul.f32 %v1297, %v1297
  %v1501 = vmul.f32 %v1298, %v1298
  %v1502 = vmul.f32 %v1299, %v1299
  %v1503 = vmul.f32 %v1300, %v1300
  %v1504 = vmul.f32 %v1301, %v1301
  %v1505 = vmul.f32 %v1302, %v1302
  %v1506 = vmul.f32 %v1303, %v1303
  %v1507 = vmul.f32 %v1304, %v1304
  %v1508 = vmul.f32 %v1305, %v1305
  %v1509 = vmul.f32 %v1306, %v1306
  %v1510 = vmul.f32 %v1307, %v1307
  %v1511 = vmul.f32 %v1308, %v1308
  %v1512 = vmul.f32 %v1309, %v1309
  %v1513 = vmul.f32 %v1310, %v1310
  %v1514 = vmul.f32 %v1311, %v1311
  %v1515 = vmul.f32 %v1312, %v1312
  %v1516 = vmul.f32 %v1313, %v1313
  %v1517 = vmul.f32 %v1314, %v1314
  %v1518 = vmul.f32 %v1315, %v1315
  %v1519 = vmul.f32 %v1316, %v1316
  %v1520 = vmul.f32 %v1317, %v1317
  %v1521 = vmul.f32 %v1318, %v1318
  %v1522 = vmul.f32 %v1319, %v1319
  %v1523 = vmul.f32 %v1320, %v1320
  %v1524 = vmul.f32 %v1321, %v1321
  %v1525 = vmul.f32 %v1322, %v1322
  %v1526 = vmul.f32 %v1323, %v1323
  %v1527 = vmul.f32 %v1324, %v1324
  %v1528 = vmul.f32 %v1325, %v1325
  %v1529 = vmul.f32 %v1326, %v1326
  %v1530 = vmul.f32 %v1327, %v1327
  %v1531 = vmul.f32 %v1328, %v1328
  %v1532 = vmul.f32 %v1329, %v1329
  %v1533 = vmul.f32 %v1330, %v1330
  %v1534 = vmul.f32 %v1331, %v1331
  %v1535 = vmul.f32 %v1332, %v1332
  %v1536 = vmul.f32 %v1333, %v1333
  %v1537 = vmul.f32 %v1334, %v1334
  %v1538 = vmul.f32 %v1335, %v1335
  %v1539 = vmul.f32 %v1336, %v1336
  %v1540 = vmul.f32 %v1337, %v1337
  %v1541 = vmul.f32 %v1338, %v1338
  %v1542 = vmul.f32 %v1339, %v1339
  %v1543 = vmul.f32 %v1340, %v1340
  %v1544 = vmul.f32 %v1341, %v1341
  %v1545 = vmul.f32 %v1342, %v1342
  %v1546 = vmul.f32 %v1343, %v1343
  %v1547 = vmul.f32 %v1344, %v1344
  %v1548 = vmul.f32 %v1345, %v1345
  %v1549 = vmul.f32 %v1346, %v1346
  %v1550 = vmul.f32 %v1347, %v1347
  %v1551 = vmul.f32 %v1348, %v1348
  %v1552 = vmul.f32 %v1349, %v1349
  %v1553 = vmul.f32 %v1350, %v1350
  %v1554 = vmul.f32 %v1351, %v1351
  %v1555 = vmul.f32 %v1352, %v1352
  %v1556 = vmul.f32 %v1353, %v1353
  %v1557 = vmul.f32 %v1354, %v1354
  %v1558 = vmul.f32 %v1355, %v1355
  %v1559 = vmul.f32 %v1356, %v1356
  %v1560 = vmul.f32 %v1357, %v1357
  %v1561 = vsel %vm1359, %v1497, 0.0
  %v1562 = vsel %vm1359, %v1498, 0.0
  %v1563 = vadd.f32 %v1561, %v1562
  %v1564 = vsel %vm1359, %v1499, 0.0
  %v1565 = vadd.f32 %v1563, %v1564
  %v1566 = vsel %vm1359, %v1500, 0.0
  %v1567 = vadd.f32 %v1565, %v1566
  %v1568 = vsel %vm1359, %v1501, 0.0
  %v1569 = vadd.f32 %v1567, %v1568
  %v1570 = vsel %vm1359, %v1502, 0.0
  %v1571 = vadd.f32 %v1569, %v1570
  %v1572 = vsel %vm1359, %v1503, 0.0
  %v1573 = vadd.f32 %v1571, %v1572
  %v1574 = vsel %vm1359, %v1504, 0.0
  %v1575 = vadd.f32 %v1573, %v1574
  %v1576 = vsel %vm1359, %v1505, 0.0
  %v1577 = vadd.f32 %v1575, %v1576
  %v1578 = vsel %vm1359, %v1506, 0.0
  %v1579 = vadd.f32 %v1577, %v1578
  %v1580 = vsel %vm1359, %v1507, 0.0
  %v1581 = vadd.f32 %v1579, %v1580
  %v1582 = vsel %vm1359, %v1508, 0.0
  %v1583 = vadd.f32 %v1581, %v1582
  %v1584 = vsel %vm1359, %v1509, 0.0
  %v1585 = vadd.f32 %v1583, %v1584
  %v1586 = vsel %vm1359, %v1510, 0.0
  %v1587 = vadd.f32 %v1585, %v1586
  %v1588 = vsel %vm1359, %v1511, 0.0
  %v1589 = vadd.f32 %v1587, %v1588
  %v1590 = vsel %vm1359, %v1512, 0.0
  %v1591 = vadd.f32 %v1589, %v1590
  %v1592 = vsel %vm1359, %v1513, 0.0
  %v1593 = vadd.f32 %v1591, %v1592
  %v1594 = vsel %vm1359, %v1514, 0.0
  %v1595 = vadd.f32 %v1593, %v1594
  %v1596 = vsel %vm1359, %v1515, 0.0
  %v1597 = vadd.f32 %v1595, %v1596
  %v1598 = vsel %vm1359, %v1516, 0.0
  %v1599 = vadd.f32 %v1597, %v1598
  %v1600 = vsel %vm1359, %v1517, 0.0
  %v1601 = vadd.f32 %v1599, %v1600
  %v1602 = vsel %vm1359, %v1518, 0.0
  %v1603 = vadd.f32 %v1601, %v1602
  %v1604 = vsel %vm1359, %v1519, 0.0
  %v1605 = vadd.f32 %v1603, %v1604
  %v1606 = vsel %vm1359, %v1520, 0.0
  %v1607 = vadd.f32 %v1605, %v1606
  %v1608 = vsel %vm1359, %v1521, 0.0
  %v1609 = vadd.f32 %v1607, %v1608
  %v1610 = vsel %vm1359, %v1522, 0.0
  %v1611 = vadd.f32 %v1609, %v1610
  %v1612 = vsel %vm1359, %v1523, 0.0
  %v1613 = vadd.f32 %v1611, %v1612
  %v1614 = vsel %vm1359, %v1524, 0.0
  %v1615 = vadd.f32 %v1613, %v1614
  %v1616 = vsel %vm1359, %v1525, 0.0
  %v1617 = vadd.f32 %v1615, %v1616
  %v1618 = vsel %vm1359, %v1526, 0.0
  %v1619 = vadd.f32 %v1617, %v1618
  %v1620 = vsel %vm1359, %v1527, 0.0
  %v1621 = vadd.f32 %v1619, %v1620
  %v1622 = vsel %vm1359, %v1528, 0.0
  %v1623 = vadd.f32 %v1621, %v1622
  %v1624 = vsel %vm1359, %v1529, 0.0
  %v1625 = vadd.f32 %v1623, %v1624
  %v1626 = vsel %vm1359, %v1530, 0.0
  %v1627 = vadd.f32 %v1625, %v1626
  %v1628 = vsel %vm1359, %v1531, 0.0
  %v1629 = vadd.f32 %v1627, %v1628
  %v1630 = vsel %vm1359, %v1532, 0.0
  %v1631 = vadd.f32 %v1629, %v1630
  %v1632 = vsel %vm1359, %v1533, 0.0
  %v1633 = vadd.f32 %v1631, %v1632
  %v1634 = vsel %vm1359, %v1534, 0.0
  %v1635 = vadd.f32 %v1633, %v1634
  %v1636 = vsel %vm1359, %v1535, 0.0
  %v1637 = vadd.f32 %v1635, %v1636
  %v1638 = vsel %vm1359, %v1536, 0.0
  %v1639 = vadd.f32 %v1637, %v1638
  %v1640 = vsel %vm1359, %v1537, 0.0
  %v1641 = vadd.f32 %v1639, %v1640
  %v1642 = vsel %vm1359, %v1538, 0.0
  %v1643 = vadd.f32 %v1641, %v1642
  %v1644 = vsel %vm1359, %v1539, 0.0
  %v1645 = vadd.f32 %v1643, %v1644
  %v1646 = vsel %vm1359, %v1540, 0.0
  %v1647 = vadd.f32 %v1645, %v1646
  %v1648 = vsel %vm1359, %v1541, 0.0
  %v1649 = vadd.f32 %v1647, %v1648
  %v1650 = vsel %vm1359, %v1542, 0.0
  %v1651 = vadd.f32 %v1649, %v1650
  %v1652 = vsel %vm1359, %v1543, 0.0
  %v1653 = vadd.f32 %v1651, %v1652
  %v1654 = vsel %vm1359, %v1544, 0.0
  %v1655 = vadd.f32 %v1653, %v1654
  %v1656 = vsel %vm1359, %v1545, 0.0
  %v1657 = vadd.f32 %v1655, %v1656
  %v1658 = vsel %vm1359, %v1546, 0.0
  %v1659 = vadd.f32 %v1657, %v1658
  %v1660 = vsel %vm1359, %v1547, 0.0
  %v1661 = vadd.f32 %v1659, %v1660
  %v1662 = vsel %vm1359, %v1548, 0.0
  %v1663 = vadd.f32 %v1661, %v1662
  %v1664 = vsel %vm1359, %v1549, 0.0
  %v1665 = vadd.f32 %v1663, %v1664
  %v1666 = vsel %vm1359, %v1550, 0.0
  %v1667 = vadd.f32 %v1665, %v1666
  %v1668 = vsel %vm1359, %v1551, 0.0
  %v1669 = vadd.f32 %v1667, %v1668
  %v1670 = vsel %vm1359, %v1552, 0.0
  %v1671 = vadd.f32 %v1669, %v1670
  %v1672 = vsel %vm1359, %v1553, 0.0
  %v1673 = vadd.f32 %v1671, %v1672
  %v1674 = vsel %vm1359, %v1554, 0.0
  %v1675 = vadd.f32 %v1673, %v1674
  %v1676 = vsel %vm1359, %v1555, 0.0
  %v1677 = vadd.f32 %v1675, %v1676
  %v1678 = vsel %vm1359, %v1556, 0.0
  %v1679 = vadd.f32 %v1677, %v1678
  %v1680 = vsel %vm1359, %v1557, 0.0
  %v1681 = vadd.f32 %v1679, %v1680
  %v1682 = vsel %vm1359, %v1558, 0.0
  %v1683 = vadd.f32 %v1681, %v1682
  %v1684 = vsel %vm1359, %v1559, 0.0
  %v1685 = vadd.f32 %v1683, %v1684
  %v1686 = vsel %vm1359, %v1560, 0.0
  %v1687 = vadd.f32 %v1685, %v1686
  %v1688 = vrot.slane %v1687, 4
  %v1689 = vadd.f32 %v1687, %v1688
  %v1690 = vrot.slane %v1689, 2
  %v1691 = vadd.f32 %v1689, %v1690
  %v1692 = vrot.slane %v1691, 1
  %v1693 = vadd.f32 %v1691, %v1692
  %v1694 = vadd.f32 %v1496, %v1693
  %1695 = vst.msk [vmem:[%s5] sm:$0x1] %vm1494, %v1694
  // Predicated region
  $region18: #{decoder_block_forward.4} parent=0 // pred_check
    _
  $region19: #{decoder_block_forward.4} parent=0 // pred_check_branch
    %1697 = sbr.rel (0) target = $region21
  $region20: #{decoder_block_forward.4} parent=0 // pred_region
    _
  $region21: #{decoder_block_forward.4} parent=0 // pred_fallthru
    _
  // Predicated region
  $region22: #{decoder_block_forward.4} parent=0 // pred_check
    _
  $region23: #{decoder_block_forward.4} parent=0 // pred_check_branch
    %1699 = sbr.rel (0) target = $region25
  $region24: #{decoder_block_forward.4} parent=0 // pred_region
    _
  $region25: #{decoder_block_forward.4} parent=0 // pred_fallthru
    _
  // Predicated region
  $region26: #{decoder_block_forward.4} parent=0 // pred_check
    _
  $region27: #{decoder_block_forward.4} parent=0 // pred_check_branch
    %1701 = sbr.rel (0) target = $region29
  $region28: #{decoder_block_forward.4} parent=0 // pred_region
    _
  $region29: #{decoder_block_forward.4} parent=0 // pred_fallthru
    _
  // Predicated region
  $region30: #{decoder_block_forward.4} parent=0 // pred_check
    _
  $region31: #{decoder_block_forward.4} parent=0 // pred_check_branch
    %1703 = sbr.rel (0) target = $region33
  $region32: #{decoder_block_forward.4} parent=0 // pred_region
    _
  $region33: #{decoder_block_forward.4} parent=0 // pred_fallthru
    _
  // Predicated region
  $region34: #{decoder_block_forward.4} parent=0 // pred_check
    _
  $region35: #{decoder_block_forward.4} parent=0 // pred_check_branch
    %1705 = sbr.rel (0) target = $region37
  $region36: #{decoder_block_forward.4} parent=0 // pred_region
    _
  $region37: #{decoder_block_forward.4} parent=0 // pred_fallthru
    _
  // Predicated region
  $region38: #{decoder_block_forward.4} parent=0 // pred_check
    _
  $region39: #{decoder_block_forward.4} parent=0 // pred_check_branch
    %1707 = sbr.rel (0) target = $region41
  $region40: #{decoder_block_forward.4} parent=0 // pred_region
    _
  $region41: #{decoder_block_forward.4} parent=0 // pred_fallthru
    _

// kernel: decoder_block_forward.6
$region0: #{decoder_block_forward.6}
  #allocation0 [shape = 'u32[]', space=smem, size = 0x4, offset = 0x4, fixed_abs, tag = 'smem constant byte address 0x4 - core index']
  #allocation1 [shape = 'u32[144,128]{1,0:T(1,128)}', space=vmem, size = 0x12000, scoped, tag = 'internal scratch']
  %s0 = inlined_call_operand.vmem [shape: bf16[2048,4], index: 0, kind: input, shape index: {}]
  %s1 = inlined_call_operand.vmem [shape: f32[1,4], index: 1, kind: input, shape index: {}]
  %s2 = inlined_call_operand.vmem [shape: f32[1,4], index: 2, kind: input, shape index: {}]
  %s3 = inlined_call_operand.vmem [shape: bf16[4,8], index: 3, kind: input, shape index: {}]
  %s4 = inlined_call_operand.vmem [shape: f32[1,8], index: 4, kind: input, shape index: {}]
  %s5 = inlined_call_operand.vmem [shape: bf16[2048,8], index: 5, kind: output, shape index: {0}]
  %s6 = inlined_call_operand.vmem [shape: f32[1,8], index: 6, kind: output, shape index: {1}]
  %s7 = inlined_call_operand.vmem [shape: f32[1,8], index: 7, kind: output, shape index: {2}]
  %8 = xla_tuple %s5, %s6, %s7
  %s9 = sld [smem:[#allocation0]]
  $region73: #{decoder_block_forward.6} parent=0
    _
  %s11 = ssub.s32 1, %s9
  %s12 = scalar_select 0, %s11, %s9
  loop: start=0, step=1, limit=6
  $region2: #{decoder_block_forward.6} parent=0 // loop_pre_header
    _
  $region3: #{decoder_block_forward.6} parent=0 // loop_header
    %s14 = sphi 0, %s18
    %p15 = scmp.ge.s32.totalorder %s14, 6
    %s24 = sphi 0, %s26
    %s27 = sphi 0, %s24
    %s28 = sphi 0, %s27
    %s44 = sphi 0, %s28
    %s48 = sphi 0, %s48
    %s50 = sphi 0, %s48
    %s51 = sphi 0, %s50
    %s65 = sphi 0, %s51
    %s69 = sphi 0, %s69
    %s71 = sphi 0, %s69
    %s72 = sphi 0, %s71
    %s86 = sphi 0, %s72
    %s90 = sphi 0, %s90
    %s92 = sphi 0, %s90
    %s93 = sphi 0, %s92
    %s107 = sphi 0, %s93
    %s111 = sphi 0, %s111
    %s113 = sphi 0, %s111
    %s114 = sphi 0, %s113
    %s128 = sphi 0, %s114
    %s134 = sphi 0, %s136
    %s137 = sphi 0, %s134
    %s138 = sphi 0, %s137
    %s154 = sphi 0, %s138
    %s158 = sphi 0, %s158
    %s160 = sphi 0, %s158
    %s161 = sphi 0, %s160
    %s175 = sphi 0, %s161
    %s179 = sphi 0, %s179
    %s181 = sphi 0, %s179
    %s182 = sphi 0, %s181
    %s196 = sphi 0, %s182
  $region4: #{decoder_block_forward.6} parent=0 // loop_header_branch
    %17 = sbr.rel (%p15) target = $region8
  $region5: #{decoder_block_forward.6} parent=0 // loop_body
    %s19 = ssub.s32 %s14, 1
    %s20 = ssub.s32 %s14, 2
    %s21 = sadd.s32 %s14, 1
    %s22 = ssub.s32 %s14, %s21
    %p23 = scmp.eq.s32.totalorder %s22, 0
    %s25 = sadd.s32 %s24, 1
    %s26 = scalar_select %p23, %s24, %s25
    %p29 = pneg %p23
    %p30 = scmp.eq.s32.totalorder %s14, 3
    %p31 = por %p29, %p30
    %p32 = scmp.ne.s32.totalorder %s24, %s27
    %p33 = scmp.eq.s32.totalorder %s14, 0
    %p34 = por %p32, %p33
    %p35 = scmp.ne.s32.totalorder %s24, %s27
    %p36 = scmp.eq.s32.totalorder %s19, 3
    %p37 = por %p35, %p36
    %p38 = scmp.ne.s32.totalorder %s27, %s28
    %p39 = scmp.eq.s32.totalorder %s19, 0
    %p40 = por %p38, %p39
    %p41 = scmp.ne.s32.totalorder %s27, %s28
    %p42 = scmp.eq.s32.totalorder %s20, 3
    %p43 = por %p41, %p42
    %p45 = scmp.ne.s32.totalorder %s28, %s44
    %p46 = scmp.eq.s32.totalorder %s20, 0
    %p47 = por %p45, %p46
    %s49 = sadd.s32 %s48, 1
    %p52 = scmp.eq.s32.totalorder %s14, 3
    %p53 = scmp.ne.s32.totalorder %s48, %s50
    %p54 = scmp.eq.s32.totalorder %s14, 0
    %p55 = por %p53, %p54
    %p56 = scmp.ne.s32.totalorder %s48, %s50
    %p57 = scmp.eq.s32.totalorder %s19, 3
    %p58 = por %p56, %p57
    %p59 = scmp.ne.s32.totalorder %s50, %s51
    %p60 = scmp.eq.s32.totalorder %s19, 0
    %p61 = por %p59, %p60
    %p62 = scmp.ne.s32.totalorder %s50, %s51
    %p63 = scmp.eq.s32.totalorder %s20, 3
    %p64 = por %p62, %p63
    %p66 = scmp.ne.s32.totalorder %s51, %s65
    %p67 = scmp.eq.s32.totalorder %s20, 0
    %p68 = por %p66, %p67
    %s70 = sadd.s32 %s69, 1
    %p73 = scmp.eq.s32.totalorder %s14, 3
    %p74 = scmp.ne.s32.totalorder %s69, %s71
    %p75 = scmp.eq.s32.totalorder %s14, 0
    %p76 = por %p74, %p75
    %p77 = scmp.ne.s32.totalorder %s69, %s71
    %p78 = scmp.eq.s32.totalorder %s19, 3
    %p79 = por %p77, %p78
    %p80 = scmp.ne.s32.totalorder %s71, %s72
    %p81 = scmp.eq.s32.totalorder %s19, 0
    %p82 = por %p80, %p81
    %p83 = scmp.ne.s32.totalorder %s71, %s72
    %p84 = scmp.eq.s32.totalorder %s20, 3
    %p85 = por %p83, %p84
    %p87 = scmp.ne.s32.totalorder %s72, %s86
    %p88 = scmp.eq.s32.totalorder %s20, 0
    %p89 = por %p87, %p88
    %s91 = sadd.s32 %s90, 1
    %p94 = scmp.eq.s32.totalorder %s14, 3
    %p95 = scmp.ne.s32.totalorder %s90, %s92
    %p96 = scmp.eq.s32.totalorder %s14, 0
    %p97 = por %p95, %p96
    %p98 = scmp.ne.s32.totalorder %s90, %s92
    %p99 = scmp.eq.s32.totalorder %s19, 3
    %p100 = por %p98, %p99
    %p101 = scmp.ne.s32.totalorder %s92, %s93
    %p102 = scmp.eq.s32.totalorder %s19, 0
    %p103 = por %p101, %p102
    %p104 = scmp.ne.s32.totalorder %s92, %s93
    %p105 = scmp.eq.s32.totalorder %s20, 3
    %p106 = por %p104, %p105
    %p108 = scmp.ne.s32.totalorder %s93, %s107
    %p109 = scmp.eq.s32.totalorder %s20, 0
    %p110 = por %p108, %p109
    %s112 = sadd.s32 %s111, 1
    %p115 = scmp.eq.s32.totalorder %s14, 3
    %p116 = scmp.ne.s32.totalorder %s111, %s113
    %p117 = scmp.eq.s32.totalorder %s14, 0
    %p118 = por %p116, %p117
    %p119 = scmp.ne.s32.totalorder %s111, %s113
    %p120 = scmp.eq.s32.totalorder %s19, 3
    %p121 = por %p119, %p120
    %p122 = scmp.ne.s32.totalorder %s113, %s114
    %p123 = scmp.eq.s32.totalorder %s19, 0
    %p124 = por %p122, %p123
    %p125 = scmp.ne.s32.totalorder %s113, %s114
    %p126 = scmp.eq.s32.totalorder %s20, 3
    %p127 = por %p125, %p126
    %p129 = scmp.ne.s32.totalorder %s114, %s128
    %p130 = scmp.eq.s32.totalorder %s20, 0
    %p131 = por %p129, %p130
    %s132 = ssub.s32 %s14, %s21
    %p133 = scmp.eq.s32.totalorder %s132, 0
    %s135 = sadd.s32 %s134, 1
    %s136 = scalar_select %p133, %s134, %s135
    %p139 = pneg %p133
    %p140 = scmp.eq.s32.totalorder %s14, 3
    %p141 = por %p139, %p140
    %p142 = scmp.ne.s32.totalorder %s134, %s137
    %p143 = scmp.eq.s32.totalorder %s14, 0
    %p144 = por %p142, %p143
    %p145 = scmp.ne.s32.totalorder %s134, %s137
    %p146 = scmp.eq.s32.totalorder %s19, 3
    %p147 = por %p145, %p146
    %p148 = scmp.ne.s32.totalorder %s137, %s138
    %p149 = scmp.eq.s32.totalorder %s19, 0
    %p150 = por %p148, %p149
    %p151 = scmp.ne.s32.totalorder %s137, %s138
    %p152 = scmp.eq.s32.totalorder %s20, 3
    %p153 = por %p151, %p152
    %p155 = scmp.ne.s32.totalorder %s138, %s154
    %p156 = scmp.eq.s32.totalorder %s20, 0
    %p157 = por %p155, %p156
    %s159 = sadd.s32 %s158, 1
    %p162 = scmp.eq.s32.totalorder %s14, 3
    %p163 = scmp.ne.s32.totalorder %s158, %s160
    %p164 = scmp.eq.s32.totalorder %s14, 0
    %p165 = por %p163, %p164
    %p166 = scmp.ne.s32.totalorder %s158, %s160
    %p167 = scmp.eq.s32.totalorder %s19, 3
    %p168 = por %p166, %p167
    %p169 = scmp.ne.s32.totalorder %s160, %s161
    %p170 = scmp.eq.s32.totalorder %s19, 0
    %p171 = por %p169, %p170
    %p172 = scmp.ne.s32.totalorder %s160, %s161
    %p173 = scmp.eq.s32.totalorder %s20, 3
    %p174 = por %p172, %p173
    %p176 = scmp.ne.s32.totalorder %s161, %s175
    %p177 = scmp.eq.s32.totalorder %s20, 0
    %p178 = por %p176, %p177
    %s180 = sadd.s32 %s179, 1
    %p183 = scmp.eq.s32.totalorder %s14, 3
    %p184 = scmp.ne.s32.totalorder %s179, %s181
    %p185 = scmp.eq.s32.totalorder %s14, 0
    %p186 = por %p184, %p185
    %p187 = scmp.ne.s32.totalorder %s179, %s181
    %p188 = scmp.eq.s32.totalorder %s19, 3
    %p189 = por %p187, %p188
    %p190 = scmp.ne.s32.totalorder %s181, %s182
    %p191 = scmp.eq.s32.totalorder %s19, 0
    %p192 = por %p190, %p191
    %p193 = scmp.ne.s32.totalorder %s181, %s182
    %p194 = scmp.eq.s32.totalorder %s20, 3
    %p195 = por %p193, %p194
    %p197 = scmp.ne.s32.totalorder %s182, %s196
    %p198 = scmp.eq.s32.totalorder %s20, 0
    %p199 = por %p197, %p198
    %p200 = scmp.le.s32.totalorder 1, %s14
    %p201 = scmp.lt.s32.totalorder %s14, 5
    %p202 = pnand %p200, %p201
    %p203 = pneg %p202
    // Predicated region
    $region9: #{decoder_block_forward.6} parent=5 // pred_check
      _
    $region10: #{decoder_block_forward.6} parent=5 // pred_check_branch
      %205 = sbr.rel (%p202) target = $region12
    $region11: #{decoder_block_forward.6} parent=5 // pred_region
      %s206 = ssub.s32 %s14, 1
      // Predicated region
      $region13: #{decoder_block_forward.6} parent=11 // pred_check
        %p207 = pneg %p61
      $region14: #{decoder_block_forward.6} parent=11 // pred_check_branch
        %209 = sbr.rel (%p207) target = $region16
      $region15: #{decoder_block_forward.6} parent=11 // pred_region
        _
      $region16: #{decoder_block_forward.6} parent=11 // pred_fallthru
        _
      // Predicated region
      $region17: #{decoder_block_forward.6} parent=11 // pred_check
        %p210 = pneg %p82
      $region18: #{decoder_block_forward.6} parent=11 // pred_check_branch
        %212 = sbr.rel (%p210) target = $region20
      $region19: #{decoder_block_forward.6} parent=11 // pred_region
        _
      $region20: #{decoder_block_forward.6} parent=11 // pred_fallthru
        _
      // Predicated region
      $region21: #{decoder_block_forward.6} parent=11 // pred_check
        %p213 = pneg %p103
      $region22: #{decoder_block_forward.6} parent=11 // pred_check_branch
        %215 = sbr.rel (%p213) target = $region24
      $region23: #{decoder_block_forward.6} parent=11 // pred_region
        _
      $region24: #{decoder_block_forward.6} parent=11 // pred_fallthru
        _
      // Predicated region
      $region25: #{decoder_block_forward.6} parent=11 // pred_check
        %p216 = pneg %p124
      $region26: #{decoder_block_forward.6} parent=11 // pred_check_branch
        %218 = sbr.rel (%p216) target = $region28
      $region27: #{decoder_block_forward.6} parent=11 // pred_region
        _
      $region28: #{decoder_block_forward.6} parent=11 // pred_fallthru
        _
    $region12: #{decoder_block_forward.6} parent=5 // pred_fallthru
      _
    %p219 = scmp.lt.s32.totalorder %s14, 4
    // Predicated region
    $region29: #{decoder_block_forward.6} parent=5 // pred_check
      %p220 = pneg %p219
    $region30: #{decoder_block_forward.6} parent=5 // pred_check_branch
      %222 = sbr.rel (%p220) target = $region32
    $region31: #{decoder_block_forward.6} parent=5 // pred_region
      // Predicated region
      $region33: #{decoder_block_forward.6} parent=31 // pred_check
        %p223 = pneg %p34
      $region34: #{decoder_block_forward.6} parent=31 // pred_check_branch
        %225 = sbr.rel (%p223) target = $region36
      $region35: #{decoder_block_forward.6} parent=31 // pred_region
        %s226 = smul.u32 64, %s14
        %p227 = scmp.lt.s32.totalorder %s226, 255
        %s228 = scalar_select %p227, %s226, 255
        %s229 = smul.addr %s228, 4
        %s230 = scalar_lea.vmem %s0, %s229
        %s231 = smul.u32 64, %s14
      $region36: #{decoder_block_forward.6} parent=31 // pred_fallthru
        _
    $region32: #{decoder_block_forward.6} parent=5 // pred_fallthru
      _
    %p232 = scmp.le.s32.totalorder 1, %s14
    %p233 = scmp.lt.s32.totalorder %s14, 5
    %p234 = pnand %p232, %p233
    %p235 = pneg %p234
    // Predicated region
    $region37: #{decoder_block_forward.6} parent=5 // pred_check
      _
    $region38: #{decoder_block_forward.6} parent=5 // pred_check_branch
      %237 = sbr.rel (%p234) target = $region40
    $region39: #{decoder_block_forward.6} parent=5 // pred_region
      %s238 = ssub.s32 %s14, 1
      %s239 = smul.u32 64, %s19
      %p240 = scmp.lt.s32.totalorder %s239, 255
      %s241 = scalar_select %p240, %s239, 255
      %s242 = smul.addr %s241, 4
      %s243 = scalar_lea.vmem %s0, %s242
      %p244 = pneg %p40
      %p245 = pneg %p37
      %p246 = pneg %p61
      %p247 = pneg %p58
      %p248 = pneg %p82
      %p249 = pneg %p79
      %p250 = pneg %p103
      %p251 = pneg %p100
      %p252 = pneg %p124
      %p253 = pneg %p121
      %p254 = pneg %p150
      %p255 = pneg %p147
      %s256 = smul.u32 64, %s19
      %p257 = scmp.lt.s32.totalorder %s256, 255
      %s258 = scalar_select %p257, %s256, 255
      %s259 = smul.addr %s258, 4
      %s260 = scalar_lea.vmem %s5, %s259
      %p261 = pneg %p171
      %p262 = pneg %p168
      %p263 = pneg %p192
      %p264 = pneg %p189
      %s265 = smul.u32 64, %s19
      %p266 = scmp.lt.s32.totalorder %s265, 255
      %s267 = scalar_select %p266, %s265, 255
      %s268 = smul.addr %s267, 4
      %s269 = scalar_lea.vmem %s0, %s268
      %s270 = smul.u32 64, %s19
      %s271 = smul.u32 64, %s19
      %p272 = scmp.lt.s32.totalorder %s271, 255
      %s273 = scalar_select %p272, %s271, 255
      %s274 = smul.addr %s273, 4
      %s275 = scalar_lea.vmem %s5, %s274
      %s276 = smul.u32 64, %s19
      %p278 = scmp.eq.s32.totalorder %s19, 0
      // Predicated region
      $region41: #{decoder_block_forward.6} parent=39 // pred_check
        %p279 = pneg %p278
      $region42: #{decoder_block_forward.6} parent=39 // pred_check_branch
        %281 = sbr.rel (%p279) target = $region44
      $region43: #{decoder_block_forward.6} parent=39 // pred_region
        %vm282 = vcmask 57344
        %283 = vst.msk [vmem:[%s6] sm:$0x1] %vm282, 0.0
        %284 = vst.msk [vmem:[%s7] sm:$0x1] %vm282, 0.0
      $region44: #{decoder_block_forward.6} parent=39 // pred_fallthru
        _
      %v285 = vld [vmem:[%s269] sm:$0xf]
      %v286 = vld [vmem:[%s269 + $0x4] sm:$0xf]
      %v287 = vld [vmem:[%s269 + $0x8] sm:$0xf]
      %v288 = vld [vmem:[%s269 + $0xc] sm:$0xf]
      %v289 = vld [vmem:[%s269 + $0x10] sm:$0xf]
      %v290 = vld [vmem:[%s269 + $0x14] sm:$0xf]
      %v291 = vld [vmem:[%s269 + $0x18] sm:$0xf]
      %v292 = vld [vmem:[%s269 + $0x1c] sm:$0xf]
      %v293 = vld [vmem:[%s269 + $0x20] sm:$0xf]
      %v294 = vld [vmem:[%s269 + $0x24] sm:$0xf]
      %v295 = vld [vmem:[%s269 + $0x28] sm:$0xf]
      %v296 = vld [vmem:[%s269 + $0x2c] sm:$0xf]
      %v297 = vld [vmem:[%s269 + $0x30] sm:$0xf]
      %v298 = vld [vmem:[%s269 + $0x34] sm:$0xf]
      %v299 = vld [vmem:[%s269 + $0x38] sm:$0xf]
      %v300 = vld [vmem:[%s269 + $0x3c] sm:$0xf]
      %v301 = vld [vmem:[%s269 + $0x40] sm:$0xf]
      %v302 = vld [vmem:[%s269 + $0x44] sm:$0xf]
      %v303 = vld [vmem:[%s269 + $0x48] sm:$0xf]
      %v304 = vld [vmem:[%s269 + $0x4c] sm:$0xf]
      %v305 = vld [vmem:[%s269 + $0x50] sm:$0xf]
      %v306 = vld [vmem:[%s269 + $0x54] sm:$0xf]
      %v307 = vld [vmem:[%s269 + $0x58] sm:$0xf]
      %v308 = vld [vmem:[%s269 + $0x5c] sm:$0xf]
      %v309 = vld [vmem:[%s269 + $0x60] sm:$0xf]
      %v310 = vld [vmem:[%s269 + $0x64] sm:$0xf]
      %v311 = vld [vmem:[%s269 + $0x68] sm:$0xf]
      %v312 = vld [vmem:[%s269 + $0x6c] sm:$0xf]
      %v313 = vld [vmem:[%s269 + $0x70] sm:$0xf]
      %v314 = vld [vmem:[%s269 + $0x74] sm:$0xf]
      %v315 = vld [vmem:[%s269 + $0x78] sm:$0xf]
      %v316 = vld [vmem:[%s269 + $0x7c] sm:$0xf]
      %v317 = vld [vmem:[%s269 + $0x80] sm:$0xf]
      %v318 = vld [vmem:[%s269 + $0x84] sm:$0xf]
      %v319 = vld [vmem:[%s269 + $0x88] sm:$0xf]
      %v320 = vld [vmem:[%s269 + $0x8c] sm:$0xf]
      %v321 = vld [vmem:[%s269 + $0x90] sm:$0xf]
      %v322 = vld [vmem:[%s269 + $0x94] sm:$0xf]
      %v323 = vld [vmem:[%s269 + $0x98] sm:$0xf]
      %v324 = vld [vmem:[%s269 + $0x9c] sm:$0xf]
      %v325 = vld [vmem:[%s269 + $0xa0] sm:$0xf]
      %v326 = vld [vmem:[%s269 + $0xa4] sm:$0xf]
      %v327 = vld [vmem:[%s269 + $0xa8] sm:$0xf]
      %v328 = vld [vmem:[%s269 + $0xac] sm:$0xf]
      %v329 = vld [vmem:[%s269 + $0xb0] sm:$0xf]
      %v330 = vld [vmem:[%s269 + $0xb4] sm:$0xf]
      %v331 = vld [vmem:[%s269 + $0xb8] sm:$0xf]
      %v332 = vld [vmem:[%s269 + $0xbc] sm:$0xf]
      %v333 = vld [vmem:[%s269 + $0xc0] sm:$0xf]
      %v334 = vld [vmem:[%s269 + $0xc4] sm:$0xf]
      %v335 = vld [vmem:[%s269 + $0xc8] sm:$0xf]
      %v336 = vld [vmem:[%s269 + $0xcc] sm:$0xf]
      %v337 = vld [vmem:[%s269 + $0xd0] sm:$0xf]
      %v338 = vld [vmem:[%s269 + $0xd4] sm:$0xf]
      %v339 = vld [vmem:[%s269 + $0xd8] sm:$0xf]
      %v340 = vld [vmem:[%s269 + $0xdc] sm:$0xf]
      %v341 = vld [vmem:[%s269 + $0xe0] sm:$0xf]
      %v342 = vld [vmem:[%s269 + $0xe4] sm:$0xf]
      %v343 = vld [vmem:[%s269 + $0xe8] sm:$0xf]
      %v344 = vld [vmem:[%s269 + $0xec] sm:$0xf]
      %v345 = vld [vmem:[%s269 + $0xf0] sm:$0xf]
      %v346 = vld [vmem:[%s269 + $0xf4] sm:$0xf]
      %v347 = vld [vmem:[%s269 + $0xf8] sm:$0xf]
      %v348 = vld [vmem:[%s269 + $0xfc] sm:$0xf]
      %v349 = vunpack.c.l.bf16 %v285
      %v350 = vunpack.c.l.bf16 %v286
      %v351 = vunpack.c.l.bf16 %v287
      %v352 = vunpack.c.l.bf16 %v288
      %v353 = vunpack.c.l.bf16 %v289
      %v354 = vunpack.c.l.bf16 %v290
      %v355 = vunpack.c.l.bf16 %v291
      %v356 = vunpack.c.l.bf16 %v292
      %v357 = vunpack.c.l.bf16 %v293
      %v358 = vunpack.c.l.bf16 %v294
      %v359 = vunpack.c.l.bf16 %v295
      %v360 = vunpack.c.l.bf16 %v296
      %v361 = vunpack.c.l.bf16 %v297
      %v362 = vunpack.c.l.bf16 %v298
      %v363 = vunpack.c.l.bf16 %v299
      %v364 = vunpack.c.l.bf16 %v300
      %v365 = vunpack.c.l.bf16 %v301
      %v366 = vunpack.c.l.bf16 %v302
      %v367 = vunpack.c.l.bf16 %v303
      %v368 = vunpack.c.l.bf16 %v304
      %v369 = vunpack.c.l.bf16 %v305
      %v370 = vunpack.c.l.bf16 %v306
      %v371 = vunpack.c.l.bf16 %v307
      %v372 = vunpack.c.l.bf16 %v308
      %v373 = vunpack.c.l.bf16 %v309
      %v374 = vunpack.c.l.bf16 %v310
      %v375 = vunpack.c.l.bf16 %v311
      %v376 = vunpack.c.l.bf16 %v312
      %v377 = vunpack.c.l.bf16 %v313
      %v378 = vunpack.c.l.bf16 %v314
      %v379 = vunpack.c.l.bf16 %v315
      %v380 = vunpack.c.l.bf16 %v316
      %v381 = vunpack.c.l.bf16 %v317
      %v382 = vunpack.c.l.bf16 %v318
      %v383 = vunpack.c.l.bf16 %v319
      %v384 = vunpack.c.l.bf16 %v320
      %v385 = vunpack.c.l.bf16 %v321
      %v386 = vunpack.c.l.bf16 %v322
      %v387 = vunpack.c.l.bf16 %v323
      %v388 = vunpack.c.l.bf16 %v324
      %v389 = vunpack.c.l.bf16 %v325
      %v390 = vunpack.c.l.bf16 %v326
      %v391 = vunpack.c.l.bf16 %v327
      %v392 = vunpack.c.l.bf16 %v328
      %v393 = vunpack.c.l.bf16 %v329
      %v394 = vunpack.c.l.bf16 %v330
      %v395 = vunpack.c.l.bf16 %v331
      %v396 = vunpack.c.l.bf16 %v332
      %v397 = vunpack.c.l.bf16 %v333
      %v398 = vunpack.c.l.bf16 %v334
      %v399 = vunpack.c.l.bf16 %v335
      %v400 = vunpack.c.l.bf16 %v336
      %v401 = vunpack.c.l.bf16 %v337
      %v402 = vunpack.c.l.bf16 %v338
      %v403 = vunpack.c.l.bf16 %v339
      %v404 = vunpack.c.l.bf16 %v340
      %v405 = vunpack.c.l.bf16 %v341
      %v406 = vunpack.c.l.bf16 %v342
      %v407 = vunpack.c.l.bf16 %v343
      %v408 = vunpack.c.l.bf16 %v344
      %v409 = vunpack.c.l.bf16 %v345
      %v410 = vunpack.c.l.bf16 %v346
      %v411 = vunpack.c.l.bf16 %v347
      %v412 = vunpack.c.l.bf16 %v348
      %v413 = vld [vmem:[%s1] sm:$0x1]
      %v415 = vlaneseq
      %v416 = vshrl.u32 %v415, 7
      %v417 = vsub.s32 0, %v416
      %v418 = vrot.slane %v413, %v417
      %v420 = vmul.f32 %v349, %v418
      %v421 = vmul.f32 %v350, %v418
      %v422 = vmul.f32 %v351, %v418
      %v423 = vmul.f32 %v352, %v418
      %v424 = vmul.f32 %v353, %v418
      %v425 = vmul.f32 %v354, %v418
      %v426 = vmul.f32 %v355, %v418
      %v427 = vmul.f32 %v356, %v418
      %v428 = vmul.f32 %v357, %v418
      %v429 = vmul.f32 %v358, %v418
      %v430 = vmul.f32 %v359, %v418
      %v431 = vmul.f32 %v360, %v418
      %v432 = vmul.f32 %v361, %v418
      %v433 = vmul.f32 %v362, %v418
      %v434 = vmul.f32 %v363, %v418
      %v435 = vmul.f32 %v364, %v418
      %v436 = vmul.f32 %v365, %v418
      %v437 = vmul.f32 %v366, %v418
      %v438 = vmul.f32 %v367, %v418
      %v439 = vmul.f32 %v368, %v418
      %v440 = vmul.f32 %v369, %v418
      %v441 = vmul.f32 %v370, %v418
      %v442 = vmul.f32 %v371, %v418
      %v443 = vmul.f32 %v372, %v418
      %v444 = vmul.f32 %v373, %v418
      %v445 = vmul.f32 %v374, %v418
      %v446 = vmul.f32 %v375, %v418
      %v447 = vmul.f32 %v376, %v418
      %v448 = vmul.f32 %v377, %v418
      %v449 = vmul.f32 %v378, %v418
      %v450 = vmul.f32 %v379, %v418
      %v451 = vmul.f32 %v380, %v418
      %v452 = vmul.f32 %v381, %v418
      %v453 = vmul.f32 %v382, %v418
      %v454 = vmul.f32 %v383, %v418
      %v455 = vmul.f32 %v384, %v418
      %v456 = vmul.f32 %v385, %v418
      %v457 = vmul.f32 %v386, %v418
      %v458 = vmul.f32 %v387, %v418
      %v459 = vmul.f32 %v388, %v418
      %v460 = vmul.f32 %v389, %v418
      %v461 = vmul.f32 %v390, %v418
      %v462 = vmul.f32 %v391, %v418
      %v463 = vmul.f32 %v392, %v418
      %v464 = vmul.f32 %v393, %v418
      %v465 = vmul.f32 %v394, %v418
      %v466 = vmul.f32 %v395, %v418
      %v467 = vmul.f32 %v396, %v418
      %v468 = vmul.f32 %v397, %v418
      %v469 = vmul.f32 %v398, %v418
      %v470 = vmul.f32 %v399, %v418
      %v471 = vmul.f32 %v400, %v418
      %v472 = vmul.f32 %v401, %v418
      %v473 = vmul.f32 %v402, %v418
      %v474 = vmul.f32 %v403, %v418
      %v475 = vmul.f32 %v404, %v418
      %v476 = vmul.f32 %v405, %v418
      %v477 = vmul.f32 %v406, %v418
      %v478 = vmul.f32 %v407, %v418
      %v479 = vmul.f32 %v408, %v418
      %v480 = vmul.f32 %v409, %v418
      %v481 = vmul.f32 %v410, %v418
      %v482 = vmul.f32 %v411, %v418
      %v483 = vmul.f32 %v412, %v418
      %v484 = vld [vmem:[%s2] sm:$0x1]
      %v486 = vlaneseq
      %v487 = vshrl.u32 %v486, 7
      %v488 = vsub.s32 0, %v487
      %v489 = vrot.slane %v484, %v488
      %v491 = vadd.f32 %v420, %v489
      %v492 = vadd.f32 %v421, %v489
      %v493 = vadd.f32 %v422, %v489
      %v494 = vadd.f32 %v423, %v489
      %v495 = vadd.f32 %v424, %v489
      %v496 = vadd.f32 %v425, %v489
      %v497 = vadd.f32 %v426, %v489
      %v498 = vadd.f32 %v427, %v489
      %v499 = vadd.f32 %v428, %v489
      %v500 = vadd.f32 %v429, %v489
      %v501 = vadd.f32 %v430, %v489
      %v502 = vadd.f32 %v431, %v489
      %v503 = vadd.f32 %v432, %v489
      %v504 = vadd.f32 %v433, %v489
      %v505 = vadd.f32 %v434, %v489
      %v506 = vadd.f32 %v435, %v489
      %v507 = vadd.f32 %v436, %v489
      %v508 = vadd.f32 %v437, %v489
      %v509 = vadd.f32 %v438, %v489
      %v510 = vadd.f32 %v439, %v489
      %v511 = vadd.f32 %v440, %v489
      %v512 = vadd.f32 %v441, %v489
      %v513 = vadd.f32 %v442, %v489
      %v514 = vadd.f32 %v443, %v489
      %v515 = vadd.f32 %v444, %v489
      %v516 = vadd.f32 %v445, %v489
      %v517 = vadd.f32 %v446, %v489
      %v518 = vadd.f32 %v447, %v489
      %v519 = vadd.f32 %v448, %v489
      %v520 = vadd.f32 %v449, %v489
      %v521 = vadd.f32 %v450, %v489
      %v522 = vadd.f32 %v451, %v489
      %v523 = vadd.f32 %v452, %v489
      %v524 = vadd.f32 %v453, %v489
      %v525 = vadd.f32 %v454, %v489
      %v526 = vadd.f32 %v455, %v489
      %v527 = vadd.f32 %v456, %v489
      %v528 = vadd.f32 %v457, %v489
      %v529 = vadd.f32 %v458, %v489
      %v530 = vadd.f32 %v459, %v489
      %v531 = vadd.f32 %v460, %v489
      %v532 = vadd.f32 %v461, %v489
      %v533 = vadd.f32 %v462, %v489
      %v534 = vadd.f32 %v463, %v489
      %v535 = vadd.f32 %v464, %v489
      %v536 = vadd.f32 %v465, %v489
      %v537 = vadd.f32 %v466, %v489
      %v538 = vadd.f32 %v467, %v489
      %v539 = vadd.f32 %v468, %v489
      %v540 = vadd.f32 %v469, %v489
      %v541 = vadd.f32 %v470, %v489
      %v542 = vadd.f32 %v471, %v489
      %v543 = vadd.f32 %v472, %v489
      %v544 = vadd.f32 %v473, %v489
      %v545 = vadd.f32 %v474, %v489
      %v546 = vadd.f32 %v475, %v489
      %v547 = vadd.f32 %v476, %v489
      %v548 = vadd.f32 %v477, %v489
      %v549 = vadd.f32 %v478, %v489
      %v550 = vadd.f32 %v479, %v489
      %v551 = vadd.f32 %v480, %v489
      %v552 = vadd.f32 %v481, %v489
      %v553 = vadd.f32 %v482, %v489
      %v554 = vadd.f32 %v483, %v489
      %v555 = vmax.f32 %v491, 0.0
      %v556 = vmax.f32 %v492, 0.0
      %v557 = vmax.f32 %v493, 0.0
      %v558 = vmax.f32 %v494, 0.0
      %v559 = vmax.f32 %v495, 0.0
      %v560 = vmax.f32 %v496, 0.0
      %v561 = vmax.f32 %v497, 0.0
      %v562 = vmax.f32 %v498, 0.0
      %v563 = vmax.f32 %v499, 0.0
      %v564 = vmax.f32 %v500, 0.0
      %v565 = vmax.f32 %v501, 0.0
      %v566 = vmax.f32 %v502, 0.0
      %v567 = vmax.f32 %v503, 0.0
      %v568 = vmax.f32 %v504, 0.0
      %v569 = vmax.f32 %v505, 0.0
      %v570 = vmax.f32 %v506, 0.0
      %v571 = vmax.f32 %v507, 0.0
      %v572 = vmax.f32 %v508, 0.0
      %v573 = vmax.f32 %v509, 0.0
      %v574 = vmax.f32 %v510, 0.0
      %v575 = vmax.f32 %v511, 0.0
      %v576 = vmax.f32 %v512, 0.0
      %v577 = vmax.f32 %v513, 0.0
      %v578 = vmax.f32 %v514, 0.0
      %v579 = vmax.f32 %v515, 0.0
      %v580 = vmax.f32 %v516, 0.0
      %v581 = vmax.f32 %v517, 0.0
      %v582 = vmax.f32 %v518, 0.0
      %v583 = vmax.f32 %v519, 0.0
      %v584 = vmax.f32 %v520, 0.0
      %v585 = vmax.f32 %v521, 0.0
      %v586 = vmax.f32 %v522, 0.0
      %v587 = vmax.f32 %v523, 0.0
      %v588 = vmax.f32 %v524, 0.0
      %v589 = vmax.f32 %v525, 0.0
      %v590 = vmax.f32 %v526, 0.0
      %v591 = vmax.f32 %v527, 0.0
      %v592 = vmax.f32 %v528, 0.0
      %v593 = vmax.f32 %v529, 0.0
      %v594 = vmax.f32 %v530, 0.0
      %v595 = vmax.f32 %v531, 0.0
      %v596 = vmax.f32 %v532, 0.0
      %v597 = vmax.f32 %v533, 0.0
      %v598 = vmax.f32 %v534, 0.0
      %v599 = vmax.f32 %v535, 0.0
      %v600 = vmax.f32 %v536, 0.0
      %v601 = vmax.f32 %v537, 0.0
      %v602 = vmax.f32 %v538, 0.0
      %v603 = vmax.f32 %v539, 0.0
      %v604 = vmax.f32 %v540, 0.0
      %v605 = vmax.f32 %v541, 0.0
      %v606 = vmax.f32 %v542, 0.0
      %v607 = vmax.f32 %v543, 0.0
      %v608 = vmax.f32 %v544, 0.0
      %v609 = vmax.f32 %v545, 0.0
      %v610 = vmax.f32 %v546, 0.0
      %v611 = vmax.f32 %v547, 0.0
      %v612 = vmax.f32 %v548, 0.0
      %v613 = vmax.f32 %v549, 0.0
      %v614 = vmax.f32 %v550, 0.0
      %v615 = vmax.f32 %v551, 0.0
      %v616 = vmax.f32 %v552, 0.0
      %v617 = vmax.f32 %v553, 0.0
      %v618 = vmax.f32 %v554, 0.0
      %v619 = vpack.c.bf16 %v556, %v555
      %v620 = vpack.c.bf16 %v558, %v557
      %v621 = vpack.c.bf16 %v560, %v559
      %v622 = vpack.c.bf16 %v562, %v561
      %v623 = vpack.c.bf16 %v564, %v563
      %v624 = vpack.c.bf16 %v566, %v565
      %v625 = vpack.c.bf16 %v568, %v567
      %v626 = vpack.c.bf16 %v570, %v569
      %v627 = vpack.c.bf16 %v572, %v571
      %v628 = vpack.c.bf16 %v574, %v573
      %v629 = vpack.c.bf16 %v576, %v575
      %v630 = vpack.c.bf16 %v578, %v577
      %v631 = vpack.c.bf16 %v580, %v579
      %v632 = vpack.c.bf16 %v582, %v581
      %v633 = vpack.c.bf16 %v584, %v583
      %v634 = vpack.c.bf16 %v586, %v585
      %v635 = vpack.c.bf16 %v588, %v587
      %v636 = vpack.c.bf16 %v590, %v589
      %v637 = vpack.c.bf16 %v592, %v591
      %v638 = vpack.c.bf16 %v594, %v593
      %v639 = vpack.c.bf16 %v596, %v595
      %v640 = vpack.c.bf16 %v598, %v597
      %v641 = vpack.c.bf16 %v600, %v599
      %v642 = vpack.c.bf16 %v602, %v601
      %v643 = vpack.c.bf16 %v604, %v603
      %v644 = vpack.c.bf16 %v606, %v605
      %v645 = vpack.c.bf16 %v608, %v607
      %v646 = vpack.c.bf16 %v610, %v609
      %v647 = vpack.c.bf16 %v612, %v611
      %v648 = vpack.c.bf16 %v614, %v613
      %v649 = vpack.c.bf16 %v616, %v615
      %v650 = vpack.c.bf16 %v618, %v617
      %v651 = vld [vmem:[%s3] sm:$0x3]
      %v652 = vld [vmem:[%s4] sm:$0x1]
      %v654 = vlaneseq
      %v655 = vshrl.u32 %v654, 7
      %v656 = vsub.s32 0, %v655
      %v657 = vrot.slane %v652, %v656
      %vm659 = vcmask 31744
      %v661 = vsel %vm659, %v619, 0
      %v664 = vsel %vm659, %v620, 0
      %v667 = vsel %vm659, %v621, 0
      %v670 = vsel %vm659, %v622, 0
      %v673 = vsel %vm659, %v623, 0
      %v676 = vsel %vm659, %v624, 0
      %v679 = vsel %vm659, %v625, 0
      %v682 = vsel %vm659, %v626, 0
      %v685 = vsel %vm659, %v627, 0
      %v688 = vsel %vm659, %v628, 0
      %v691 = vsel %vm659, %v629, 0
      %v694 = vsel %vm659, %v630, 0
      %v697 = vsel %vm659, %v631, 0
      %v700 = vsel %vm659, %v632, 0
      %v703 = vsel %vm659, %v633, 0
      %v706 = vsel %vm659, %v634, 0
      %v709 = vsel %vm659, %v635, 0
      %v712 = vsel %vm659, %v636, 0
      %v715 = vsel %vm659, %v637, 0
      %v718 = vsel %vm659, %v638, 0
      %v721 = vsel %vm659, %v639, 0
      %v724 = vsel %vm659, %v640, 0
      %v727 = vsel %vm659, %v641, 0
      %v730 = vsel %vm659, %v642, 0
      %v733 = vsel %vm659, %v643, 0
      %v736 = vsel %vm659, %v644, 0
      %v739 = vsel %vm659, %v645, 0
      %v742 = vsel %vm659, %v646, 0
      %v745 = vsel %vm659, %v647, 0
      %v748 = vsel %vm659, %v648, 0
      %v751 = vsel %vm659, %v649, 0
      %v754 = vsel %vm659, %v650, 0
      %vm756 = vcmask 1041408
      %v758 = vsel %vm756, %v651, 0
      %760 = vmatprep.subr.bf16.mxu0 0
      %761 = vmatpush1.bf16.msra.mxu0 %v758
      %762 = vmatprep.subr.bf16.mxu0 0
      %763 = vmatpush1.bf16.msra.mxu0 0
      %764 = vmatprep.subr.bf16.mxu0 0
      %765 = vmatpush1.bf16.msra.mxu0 0
      %766 = vmatprep.subr.bf16.mxu0 0
      %767 = vmatpush1.bf16.msra.mxu0 0
      %768 = vmatprep.subr.bf16.mxu0 0
      %769 = vmatpush1.bf16.msra.mxu0 0
      %770 = vmatprep.subr.bf16.mxu0 0
      %771 = vmatpush1.bf16.msra.mxu0 0
      %772 = vmatprep.subr.bf16.mxu0 0
      %773 = vmatpush1.bf16.msra.mxu0 0
      %774 = vmatprep.subr.bf16.mxu0 0
      %775 = vmatpush1.bf16.msra.mxu0 0
      %776 = vmatprep.subr.bf16.mxu0 0
      %777 = vmatpush1.bf16.msra.mxu0 0
      %778 = vmatprep.subr.bf16.mxu0 0
      %779 = vmatpush1.bf16.msra.mxu0 0
      %780 = vmatprep.subr.bf16.mxu0 0
      %781 = vmatpush1.bf16.msra.mxu0 0
      %782 = vmatprep.subr.bf16.mxu0 0
      %783 = vmatpush1.bf16.msra.mxu0 0
      %784 = vmatprep.subr.bf16.mxu0 0
      %785 = vmatpush1.bf16.msra.mxu0 0
      %786 = vmatprep.subr.bf16.mxu0 0
      %787 = vmatpush1.bf16.msra.mxu0 0
      %788 = vmatprep.subr.bf16.mxu0 0
      %789 = vmatpush1.bf16.msra.mxu0 0
      %790 = vmatprep.subr.bf16.mxu0 0
      %791 = vmatpush1.bf16.msra.mxu0 0
      %792 = vmatprep.mubr.bf16.mxu0 0
      %793 = vmatmul.mubr.bf16.gmra.mrb[0].mxu0 %v661
      %v794 = vpop.f32.mrb[0].mxu0
      %v795 = vadd.f32 %v657, %v794
      %v796 = vpop.f32.mrb[0].mxu0
      %v797 = vpop.f32.mrb[0].mxu0
      %v798 = vadd.f32 %v657, %v797
      %v799 = vpop.f32.mrb[0].mxu0
      %800 = vmatprep.mubr.bf16.mxu0 0
      %801 = vmatmul.mubr.bf16.gmra.mrb[0].mxu0 %v664
      %v802 = vpop.f32.mrb[0].mxu0
      %v803 = vadd.f32 %v657, %v802
      %v804 = vpop.f32.mrb[0].mxu0
      %v805 = vpop.f32.mrb[0].mxu0
      %v806 = vadd.f32 %v657, %v805
      %v807 = vpop.f32.mrb[0].mxu0
      %808 = vmatprep.mubr.bf16.mxu0 0
      %809 = vmatmul.mubr.bf16.gmra.mrb[0].mxu0 %v667
      %v810 = vpop.f32.mrb[0].mxu0
      %v811 = vadd.f32 %v657, %v810
      %v812 = vpop.f32.mrb[0].mxu0
      %v813 = vpop.f32.mrb[0].mxu0
      %v814 = vadd.f32 %v657, %v813
      %v815 = vpop.f32.mrb[0].mxu0
      %816 = vmatprep.mubr.bf16.mxu0 0
      %817 = vmatmul.mubr.bf16.gmra.mrb[0].mxu0 %v670
      %v818 = vpop.f32.mrb[0].mxu0
      %v819 = vadd.f32 %v657, %v818
      %v820 = vpop.f32.mrb[0].mxu0
      %v821 = vpop.f32.mrb[0].mxu0
      %v822 = vadd.f32 %v657, %v821
      %v823 = vpop.f32.mrb[0].mxu0
      %824 = vmatprep.mubr.bf16.mxu0 0
      %825 = vmatmul.mubr.bf16.gmra.mrb[0].mxu0 %v673
      %v826 = vpop.f32.mrb[0].mxu0
      %v827 = vadd.f32 %v657, %v826
      %v828 = vpop.f32.mrb[0].mxu0
      %v829 = vpop.f32.mrb[0].mxu0
      %v830 = vadd.f32 %v657, %v829
      %v831 = vpop.f32.mrb[0].mxu0
      %832 = vmatprep.mubr.bf16.mxu0 0
      %833 = vmatmul.mubr.bf16.gmra.mrb[0].mxu0 %v676
      %v834 = vpop.f32.mrb[0].mxu0
      %v835 = vadd.f32 %v657, %v834
      %v836 = vpop.f32.mrb[0].mxu0
      %v837 = vpop.f32.mrb[0].mxu0
      %v838 = vadd.f32 %v657, %v837
      %v839 = vpop.f32.mrb[0].mxu0
      %840 = vmatprep.mubr.bf16.mxu0 0
      %841 = vmatmul.mubr.bf16.gmra.mrb[0].mxu0 %v679
      %v842 = vpop.f32.mrb[0].mxu0
      %v843 = vadd.f32 %v657, %v842
      %v844 = vpop.f32.mrb[0].mxu0
      %v845 = vpop.f32.mrb[0].mxu0
      %v846 = vadd.f32 %v657, %v845
      %v847 = vpop.f32.mrb[0].mxu0
      %848 = vmatprep.mubr.bf16.mxu0 0
      %849 = vmatmul.mubr.bf16.gmra.mrb[0].mxu0 %v682
      %v850 = vpop.f32.mrb[0].mxu0
      %v851 = vadd.f32 %v657, %v850
      %v852 = vpop.f32.mrb[0].mxu0
      %v853 = vpop.f32.mrb[0].mxu0
      %v854 = vadd.f32 %v657, %v853
      %v855 = vpop.f32.mrb[0].mxu0
      %856 = vmatprep.mubr.bf16.mxu0 0
      %857 = vmatmul.mubr.bf16.gmra.mrb[0].mxu0 %v685
      %v858 = vpop.f32.mrb[0].mxu0
      %v859 = vadd.f32 %v657, %v858
      %v860 = vpop.f32.mrb[0].mxu0
      %v861 = vpop.f32.mrb[0].mxu0
      %v862 = vadd.f32 %v657, %v861
      %v863 = vpop.f32.mrb[0].mxu0
      %864 = vmatprep.mubr.bf16.mxu0 0
      %865 = vmatmul.mubr.bf16.gmra.mrb[0].mxu0 %v688
      %v866 = vpop.f32.mrb[0].mxu0
      %v867 = vadd.f32 %v657, %v866
      %v868 = vpop.f32.mrb[0].mxu0
      %v869 = vpop.f32.mrb[0].mxu0
      %v870 = vadd.f32 %v657, %v869
      %v871 = vpop.f32.mrb[0].mxu0
      %872 = vmatprep.mubr.bf16.mxu0 0
      %873 = vmatmul.mubr.bf16.gmra.mrb[0].mxu0 %v691
      %v874 = vpop.f32.mrb[0].mxu0
      %v875 = vadd.f32 %v657, %v874
      %v876 = vpop.f32.mrb[0].mxu0
      %v877 = vpop.f32.mrb[0].mxu0
      %v878 = vadd.f32 %v657, %v877
      %v879 = vpop.f32.mrb[0].mxu0
      %880 = vmatprep.mubr.bf16.mxu0 0
      %881 = vmatmul.mubr.bf16.gmra.mrb[0].mxu0 %v694
      %v882 = vpop.f32.mrb[0].mxu0
      %v883 = vadd.f32 %v657, %v882
      %v884 = vpop.f32.mrb[0].mxu0
      %v885 = vpop.f32.mrb[0].mxu0
      %v886 = vadd.f32 %v657, %v885
      %v887 = vpop.f32.mrb[0].mxu0
      %888 = vmatprep.mubr.bf16.mxu0 0
      %889 = vmatmul.mubr.bf16.gmra.mrb[0].mxu0 %v697
      %v890 = vpop.f32.mrb[0].mxu0
      %v891 = vadd.f32 %v657, %v890
      %v892 = vpop.f32.mrb[0].mxu0
      %v893 = vpop.f32.mrb[0].mxu0
      %v894 = vadd.f32 %v657, %v893
      %v895 = vpop.f32.mrb[0].mxu0
      %896 = vmatprep.mubr.bf16.mxu0 0
      %897 = vmatmul.mubr.bf16.gmra.mrb[0].mxu0 %v700
      %v898 = vpop.f32.mrb[0].mxu0
      %v899 = vadd.f32 %v657, %v898
      %v900 = vpop.f32.mrb[0].mxu0
      %v901 = vpop.f32.mrb[0].mxu0
      %v902 = vadd.f32 %v657, %v901
      %v903 = vpop.f32.mrb[0].mxu0
      %904 = vmatprep.mubr.bf16.mxu0 0
      %905 = vmatmul.mubr.bf16.gmra.mrb[0].mxu0 %v703
      %v906 = vpop.f32.mrb[0].mxu0
      %v907 = vadd.f32 %v657, %v906
      %v908 = vpop.f32.mrb[0].mxu0
      %v909 = vpop.f32.mrb[0].mxu0
      %v910 = vadd.f32 %v657, %v909
      %v911 = vpop.f32.mrb[0].mxu0
      %912 = vmatprep.mubr.bf16.mxu0 0
      %913 = vmatmul.mubr.bf16.gmra.mrb[0].mxu0 %v706
      %v914 = vpop.f32.mrb[0].mxu0
      %v915 = vadd.f32 %v657, %v914
      %v916 = vpop.f32.mrb[0].mxu0
      %v917 = vpop.f32.mrb[0].mxu0
      %v918 = vadd.f32 %v657, %v917
      %v919 = vpop.f32.mrb[0].mxu0
      %920 = vmatprep.mubr.bf16.mxu0 0
      %921 = vmatmul.mubr.bf16.gmra.mrb[0].mxu0 %v709
      %v922 = vpop.f32.mrb[0].mxu0
      %v923 = vadd.f32 %v657, %v922
      %v924 = vpop.f32.mrb[0].mxu0
      %v925 = vpop.f32.mrb[0].mxu0
      %v926 = vadd.f32 %v657, %v925
      %v927 = vpop.f32.mrb[0].mxu0
      %928 = vmatprep.mubr.bf16.mxu0 0
      %929 = vmatmul.mubr.bf16.gmra.mrb[0].mxu0 %v712
      %v930 = vpop.f32.mrb[0].mxu0
      %v931 = vadd.f32 %v657, %v930
      %v932 = vpop.f32.mrb[0].mxu0
      %v933 = vpop.f32.mrb[0].mxu0
      %v934 = vadd.f32 %v657, %v933
      %v935 = vpop.f32.mrb[0].mxu0
      %936 = vmatprep.mubr.bf16.mxu0 0
      %937 = vmatmul.mubr.bf16.gmra.mrb[0].mxu0 %v715
      %v938 = vpop.f32.mrb[0].mxu0
      %v939 = vadd.f32 %v657, %v938
      %v940 = vpop.f32.mrb[0].mxu0
      %v941 = vpop.f32.mrb[0].mxu0
      %v942 = vadd.f32 %v657, %v941
      %v943 = vpop.f32.mrb[0].mxu0
      %944 = vmatprep.mubr.bf16.mxu0 0
      %945 = vmatmul.mubr.bf16.gmra.mrb[0].mxu0 %v718
      %v946 = vpop.f32.mrb[0].mxu0
      %v947 = vadd.f32 %v657, %v946
      %v948 = vpop.f32.mrb[0].mxu0
      %v949 = vpop.f32.mrb[0].mxu0
      %v950 = vadd.f32 %v657, %v949
      %v951 = vpop.f32.mrb[0].mxu0
      %952 = vmatprep.mubr.bf16.mxu0 0
      %953 = vmatmul.mubr.bf16.gmra.mrb[0].mxu0 %v721
      %v954 = vpop.f32.mrb[0].mxu0
      %v955 = vadd.f32 %v657, %v954
      %v956 = vpop.f32.mrb[0].mxu0
      %v957 = vpop.f32.mrb[0].mxu0
      %v958 = vadd.f32 %v657, %v957
      %v959 = vpop.f32.mrb[0].mxu0
      %960 = vmatprep.mubr.bf16.mxu0 0
      %961 = vmatmul.mubr.bf16.gmra.mrb[0].mxu0 %v724
      %v962 = vpop.f32.mrb[0].mxu0
      %v963 = vadd.f32 %v657, %v962
      %v964 = vpop.f32.mrb[0].mxu0
      %v965 = vpop.f32.mrb[0].mxu0
      %v966 = vadd.f32 %v657, %v965
      %v967 = vpop.f32.mrb[0].mxu0
      %968 = vmatprep.mubr.bf16.mxu0 0
      %969 = vmatmul.mubr.bf16.gmra.mrb[0].mxu0 %v727
      %v970 = vpop.f32.mrb[0].mxu0
      %v971 = vadd.f32 %v657, %v970
      %v972 = vpop.f32.mrb[0].mxu0
      %v973 = vpop.f32.mrb[0].mxu0
      %v974 = vadd.f32 %v657, %v973
      %v975 = vpop.f32.mrb[0].mxu0
      %976 = vmatprep.mubr.bf16.mxu0 0
      %977 = vmatmul.mubr.bf16.gmra.mrb[0].mxu0 %v730
      %v978 = vpop.f32.mrb[0].mxu0
      %v979 = vadd.f32 %v657, %v978
      %v980 = vpop.f32.mrb[0].mxu0
      %v981 = vpop.f32.mrb[0].mxu0
      %v982 = vadd.f32 %v657, %v981
      %v983 = vpop.f32.mrb[0].mxu0
      %984 = vmatprep.mubr.bf16.mxu0 0
      %985 = vmatmul.mubr.bf16.gmra.mrb[0].mxu0 %v733
      %v986 = vpop.f32.mrb[0].mxu0
      %v987 = vadd.f32 %v657, %v986
      %v988 = vpop.f32.mrb[0].mxu0
      %v989 = vpop.f32.mrb[0].mxu0
      %v990 = vadd.f32 %v657, %v989
      %v991 = vpop.f32.mrb[0].mxu0
      %992 = vmatprep.mubr.bf16.mxu0 0
      %993 = vmatmul.mubr.bf16.gmra.mrb[0].mxu0 %v736
      %v994 = vpop.f32.mrb[0].mxu0
      %v995 = vadd.f32 %v657, %v994
      %v996 = vpop.f32.mrb[0].mxu0
      %v997 = vpop.f32.mrb[0].mxu0
      %v998 = vadd.f32 %v657, %v997
      %v999 = vpop.f32.mrb[0].mxu0
      %1000 = vmatprep.mubr.bf16.mxu0 0
      %1001 = vmatmul.mubr.bf16.gmra.mrb[0].mxu0 %v739
      %v1002 = vpop.f32.mrb[0].mxu0
      %v1003 = vadd.f32 %v657, %v1002
      %v1004 = vpop.f32.mrb[0].mxu0
      %v1005 = vpop.f32.mrb[0].mxu0
      %v1006 = vadd.f32 %v657, %v1005
      %v1007 = vpop.f32.mrb[0].mxu0
      %1008 = vmatprep.mubr.bf16.mxu0 0
      %1009 = vmatmul.mubr.bf16.gmra.mrb[0].mxu0 %v742
      %v1010 = vpop.f32.mrb[0].mxu0
      %v1011 = vadd.f32 %v657, %v1010
      %v1012 = vpop.f32.mrb[0].mxu0
      %v1013 = vpop.f32.mrb[0].mxu0
      %v1014 = vadd.f32 %v657, %v1013
      %v1015 = vpop.f32.mrb[0].mxu0
      %1016 = vmatprep.mubr.bf16.mxu0 0
      %1017 = vmatmul.mubr.bf16.gmra.mrb[0].mxu0 %v745
      %v1018 = vpop.f32.mrb[0].mxu0
      %v1019 = vadd.f32 %v657, %v1018
      %v1020 = vpop.f32.mrb[0].mxu0
      %v1021 = vpop.f32.mrb[0].mxu0
      %v1022 = vadd.f32 %v657, %v1021
      %v1023 = vpop.f32.mrb[0].mxu0
      %1024 = vmatprep.mubr.bf16.mxu0 0
      %1025 = vmatmul.mubr.bf16.gmra.mrb[0].mxu0 %v748
      %v1026 = vpop.f32.mrb[0].mxu0
      %v1027 = vadd.f32 %v657, %v1026
      %v1028 = vpop.f32.mrb[0].mxu0
      %v1029 = vpop.f32.mrb[0].mxu0
      %v1030 = vadd.f32 %v657, %v1029
      %v1031 = vpop.f32.mrb[0].mxu0
      %1032 = vmatprep.mubr.bf16.mxu0 0
      %1033 = vmatmul.mubr.bf16.gmra.mrb[0].mxu0 %v751
      %v1034 = vpop.f32.mrb[0].mxu0
      %v1035 = vadd.f32 %v657, %v1034
      %v1036 = vpop.f32.mrb[0].mxu0
      %v1037 = vpop.f32.mrb[0].mxu0
      %v1038 = vadd.f32 %v657, %v1037
      %v1039 = vpop.f32.mrb[0].mxu0
      %1040 = vmatprep.mubr.bf16.mxu0 0
      %1041 = vmatmul.mubr.bf16.gmra.mrb[0].mxu0 %v754
      %v1042 = vpop.f32.mrb[0].mxu0
      %v1043 = vadd.f32 %v657, %v1042
      %v1044 = vpop.f32.mrb[0].mxu0
      %v1045 = vpop.f32.mrb[0].mxu0
      %v1046 = vadd.f32 %v657, %v1045
      %v1047 = vpop.f32.mrb[0].mxu0
      %1048 = vdwg.mxu0
      %v1049 = vpack.c.bf16 %v798, %v795
      %v1050 = vpack.c.bf16 %v806, %v803
      %v1051 = vpack.c.bf16 %v814, %v811
      %v1052 = vpack.c.bf16 %v822, %v819
      %v1053 = vpack.c.bf16 %v830, %v827
      %v1054 = vpack.c.bf16 %v838, %v835
      %v1055 = vpack.c.bf16 %v846, %v843
      %v1056 = vpack.c.bf16 %v854, %v851
      %v1057 = vpack.c.bf16 %v862, %v859
      %v1058 = vpack.c.bf16 %v870, %v867
      %v1059 = vpack.c.bf16 %v878, %v875
      %v1060 = vpack.c.bf16 %v886, %v883
      %v1061 = vpack.c.bf16 %v894, %v891
      %v1062 = vpack.c.bf16 %v902, %v899
      %v1063 = vpack.c.bf16 %v910, %v907
      %v1064 = vpack.c.bf16 %v918, %v915
      %v1065 = vpack.c.bf16 %v926, %v923
      %v1066 = vpack.c.bf16 %v934, %v931
      %v1067 = vpack.c.bf16 %v942, %v939
      %v1068 = vpack.c.bf16 %v950, %v947
      %v1069 = vpack.c.bf16 %v958, %v955
      %v1070 = vpack.c.bf16 %v966, %v963
      %v1071 = vpack.c.bf16 %v974, %v971
      %v1072 = vpack.c.bf16 %v982, %v979
      %v1073 = vpack.c.bf16 %v990, %v987
      %v1074 = vpack.c.bf16 %v998, %v995
      %v1075 = vpack.c.bf16 %v1006, %v1003
      %v1076 = vpack.c.bf16 %v1014, %v1011
      %v1077 = vpack.c.bf16 %v1022, %v1019
      %v1078 = vpack.c.bf16 %v1030, %v1027
      %v1079 = vpack.c.bf16 %v1038, %v1035
      %v1080 = vpack.c.bf16 %v1046, %v1043
      %v1113 = vunpack.c.l.b16 %v1049
      %v1114 = vunpack.c.h.b16 %v1049
      %v1115 = vunpack.c.l.b16 %v1050
      %v1116 = vunpack.c.h.b16 %v1050
      %v1117 = vunpack.c.l.b16 %v1051
      %v1118 = vunpack.c.h.b16 %v1051
      %v1119 = vunpack.c.l.b16 %v1052
      %v1120 = vunpack.c.h.b16 %v1052
      %v1121 = vunpack.c.l.b16 %v1053
      %v1122 = vunpack.c.h.b16 %v1053
      %v1123 = vunpack.c.l.b16 %v1054
      %v1124 = vunpack.c.h.b16 %v1054
      %v1125 = vunpack.c.l.b16 %v1055
      %v1126 = vunpack.c.h.b16 %v1055
      %v1127 = vunpack.c.l.b16 %v1056
      %v1128 = vunpack.c.h.b16 %v1056
      %v1129 = vunpack.c.l.b16 %v1057
      %v1130 = vunpack.c.h.b16 %v1057
      %v1131 = vunpack.c.l.b16 %v1058
      %v1132 = vunpack.c.h.b16 %v1058
      %v1133 = vunpack.c.l.b16 %v1059
      %v1134 = vunpack.c.h.b16 %v1059
      %v1135 = vunpack.c.l.b16 %v1060
      %v1136 = vunpack.c.h.b16 %v1060
      %v1137 = vunpack.c.l.b16 %v1061
      %v1138 = vunpack.c.h.b16 %v1061
      %v1139 = vunpack.c.l.b16 %v1062
      %v1140 = vunpack.c.h.b16 %v1062
      %v1141 = vunpack.c.l.b16 %v1063
      %v1142 = vunpack.c.h.b16 %v1063
      %v1143 = vunpack.c.l.b16 %v1064
      %v1144 = vunpack.c.h.b16 %v1064
      %v1145 = vunpack.c.l.b16 %v1065
      %v1146 = vunpack.c.h.b16 %v1065
      %v1147 = vunpack.c.l.b16 %v1066
      %v1148 = vunpack.c.h.b16 %v1066
      %v1149 = vunpack.c.l.b16 %v1067
      %v1150 = vunpack.c.h.b16 %v1067
      %v1151 = vunpack.c.l.b16 %v1068
      %v1152 = vunpack.c.h.b16 %v1068
      %v1153 = vunpack.c.l.b16 %v1069
      %v1154 = vunpack.c.h.b16 %v1069
      %v1155 = vunpack.c.l.b16 %v1070
      %v1156 = vunpack.c.h.b16 %v1070
      %v1157 = vunpack.c.l.b16 %v1071
      %v1158 = vunpack.c.h.b16 %v1071
      %v1159 = vunpack.c.l.b16 %v1072
      %v1160 = vunpack.c.h.b16 %v1072
      %v1161 = vunpack.c.l.b16 %v1073
      %v1162 = vunpack.c.h.b16 %v1073
      %v1163 = vunpack.c.l.b16 %v1074
      %v1164 = vunpack.c.h.b16 %v1074
      %v1165 = vunpack.c.l.b16 %v1075
      %v1166 = vunpack.c.h.b16 %v1075
      %v1167 = vunpack.c.l.b16 %v1076
      %v1168 = vunpack.c.h.b16 %v1076
      %v1169 = vunpack.c.l.b16 %v1077
      %v1170 = vunpack.c.h.b16 %v1077
      %v1171 = vunpack.c.l.b16 %v1078
      %v1172 = vunpack.c.h.b16 %v1078
      %v1173 = vunpack.c.l.b16 %v1079
      %v1174 = vunpack.c.h.b16 %v1079
      %v1175 = vunpack.c.l.b16 %v1080
      %v1176 = vunpack.c.h.b16 %v1080
      %v1177 = vpack.c.b16 %v1113, %v1113
      %v1178 = vpack.c.b16 %v1114, %v1114
      %v1179 = vpack.c.b16 %v1115, %v1115
      %v1180 = vpack.c.b16 %v1116, %v1116
      %v1181 = vpack.c.b16 %v1117, %v1117
      %v1182 = vpack.c.b16 %v1118, %v1118
      %v1183 = vpack.c.b16 %v1119, %v1119
      %v1184 = vpack.c.b16 %v1120, %v1120
      %v1185 = vpack.c.b16 %v1121, %v1121
      %v1186 = vpack.c.b16 %v1122, %v1122
      %v1187 = vpack.c.b16 %v1123, %v1123
      %v1188 = vpack.c.b16 %v1124, %v1124
      %v1189 = vpack.c.b16 %v1125, %v1125
      %v1190 = vpack.c.b16 %v1126, %v1126
      %v1191 = vpack.c.b16 %v1127, %v1127
      %v1192 = vpack.c.b16 %v1128, %v1128
      %v1193 = vpack.c.b16 %v1129, %v1129
      %v1194 = vpack.c.b16 %v1130, %v1130
      %v1195 = vpack.c.b16 %v1131, %v1131
      %v1196 = vpack.c.b16 %v1132, %v1132
      %v1197 = vpack.c.b16 %v1133, %v1133
      %v1198 = vpack.c.b16 %v1134, %v1134
      %v1199 = vpack.c.b16 %v1135, %v1135
      %v1200 = vpack.c.b16 %v1136, %v1136
      %v1201 = vpack.c.b16 %v1137, %v1137
      %v1202 = vpack.c.b16 %v1138, %v1138
      %v1203 = vpack.c.b16 %v1139, %v1139
      %v1204 = vpack.c.b16 %v1140, %v1140
      %v1205 = vpack.c.b16 %v1141, %v1141
      %v1206 = vpack.c.b16 %v1142, %v1142
      %v1207 = vpack.c.b16 %v1143, %v1143
      %v1208 = vpack.c.b16 %v1144, %v1144
      %v1209 = vpack.c.b16 %v1145, %v1145
      %v1210 = vpack.c.b16 %v1146, %v1146
      %v1211 = vpack.c.b16 %v1147, %v1147
      %v1212 = vpack.c.b16 %v1148, %v1148
      %v1213 = vpack.c.b16 %v1149, %v1149
      %v1214 = vpack.c.b16 %v1150, %v1150
      %v1215 = vpack.c.b16 %v1151, %v1151
      %v1216 = vpack.c.b16 %v1152, %v1152
      %v1217 = vpack.c.b16 %v1153, %v1153
      %v1218 = vpack.c.b16 %v1154, %v1154
      %v1219 = vpack.c.b16 %v1155, %v1155
      %v1220 = vpack.c.b16 %v1156, %v1156
      %v1221 = vpack.c.b16 %v1157, %v1157
      %v1222 = vpack.c.b16 %v1158, %v1158
      %v1223 = vpack.c.b16 %v1159, %v1159
      %v1224 = vpack.c.b16 %v1160, %v1160
      %v1225 = vpack.c.b16 %v1161, %v1161
      %v1226 = vpack.c.b16 %v1162, %v1162
      %v1227 = vpack.c.b16 %v1163, %v1163
      %v1228 = vpack.c.b16 %v1164, %v1164
      %v1229 = vpack.c.b16 %v1165, %v1165
      %v1230 = vpack.c.b16 %v1166, %v1166
      %v1231 = vpack.c.b16 %v1167, %v1167
      %v1232 = vpack.c.b16 %v1168, %v1168
      %v1233 = vpack.c.b16 %v1169, %v1169
      %v1234 = vpack.c.b16 %v1170, %v1170
      %v1235 = vpack.c.b16 %v1171, %v1171
      %v1236 = vpack.c.b16 %v1172, %v1172
      %v1237 = vpack.c.b16 %v1173, %v1173
      %v1238 = vpack.c.b16 %v1174, %v1174
      %v1239 = vpack.c.b16 %v1175, %v1175
      %v1240 = vpack.c.b16 %v1176, %v1176
      %vm1305 = vcmask 60416
      %1306 = vst.msk [vmem:[%s275] sm:$0xf] %vm1305, %v1177
      %1307 = vst.msk [vmem:[%s275 + $0x4] sm:$0xf] %vm1305, %v1178
      %1308 = vst.msk [vmem:[%s275 + $0x8] sm:$0xf] %vm1305, %v1179
      %1309 = vst.msk [vmem:[%s275 + $0xc] sm:$0xf] %vm1305, %v1180
      %1310 = vst.msk [vmem:[%s275 + $0x10] sm:$0xf] %vm1305, %v1181
      %1311 = vst.msk [vmem:[%s275 + $0x14] sm:$0xf] %vm1305, %v1182
      %1312 = vst.msk [vmem:[%s275 + $0x18] sm:$0xf] %vm1305, %v1183
      %1313 = vst.msk [vmem:[%s275 + $0x1c] sm:$0xf] %vm1305, %v1184
      %1314 = vst.msk [vmem:[%s275 + $0x20] sm:$0xf] %vm1305, %v1185
      %1315 = vst.msk [vmem:[%s275 + $0x24] sm:$0xf] %vm1305, %v1186
      %1316 = vst.msk [vmem:[%s275 + $0x28] sm:$0xf] %vm1305, %v1187
      %1317 = vst.msk [vmem:[%s275 + $0x2c] sm:$0xf] %vm1305, %v1188
      %1318 = vst.msk [vmem:[%s275 + $0x30] sm:$0xf] %vm1305, %v1189
      %1319 = vst.msk [vmem:[%s275 + $0x34] sm:$0xf] %vm1305, %v1190
      %1320 = vst.msk [vmem:[%s275 + $0x38] sm:$0xf] %vm1305, %v1191
      %1321 = vst.msk [vmem:[%s275 + $0x3c] sm:$0xf] %vm1305, %v1192
      %1322 = vst.msk [vmem:[%s275 + $0x40] sm:$0xf] %vm1305, %v1193
      %1323 = vst.msk [vmem:[%s275 + $0x44] sm:$0xf] %vm1305, %v1194
      %1324 = vst.msk [vmem:[%s275 + $0x48] sm:$0xf] %vm1305, %v1195
      %1325 = vst.msk [vmem:[%s275 + $0x4c] sm:$0xf] %vm1305, %v1196
      %1326 = vst.msk [vmem:[%s275 + $0x50] sm:$0xf] %vm1305, %v1197
      %1327 = vst.msk [vmem:[%s275 + $0x54] sm:$0xf] %vm1305, %v1198
      %1328 = vst.msk [vmem:[%s275 + $0x58] sm:$0xf] %vm1305, %v1199
      %1329 = vst.msk [vmem:[%s275 + $0x5c] sm:$0xf] %vm1305, %v1200
      %1330 = vst.msk [vmem:[%s275 + $0x60] sm:$0xf] %vm1305, %v1201
      %1331 = vst.msk [vmem:[%s275 + $0x64] sm:$0xf] %vm1305, %v1202
      %1332 = vst.msk [vmem:[%s275 + $0x68] sm:$0xf] %vm1305, %v1203
      %1333 = vst.msk [vmem:[%s275 + $0x6c] sm:$0xf] %vm1305, %v1204
      %1334 = vst.msk [vmem:[%s275 + $0x70] sm:$0xf] %vm1305, %v1205
      %1335 = vst.msk [vmem:[%s275 + $0x74] sm:$0xf] %vm1305, %v1206
      %1336 = vst.msk [vmem:[%s275 + $0x78] sm:$0xf] %vm1305, %v1207
      %1337 = vst.msk [vmem:[%s275 + $0x7c] sm:$0xf] %vm1305, %v1208
      %1338 = vst.msk [vmem:[%s275 + $0x80] sm:$0xf] %vm1305, %v1209
      %1339 = vst.msk [vmem:[%s275 + $0x84] sm:$0xf] %vm1305, %v1210
      %1340 = vst.msk [vmem:[%s275 + $0x88] sm:$0xf] %vm1305, %v1211
      %1341 = vst.msk [vmem:[%s275 + $0x8c] sm:$0xf] %vm1305, %v1212
      %1342 = vst.msk [vmem:[%s275 + $0x90] sm:$0xf] %vm1305, %v1213
      %1343 = vst.msk [vmem:[%s275 + $0x94] sm:$0xf] %vm1305, %v1214
      %1344 = vst.msk [vmem:[%s275 + $0x98] sm:$0xf] %vm1305, %v1215
      %1345 = vst.msk [vmem:[%s275 + $0x9c] sm:$0xf] %vm1305, %v1216
      %1346 = vst.msk [vmem:[%s275 + $0xa0] sm:$0xf] %vm1305, %v1217
      %1347 = vst.msk [vmem:[%s275 + $0xa4] sm:$0xf] %vm1305, %v1218
      %1348 = vst.msk [vmem:[%s275 + $0xa8] sm:$0xf] %vm1305, %v1219
      %1349 = vst.msk [vmem:[%s275 + $0xac] sm:$0xf] %vm1305, %v1220
      %1350 = vst.msk [vmem:[%s275 + $0xb0] sm:$0xf] %vm1305, %v1221
      %1351 = vst.msk [vmem:[%s275 + $0xb4] sm:$0xf] %vm1305, %v1222
      %1352 = vst.msk [vmem:[%s275 + $0xb8] sm:$0xf] %vm1305, %v1223
      %1353 = vst.msk [vmem:[%s275 + $0xbc] sm:$0xf] %vm1305, %v1224
      %1354 = vst.msk [vmem:[%s275 + $0xc0] sm:$0xf] %vm1305, %v1225
      %1355 = vst.msk [vmem:[%s275 + $0xc4] sm:$0xf] %vm1305, %v1226
      %1356 = vst.msk [vmem:[%s275 + $0xc8] sm:$0xf] %vm1305, %v1227
      %1357 = vst.msk [vmem:[%s275 + $0xcc] sm:$0xf] %vm1305, %v1228
      %1358 = vst.msk [vmem:[%s275 + $0xd0] sm:$0xf] %vm1305, %v1229
      %1359 = vst.msk [vmem:[%s275 + $0xd4] sm:$0xf] %vm1305, %v1230
      %1360 = vst.msk [vmem:[%s275 + $0xd8] sm:$0xf] %vm1305, %v1231
      %1361 = vst.msk [vmem:[%s275 + $0xdc] sm:$0xf] %vm1305, %v1232
      %1362 = vst.msk [vmem:[%s275 + $0xe0] sm:$0xf] %vm1305, %v1233
      %1363 = vst.msk [vmem:[%s275 + $0xe4] sm:$0xf] %vm1305, %v1234
      %1364 = vst.msk [vmem:[%s275 + $0xe8] sm:$0xf] %vm1305, %v1235
      %1365 = vst.msk [vmem:[%s275 + $0xec] sm:$0xf] %vm1305, %v1236
      %1366 = vst.msk [vmem:[%s275 + $0xf0] sm:$0xf] %vm1305, %v1237
      %1367 = vst.msk [vmem:[%s275 + $0xf4] sm:$0xf] %vm1305, %v1238
      %1368 = vst.msk [vmem:[%s275 + $0xf8] sm:$0xf] %vm1305, %v1239
      %1369 = vst.msk [vmem:[%s275 + $0xfc] sm:$0xf] %vm1305, %v1240
      %s1370 = smul.u32 %s19, 512
      %v1371 = vlaneseq
      %v1372 = vshrl.u32 %v1371, 7
      %v1373 = vadd.s32 %v1372, 8
      %v1374 = vadd.s32 %v1372, 16
      %v1375 = vadd.s32 %v1372, 24
      %v1376 = vadd.s32 %v1372, 32
      %v1377 = vadd.s32 %v1372, 40
      %v1378 = vadd.s32 %v1372, 48
      %v1379 = vadd.s32 %v1372, 56
      %v1380 = vadd.s32 %v1372, 64
      %v1381 = vadd.s32 %v1372, 72
      %v1382 = vadd.s32 %v1372, 80
      %v1383 = vadd.s32 %v1372, 88
      %v1384 = vadd.s32 %v1372, 96
      %v1385 = vadd.s32 %v1372, 104
      %v1386 = vadd.s32 %v1372, 112
      %v1387 = vadd.s32 %v1372, 120
      %v1388 = vadd.s32 %v1372, 128
      %v1389 = vadd.s32 %v1372, 136
      %v1390 = vadd.s32 %v1372, 144
      %v1391 = vadd.s32 %v1372, 152
      %v1392 = vadd.s32 %v1372, 160
      %v1393 = vadd.s32 %v1372, 168
      %v1394 = vadd.s32 %v1372, 176
      %v1395 = vadd.s32 %v1372, 184
      %v1396 = vadd.s32 %v1372, 192
      %v1397 = vadd.s32 %v1372, 200
      %v1398 = vadd.s32 %v1372, 208
      %v1399 = vadd.s32 %v1372, 216
      %v1400 = vadd.s32 %v1372, 224
      %v1401 = vadd.s32 %v1372, 232
      %v1402 = vadd.s32 %v1372, 240
      %v1403 = vadd.s32 %v1372, 248
      %v1404 = vadd.s32 %v1372, 256
      %v1405 = vadd.s32 %v1372, 264
      %v1406 = vadd.s32 %v1372, 272
      %v1407 = vadd.s32 %v1372, 280
      %v1408 = vadd.s32 %v1372, 288
      %v1409 = vadd.s32 %v1372, 296
      %v1410 = vadd.s32 %v1372, 304
      %v1411 = vadd.s32 %v1372, 312
      %v1412 = vadd.s32 %v1372, 320
      %v1413 = vadd.s32 %v1372, 328
      %v1414 = vadd.s32 %v1372, 336
      %v1415 = vadd.s32 %v1372, 344
      %v1416 = vadd.s32 %v1372, 352
      %v1417 = vadd.s32 %v1372, 360
      %v1418 = vadd.s32 %v1372, 368
      %v1419 = vadd.s32 %v1372, 376
      %v1420 = vadd.s32 %v1372, 384
      %v1421 = vadd.s32 %v1372, 392
      %v1422 = vadd.s32 %v1372, 400
      %v1423 = vadd.s32 %v1372, 408
      %v1424 = vadd.s32 %v1372, 416
      %v1425 = vadd.s32 %v1372, 424
      %v1426 = vadd.s32 %v1372, 432
      %v1427 = vadd.s32 %v1372, 440
      %v1428 = vadd.s32 %v1372, 448
      %v1429 = vadd.s32 %v1372, 456
      %v1430 = vadd.s32 %v1372, 464
      %v1431 = vadd.s32 %v1372, 472
      %v1432 = vadd.s32 %v1372, 480
      %v1433 = vadd.s32 %v1372, 488
      %v1434 = vadd.s32 %v1372, 496
      %v1435 = vadd.s32 %v1372, 504
      %v1436 = vstv %s1370
      %v1437 = vadd.s32 %v1436, %v1372
      %v1438 = vadd.s32 %v1436, %v1373
      %v1439 = vadd.s32 %v1436, %v1374
      %v1440 = vadd.s32 %v1436, %v1375
      %v1441 = vadd.s32 %v1436, %v1376
      %v1442 = vadd.s32 %v1436, %v1377
      %v1443 = vadd.s32 %v1436, %v1378
      %v1444 = vadd.s32 %v1436, %v1379
      %v1445 = vadd.s32 %v1436, %v1380
      %v1446 = vadd.s32 %v1436, %v1381
      %v1447 = vadd.s32 %v1436, %v1382
      %v1448 = vadd.s32 %v1436, %v1383
      %v1449 = vadd.s32 %v1436, %v1384
      %v1450 = vadd.s32 %v1436, %v1385
      %v1451 = vadd.s32 %v1436, %v1386
      %v1452 = vadd.s32 %v1436, %v1387
      %v1453 = vadd.s32 %v1436, %v1388
      %v1454 = vadd.s32 %v1436, %v1389
      %v1455 = vadd.s32 %v1436, %v1390
      %v1456 = vadd.s32 %v1436, %v1391
      %v1457 = vadd.s32 %v1436, %v1392
      %v1458 = vadd.s32 %v1436, %v1393
      %v1459 = vadd.s32 %v1436, %v1394
      %v1460 = vadd.s32 %v1436, %v1395
      %v1461 = vadd.s32 %v1436, %v1396
      %v1462 = vadd.s32 %v1436, %v1397
      %v1463 = vadd.s32 %v1436, %v1398
      %v1464 = vadd.s32 %v1436, %v1399
      %v1465 = vadd.s32 %v1436, %v1400
      %v1466 = vadd.s32 %v1436, %v1401
      %v1467 = vadd.s32 %v1436, %v1402
      %v1468 = vadd.s32 %v1436, %v1403
      %v1469 = vadd.s32 %v1436, %v1404
      %v1470 = vadd.s32 %v1436, %v1405
      %v1471 = vadd.s32 %v1436, %v1406
      %v1472 = vadd.s32 %v1436, %v1407
      %v1473 = vadd.s32 %v1436, %v1408
      %v1474 = vadd.s32 %v1436, %v1409
      %v1475 = vadd.s32 %v1436, %v1410
      %v1476 = vadd.s32 %v1436, %v1411
      %v1477 = vadd.s32 %v1436, %v1412
      %v1478 = vadd.s32 %v1436, %v1413
      %v1479 = vadd.s32 %v1436, %v1414
      %v1480 = vadd.s32 %v1436, %v1415
      %v1481 = vadd.s32 %v1436, %v1416
      %v1482 = vadd.s32 %v1436, %v1417
      %v1483 = vadd.s32 %v1436, %v1418
      %v1484 = vadd.s32 %v1436, %v1419
      %v1485 = vadd.s32 %v1436, %v1420
      %v1486 = vadd.s32 %v1436, %v1421
      %v1487 = vadd.s32 %v1436, %v1422
      %v1488 = vadd.s32 %v1436, %v1423
      %v1489 = vadd.s32 %v1436, %v1424
      %v1490 = vadd.s32 %v1436, %v1425
      %v1491 = vadd.s32 %v1436, %v1426
      %v1492 = vadd.s32 %v1436, %v1427
      %v1493 = vadd.s32 %v1436, %v1428
      %v1494 = vadd.s32 %v1436, %v1429
      %v1495 = vadd.s32 %v1436, %v1430
      %v1496 = vadd.s32 %v1436, %v1431
      %v1497 = vadd.s32 %v1436, %v1432
      %v1498 = vadd.s32 %v1436, %v1433
      %v1499 = vadd.s32 %v1436, %v1434
      %v1500 = vadd.s32 %v1436, %v1435
      %vm1501 = vcmp.lt.s32.totalorder %v1437, 2048
      %vm1502 = vcmp.lt.s32.totalorder %v1438, 2048
      %vm1503 = vcmp.lt.s32.totalorder %v1439, 2048
      %vm1504 = vcmp.lt.s32.totalorder %v1440, 2048
      %vm1505 = vcmp.lt.s32.totalorder %v1441, 2048
      %vm1506 = vcmp.lt.s32.totalorder %v1442, 2048
      %vm1507 = vcmp.lt.s32.totalorder %v1443, 2048
      %vm1508 = vcmp.lt.s32.totalorder %v1444, 2048
      %vm1509 = vcmp.lt.s32.totalorder %v1445, 2048
      %vm1510 = vcmp.lt.s32.totalorder %v1446, 2048
      %vm1511 = vcmp.lt.s32.totalorder %v1447, 2048
      %vm1512 = vcmp.lt.s32.totalorder %v1448, 2048
      %vm1513 = vcmp.lt.s32.totalorder %v1449, 2048
      %vm1514 = vcmp.lt.s32.totalorder %v1450, 2048
      %vm1515 = vcmp.lt.s32.totalorder %v1451, 2048
      %vm1516 = vcmp.lt.s32.totalorder %v1452, 2048
      %vm1517 = vcmp.lt.s32.totalorder %v1453, 2048
      %vm1518 = vcmp.lt.s32.totalorder %v1454, 2048
      %vm1519 = vcmp.lt.s32.totalorder %v1455, 2048
      %vm1520 = vcmp.lt.s32.totalorder %v1456, 2048
      %vm1521 = vcmp.lt.s32.totalorder %v1457, 2048
      %vm1522 = vcmp.lt.s32.totalorder %v1458, 2048
      %vm1523 = vcmp.lt.s32.totalorder %v1459, 2048
      %vm1524 = vcmp.lt.s32.totalorder %v1460, 2048
      %vm1525 = vcmp.lt.s32.totalorder %v1461, 2048
      %vm1526 = vcmp.lt.s32.totalorder %v1462, 2048
      %vm1527 = vcmp.lt.s32.totalorder %v1463, 2048
      %vm1528 = vcmp.lt.s32.totalorder %v1464, 2048
      %vm1529 = vcmp.lt.s32.totalorder %v1465, 2048
      %vm1530 = vcmp.lt.s32.totalorder %v1466, 2048
      %vm1531 = vcmp.lt.s32.totalorder %v1467, 2048
      %vm1532 = vcmp.lt.s32.totalorder %v1468, 2048
      %vm1533 = vcmp.lt.s32.totalorder %v1469, 2048
      %vm1534 = vcmp.lt.s32.totalorder %v1470, 2048
      %vm1535 = vcmp.lt.s32.totalorder %v1471, 2048
      %vm1536 = vcmp.lt.s32.totalorder %v1472, 2048
      %vm1537 = vcmp.lt.s32.totalorder %v1473, 2048
      %vm1538 = vcmp.lt.s32.totalorder %v1474, 2048
      %vm1539 = vcmp.lt.s32.totalorder %v1475, 2048
      %vm1540 = vcmp.lt.s32.totalorder %v1476, 2048
      %vm1541 = vcmp.lt.s32.totalorder %v1477, 2048
      %vm1542 = vcmp.lt.s32.totalorder %v1478, 2048
      %vm1543 = vcmp.lt.s32.totalorder %v1479, 2048
      %vm1544 = vcmp.lt.s32.totalorder %v1480, 2048
      %vm1545 = vcmp.lt.s32.totalorder %v1481, 2048
      %vm1546 = vcmp.lt.s32.totalorder %v1482, 2048
      %vm1547 = vcmp.lt.s32.totalorder %v1483, 2048
      %vm1548 = vcmp.lt.s32.totalorder %v1484, 2048
      %vm1549 = vcmp.lt.s32.totalorder %v1485, 2048
      %vm1550 = vcmp.lt.s32.totalorder %v1486, 2048
      %vm1551 = vcmp.lt.s32.totalorder %v1487, 2048
      %vm1552 = vcmp.lt.s32.totalorder %v1488, 2048
      %vm1553 = vcmp.lt.s32.totalorder %v1489, 2048
      %vm1554 = vcmp.lt.s32.totalorder %v1490, 2048
      %vm1555 = vcmp.lt.s32.totalorder %v1491, 2048
      %vm1556 = vcmp.lt.s32.totalorder %v1492, 2048
      %vm1557 = vcmp.lt.s32.totalorder %v1493, 2048
      %vm1558 = vcmp.lt.s32.totalorder %v1494, 2048
      %vm1559 = vcmp.lt.s32.totalorder %v1495, 2048
      %vm1560 = vcmp.lt.s32.totalorder %v1496, 2048
      %vm1561 = vcmp.lt.s32.totalorder %v1497, 2048
      %vm1562 = vcmp.lt.s32.totalorder %v1498, 2048
      %vm1563 = vcmp.lt.s32.totalorder %v1499, 2048
      %vm1564 = vcmp.lt.s32.totalorder %v1500, 2048
      %v1565 = vsel %vm1501, 1, 0
      %v1566 = vsel %vm1502, 1, 0
      %v1567 = vsel %vm1503, 1, 0
      %v1568 = vsel %vm1504, 1, 0
      %v1569 = vsel %vm1505, 1, 0
      %v1570 = vsel %vm1506, 1, 0
      %v1571 = vsel %vm1507, 1, 0
      %v1572 = vsel %vm1508, 1, 0
      %v1573 = vsel %vm1509, 1, 0
      %v1574 = vsel %vm1510, 1, 0
      %v1575 = vsel %vm1511, 1, 0
      %v1576 = vsel %vm1512, 1, 0
      %v1577 = vsel %vm1513, 1, 0
      %v1578 = vsel %vm1514, 1, 0
      %v1579 = vsel %vm1515, 1, 0
      %v1580 = vsel %vm1516, 1, 0
      %v1581 = vsel %vm1517, 1, 0
      %v1582 = vsel %vm1518, 1, 0
      %v1583 = vsel %vm1519, 1, 0
      %v1584 = vsel %vm1520, 1, 0
      %v1585 = vsel %vm1521, 1, 0
      %v1586 = vsel %vm1522, 1, 0
      %v1587 = vsel %vm1523, 1, 0
      %v1588 = vsel %vm1524, 1, 0
      %v1589 = vsel %vm1525, 1, 0
      %v1590 = vsel %vm1526, 1, 0
      %v1591 = vsel %vm1527, 1, 0
      %v1592 = vsel %vm1528, 1, 0
      %v1593 = vsel %vm1529, 1, 0
      %v1594 = vsel %vm1530, 1, 0
      %v1595 = vsel %vm1531, 1, 0
      %v1596 = vsel %vm1532, 1, 0
      %v1597 = vsel %vm1533, 1, 0
      %v1598 = vsel %vm1534, 1, 0
      %v1599 = vsel %vm1535, 1, 0
      %v1600 = vsel %vm1536, 1, 0
      %v1601 = vsel %vm1537, 1, 0
      %v1602 = vsel %vm1538, 1, 0
      %v1603 = vsel %vm1539, 1, 0
      %v1604 = vsel %vm1540, 1, 0
      %v1605 = vsel %vm1541, 1, 0
      %v1606 = vsel %vm1542, 1, 0
      %v1607 = vsel %vm1543, 1, 0
      %v1608 = vsel %vm1544, 1, 0
      %v1609 = vsel %vm1545, 1, 0
      %v1610 = vsel %vm1546, 1, 0
      %v1611 = vsel %vm1547, 1, 0
      %v1612 = vsel %vm1548, 1, 0
      %v1613 = vsel %vm1549, 1, 0
      %v1614 = vsel %vm1550, 1, 0
      %v1615 = vsel %vm1551, 1, 0
      %v1616 = vsel %vm1552, 1, 0
      %v1617 = vsel %vm1553, 1, 0
      %v1618 = vsel %vm1554, 1, 0
      %v1619 = vsel %vm1555, 1, 0
      %v1620 = vsel %vm1556, 1, 0
      %v1621 = vsel %vm1557, 1, 0
      %v1622 = vsel %vm1558, 1, 0
      %v1623 = vsel %vm1559, 1, 0
      %v1624 = vsel %vm1560, 1, 0
      %v1625 = vsel %vm1561, 1, 0
      %v1626 = vsel %vm1562, 1, 0
      %v1627 = vsel %vm1563, 1, 0
      %v1628 = vsel %vm1564, 1, 0
      %vm1629 = vcmp.eq.s32.totalorder %v1565, 1
      %vm1630 = vcmp.eq.s32.totalorder %v1566, 1
      %vm1631 = vcmp.eq.s32.totalorder %v1567, 1
      %vm1632 = vcmp.eq.s32.totalorder %v1568, 1
      %vm1633 = vcmp.eq.s32.totalorder %v1569, 1
      %vm1634 = vcmp.eq.s32.totalorder %v1570, 1
      %vm1635 = vcmp.eq.s32.totalorder %v1571, 1
      %vm1636 = vcmp.eq.s32.totalorder %v1572, 1
      %vm1637 = vcmp.eq.s32.totalorder %v1573, 1
      %vm1638 = vcmp.eq.s32.totalorder %v1574, 1
      %vm1639 = vcmp.eq.s32.totalorder %v1575, 1
      %vm1640 = vcmp.eq.s32.totalorder %v1576, 1
      %vm1641 = vcmp.eq.s32.totalorder %v1577, 1
      %vm1642 = vcmp.eq.s32.totalorder %v1578, 1
      %vm1643 = vcmp.eq.s32.totalorder %v1579, 1
      %vm1644 = vcmp.eq.s32.totalorder %v1580, 1
      %vm1645 = vcmp.eq.s32.totalorder %v1581, 1
      %vm1646 = vcmp.eq.s32.totalorder %v1582, 1
      %vm1647 = vcmp.eq.s32.totalorder %v1583, 1
      %vm1648 = vcmp.eq.s32.totalorder %v1584, 1
      %vm1649 = vcmp.eq.s32.totalorder %v1585, 1
      %vm1650 = vcmp.eq.s32.totalorder %v1586, 1
      %vm1651 = vcmp.eq.s32.totalorder %v1587, 1
      %vm1652 = vcmp.eq.s32.totalorder %v1588, 1
      %vm1653 = vcmp.eq.s32.totalorder %v1589, 1
      %vm1654 = vcmp.eq.s32.totalorder %v1590, 1
      %vm1655 = vcmp.eq.s32.totalorder %v1591, 1
      %vm1656 = vcmp.eq.s32.totalorder %v1592, 1
      %vm1657 = vcmp.eq.s32.totalorder %v1593, 1
      %vm1658 = vcmp.eq.s32.totalorder %v1594, 1
      %vm1659 = vcmp.eq.s32.totalorder %v1595, 1
      %vm1660 = vcmp.eq.s32.totalorder %v1596, 1
      %vm1661 = vcmp.eq.s32.totalorder %v1597, 1
      %vm1662 = vcmp.eq.s32.totalorder %v1598, 1
      %vm1663 = vcmp.eq.s32.totalorder %v1599, 1
      %vm1664 = vcmp.eq.s32.totalorder %v1600, 1
      %vm1665 = vcmp.eq.s32.totalorder %v1601, 1
      %vm1666 = vcmp.eq.s32.totalorder %v1602, 1
      %vm1667 = vcmp.eq.s32.totalorder %v1603, 1
      %vm1668 = vcmp.eq.s32.totalorder %v1604, 1
      %vm1669 = vcmp.eq.s32.totalorder %v1605, 1
      %vm1670 = vcmp.eq.s32.totalorder %v1606, 1
      %vm1671 = vcmp.eq.s32.totalorder %v1607, 1
      %vm1672 = vcmp.eq.s32.totalorder %v1608, 1
      %vm1673 = vcmp.eq.s32.totalorder %v1609, 1
      %vm1674 = vcmp.eq.s32.totalorder %v1610, 1
      %vm1675 = vcmp.eq.s32.totalorder %v1611, 1
      %vm1676 = vcmp.eq.s32.totalorder %v1612, 1
      %vm1677 = vcmp.eq.s32.totalorder %v1613, 1
      %vm1678 = vcmp.eq.s32.totalorder %v1614, 1
      %vm1679 = vcmp.eq.s32.totalorder %v1615, 1
      %vm1680 = vcmp.eq.s32.totalorder %v1616, 1
      %vm1681 = vcmp.eq.s32.totalorder %v1617, 1
      %vm1682 = vcmp.eq.s32.totalorder %v1618, 1
      %vm1683 = vcmp.eq.s32.totalorder %v1619, 1
      %vm1684 = vcmp.eq.s32.totalorder %v1620, 1
      %vm1685 = vcmp.eq.s32.totalorder %v1621, 1
      %vm1686 = vcmp.eq.s32.totalorder %v1622, 1
      %vm1687 = vcmp.eq.s32.totalorder %v1623, 1
      %vm1688 = vcmp.eq.s32.totalorder %v1624, 1
      %vm1689 = vcmp.eq.s32.totalorder %v1625, 1
      %vm1690 = vcmp.eq.s32.totalorder %v1626, 1
      %vm1691 = vcmp.eq.s32.totalorder %v1627, 1
      %vm1692 = vcmp.eq.s32.totalorder %v1628, 1
      %v1693 = vsel %vm1629, %v795, 0.0
      %v1694 = vsel %vm1630, %v798, 0.0
      %v1695 = vsel %vm1631, %v803, 0.0
      %v1696 = vsel %vm1632, %v806, 0.0
      %v1697 = vsel %vm1633, %v811, 0.0
      %v1698 = vsel %vm1634, %v814, 0.0
      %v1699 = vsel %vm1635, %v819, 0.0
      %v1700 = vsel %vm1636, %v822, 0.0
      %v1701 = vsel %vm1637, %v827, 0.0
      %v1702 = vsel %vm1638, %v830, 0.0
      %v1703 = vsel %vm1639, %v835, 0.0
      %v1704 = vsel %vm1640, %v838, 0.0
      %v1705 = vsel %vm1641, %v843, 0.0
      %v1706 = vsel %vm1642, %v846, 0.0
      %v1707 = vsel %vm1643, %v851, 0.0
      %v1708 = vsel %vm1644, %v854, 0.0
      %v1709 = vsel %vm1645, %v859, 0.0
      %v1710 = vsel %vm1646, %v862, 0.0
      %v1711 = vsel %vm1647, %v867, 0.0
      %v1712 = vsel %vm1648, %v870, 0.0
      %v1713 = vsel %vm1649, %v875, 0.0
      %v1714 = vsel %vm1650, %v878, 0.0
      %v1715 = vsel %vm1651, %v883, 0.0
      %v1716 = vsel %vm1652, %v886, 0.0
      %v1717 = vsel %vm1653, %v891, 0.0
      %v1718 = vsel %vm1654, %v894, 0.0
      %v1719 = vsel %vm1655, %v899, 0.0
      %v1720 = vsel %vm1656, %v902, 0.0
      %v1721 = vsel %vm1657, %v907, 0.0
      %v1722 = vsel %vm1658, %v910, 0.0
      %v1723 = vsel %vm1659, %v915, 0.0
      %v1724 = vsel %vm1660, %v918, 0.0
      %v1725 = vsel %vm1661, %v923, 0.0
      %v1726 = vsel %vm1662, %v926, 0.0
      %v1727 = vsel %vm1663, %v931, 0.0
      %v1728 = vsel %vm1664, %v934, 0.0
      %v1729 = vsel %vm1665, %v939, 0.0
      %v1730 = vsel %vm1666, %v942, 0.0
      %v1731 = vsel %vm1667, %v947, 0.0
      %v1732 = vsel %vm1668, %v950, 0.0
      %v1733 = vsel %vm1669, %v955, 0.0
      %v1734 = vsel %vm1670, %v958, 0.0
      %v1735 = vsel %vm1671, %v963, 0.0
      %v1736 = vsel %vm1672, %v966, 0.0
      %v1737 = vsel %vm1673, %v971, 0.0
      %v1738 = vsel %vm1674, %v974, 0.0
      %v1739 = vsel %vm1675, %v979, 0.0
      %v1740 = vsel %vm1676, %v982, 0.0
      %v1741 = vsel %vm1677, %v987, 0.0
      %v1742 = vsel %vm1678, %v990, 0.0
      %v1743 = vsel %vm1679, %v995, 0.0
      %v1744 = vsel %vm1680, %v998, 0.0
      %v1745 = vsel %vm1681, %v1003, 0.0
      %v1746 = vsel %vm1682, %v1006, 0.0
      %v1747 = vsel %vm1683, %v1011, 0.0
      %v1748 = vsel %vm1684, %v1014, 0.0
      %v1749 = vsel %vm1685, %v1019, 0.0
      %v1750 = vsel %vm1686, %v1022, 0.0
      %v1751 = vsel %vm1687, %v1027, 0.0
      %v1752 = vsel %vm1688, %v1030, 0.0
      %v1753 = vsel %vm1689, %v1035, 0.0
      %v1754 = vsel %vm1690, %v1038, 0.0
      %v1755 = vsel %vm1691, %v1043, 0.0
      %v1756 = vsel %vm1692, %v1046, 0.0
      %v1757 = vld [vmem:[%s6] sm:$0x1]
      %vm1758 = vcmask 64512
      %v1759 = vsel %vm1758, %v1693, 0.0
      %v1760 = vsel %vm1758, %v1694, 0.0
      %v1761 = vadd.f32 %v1759, %v1760
      %v1762 = vsel %vm1758, %v1695, 0.0
      %v1763 = vadd.f32 %v1761, %v1762
      %v1764 = vsel %vm1758, %v1696, 0.0
      %v1765 = vadd.f32 %v1763, %v1764
      %v1766 = vsel %vm1758, %v1697, 0.0
      %v1767 = vadd.f32 %v1765, %v1766
      %v1768 = vsel %vm1758, %v1698, 0.0
      %v1769 = vadd.f32 %v1767, %v1768
      %v1770 = vsel %vm1758, %v1699, 0.0
      %v1771 = vadd.f32 %v1769, %v1770
      %v1772 = vsel %vm1758, %v1700, 0.0
      %v1773 = vadd.f32 %v1771, %v1772
      %v1774 = vsel %vm1758, %v1701, 0.0
      %v1775 = vadd.f32 %v1773, %v1774
      %v1776 = vsel %vm1758, %v1702, 0.0
      %v1777 = vadd.f32 %v1775, %v1776
      %v1778 = vsel %vm1758, %v1703, 0.0
      %v1779 = vadd.f32 %v1777, %v1778
      %v1780 = vsel %vm1758, %v1704, 0.0
      %v1781 = vadd.f32 %v1779, %v1780
      %v1782 = vsel %vm1758, %v1705, 0.0
      %v1783 = vadd.f32 %v1781, %v1782
      %v1784 = vsel %vm1758, %v1706, 0.0
      %v1785 = vadd.f32 %v1783, %v1784
      %v1786 = vsel %vm1758, %v1707, 0.0
      %v1787 = vadd.f32 %v1785, %v1786
      %v1788 = vsel %vm1758, %v1708, 0.0
      %v1789 = vadd.f32 %v1787, %v1788
      %v1790 = vsel %vm1758, %v1709, 0.0
      %v1791 = vadd.f32 %v1789, %v1790
      %v1792 = vsel %vm1758, %v1710, 0.0
      %v1793 = vadd.f32 %v1791, %v1792
      %v1794 = vsel %vm1758, %v1711, 0.0
      %v1795 = vadd.f32 %v1793, %v1794
      %v1796 = vsel %vm1758, %v1712, 0.0
      %v1797 = vadd.f32 %v1795, %v1796
      %v1798 = vsel %vm1758, %v1713, 0.0
      %v1799 = vadd.f32 %v1797, %v1798
      %v1800 = vsel %vm1758, %v1714, 0.0
      %v1801 = vadd.f32 %v1799, %v1800
      %v1802 = vsel %vm1758, %v1715, 0.0
      %v1803 = vadd.f32 %v1801, %v1802
      %v1804 = vsel %vm1758, %v1716, 0.0
      %v1805 = vadd.f32 %v1803, %v1804
      %v1806 = vsel %vm1758, %v1717, 0.0
      %v1807 = vadd.f32 %v1805, %v1806
      %v1808 = vsel %vm1758, %v1718, 0.0
      %v1809 = vadd.f32 %v1807, %v1808
      %v1810 = vsel %vm1758, %v1719, 0.0
      %v1811 = vadd.f32 %v1809, %v1810
      %v1812 = vsel %vm1758, %v1720, 0.0
      %v1813 = vadd.f32 %v1811, %v1812
      %v1814 = vsel %vm1758, %v1721, 0.0
      %v1815 = vadd.f32 %v1813, %v1814
      %v1816 = vsel %vm1758, %v1722, 0.0
      %v1817 = vadd.f32 %v1815, %v1816
      %v1818 = vsel %vm1758, %v1723, 0.0
      %v1819 = vadd.f32 %v1817, %v1818
      %v1820 = vsel %vm1758, %v1724, 0.0
      %v1821 = vadd.f32 %v1819, %v1820
      %v1822 = vsel %vm1758, %v1725, 0.0
      %v1823 = vadd.f32 %v1821, %v1822
      %v1824 = vsel %vm1758, %v1726, 0.0
      %v1825 = vadd.f32 %v1823, %v1824
      %v1826 = vsel %vm1758, %v1727, 0.0
      %v1827 = vadd.f32 %v1825, %v1826
      %v1828 = vsel %vm1758, %v1728, 0.0
      %v1829 = vadd.f32 %v1827, %v1828
      %v1830 = vsel %vm1758, %v1729, 0.0
      %v1831 = vadd.f32 %v1829, %v1830
      %v1832 = vsel %vm1758, %v1730, 0.0
      %v1833 = vadd.f32 %v1831, %v1832
      %v1834 = vsel %vm1758, %v1731, 0.0
      %v1835 = vadd.f32 %v1833, %v1834
      %v1836 = vsel %vm1758, %v1732, 0.0
      %v1837 = vadd.f32 %v1835, %v1836
      %v1838 = vsel %vm1758, %v1733, 0.0
      %v1839 = vadd.f32 %v1837, %v1838
      %v1840 = vsel %vm1758, %v1734, 0.0
      %v1841 = vadd.f32 %v1839, %v1840
      %v1842 = vsel %vm1758, %v1735, 0.0
      %v1843 = vadd.f32 %v1841, %v1842
      %v1844 = vsel %vm1758, %v1736, 0.0
      %v1845 = vadd.f32 %v1843, %v1844
      %v1846 = vsel %vm1758, %v1737, 0.0
      %v1847 = vadd.f32 %v1845, %v1846
      %v1848 = vsel %vm1758, %v1738, 0.0
      %v1849 = vadd.f32 %v1847, %v1848
      %v1850 = vsel %vm1758, %v1739, 0.0
      %v1851 = vadd.f32 %v1849, %v1850
      %v1852 = vsel %vm1758, %v1740, 0.0
      %v1853 = vadd.f32 %v1851, %v1852
      %v1854 = vsel %vm1758, %v1741, 0.0
      %v1855 = vadd.f32 %v1853, %v1854
      %v1856 = vsel %vm1758, %v1742, 0.0
      %v1857 = vadd.f32 %v1855, %v1856
      %v1858 = vsel %vm1758, %v1743, 0.0
      %v1859 = vadd.f32 %v1857, %v1858
      %v1860 = vsel %vm1758, %v1744, 0.0
      %v1861 = vadd.f32 %v1859, %v1860
      %v1862 = vsel %vm1758, %v1745, 0.0
      %v1863 = vadd.f32 %v1861, %v1862
      %v1864 = vsel %vm1758, %v1746, 0.0
      %v1865 = vadd.f32 %v1863, %v1864
      %v1866 = vsel %vm1758, %v1747, 0.0
      %v1867 = vadd.f32 %v1865, %v1866
      %v1868 = vsel %vm1758, %v1748, 0.0
      %v1869 = vadd.f32 %v1867, %v1868
      %v1870 = vsel %vm1758, %v1749, 0.0
      %v1871 = vadd.f32 %v1869, %v1870
      %v1872 = vsel %vm1758, %v1750, 0.0
      %v1873 = vadd.f32 %v1871, %v1872
      %v1874 = vsel %vm1758, %v1751, 0.0
      %v1875 = vadd.f32 %v1873, %v1874
      %v1876 = vsel %vm1758, %v1752, 0.0
      %v1877 = vadd.f32 %v1875, %v1876
      %v1878 = vsel %vm1758, %v1753, 0.0
      %v1879 = vadd.f32 %v1877, %v1878
      %v1880 = vsel %vm1758, %v1754, 0.0
      %v1881 = vadd.f32 %v1879, %v1880
      %v1882 = vsel %vm1758, %v1755, 0.0
      %v1883 = vadd.f32 %v1881, %v1882
      %v1884 = vsel %vm1758, %v1756, 0.0
      %v1885 = vadd.f32 %v1883, %v1884
      %v1886 = vrot.slane %v1885, 4
      %v1887 = vadd.f32 %v1885, %v1886
      %v1888 = vrot.slane %v1887, 2
      %v1889 = vadd.f32 %v1887, %v1888
      %v1890 = vrot.slane %v1889, 1
      %v1891 = vadd.f32 %v1889, %v1890
      %v1892 = vadd.f32 %v1757, %v1891
      %vm1893 = vcmask 57344
      %1894 = vst.msk [vmem:[%s6] sm:$0x1] %vm1893, %v1892
      %v1895 = vld [vmem:[%s7] sm:$0x1]
      %v1896 = vmul.f32 %v1693, %v1693
      %v1897 = vmul.f32 %v1694, %v1694
      %v1898 = vmul.f32 %v1695, %v1695
      %v1899 = vmul.f32 %v1696, %v1696
      %v1900 = vmul.f32 %v1697, %v1697
      %v1901 = vmul.f32 %v1698, %v1698
      %v1902 = vmul.f32 %v1699, %v1699
      %v1903 = vmul.f32 %v1700, %v1700
      %v1904 = vmul.f32 %v1701, %v1701
      %v1905 = vmul.f32 %v1702, %v1702
      %v1906 = vmul.f32 %v1703, %v1703
      %v1907 = vmul.f32 %v1704, %v1704
      %v1908 = vmul.f32 %v1705, %v1705
      %v1909 = vmul.f32 %v1706, %v1706
      %v1910 = vmul.f32 %v1707, %v1707
      %v1911 = vmul.f32 %v1708, %v1708
      %v1912 = vmul.f32 %v1709, %v1709
      %v1913 = vmul.f32 %v1710, %v1710
      %v1914 = vmul.f32 %v1711, %v1711
      %v1915 = vmul.f32 %v1712, %v1712
      %v1916 = vmul.f32 %v1713, %v1713
      %v1917 = vmul.f32 %v1714, %v1714
      %v1918 = vmul.f32 %v1715, %v1715
      %v1919 = vmul.f32 %v1716, %v1716
      %v1920 = vmul.f32 %v1717, %v1717
      %v1921 = vmul.f32 %v1718, %v1718
      %v1922 = vmul.f32 %v1719, %v1719
      %v1923 = vmul.f32 %v1720, %v1720
      %v1924 = vmul.f32 %v1721, %v1721
      %v1925 = vmul.f32 %v1722, %v1722
      %v1926 = vmul.f32 %v1723, %v1723
      %v1927 = vmul.f32 %v1724, %v1724
      %v1928 = vmul.f32 %v1725, %v1725
      %v1929 = vmul.f32 %v1726, %v1726
      %v1930 = vmul.f32 %v1727, %v1727
      %v1931 = vmul.f32 %v1728, %v1728
      %v1932 = vmul.f32 %v1729, %v1729
      %v1933 = vmul.f32 %v1730, %v1730
      %v1934 = vmul.f32 %v1731, %v1731
      %v1935 = vmul.f32 %v1732, %v1732
      %v1936 = vmul.f32 %v1733, %v1733
      %v1937 = vmul.f32 %v1734, %v1734
      %v1938 = vmul.f32 %v1735, %v1735
      %v1939 = vmul.f32 %v1736, %v1736
      %v1940 = vmul.f32 %v1737, %v1737
      %v1941 = vmul.f32 %v1738, %v1738
      %v1942 = vmul.f32 %v1739, %v1739
      %v1943 = vmul.f32 %v1740, %v1740
      %v1944 = vmul.f32 %v1741, %v1741
      %v1945 = vmul.f32 %v1742, %v1742
      %v1946 = vmul.f32 %v1743, %v1743
      %v1947 = vmul.f32 %v1744, %v1744
      %v1948 = vmul.f32 %v1745, %v1745
      %v1949 = vmul.f32 %v1746, %v1746
      %v1950 = vmul.f32 %v1747, %v1747
      %v1951 = vmul.f32 %v1748, %v1748
      %v1952 = vmul.f32 %v1749, %v1749
      %v1953 = vmul.f32 %v1750, %v1750
      %v1954 = vmul.f32 %v1751, %v1751
      %v1955 = vmul.f32 %v1752, %v1752
      %v1956 = vmul.f32 %v1753, %v1753
      %v1957 = vmul.f32 %v1754, %v1754
      %v1958 = vmul.f32 %v1755, %v1755
      %v1959 = vmul.f32 %v1756, %v1756
      %v1960 = vsel %vm1758, %v1896, 0.0
      %v1961 = vsel %vm1758, %v1897, 0.0
      %v1962 = vadd.f32 %v1960, %v1961
      %v1963 = vsel %vm1758, %v1898, 0.0
      %v1964 = vadd.f32 %v1962, %v1963
      %v1965 = vsel %vm1758, %v1899, 0.0
      %v1966 = vadd.f32 %v1964, %v1965
      %v1967 = vsel %vm1758, %v1900, 0.0
      %v1968 = vadd.f32 %v1966, %v1967
      %v1969 = vsel %vm1758, %v1901, 0.0
      %v1970 = vadd.f32 %v1968, %v1969
      %v1971 = vsel %vm1758, %v1902, 0.0
      %v1972 = vadd.f32 %v1970, %v1971
      %v1973 = vsel %vm1758, %v1903, 0.0
      %v1974 = vadd.f32 %v1972, %v1973
      %v1975 = vsel %vm1758, %v1904, 0.0
      %v1976 = vadd.f32 %v1974, %v1975
      %v1977 = vsel %vm1758, %v1905, 0.0
      %v1978 = vadd.f32 %v1976, %v1977
      %v1979 = vsel %vm1758, %v1906, 0.0
      %v1980 = vadd.f32 %v1978, %v1979
      %v1981 = vsel %vm1758, %v1907, 0.0
      %v1982 = vadd.f32 %v1980, %v1981
      %v1983 = vsel %vm1758, %v1908, 0.0
      %v1984 = vadd.f32 %v1982, %v1983
      %v1985 = vsel %vm1758, %v1909, 0.0
      %v1986 = vadd.f32 %v1984, %v1985
      %v1987 = vsel %vm1758, %v1910, 0.0
      %v1988 = vadd.f32 %v1986, %v1987
      %v1989 = vsel %vm1758, %v1911, 0.0
      %v1990 = vadd.f32 %v1988, %v1989
      %v1991 = vsel %vm1758, %v1912, 0.0
      %v1992 = vadd.f32 %v1990, %v1991
      %v1993 = vsel %vm1758, %v1913, 0.0
      %v1994 = vadd.f32 %v1992, %v1993
      %v1995 = vsel %vm1758, %v1914, 0.0
      %v1996 = vadd.f32 %v1994, %v1995
      %v1997 = vsel %vm1758, %v1915, 0.0
      %v1998 = vadd.f32 %v1996, %v1997
      %v1999 = vsel %vm1758, %v1916, 0.0
      %v2000 = vadd.f32 %v1998, %v1999
      %v2001 = vsel %vm1758, %v1917, 0.0
      %v2002 = vadd.f32 %v2000, %v2001
      %v2003 = vsel %vm1758, %v1918, 0.0
      %v2004 = vadd.f32 %v2002, %v2003
      %v2005 = vsel %vm1758, %v1919, 0.0
      %v2006 = vadd.f32 %v2004, %v2005
      %v2007 = vsel %vm1758, %v1920, 0.0
      %v2008 = vadd.f32 %v2006, %v2007
      %v2009 = vsel %vm1758, %v1921, 0.0
      %v2010 = vadd.f32 %v2008, %v2009
      %v2011 = vsel %vm1758, %v1922, 0.0
      %v2012 = vadd.f32 %v2010, %v2011
      %v2013 = vsel %vm1758, %v1923, 0.0
      %v2014 = vadd.f32 %v2012, %v2013
      %v2015 = vsel %vm1758, %v1924, 0.0
      %v2016 = vadd.f32 %v2014, %v2015
      %v2017 = vsel %vm1758, %v1925, 0.0
      %v2018 = vadd.f32 %v2016, %v2017
      %v2019 = vsel %vm1758, %v1926, 0.0
      %v2020 = vadd.f32 %v2018, %v2019
      %v2021 = vsel %vm1758, %v1927, 0.0
      %v2022 = vadd.f32 %v2020, %v2021
      %v2023 = vsel %vm1758, %v1928, 0.0
      %v2024 = vadd.f32 %v2022, %v2023
      %v2025 = vsel %vm1758, %v1929, 0.0
      %v2026 = vadd.f32 %v2024, %v2025
      %v2027 = vsel %vm1758, %v1930, 0.0
      %v2028 = vadd.f32 %v2026, %v2027
      %v2029 = vsel %vm1758, %v1931, 0.0
      %v2030 = vadd.f32 %v2028, %v2029
      %v2031 = vsel %vm1758, %v1932, 0.0
      %v2032 = vadd.f32 %v2030, %v2031
      %v2033 = vsel %vm1758, %v1933, 0.0
      %v2034 = vadd.f32 %v2032, %v2033
      %v2035 = vsel %vm1758, %v1934, 0.0
      %v2036 = vadd.f32 %v2034, %v2035
      %v2037 = vsel %vm1758, %v1935, 0.0
      %v2038 = vadd.f32 %v2036, %v2037
      %v2039 = vsel %vm1758, %v1936, 0.0
      %v2040 = vadd.f32 %v2038, %v2039
      %v2041 = vsel %vm1758, %v1937, 0.0
      %v2042 = vadd.f32 %v2040, %v2041
      %v2043 = vsel %vm1758, %v1938, 0.0
      %v2044 = vadd.f32 %v2042, %v2043
      %v2045 = vsel %vm1758, %v1939, 0.0
      %v2046 = vadd.f32 %v2044, %v2045
      %v2047 = vsel %vm1758, %v1940, 0.0
      %v2048 = vadd.f32 %v2046, %v2047
      %v2049 = vsel %vm1758, %v1941, 0.0
      %v2050 = vadd.f32 %v2048, %v2049
      %v2051 = vsel %vm1758, %v1942, 0.0
      %v2052 = vadd.f32 %v2050, %v2051
      %v2053 = vsel %vm1758, %v1943, 0.0
      %v2054 = vadd.f32 %v2052, %v2053
      %v2055 = vsel %vm1758, %v1944, 0.0
      %v2056 = vadd.f32 %v2054, %v2055
      %v2057 = vsel %vm1758, %v1945, 0.0
      %v2058 = vadd.f32 %v2056, %v2057
      %v2059 = vsel %vm1758, %v1946, 0.0
      %v2060 = vadd.f32 %v2058, %v2059
      %v2061 = vsel %vm1758, %v1947, 0.0
      %v2062 = vadd.f32 %v2060, %v2061
      %v2063 = vsel %vm1758, %v1948, 0.0
      %v2064 = vadd.f32 %v2062, %v2063
      %v2065 = vsel %vm1758, %v1949, 0.0
      %v2066 = vadd.f32 %v2064, %v2065
      %v2067 = vsel %vm1758, %v1950, 0.0
      %v2068 = vadd.f32 %v2066, %v2067
      %v2069 = vsel %vm1758, %v1951, 0.0
      %v2070 = vadd.f32 %v2068, %v2069
      %v2071 = vsel %vm1758, %v1952, 0.0
      %v2072 = vadd.f32 %v2070, %v2071
      %v2073 = vsel %vm1758, %v1953, 0.0
      %v2074 = vadd.f32 %v2072, %v2073
      %v2075 = vsel %vm1758, %v1954, 0.0
      %v2076 = vadd.f32 %v2074, %v2075
      %v2077 = vsel %vm1758, %v1955, 0.0
      %v2078 = vadd.f32 %v2076, %v2077
      %v2079 = vsel %vm1758, %v1956, 0.0
      %v2080 = vadd.f32 %v2078, %v2079
      %v2081 = vsel %vm1758, %v1957, 0.0
      %v2082 = vadd.f32 %v2080, %v2081
      %v2083 = vsel %vm1758, %v1958, 0.0
      %v2084 = vadd.f32 %v2082, %v2083
      %v2085 = vsel %vm1758, %v1959, 0.0
      %v2086 = vadd.f32 %v2084, %v2085
      %v2087 = vrot.slane %v2086, 4
      %v2088 = vadd.f32 %v2086, %v2087
      %v2089 = vrot.slane %v2088, 2
      %v2090 = vadd.f32 %v2088, %v2089
      %v2091 = vrot.slane %v2090, 1
      %v2092 = vadd.f32 %v2090, %v2091
      %v2093 = vadd.f32 %v1895, %v2092
      %2094 = vst.msk [vmem:[%s7] sm:$0x1] %vm1893, %v2093
      %s2095 = smul.u32 64, %s19
      %p2096 = scmp.lt.s32.totalorder %s2095, 255
      %s2097 = scalar_select %p2096, %s2095, 255
      %s2098 = smul.addr %s2097, 4
      %s2099 = scalar_lea.vmem %s5, %s2098
      // Predicated region
      $region45: #{decoder_block_forward.6} parent=39 // pred_check
        %p2100 = pneg %p147
      $region46: #{decoder_block_forward.6} parent=39 // pred_check_branch
        %2102 = sbr.rel (%p2100) target = $region48
      $region47: #{decoder_block_forward.6} parent=39 // pred_region
        %s2103 = smul.u32 64, %s19
      $region48: #{decoder_block_forward.6} parent=39 // pred_fallthru
        _
      // Predicated region
      $region49: #{decoder_block_forward.6} parent=39 // pred_check
        %p2104 = pneg %p168
      $region50: #{decoder_block_forward.6} parent=39 // pred_check_branch
        %2106 = sbr.rel (%p2104) target = $region52
      $region51: #{decoder_block_forward.6} parent=39 // pred_region
        _
      $region52: #{decoder_block_forward.6} parent=39 // pred_fallthru
        _
      // Predicated region
      $region53: #{decoder_block_forward.6} parent=39 // pred_check
        %p2107 = pneg %p189
      $region54: #{decoder_block_forward.6} parent=39 // pred_check_branch
        %2109 = sbr.rel (%p2107) target = $region56
      $region55: #{decoder_block_forward.6} parent=39 // pred_region
        _
      $region56: #{decoder_block_forward.6} parent=39 // pred_fallthru
        _
      // Predicated region
      $region57: #{decoder_block_forward.6} parent=39 // pred_check
        %p2110 = pneg %p168
      $region58: #{decoder_block_forward.6} parent=39 // pred_check_branch
        %2112 = sbr.rel (%p2110) target = $region60
      $region59: #{decoder_block_forward.6} parent=39 // pred_region
        _
      $region60: #{decoder_block_forward.6} parent=39 // pred_fallthru
        _
      // Predicated region
      $region61: #{decoder_block_forward.6} parent=39 // pred_check
        %p2113 = pneg %p189
      $region62: #{decoder_block_forward.6} parent=39 // pred_check_branch
        %2115 = sbr.rel (%p2113) target = $region64
      $region63: #{decoder_block_forward.6} parent=39 // pred_region
        _
      $region64: #{decoder_block_forward.6} parent=39 // pred_fallthru
        _
    $region40: #{decoder_block_forward.6} parent=5 // pred_fallthru
      _
    %p2116 = scmp.le.s32.totalorder 2, %s14
    // Predicated region
    $region65: #{decoder_block_forward.6} parent=5 // pred_check
      %p2117 = pneg %p2116
    $region66: #{decoder_block_forward.6} parent=5 // pred_check_branch
      %2119 = sbr.rel (%p2117) target = $region68
    $region67: #{decoder_block_forward.6} parent=5 // pred_region
      %s2120 = ssub.s32 %s14, 2
      // Predicated region
      $region69: #{decoder_block_forward.6} parent=67 // pred_check
        %p2121 = pneg %p153
      $region70: #{decoder_block_forward.6} parent=67 // pred_check_branch
        %2123 = sbr.rel (%p2121) target = $region72
      $region71: #{decoder_block_forward.6} parent=67 // pred_region
        %s2124 = smul.u32 64, %s20
        %p2125 = scmp.lt.s32.totalorder %s2124, 255
        %s2126 = scalar_select %p2125, %s2124, 255
        %s2127 = smul.addr %s2126, 4
        %s2128 = scalar_lea.vmem %s5, %s2127
      $region72: #{decoder_block_forward.6} parent=67 // pred_fallthru
        _
    $region68: #{decoder_block_forward.6} parent=5 // pred_fallthru
      _
  $region6: #{decoder_block_forward.6} parent=0 // loop_footer
    %s18 = sadd.s32 1, %s14
  $region7: #{decoder_block_forward.6} parent=0 // loop_footer_branch
    %13 = sbr.rel target = $region3
  $region8: #{decoder_block_forward.6} parent=0 // loop_exit
    _

// kernel: decoder_block_forward.7
$region0: #{decoder_block_forward.7}
  #allocation0 [shape = 'u32[]', space=smem, size = 0x4, offset = 0x4, fixed_abs, tag = 'smem constant byte address 0x4 - core index']
  #allocation1 [shape = 'u32[144,128]{1,0:T(1,128)}', space=vmem, size = 0x12000, scoped, tag = 'internal scratch']
  %s0 = inlined_call_operand.vmem [shape: bf16[2048,8], index: 0, kind: input, shape index: {}]
  %s1 = inlined_call_operand.vmem [shape: f32[1,8], index: 1, kind: input, shape index: {}]
  %s2 = inlined_call_operand.vmem [shape: f32[1,8], index: 2, kind: input, shape index: {}]
  %s3 = inlined_call_operand.vmem [shape: f32[2048,8], index: 3, kind: output, shape index: {}]
  %s4 = sld [smem:[#allocation0]]
  $region45: #{decoder_block_forward.7} parent=0
    _
  %s6 = ssub.s32 1, %s4
  %s7 = scalar_select 0, %s6, %s4
  loop: start=0, step=1, limit=6
  $region2: #{decoder_block_forward.7} parent=0 // loop_pre_header
    _
  $region3: #{decoder_block_forward.7} parent=0 // loop_header
    %s9 = sphi 0, %s13
    %p10 = scmp.ge.s32.totalorder %s9, 6
    %s19 = sphi 0, %s21
    %s22 = sphi 0, %s19
    %s23 = sphi 0, %s22
    %s39 = sphi 0, %s23
    %s43 = sphi 0, %s43
    %s45 = sphi 0, %s43
    %s46 = sphi 0, %s45
    %s60 = sphi 0, %s46
    %s64 = sphi 0, %s64
    %s66 = sphi 0, %s64
    %s67 = sphi 0, %s66
    %s81 = sphi 0, %s67
    %s87 = sphi 0, %s89
    %s90 = sphi 0, %s87
    %s91 = sphi 0, %s90
    %s107 = sphi 0, %s91
  $region4: #{decoder_block_forward.7} parent=0 // loop_header_branch
    %12 = sbr.rel (%p10) target = $region8
  $region5: #{decoder_block_forward.7} parent=0 // loop_body
    %s14 = ssub.s32 %s9, 1
    %s15 = ssub.s32 %s9, 2
    %s16 = sadd.s32 %s9, 1
    %s17 = ssub.s32 %s9, %s16
    %p18 = scmp.eq.s32.totalorder %s17, 0
    %s20 = sadd.s32 %s19, 1
    %s21 = scalar_select %p18, %s19, %s20
    %p24 = pneg %p18
    %p25 = scmp.eq.s32.totalorder %s9, 3
    %p26 = por %p24, %p25
    %p27 = scmp.ne.s32.totalorder %s19, %s22
    %p28 = scmp.eq.s32.totalorder %s9, 0
    %p29 = por %p27, %p28
    %p30 = scmp.ne.s32.totalorder %s19, %s22
    %p31 = scmp.eq.s32.totalorder %s14, 3
    %p32 = por %p30, %p31
    %p33 = scmp.ne.s32.totalorder %s22, %s23
    %p34 = scmp.eq.s32.totalorder %s14, 0
    %p35 = por %p33, %p34
    %p36 = scmp.ne.s32.totalorder %s22, %s23
    %p37 = scmp.eq.s32.totalorder %s15, 3
    %p38 = por %p36, %p37
    %p40 = scmp.ne.s32.totalorder %s23, %s39
    %p41 = scmp.eq.s32.totalorder %s15, 0
    %p42 = por %p40, %p41
    %s44 = sadd.s32 %s43, 1
    %p47 = scmp.eq.s32.totalorder %s9, 3
    %p48 = scmp.ne.s32.totalorder %s43, %s45
    %p49 = scmp.eq.s32.totalorder %s9, 0
    %p50 = por %p48, %p49
    %p51 = scmp.ne.s32.totalorder %s43, %s45
    %p52 = scmp.eq.s32.totalorder %s14, 3
    %p53 = por %p51, %p52
    %p54 = scmp.ne.s32.totalorder %s45, %s46
    %p55 = scmp.eq.s32.totalorder %s14, 0
    %p56 = por %p54, %p55
    %p57 = scmp.ne.s32.totalorder %s45, %s46
    %p58 = scmp.eq.s32.totalorder %s15, 3
    %p59 = por %p57, %p58
    %p61 = scmp.ne.s32.totalorder %s46, %s60
    %p62 = scmp.eq.s32.totalorder %s15, 0
    %p63 = por %p61, %p62
    %s65 = sadd.s32 %s64, 1
    %p68 = scmp.eq.s32.totalorder %s9, 3
    %p69 = scmp.ne.s32.totalorder %s64, %s66
    %p70 = scmp.eq.s32.totalorder %s9, 0
    %p71 = por %p69, %p70
    %p72 = scmp.ne.s32.totalorder %s64, %s66
    %p73 = scmp.eq.s32.totalorder %s14, 3
    %p74 = por %p72, %p73
    %p75 = scmp.ne.s32.totalorder %s66, %s67
    %p76 = scmp.eq.s32.totalorder %s14, 0
    %p77 = por %p75, %p76
    %p78 = scmp.ne.s32.totalorder %s66, %s67
    %p79 = scmp.eq.s32.totalorder %s15, 3
    %p80 = por %p78, %p79
    %p82 = scmp.ne.s32.totalorder %s67, %s81
    %p83 = scmp.eq.s32.totalorder %s15, 0
    %p84 = por %p82, %p83
    %s85 = ssub.s32 %s9, %s16
    %p86 = scmp.eq.s32.totalorder %s85, 0
    %s88 = sadd.s32 %s87, 1
    %s89 = scalar_select %p86, %s87, %s88
    %p92 = pneg %p86
    %p93 = scmp.eq.s32.totalorder %s9, 3
    %p94 = por %p92, %p93
    %p95 = scmp.ne.s32.totalorder %s87, %s90
    %p96 = scmp.eq.s32.totalorder %s9, 0
    %p97 = por %p95, %p96
    %p98 = scmp.ne.s32.totalorder %s87, %s90
    %p99 = scmp.eq.s32.totalorder %s14, 3
    %p100 = por %p98, %p99
    %p101 = scmp.ne.s32.totalorder %s90, %s91
    %p102 = scmp.eq.s32.totalorder %s14, 0
    %p103 = por %p101, %p102
    %p104 = scmp.ne.s32.totalorder %s90, %s91
    %p105 = scmp.eq.s32.totalorder %s15, 3
    %p106 = por %p104, %p105
    %p108 = scmp.ne.s32.totalorder %s91, %s107
    %p109 = scmp.eq.s32.totalorder %s15, 0
    %p110 = por %p108, %p109
    %p111 = scmp.le.s32.totalorder 1, %s9
    %p112 = scmp.lt.s32.totalorder %s9, 5
    %p113 = pnand %p111, %p112
    %p114 = pneg %p113
    // Predicated region
    $region9: #{decoder_block_forward.7} parent=5 // pred_check
      _
    $region10: #{decoder_block_forward.7} parent=5 // pred_check_branch
      %116 = sbr.rel (%p113) target = $region12
    $region11: #{decoder_block_forward.7} parent=5 // pred_region
      %s117 = ssub.s32 %s9, 1
      // Predicated region
      $region13: #{decoder_block_forward.7} parent=11 // pred_check
        %p118 = pneg %p56
      $region14: #{decoder_block_forward.7} parent=11 // pred_check_branch
        %120 = sbr.rel (%p118) target = $region16
      $region15: #{decoder_block_forward.7} parent=11 // pred_region
        _
      $region16: #{decoder_block_forward.7} parent=11 // pred_fallthru
        _
      // Predicated region
      $region17: #{decoder_block_forward.7} parent=11 // pred_check
        %p121 = pneg %p77
      $region18: #{decoder_block_forward.7} parent=11 // pred_check_branch
        %123 = sbr.rel (%p121) target = $region20
      $region19: #{decoder_block_forward.7} parent=11 // pred_region
        _
      $region20: #{decoder_block_forward.7} parent=11 // pred_fallthru
        _
    $region12: #{decoder_block_forward.7} parent=5 // pred_fallthru
      _
    %p124 = scmp.lt.s32.totalorder %s9, 4
    // Predicated region
    $region21: #{decoder_block_forward.7} parent=5 // pred_check
      %p125 = pneg %p124
    $region22: #{decoder_block_forward.7} parent=5 // pred_check_branch
      %127 = sbr.rel (%p125) target = $region24
    $region23: #{decoder_block_forward.7} parent=5 // pred_region
      // Predicated region
      $region25: #{decoder_block_forward.7} parent=23 // pred_check
        %p128 = pneg %p29
      $region26: #{decoder_block_forward.7} parent=23 // pred_check_branch
        %130 = sbr.rel (%p128) target = $region28
      $region27: #{decoder_block_forward.7} parent=23 // pred_region
        %s131 = smul.u32 64, %s9
        %p132 = scmp.lt.s32.totalorder %s131, 255
        %s133 = scalar_select %p132, %s131, 255
        %s134 = smul.addr %s133, 4
        %s135 = scalar_lea.vmem %s0, %s134
        %s136 = smul.u32 64, %s9
      $region28: #{decoder_block_forward.7} parent=23 // pred_fallthru
        _
    $region24: #{decoder_block_forward.7} parent=5 // pred_fallthru
      _
    %p137 = scmp.le.s32.totalorder 1, %s9
    %p138 = scmp.lt.s32.totalorder %s9, 5
    %p139 = pnand %p137, %p138
    %p140 = pneg %p139
    // Predicated region
    $region29: #{decoder_block_forward.7} parent=5 // pred_check
      _
    $region30: #{decoder_block_forward.7} parent=5 // pred_check_branch
      %142 = sbr.rel (%p139) target = $region32
    $region31: #{decoder_block_forward.7} parent=5 // pred_region
      %s143 = ssub.s32 %s9, 1
      %s144 = smul.u32 64, %s14
      %p145 = scmp.lt.s32.totalorder %s144, 255
      %s146 = scalar_select %p145, %s144, 255
      %s147 = smul.addr %s146, 4
      %s148 = scalar_lea.vmem %s0, %s147
      %p149 = pneg %p35
      %p150 = pneg %p32
      %p151 = pneg %p56
      %p152 = pneg %p53
      %p153 = pneg %p77
      %p154 = pneg %p74
      %p155 = pneg %p103
      %p156 = pneg %p100
      %s157 = smul.u32 64, %s14
      %p158 = scmp.lt.s32.totalorder %s157, 255
      %s159 = scalar_select %p158, %s157, 255
      %s160 = smul.addr %s159, 8
      %s161 = scalar_lea.vmem %s3, %s160
      %s162 = smul.u32 64, %s14
      %p163 = scmp.lt.s32.totalorder %s162, 255
      %s164 = scalar_select %p163, %s162, 255
      %s165 = smul.addr %s164, 4
      %s166 = scalar_lea.vmem %s0, %s165
      %s167 = smul.u32 64, %s14
      %s168 = smul.u32 64, %s14
      %p169 = scmp.lt.s32.totalorder %s168, 255
      %s170 = scalar_select %p169, %s168, 255
      %s171 = smul.addr %s170, 8
      %s172 = scalar_lea.vmem %s3, %s171
      %s173 = smul.u32 64, %s14
      %v174 = vld [vmem:[%s166] sm:$0xf]
      %v175 = vld [vmem:[%s166 + $0x4] sm:$0xf]
      %v176 = vld [vmem:[%s166 + $0x8] sm:$0xf]
      %v177 = vld [vmem:[%s166 + $0xc] sm:$0xf]
      %v178 = vld [vmem:[%s166 + $0x10] sm:$0xf]
      %v179 = vld [vmem:[%s166 + $0x14] sm:$0xf]
      %v180 = vld [vmem:[%s166 + $0x18] sm:$0xf]
      %v181 = vld [vmem:[%s166 + $0x1c] sm:$0xf]
      %v182 = vld [vmem:[%s166 + $0x20] sm:$0xf]
      %v183 = vld [vmem:[%s166 + $0x24] sm:$0xf]
      %v184 = vld [vmem:[%s166 + $0x28] sm:$0xf]
      %v185 = vld [vmem:[%s166 + $0x2c] sm:$0xf]
      %v186 = vld [vmem:[%s166 + $0x30] sm:$0xf]
      %v187 = vld [vmem:[%s166 + $0x34] sm:$0xf]
      %v188 = vld [vmem:[%s166 + $0x38] sm:$0xf]
      %v189 = vld [vmem:[%s166 + $0x3c] sm:$0xf]
      %v190 = vld [vmem:[%s166 + $0x40] sm:$0xf]
      %v191 = vld [vmem:[%s166 + $0x44] sm:$0xf]
      %v192 = vld [vmem:[%s166 + $0x48] sm:$0xf]
      %v193 = vld [vmem:[%s166 + $0x4c] sm:$0xf]
      %v194 = vld [vmem:[%s166 + $0x50] sm:$0xf]
      %v195 = vld [vmem:[%s166 + $0x54] sm:$0xf]
      %v196 = vld [vmem:[%s166 + $0x58] sm:$0xf]
      %v197 = vld [vmem:[%s166 + $0x5c] sm:$0xf]
      %v198 = vld [vmem:[%s166 + $0x60] sm:$0xf]
      %v199 = vld [vmem:[%s166 + $0x64] sm:$0xf]
      %v200 = vld [vmem:[%s166 + $0x68] sm:$0xf]
      %v201 = vld [vmem:[%s166 + $0x6c] sm:$0xf]
      %v202 = vld [vmem:[%s166 + $0x70] sm:$0xf]
      %v203 = vld [vmem:[%s166 + $0x74] sm:$0xf]
      %v204 = vld [vmem:[%s166 + $0x78] sm:$0xf]
      %v205 = vld [vmem:[%s166 + $0x7c] sm:$0xf]
      %v206 = vld [vmem:[%s166 + $0x80] sm:$0xf]
      %v207 = vld [vmem:[%s166 + $0x84] sm:$0xf]
      %v208 = vld [vmem:[%s166 + $0x88] sm:$0xf]
      %v209 = vld [vmem:[%s166 + $0x8c] sm:$0xf]
      %v210 = vld [vmem:[%s166 + $0x90] sm:$0xf]
      %v211 = vld [vmem:[%s166 + $0x94] sm:$0xf]
      %v212 = vld [vmem:[%s166 + $0x98] sm:$0xf]
      %v213 = vld [vmem:[%s166 + $0x9c] sm:$0xf]
      %v214 = vld [vmem:[%s166 + $0xa0] sm:$0xf]
      %v215 = vld [vmem:[%s166 + $0xa4] sm:$0xf]
      %v216 = vld [vmem:[%s166 + $0xa8] sm:$0xf]
      %v217 = vld [vmem:[%s166 + $0xac] sm:$0xf]
      %v218 = vld [vmem:[%s166 + $0xb0] sm:$0xf]
      %v219 = vld [vmem:[%s166 + $0xb4] sm:$0xf]
      %v220 = vld [vmem:[%s166 + $0xb8] sm:$0xf]
      %v221 = vld [vmem:[%s166 + $0xbc] sm:$0xf]
      %v222 = vld [vmem:[%s166 + $0xc0] sm:$0xf]
      %v223 = vld [vmem:[%s166 + $0xc4] sm:$0xf]
      %v224 = vld [vmem:[%s166 + $0xc8] sm:$0xf]
      %v225 = vld [vmem:[%s166 + $0xcc] sm:$0xf]
      %v226 = vld [vmem:[%s166 + $0xd0] sm:$0xf]
      %v227 = vld [vmem:[%s166 + $0xd4] sm:$0xf]
      %v228 = vld [vmem:[%s166 + $0xd8] sm:$0xf]
      %v229 = vld [vmem:[%s166 + $0xdc] sm:$0xf]
      %v230 = vld [vmem:[%s166 + $0xe0] sm:$0xf]
      %v231 = vld [vmem:[%s166 + $0xe4] sm:$0xf]
      %v232 = vld [vmem:[%s166 + $0xe8] sm:$0xf]
      %v233 = vld [vmem:[%s166 + $0xec] sm:$0xf]
      %v234 = vld [vmem:[%s166 + $0xf0] sm:$0xf]
      %v235 = vld [vmem:[%s166 + $0xf4] sm:$0xf]
      %v236 = vld [vmem:[%s166 + $0xf8] sm:$0xf]
      %v237 = vld [vmem:[%s166 + $0xfc] sm:$0xf]
      %v238 = vunpack.c.l.bf16 %v174
      %v239 = vunpack.c.l.bf16 %v175
      %v240 = vunpack.c.l.bf16 %v176
      %v241 = vunpack.c.l.bf16 %v177
      %v242 = vunpack.c.l.bf16 %v178
      %v243 = vunpack.c.l.bf16 %v179
      %v244 = vunpack.c.l.bf16 %v180
      %v245 = vunpack.c.l.bf16 %v181
      %v246 = vunpack.c.l.bf16 %v182
      %v247 = vunpack.c.l.bf16 %v183
      %v248 = vunpack.c.l.bf16 %v184
      %v249 = vunpack.c.l.bf16 %v185
      %v250 = vunpack.c.l.bf16 %v186
      %v251 = vunpack.c.l.bf16 %v187
      %v252 = vunpack.c.l.bf16 %v188
      %v253 = vunpack.c.l.bf16 %v189
      %v254 = vunpack.c.l.bf16 %v190
      %v255 = vunpack.c.l.bf16 %v191
      %v256 = vunpack.c.l.bf16 %v192
      %v257 = vunpack.c.l.bf16 %v193
      %v258 = vunpack.c.l.bf16 %v194
      %v259 = vunpack.c.l.bf16 %v195
      %v260 = vunpack.c.l.bf16 %v196
      %v261 = vunpack.c.l.bf16 %v197
      %v262 = vunpack.c.l.bf16 %v198
      %v263 = vunpack.c.l.bf16 %v199
      %v264 = vunpack.c.l.bf16 %v200
      %v265 = vunpack.c.l.bf16 %v201
      %v266 = vunpack.c.l.bf16 %v202
      %v267 = vunpack.c.l.bf16 %v203
      %v268 = vunpack.c.l.bf16 %v204
      %v269 = vunpack.c.l.bf16 %v205
      %v270 = vunpack.c.l.bf16 %v206
      %v271 = vunpack.c.l.bf16 %v207
      %v272 = vunpack.c.l.bf16 %v208
      %v273 = vunpack.c.l.bf16 %v209
      %v274 = vunpack.c.l.bf16 %v210
      %v275 = vunpack.c.l.bf16 %v211
      %v276 = vunpack.c.l.bf16 %v212
      %v277 = vunpack.c.l.bf16 %v213
      %v278 = vunpack.c.l.bf16 %v214
      %v279 = vunpack.c.l.bf16 %v215
      %v280 = vunpack.c.l.bf16 %v216
      %v281 = vunpack.c.l.bf16 %v217
      %v282 = vunpack.c.l.bf16 %v218
      %v283 = vunpack.c.l.bf16 %v219
      %v284 = vunpack.c.l.bf16 %v220
      %v285 = vunpack.c.l.bf16 %v221
      %v286 = vunpack.c.l.bf16 %v222
      %v287 = vunpack.c.l.bf16 %v223
      %v288 = vunpack.c.l.bf16 %v224
      %v289 = vunpack.c.l.bf16 %v225
      %v290 = vunpack.c.l.bf16 %v226
      %v291 = vunpack.c.l.bf16 %v227
      %v292 = vunpack.c.l.bf16 %v228
      %v293 = vunpack.c.l.bf16 %v229
      %v294 = vunpack.c.l.bf16 %v230
      %v295 = vunpack.c.l.bf16 %v231
      %v296 = vunpack.c.l.bf16 %v232
      %v297 = vunpack.c.l.bf16 %v233
      %v298 = vunpack.c.l.bf16 %v234
      %v299 = vunpack.c.l.bf16 %v235
      %v300 = vunpack.c.l.bf16 %v236
      %v301 = vunpack.c.l.bf16 %v237
      %v302 = vld [vmem:[%s1] sm:$0x1]
      %v304 = vlaneseq
      %v305 = vshrl.u32 %v304, 7
      %v306 = vsub.s32 0, %v305
      %v307 = vrot.slane %v302, %v306
      %v309 = vmul.f32 %v238, %v307
      %v310 = vmul.f32 %v239, %v307
      %v311 = vmul.f32 %v240, %v307
      %v312 = vmul.f32 %v241, %v307
      %v313 = vmul.f32 %v242, %v307
      %v314 = vmul.f32 %v243, %v307
      %v315 = vmul.f32 %v244, %v307
      %v316 = vmul.f32 %v245, %v307
      %v317 = vmul.f32 %v246, %v307
      %v318 = vmul.f32 %v247, %v307
      %v319 = vmul.f32 %v248, %v307
      %v320 = vmul.f32 %v249, %v307
      %v321 = vmul.f32 %v250, %v307
      %v322 = vmul.f32 %v251, %v307
      %v323 = vmul.f32 %v252, %v307
      %v324 = vmul.f32 %v253, %v307
      %v325 = vmul.f32 %v254, %v307
      %v326 = vmul.f32 %v255, %v307
      %v327 = vmul.f32 %v256, %v307
      %v328 = vmul.f32 %v257, %v307
      %v329 = vmul.f32 %v258, %v307
      %v330 = vmul.f32 %v259, %v307
      %v331 = vmul.f32 %v260, %v307
      %v332 = vmul.f32 %v261, %v307
      %v333 = vmul.f32 %v262, %v307
      %v334 = vmul.f32 %v263, %v307
      %v335 = vmul.f32 %v264, %v307
      %v336 = vmul.f32 %v265, %v307
      %v337 = vmul.f32 %v266, %v307
      %v338 = vmul.f32 %v267, %v307
      %v339 = vmul.f32 %v268, %v307
      %v340 = vmul.f32 %v269, %v307
      %v341 = vmul.f32 %v270, %v307
      %v342 = vmul.f32 %v271, %v307
      %v343 = vmul.f32 %v272, %v307
      %v344 = vmul.f32 %v273, %v307
      %v345 = vmul.f32 %v274, %v307
      %v346 = vmul.f32 %v275, %v307
      %v347 = vmul.f32 %v276, %v307
      %v348 = vmul.f32 %v277, %v307
      %v349 = vmul.f32 %v278, %v307
      %v350 = vmul.f32 %v279, %v307
      %v351 = vmul.f32 %v280, %v307
      %v352 = vmul.f32 %v281, %v307
      %v353 = vmul.f32 %v282, %v307
      %v354 = vmul.f32 %v283, %v307
      %v355 = vmul.f32 %v284, %v307
      %v356 = vmul.f32 %v285, %v307
      %v357 = vmul.f32 %v286, %v307
      %v358 = vmul.f32 %v287, %v307
      %v359 = vmul.f32 %v288, %v307
      %v360 = vmul.f32 %v289, %v307
      %v361 = vmul.f32 %v290, %v307
      %v362 = vmul.f32 %v291, %v307
      %v363 = vmul.f32 %v292, %v307
      %v364 = vmul.f32 %v293, %v307
      %v365 = vmul.f32 %v294, %v307
      %v366 = vmul.f32 %v295, %v307
      %v367 = vmul.f32 %v296, %v307
      %v368 = vmul.f32 %v297, %v307
      %v369 = vmul.f32 %v298, %v307
      %v370 = vmul.f32 %v299, %v307
      %v371 = vmul.f32 %v300, %v307
      %v372 = vmul.f32 %v301, %v307
      %v373 = vld [vmem:[%s2] sm:$0x1]
      %v375 = vlaneseq
      %v376 = vshrl.u32 %v375, 7
      %v377 = vsub.s32 0, %v376
      %v378 = vrot.slane %v373, %v377
      %v380 = vadd.f32 %v309, %v378
      %v381 = vadd.f32 %v310, %v378
      %v382 = vadd.f32 %v311, %v378
      %v383 = vadd.f32 %v312, %v378
      %v384 = vadd.f32 %v313, %v378
      %v385 = vadd.f32 %v314, %v378
      %v386 = vadd.f32 %v315, %v378
      %v387 = vadd.f32 %v316, %v378
      %v388 = vadd.f32 %v317, %v378
      %v389 = vadd.f32 %v318, %v378
      %v390 = vadd.f32 %v319, %v378
      %v391 = vadd.f32 %v320, %v378
      %v392 = vadd.f32 %v321, %v378
      %v393 = vadd.f32 %v322, %v378
      %v394 = vadd.f32 %v323, %v378
      %v395 = vadd.f32 %v324, %v378
      %v396 = vadd.f32 %v325, %v378
      %v397 = vadd.f32 %v326, %v378
      %v398 = vadd.f32 %v327, %v378
      %v399 = vadd.f32 %v328, %v378
      %v400 = vadd.f32 %v329, %v378
      %v401 = vadd.f32 %v330, %v378
      %v402 = vadd.f32 %v331, %v378
      %v403 = vadd.f32 %v332, %v378
      %v404 = vadd.f32 %v333, %v378
      %v405 = vadd.f32 %v334, %v378
      %v406 = vadd.f32 %v335, %v378
      %v407 = vadd.f32 %v336, %v378
      %v408 = vadd.f32 %v337, %v378
      %v409 = vadd.f32 %v338, %v378
      %v410 = vadd.f32 %v339, %v378
      %v411 = vadd.f32 %v340, %v378
      %v412 = vadd.f32 %v341, %v378
      %v413 = vadd.f32 %v342, %v378
      %v414 = vadd.f32 %v343, %v378
      %v415 = vadd.f32 %v344, %v378
      %v416 = vadd.f32 %v345, %v378
      %v417 = vadd.f32 %v346, %v378
      %v418 = vadd.f32 %v347, %v378
      %v419 = vadd.f32 %v348, %v378
      %v420 = vadd.f32 %v349, %v378
      %v421 = vadd.f32 %v350, %v378
      %v422 = vadd.f32 %v351, %v378
      %v423 = vadd.f32 %v352, %v378
      %v424 = vadd.f32 %v353, %v378
      %v425 = vadd.f32 %v354, %v378
      %v426 = vadd.f32 %v355, %v378
      %v427 = vadd.f32 %v356, %v378
      %v428 = vadd.f32 %v357, %v378
      %v429 = vadd.f32 %v358, %v378
      %v430 = vadd.f32 %v359, %v378
      %v431 = vadd.f32 %v360, %v378
      %v432 = vadd.f32 %v361, %v378
      %v433 = vadd.f32 %v362, %v378
      %v434 = vadd.f32 %v363, %v378
      %v435 = vadd.f32 %v364, %v378
      %v436 = vadd.f32 %v365, %v378
      %v437 = vadd.f32 %v366, %v378
      %v438 = vadd.f32 %v367, %v378
      %v439 = vadd.f32 %v368, %v378
      %v440 = vadd.f32 %v369, %v378
      %v441 = vadd.f32 %v370, %v378
      %v442 = vadd.f32 %v371, %v378
      %v443 = vadd.f32 %v372, %v378
      %v444 = vmax.f32 %v380, 0.0
      %v445 = vmax.f32 %v381, 0.0
      %v446 = vmax.f32 %v382, 0.0
      %v447 = vmax.f32 %v383, 0.0
      %v448 = vmax.f32 %v384, 0.0
      %v449 = vmax.f32 %v385, 0.0
      %v450 = vmax.f32 %v386, 0.0
      %v451 = vmax.f32 %v387, 0.0
      %v452 = vmax.f32 %v388, 0.0
      %v453 = vmax.f32 %v389, 0.0
      %v454 = vmax.f32 %v390, 0.0
      %v455 = vmax.f32 %v391, 0.0
      %v456 = vmax.f32 %v392, 0.0
      %v457 = vmax.f32 %v393, 0.0
      %v458 = vmax.f32 %v394, 0.0
      %v459 = vmax.f32 %v395, 0.0
      %v460 = vmax.f32 %v396, 0.0
      %v461 = vmax.f32 %v397, 0.0
      %v462 = vmax.f32 %v398, 0.0
      %v463 = vmax.f32 %v399, 0.0
      %v464 = vmax.f32 %v400, 0.0
      %v465 = vmax.f32 %v401, 0.0
      %v466 = vmax.f32 %v402, 0.0
      %v467 = vmax.f32 %v403, 0.0
      %v468 = vmax.f32 %v404, 0.0
      %v469 = vmax.f32 %v405, 0.0
      %v470 = vmax.f32 %v406, 0.0
      %v471 = vmax.f32 %v407, 0.0
      %v472 = vmax.f32 %v408, 0.0
      %v473 = vmax.f32 %v409, 0.0
      %v474 = vmax.f32 %v410, 0.0
      %v475 = vmax.f32 %v411, 0.0
      %v476 = vmax.f32 %v412, 0.0
      %v477 = vmax.f32 %v413, 0.0
      %v478 = vmax.f32 %v414, 0.0
      %v479 = vmax.f32 %v415, 0.0
      %v480 = vmax.f32 %v416, 0.0
      %v481 = vmax.f32 %v417, 0.0
      %v482 = vmax.f32 %v418, 0.0
      %v483 = vmax.f32 %v419, 0.0
      %v484 = vmax.f32 %v420, 0.0
      %v485 = vmax.f32 %v421, 0.0
      %v486 = vmax.f32 %v422, 0.0
      %v487 = vmax.f32 %v423, 0.0
      %v488 = vmax.f32 %v424, 0.0
      %v489 = vmax.f32 %v425, 0.0
      %v490 = vmax.f32 %v426, 0.0
      %v491 = vmax.f32 %v427, 0.0
      %v492 = vmax.f32 %v428, 0.0
      %v493 = vmax.f32 %v429, 0.0
      %v494 = vmax.f32 %v430, 0.0
      %v495 = vmax.f32 %v431, 0.0
      %v496 = vmax.f32 %v432, 0.0
      %v497 = vmax.f32 %v433, 0.0
      %v498 = vmax.f32 %v434, 0.0
      %v499 = vmax.f32 %v435, 0.0
      %v500 = vmax.f32 %v436, 0.0
      %v501 = vmax.f32 %v437, 0.0
      %v502 = vmax.f32 %v438, 0.0
      %v503 = vmax.f32 %v439, 0.0
      %v504 = vmax.f32 %v440, 0.0
      %v505 = vmax.f32 %v441, 0.0
      %v506 = vmax.f32 %v442, 0.0
      %v507 = vmax.f32 %v443, 0.0
      %vm508 = vcmask 64512
      %509 = vst.msk [vmem:[%s172] sm:$0xff] %vm508, %v444
      %510 = vst.msk [vmem:[%s172 + $0x8] sm:$0xff] %vm508, %v445
      %511 = vst.msk [vmem:[%s172 + $0x10] sm:$0xff] %vm508, %v446
      %512 = vst.msk [vmem:[%s172 + $0x18] sm:$0xff] %vm508, %v447
      %513 = vst.msk [vmem:[%s172 + $0x20] sm:$0xff] %vm508, %v448
      %514 = vst.msk [vmem:[%s172 + $0x28] sm:$0xff] %vm508, %v449
      %515 = vst.msk [vmem:[%s172 + $0x30] sm:$0xff] %vm508, %v450
      %516 = vst.msk [vmem:[%s172 + $0x38] sm:$0xff] %vm508, %v451
      %517 = vst.msk [vmem:[%s172 + $0x40] sm:$0xff] %vm508, %v452
      %518 = vst.msk [vmem:[%s172 + $0x48] sm:$0xff] %vm508, %v453
      %519 = vst.msk [vmem:[%s172 + $0x50] sm:$0xff] %vm508, %v454
      %520 = vst.msk [vmem:[%s172 + $0x58] sm:$0xff] %vm508, %v455
      %521 = vst.msk [vmem:[%s172 + $0x60] sm:$0xff] %vm508, %v456
      %522 = vst.msk [vmem:[%s172 + $0x68] sm:$0xff] %vm508, %v457
      %523 = vst.msk [vmem:[%s172 + $0x70] sm:$0xff] %vm508, %v458
      %524 = vst.msk [vmem:[%s172 + $0x78] sm:$0xff] %vm508, %v459
      %525 = vst.msk [vmem:[%s172 + $0x80] sm:$0xff] %vm508, %v460
      %526 = vst.msk [vmem:[%s172 + $0x88] sm:$0xff] %vm508, %v461
      %527 = vst.msk [vmem:[%s172 + $0x90] sm:$0xff] %vm508, %v462
      %528 = vst.msk [vmem:[%s172 + $0x98] sm:$0xff] %vm508, %v463
      %529 = vst.msk [vmem:[%s172 + $0xa0] sm:$0xff] %vm508, %v464
      %530 = vst.msk [vmem:[%s172 + $0xa8] sm:$0xff] %vm508, %v465
      %531 = vst.msk [vmem:[%s172 + $0xb0] sm:$0xff] %vm508, %v466
      %532 = vst.msk [vmem:[%s172 + $0xb8] sm:$0xff] %vm508, %v467
      %533 = vst.msk [vmem:[%s172 + $0xc0] sm:$0xff] %vm508, %v468
      %534 = vst.msk [vmem:[%s172 + $0xc8] sm:$0xff] %vm508, %v469
      %535 = vst.msk [vmem:[%s172 + $0xd0] sm:$0xff] %vm508, %v470
      %536 = vst.msk [vmem:[%s172 + $0xd8] sm:$0xff] %vm508, %v471
      %537 = vst.msk [vmem:[%s172 + $0xe0] sm:$0xff] %vm508, %v472
      %538 = vst.msk [vmem:[%s172 + $0xe8] sm:$0xff] %vm508, %v473
      %539 = vst.msk [vmem:[%s172 + $0xf0] sm:$0xff] %vm508, %v474
      %540 = vst.msk [vmem:[%s172 + $0xf8] sm:$0xff] %vm508, %v475
      %541 = vst.msk [vmem:[%s172 + $0x100] sm:$0xff] %vm508, %v476
      %542 = vst.msk [vmem:[%s172 + $0x108] sm:$0xff] %vm508, %v477
      %543 = vst.msk [vmem:[%s172 + $0x110] sm:$0xff] %vm508, %v478
      %544 = vst.msk [vmem:[%s172 + $0x118] sm:$0xff] %vm508, %v479
      %545 = vst.msk [vmem:[%s172 + $0x120] sm:$0xff] %vm508, %v480
      %546 = vst.msk [vmem:[%s172 + $0x128] sm:$0xff] %vm508, %v481
      %547 = vst.msk [vmem:[%s172 + $0x130] sm:$0xff] %vm508, %v482
      %548 = vst.msk [vmem:[%s172 + $0x138] sm:$0xff] %vm508, %v483
      %549 = vst.msk [vmem:[%s172 + $0x140] sm:$0xff] %vm508, %v484
      %550 = vst.msk [vmem:[%s172 + $0x148] sm:$0xff] %vm508, %v485
      %551 = vst.msk [vmem:[%s172 + $0x150] sm:$0xff] %vm508, %v486
      %552 = vst.msk [vmem:[%s172 + $0x158] sm:$0xff] %vm508, %v487
      %553 = vst.msk [vmem:[%s172 + $0x160] sm:$0xff] %vm508, %v488
      %554 = vst.msk [vmem:[%s172 + $0x168] sm:$0xff] %vm508, %v489
      %555 = vst.msk [vmem:[%s172 + $0x170] sm:$0xff] %vm508, %v490
      %556 = vst.msk [vmem:[%s172 + $0x178] sm:$0xff] %vm508, %v491
      %557 = vst.msk [vmem:[%s172 + $0x180] sm:$0xff] %vm508, %v492
      %558 = vst.msk [vmem:[%s172 + $0x188] sm:$0xff] %vm508, %v493
      %559 = vst.msk [vmem:[%s172 + $0x190] sm:$0xff] %vm508, %v494
      %560 = vst.msk [vmem:[%s172 + $0x198] sm:$0xff] %vm508, %v495
      %561 = vst.msk [vmem:[%s172 + $0x1a0] sm:$0xff] %vm508, %v496
      %562 = vst.msk [vmem:[%s172 + $0x1a8] sm:$0xff] %vm508, %v497
      %563 = vst.msk [vmem:[%s172 + $0x1b0] sm:$0xff] %vm508, %v498
      %564 = vst.msk [vmem:[%s172 + $0x1b8] sm:$0xff] %vm508, %v499
      %565 = vst.msk [vmem:[%s172 + $0x1c0] sm:$0xff] %vm508, %v500
      %566 = vst.msk [vmem:[%s172 + $0x1c8] sm:$0xff] %vm508, %v501
      %567 = vst.msk [vmem:[%s172 + $0x1d0] sm:$0xff] %vm508, %v502
      %568 = vst.msk [vmem:[%s172 + $0x1d8] sm:$0xff] %vm508, %v503
      %569 = vst.msk [vmem:[%s172 + $0x1e0] sm:$0xff] %vm508, %v504
      %570 = vst.msk [vmem:[%s172 + $0x1e8] sm:$0xff] %vm508, %v505
      %571 = vst.msk [vmem:[%s172 + $0x1f0] sm:$0xff] %vm508, %v506
      %572 = vst.msk [vmem:[%s172 + $0x1f8] sm:$0xff] %vm508, %v507
      %s573 = smul.u32 64, %s14
      %p574 = scmp.lt.s32.totalorder %s573, 255
      %s575 = scalar_select %p574, %s573, 255
      %s576 = smul.addr %s575, 8
      %s577 = scalar_lea.vmem %s3, %s576
      // Predicated region
      $region33: #{decoder_block_forward.7} parent=31 // pred_check
        %p578 = pneg %p100
      $region34: #{decoder_block_forward.7} parent=31 // pred_check_branch
        %580 = sbr.rel (%p578) target = $region36
      $region35: #{decoder_block_forward.7} parent=31 // pred_region
        %s581 = smul.u32 64, %s14
      $region36: #{decoder_block_forward.7} parent=31 // pred_fallthru
        _
    $region32: #{decoder_block_forward.7} parent=5 // pred_fallthru
      _
    %p582 = scmp.le.s32.totalorder 2, %s9
    // Predicated region
    $region37: #{decoder_block_forward.7} parent=5 // pred_check
      %p583 = pneg %p582
    $region38: #{decoder_block_forward.7} parent=5 // pred_check_branch
      %585 = sbr.rel (%p583) target = $region40
    $region39: #{decoder_block_forward.7} parent=5 // pred_region
      %s586 = ssub.s32 %s9, 2
      // Predicated region
      $region41: #{decoder_block_forward.7} parent=39 // pred_check
        %p587 = pneg %p106
      $region42: #{decoder_block_forward.7} parent=39 // pred_check_branch
        %589 = sbr.rel (%p587) target = $region44
      $region43: #{decoder_block_forward.7} parent=39 // pred_region
        %s590 = smul.u32 64, %s15
        %p591 = scmp.lt.s32.totalorder %s590, 255
        %s592 = scalar_select %p591, %s590, 255
        %s593 = smul.addr %s592, 8
        %s594 = scalar_lea.vmem %s3, %s593
      $region44: #{decoder_block_forward.7} parent=39 // pred_fallthru
        _
    $region40: #{decoder_block_forward.7} parent=5 // pred_fallthru
      _
  $region6: #{decoder_block_forward.7} parent=0 // loop_footer
    %s13 = sadd.s32 1, %s9
  $region7: #{decoder_block_forward.7} parent=0 // loop_footer_branch
    %8 = sbr.rel target = $region3
  $region8: #{decoder_block_forward.7} parent=0 // loop_exit
    _

// kernel: decoder_block_forward.5
$region0: #{decoder_block_forward.5}
  #allocation0 [shape = 'u32[]', space=smem, size = 0x4, offset = 0x4, fixed_abs, tag = 'smem constant byte address 0x4 - core index']
  #allocation1 [shape = 'u32[144,128]{1,0:T(1,128)}', space=vmem, size = 0x12000, scoped, tag = 'internal scratch']
  #allocation2 [shape = 'f32[18,32,4]{2,1,0:T(8,128)}', space=vmem, size = 0x48000, scoped, tag = 'scratch operand']
  #allocation3 [shape = 'bf16[3,18,16,4]{3,2,1,0:T(16,128)(2,1)}', space=vmem, size = 0x36000, scoped, tag = 'scratch operand']
  %s0 = inlined_call_operand.vmem [shape: bf16[2,16,16,4], index: 0, kind: input, shape index: {}]
  %s1 = inlined_call_operand.vmem [shape: f32[1,4], index: 1, kind: input, shape index: {}]
  %s2 = inlined_call_operand.vmem [shape: f32[1,4], index: 2, kind: input, shape index: {}]
  %s3 = inlined_call_operand.vmem [shape: bf16[16,4,4], index: 3, kind: input, shape index: {}]
  %s4 = inlined_call_operand.vmem [shape: f32[1,4], index: 4, kind: input, shape index: {}]
  %s5 = inlined_call_operand.vmem [shape: bf16[2,4,16,16,4], index: 5, kind: output, shape index: {0}]
  %s6 = inlined_call_operand.vmem [shape: f32[1,4], index: 6, kind: output, shape index: {1}]
  %s7 = inlined_call_operand.vmem [shape: f32[1,4], index: 7, kind: output, shape index: {2}]
  %8 = xla_tuple %s5, %s6, %s7
  %s9 = sld [smem:[#allocation0]]
  $region73: #{decoder_block_forward.5} parent=0
    _
  %s11 = ssub.s32 1, %s9
  %s12 = scalar_select 0, %s11, %s9
  loop: start=0, step=1, limit=4
  $region2: #{decoder_block_forward.5} parent=0 // loop_pre_header
    _
  $region3: #{decoder_block_forward.5} parent=0 // loop_header
    %s14 = sphi 0, %s18
    %p15 = scmp.ge.s32.totalorder %s14, 4
    %s24 = sphi 0, %s26
    %s27 = sphi 0, %s24
    %s28 = sphi 0, %s27
    %s44 = sphi 0, %s28
    %s48 = sphi 0, %s48
    %s50 = sphi 0, %s48
    %s51 = sphi 0, %s50
    %s65 = sphi 0, %s51
    %s69 = sphi 0, %s69
    %s71 = sphi 0, %s69
    %s72 = sphi 0, %s71
    %s86 = sphi 0, %s72
    %s90 = sphi 0, %s90
    %s92 = sphi 0, %s90
    %s93 = sphi 0, %s92
    %s107 = sphi 0, %s93
    %s111 = sphi 0, %s111
    %s113 = sphi 0, %s111
    %s114 = sphi 0, %s113
    %s128 = sphi 0, %s114
    %s134 = sphi 0, %s136
    %s137 = sphi 0, %s134
    %s138 = sphi 0, %s137
    %s154 = sphi 0, %s138
    %s158 = sphi 0, %s158
    %s160 = sphi 0, %s158
    %s161 = sphi 0, %s160
    %s175 = sphi 0, %s161
    %s179 = sphi 0, %s179
    %s181 = sphi 0, %s179
    %s182 = sphi 0, %s181
    %s196 = sphi 0, %s182
  $region4: #{decoder_block_forward.5} parent=0 // loop_header_branch
    %17 = sbr.rel (%p15) target = $region8
  $region5: #{decoder_block_forward.5} parent=0 // loop_body
    %s19 = ssub.s32 %s14, 1
    %s20 = ssub.s32 %s14, 2
    %s21 = sadd.s32 %s14, 1
    %s22 = ssub.s32 %s14, %s21
    %p23 = scmp.eq.s32.totalorder %s22, 0
    %s25 = sadd.s32 %s24, 1
    %s26 = scalar_select %p23, %s24, %s25
    %p29 = pneg %p23
    %p30 = scmp.eq.s32.totalorder %s14, 1
    %p31 = por %p29, %p30
    %p32 = scmp.ne.s32.totalorder %s24, %s27
    %p33 = scmp.eq.s32.totalorder %s14, 0
    %p34 = por %p32, %p33
    %p35 = scmp.ne.s32.totalorder %s24, %s27
    %p36 = scmp.eq.s32.totalorder %s19, 1
    %p37 = por %p35, %p36
    %p38 = scmp.ne.s32.totalorder %s27, %s28
    %p39 = scmp.eq.s32.totalorder %s19, 0
    %p40 = por %p38, %p39
    %p41 = scmp.ne.s32.totalorder %s27, %s28
    %p42 = scmp.eq.s32.totalorder %s20, 1
    %p43 = por %p41, %p42
    %p45 = scmp.ne.s32.totalorder %s28, %s44
    %p46 = scmp.eq.s32.totalorder %s20, 0
    %p47 = por %p45, %p46
    %s49 = sadd.s32 %s48, 1
    %p52 = scmp.eq.s32.totalorder %s14, 1
    %p53 = scmp.ne.s32.totalorder %s48, %s50
    %p54 = scmp.eq.s32.totalorder %s14, 0
    %p55 = por %p53, %p54
    %p56 = scmp.ne.s32.totalorder %s48, %s50
    %p57 = scmp.eq.s32.totalorder %s19, 1
    %p58 = por %p56, %p57
    %p59 = scmp.ne.s32.totalorder %s50, %s51
    %p60 = scmp.eq.s32.totalorder %s19, 0
    %p61 = por %p59, %p60
    %p62 = scmp.ne.s32.totalorder %s50, %s51
    %p63 = scmp.eq.s32.totalorder %s20, 1
    %p64 = por %p62, %p63
    %p66 = scmp.ne.s32.totalorder %s51, %s65
    %p67 = scmp.eq.s32.totalorder %s20, 0
    %p68 = por %p66, %p67
    %s70 = sadd.s32 %s69, 1
    %p73 = scmp.eq.s32.totalorder %s14, 1
    %p74 = scmp.ne.s32.totalorder %s69, %s71
    %p75 = scmp.eq.s32.totalorder %s14, 0
    %p76 = por %p74, %p75
    %p77 = scmp.ne.s32.totalorder %s69, %s71
    %p78 = scmp.eq.s32.totalorder %s19, 1
    %p79 = por %p77, %p78
    %p80 = scmp.ne.s32.totalorder %s71, %s72
    %p81 = scmp.eq.s32.totalorder %s19, 0
    %p82 = por %p80, %p81
    %p83 = scmp.ne.s32.totalorder %s71, %s72
    %p84 = scmp.eq.s32.totalorder %s20, 1
    %p85 = por %p83, %p84
    %p87 = scmp.ne.s32.totalorder %s72, %s86
    %p88 = scmp.eq.s32.totalorder %s20, 0
    %p89 = por %p87, %p88
    %s91 = sadd.s32 %s90, 1
    %p94 = scmp.eq.s32.totalorder %s14, 1
    %p95 = scmp.ne.s32.totalorder %s90, %s92
    %p96 = scmp.eq.s32.totalorder %s14, 0
    %p97 = por %p95, %p96
    %p98 = scmp.ne.s32.totalorder %s90, %s92
    %p99 = scmp.eq.s32.totalorder %s19, 1
    %p100 = por %p98, %p99
    %p101 = scmp.ne.s32.totalorder %s92, %s93
    %p102 = scmp.eq.s32.totalorder %s19, 0
    %p103 = por %p101, %p102
    %p104 = scmp.ne.s32.totalorder %s92, %s93
    %p105 = scmp.eq.s32.totalorder %s20, 1
    %p106 = por %p104, %p105
    %p108 = scmp.ne.s32.totalorder %s93, %s107
    %p109 = scmp.eq.s32.totalorder %s20, 0
    %p110 = por %p108, %p109
    %s112 = sadd.s32 %s111, 1
    %p115 = scmp.eq.s32.totalorder %s14, 1
    %p116 = scmp.ne.s32.totalorder %s111, %s113
    %p117 = scmp.eq.s32.totalorder %s14, 0
    %p118 = por %p116, %p117
    %p119 = scmp.ne.s32.totalorder %s111, %s113
    %p120 = scmp.eq.s32.totalorder %s19, 1
    %p121 = por %p119, %p120
    %p122 = scmp.ne.s32.totalorder %s113, %s114
    %p123 = scmp.eq.s32.totalorder %s19, 0
    %p124 = por %p122, %p123
    %p125 = scmp.ne.s32.totalorder %s113, %s114
    %p126 = scmp.eq.s32.totalorder %s20, 1
    %p127 = por %p125, %p126
    %p129 = scmp.ne.s32.totalorder %s114, %s128
    %p130 = scmp.eq.s32.totalorder %s20, 0
    %p131 = por %p129, %p130
    %s132 = ssub.s32 %s14, %s21
    %p133 = scmp.eq.s32.totalorder %s132, 0
    %s135 = sadd.s32 %s134, 1
    %s136 = scalar_select %p133, %s134, %s135
    %p139 = pneg %p133
    %p140 = scmp.eq.s32.totalorder %s14, 1
    %p141 = por %p139, %p140
    %p142 = scmp.ne.s32.totalorder %s134, %s137
    %p143 = scmp.eq.s32.totalorder %s14, 0
    %p144 = por %p142, %p143
    %p145 = scmp.ne.s32.totalorder %s134, %s137
    %p146 = scmp.eq.s32.totalorder %s19, 1
    %p147 = por %p145, %p146
    %p148 = scmp.ne.s32.totalorder %s137, %s138
    %p149 = scmp.eq.s32.totalorder %s19, 0
    %p150 = por %p148, %p149
    %p151 = scmp.ne.s32.totalorder %s137, %s138
    %p152 = scmp.eq.s32.totalorder %s20, 1
    %p153 = por %p151, %p152
    %p155 = scmp.ne.s32.totalorder %s138, %s154
    %p156 = scmp.eq.s32.totalorder %s20, 0
    %p157 = por %p155, %p156
    %s159 = sadd.s32 %s158, 1
    %p162 = scmp.eq.s32.totalorder %s14, 1
    %p163 = scmp.ne.s32.totalorder %s158, %s160
    %p164 = scmp.eq.s32.totalorder %s14, 0
    %p165 = por %p163, %p164
    %p166 = scmp.ne.s32.totalorder %s158, %s160
    %p167 = scmp.eq.s32.totalorder %s19, 1
    %p168 = por %p166, %p167
    %p169 = scmp.ne.s32.totalorder %s160, %s161
    %p170 = scmp.eq.s32.totalorder %s19, 0
    %p171 = por %p169, %p170
    %p172 = scmp.ne.s32.totalorder %s160, %s161
    %p173 = scmp.eq.s32.totalorder %s20, 1
    %p174 = por %p172, %p173
    %p176 = scmp.ne.s32.totalorder %s161, %s175
    %p177 = scmp.eq.s32.totalorder %s20, 0
    %p178 = por %p176, %p177
    %s180 = sadd.s32 %s179, 1
    %p183 = scmp.eq.s32.totalorder %s14, 1
    %p184 = scmp.ne.s32.totalorder %s179, %s181
    %p185 = scmp.eq.s32.totalorder %s14, 0
    %p186 = por %p184, %p185
    %p187 = scmp.ne.s32.totalorder %s179, %s181
    %p188 = scmp.eq.s32.totalorder %s19, 1
    %p189 = por %p187, %p188
    %p190 = scmp.ne.s32.totalorder %s181, %s182
    %p191 = scmp.eq.s32.totalorder %s19, 0
    %p192 = por %p190, %p191
    %p193 = scmp.ne.s32.totalorder %s181, %s182
    %p194 = scmp.eq.s32.totalorder %s20, 1
    %p195 = por %p193, %p194
    %p197 = scmp.ne.s32.totalorder %s182, %s196
    %p198 = scmp.eq.s32.totalorder %s20, 0
    %p199 = por %p197, %p198
    %p200 = scmp.le.s32.totalorder 1, %s14
    %p201 = scmp.lt.s32.totalorder %s14, 3
    %p202 = pnand %p200, %p201
    %p203 = pneg %p202
    // Predicated region
    $region9: #{decoder_block_forward.5} parent=5 // pred_check
      _
    $region10: #{decoder_block_forward.5} parent=5 // pred_check_branch
      %205 = sbr.rel (%p202) target = $region12
    $region11: #{decoder_block_forward.5} parent=5 // pred_region
      %s206 = ssub.s32 %s14, 1
      // Predicated region
      $region13: #{decoder_block_forward.5} parent=11 // pred_check
        %p207 = pneg %p61
      $region14: #{decoder_block_forward.5} parent=11 // pred_check_branch
        %209 = sbr.rel (%p207) target = $region16
      $region15: #{decoder_block_forward.5} parent=11 // pred_region
        _
      $region16: #{decoder_block_forward.5} parent=11 // pred_fallthru
        _
      // Predicated region
      $region17: #{decoder_block_forward.5} parent=11 // pred_check
        %p210 = pneg %p82
      $region18: #{decoder_block_forward.5} parent=11 // pred_check_branch
        %212 = sbr.rel (%p210) target = $region20
      $region19: #{decoder_block_forward.5} parent=11 // pred_region
        _
      $region20: #{decoder_block_forward.5} parent=11 // pred_fallthru
        _
      // Predicated region
      $region21: #{decoder_block_forward.5} parent=11 // pred_check
        %p213 = pneg %p103
      $region22: #{decoder_block_forward.5} parent=11 // pred_check_branch
        %215 = sbr.rel (%p213) target = $region24
      $region23: #{decoder_block_forward.5} parent=11 // pred_region
        _
      $region24: #{decoder_block_forward.5} parent=11 // pred_fallthru
        _
      // Predicated region
      $region25: #{decoder_block_forward.5} parent=11 // pred_check
        %p216 = pneg %p124
      $region26: #{decoder_block_forward.5} parent=11 // pred_check_branch
        %218 = sbr.rel (%p216) target = $region28
      $region27: #{decoder_block_forward.5} parent=11 // pred_region
        _
      $region28: #{decoder_block_forward.5} parent=11 // pred_fallthru
        _
    $region12: #{decoder_block_forward.5} parent=5 // pred_fallthru
      _
    %p219 = scmp.lt.s32.totalorder %s14, 2
    // Predicated region
    $region29: #{decoder_block_forward.5} parent=5 // pred_check
      %p220 = pneg %p219
    $region30: #{decoder_block_forward.5} parent=5 // pred_check_branch
      %222 = sbr.rel (%p220) target = $region32
    $region31: #{decoder_block_forward.5} parent=5 // pred_region
      // Predicated region
      $region33: #{decoder_block_forward.5} parent=31 // pred_check
        %p223 = pneg %p34
      $region34: #{decoder_block_forward.5} parent=31 // pred_check_branch
        %225 = sbr.rel (%p223) target = $region36
      $region35: #{decoder_block_forward.5} parent=31 // pred_region
        %p226 = scmp.lt.s32.totalorder %s14, 1
        %s227 = scalar_select %p226, %s14, 1
        %s228 = smul.addr %s227, 32
        %s229 = smul.addr %s228, 4
        %s230 = scalar_lea.vmem %s0, %s229
      $region36: #{decoder_block_forward.5} parent=31 // pred_fallthru
        _
    $region32: #{decoder_block_forward.5} parent=5 // pred_fallthru
      _
    %p231 = scmp.le.s32.totalorder 1, %s14
    %p232 = scmp.lt.s32.totalorder %s14, 3
    %p233 = pnand %p231, %p232
    %p234 = pneg %p233
    // Predicated region
    $region37: #{decoder_block_forward.5} parent=5 // pred_check
      _
    $region38: #{decoder_block_forward.5} parent=5 // pred_check_branch
      %236 = sbr.rel (%p233) target = $region40
    $region39: #{decoder_block_forward.5} parent=5 // pred_region
      %s237 = ssub.s32 %s14, 1
      %p238 = scmp.lt.s32.totalorder %s19, 1
      %s239 = scalar_select %p238, %s19, 1
      %s240 = smul.addr %s239, 32
      %s241 = smul.addr %s240, 4
      %s242 = scalar_lea.vmem %s0, %s241
      %p243 = pneg %p40
      %p244 = pneg %p37
      %p245 = pneg %p61
      %p246 = pneg %p58
      %p247 = pneg %p82
      %p248 = pneg %p79
      %p249 = pneg %p103
      %p250 = pneg %p100
      %p251 = pneg %p124
      %p252 = pneg %p121
      %p253 = pneg %p150
      %p254 = pneg %p147
      %p255 = scmp.lt.s32.totalorder %s19, 1
      %s256 = scalar_select %p255, %s19, 1
      %s257 = smul.addr %s256, 128
      %s258 = smul.addr %s257, 4
      %s259 = scalar_lea.vmem %s5, %s258
      %p260 = pneg %p171
      %p261 = pneg %p168
      %p262 = pneg %p192
      %p263 = pneg %p189
      %p264 = scmp.lt.s32.totalorder %s19, 1
      %s265 = scalar_select %p264, %s19, 1
      %s266 = smul.addr %s265, 32
      %s267 = smul.addr %s266, 4
      %s268 = scalar_lea.vmem %s0, %s267
      %p269 = scmp.lt.s32.totalorder %s19, 1
      %s270 = scalar_select %p269, %s19, 1
      %s271 = smul.addr %s270, 128
      %s272 = smul.addr %s271, 4
      %s273 = scalar_lea.vmem %s5, %s272
      %p275 = scmp.eq.s32.totalorder %s19, 0
      // Predicated region
      $region41: #{decoder_block_forward.5} parent=39 // pred_check
        %p276 = pneg %p275
      $region42: #{decoder_block_forward.5} parent=39 // pred_check_branch
        %278 = sbr.rel (%p276) target = $region44
      $region43: #{decoder_block_forward.5} parent=39 // pred_region
        %vm279 = vcmask 24576
        %280 = vst.msk [vmem:[%s6] sm:$0x1] %vm279, 0.0
        %281 = vst.msk [vmem:[%s7] sm:$0x1] %vm279, 0.0
        %vm282 = vcmask 31744
        %283 = vst.msk [vmem:[#allocation2] sm:$0xff] %vm282, 0.0
        %284 = vst.msk [vmem:[#allocation2 + $0x8] sm:$0xff] %vm282, 0.0
        %285 = vst.msk [vmem:[#allocation2 + $0x10] sm:$0xff] %vm282, 0.0
        %286 = vst.msk [vmem:[#allocation2 + $0x18] sm:$0xff] %vm282, 0.0
        %287 = vst.msk [vmem:[#allocation2 + $0x20] sm:$0xff] %vm282, 0.0
        %288 = vst.msk [vmem:[#allocation2 + $0x28] sm:$0xff] %vm282, 0.0
        %289 = vst.msk [vmem:[#allocation2 + $0x30] sm:$0xff] %vm282, 0.0
        %290 = vst.msk [vmem:[#allocation2 + $0x38] sm:$0xff] %vm282, 0.0
        %291 = vst.msk [vmem:[#allocation2 + $0x40] sm:$0xff] %vm282, 0.0
        %292 = vst.msk [vmem:[#allocation2 + $0x48] sm:$0xff] %vm282, 0.0
        %293 = vst.msk [vmem:[#allocation2 + $0x50] sm:$0xff] %vm282, 0.0
        %294 = vst.msk [vmem:[#allocation2 + $0x58] sm:$0xff] %vm282, 0.0
        %295 = vst.msk [vmem:[#allocation2 + $0x60] sm:$0xff] %vm282, 0.0
        %296 = vst.msk [vmem:[#allocation2 + $0x68] sm:$0xff] %vm282, 0.0
        %297 = vst.msk [vmem:[#allocation2 + $0x70] sm:$0xff] %vm282, 0.0
        %298 = vst.msk [vmem:[#allocation2 + $0x78] sm:$0xff] %vm282, 0.0
        %299 = vst.msk [vmem:[#allocation2 + $0x80] sm:$0xff] %vm282, 0.0
        %300 = vst.msk [vmem:[#allocation2 + $0x88] sm:$0xff] %vm282, 0.0
        %301 = vst.msk [vmem:[#allocation2 + $0x90] sm:$0xff] %vm282, 0.0
        %302 = vst.msk [vmem:[#allocation2 + $0x98] sm:$0xff] %vm282, 0.0
        %303 = vst.msk [vmem:[#allocation2 + $0xa0] sm:$0xff] %vm282, 0.0
        %304 = vst.msk [vmem:[#allocation2 + $0xa8] sm:$0xff] %vm282, 0.0
        %305 = vst.msk [vmem:[#allocation2 + $0xb0] sm:$0xff] %vm282, 0.0
        %306 = vst.msk [vmem:[#allocation2 + $0xb8] sm:$0xff] %vm282, 0.0
        %307 = vst.msk [vmem:[#allocation2 + $0xc0] sm:$0xff] %vm282, 0.0
        %308 = vst.msk [vmem:[#allocation2 + $0xc8] sm:$0xff] %vm282, 0.0
        %309 = vst.msk [vmem:[#allocation2 + $0xd0] sm:$0xff] %vm282, 0.0
        %310 = vst.msk [vmem:[#allocation2 + $0xd8] sm:$0xff] %vm282, 0.0
        %311 = vst.msk [vmem:[#allocation2 + $0xe0] sm:$0xff] %vm282, 0.0
        %312 = vst.msk [vmem:[#allocation2 + $0xe8] sm:$0xff] %vm282, 0.0
        %313 = vst.msk [vmem:[#allocation2 + $0xf0] sm:$0xff] %vm282, 0.0
        %314 = vst.msk [vmem:[#allocation2 + $0xf8] sm:$0xff] %vm282, 0.0
        %315 = vst.msk [vmem:[#allocation2 + $0x100] sm:$0xff] %vm282, 0.0
        %316 = vst.msk [vmem:[#allocation2 + $0x108] sm:$0xff] %vm282, 0.0
        %317 = vst.msk [vmem:[#allocation2 + $0x110] sm:$0xff] %vm282, 0.0
        %318 = vst.msk [vmem:[#allocation2 + $0x118] sm:$0xff] %vm282, 0.0
        %319 = vst.msk [vmem:[#allocation2 + $0x120] sm:$0xff] %vm282, 0.0
        %320 = vst.msk [vmem:[#allocation2 + $0x128] sm:$0xff] %vm282, 0.0
        %321 = vst.msk [vmem:[#allocation2 + $0x130] sm:$0xff] %vm282, 0.0
        %322 = vst.msk [vmem:[#allocation2 + $0x138] sm:$0xff] %vm282, 0.0
        %323 = vst.msk [vmem:[#allocation2 + $0x140] sm:$0xff] %vm282, 0.0
        %324 = vst.msk [vmem:[#allocation2 + $0x148] sm:$0xff] %vm282, 0.0
        %325 = vst.msk [vmem:[#allocation2 + $0x150] sm:$0xff] %vm282, 0.0
        %326 = vst.msk [vmem:[#allocation2 + $0x158] sm:$0xff] %vm282, 0.0
        %327 = vst.msk [vmem:[#allocation2 + $0x160] sm:$0xff] %vm282, 0.0
        %328 = vst.msk [vmem:[#allocation2 + $0x168] sm:$0xff] %vm282, 0.0
        %329 = vst.msk [vmem:[#allocation2 + $0x170] sm:$0xff] %vm282, 0.0
        %330 = vst.msk [vmem:[#allocation2 + $0x178] sm:$0xff] %vm282, 0.0
        %331 = vst.msk [vmem:[#allocation2 + $0x180] sm:$0xff] %vm282, 0.0
        %332 = vst.msk [vmem:[#allocation2 + $0x188] sm:$0xff] %vm282, 0.0
        %333 = vst.msk [vmem:[#allocation2 + $0x190] sm:$0xff] %vm282, 0.0
        %334 = vst.msk [vmem:[#allocation2 + $0x198] sm:$0xff] %vm282, 0.0
        %335 = vst.msk [vmem:[#allocation2 + $0x1a0] sm:$0xff] %vm282, 0.0
        %336 = vst.msk [vmem:[#allocation2 + $0x1a8] sm:$0xff] %vm282, 0.0
        %337 = vst.msk [vmem:[#allocation2 + $0x1b0] sm:$0xff] %vm282, 0.0
        %338 = vst.msk [vmem:[#allocation2 + $0x1b8] sm:$0xff] %vm282, 0.0
        %339 = vst.msk [vmem:[#allocation2 + $0x1c0] sm:$0xff] %vm282, 0.0
        %340 = vst.msk [vmem:[#allocation2 + $0x1c8] sm:$0xff] %vm282, 0.0
        %341 = vst.msk [vmem:[#allocation2 + $0x1d0] sm:$0xff] %vm282, 0.0
        %342 = vst.msk [vmem:[#allocation2 + $0x1d8] sm:$0xff] %vm282, 0.0
        %343 = vst.msk [vmem:[#allocation2 + $0x1e0] sm:$0xff] %vm282, 0.0
        %344 = vst.msk [vmem:[#allocation2 + $0x1e8] sm:$0xff] %vm282, 0.0
        %345 = vst.msk [vmem:[#allocation2 + $0x1f0] sm:$0xff] %vm282, 0.0
        %346 = vst.msk [vmem:[#allocation2 + $0x1f8] sm:$0xff] %vm282, 0.0
        %347 = vst.msk [vmem:[#allocation2 + $0x200] sm:$0xff] %vm282, 0.0
        %348 = vst.msk [vmem:[#allocation2 + $0x208] sm:$0xff] %vm282, 0.0
        %349 = vst.msk [vmem:[#allocation2 + $0x210] sm:$0xff] %vm282, 0.0
        %350 = vst.msk [vmem:[#allocation2 + $0x218] sm:$0xff] %vm282, 0.0
        %351 = vst.msk [vmem:[#allocation2 + $0x220] sm:$0xff] %vm282, 0.0
        %352 = vst.msk [vmem:[#allocation2 + $0x228] sm:$0xff] %vm282, 0.0
        %353 = vst.msk [vmem:[#allocation2 + $0x230] sm:$0xff] %vm282, 0.0
        %354 = vst.msk [vmem:[#allocation2 + $0x238] sm:$0xff] %vm282, 0.0
      $region44: #{decoder_block_forward.5} parent=39 // pred_fallthru
        _
      %v355 = vld [vmem:[%s268] sm:$0xf]
      %v356 = vld [vmem:[%s268 + $0x4] sm:$0xf]
      %v357 = vld [vmem:[%s268 + $0x8] sm:$0xf]
      %v358 = vld [vmem:[%s268 + $0xc] sm:$0xf]
      %v359 = vld [vmem:[%s268 + $0x10] sm:$0xf]
      %v360 = vld [vmem:[%s268 + $0x14] sm:$0xf]
      %v361 = vld [vmem:[%s268 + $0x18] sm:$0xf]
      %v362 = vld [vmem:[%s268 + $0x1c] sm:$0xf]
      %v363 = vld [vmem:[%s268 + $0x20] sm:$0xf]
      %v364 = vld [vmem:[%s268 + $0x24] sm:$0xf]
      %v365 = vld [vmem:[%s268 + $0x28] sm:$0xf]
      %v366 = vld [vmem:[%s268 + $0x2c] sm:$0xf]
      %v367 = vld [vmem:[%s268 + $0x30] sm:$0xf]
      %v368 = vld [vmem:[%s268 + $0x34] sm:$0xf]
      %v369 = vld [vmem:[%s268 + $0x38] sm:$0xf]
      %v370 = vld [vmem:[%s268 + $0x3c] sm:$0xf]
      %v371 = vld [vmem:[%s268 + $0x40] sm:$0xf]
      %v372 = vld [vmem:[%s268 + $0x44] sm:$0xf]
      %v373 = vld [vmem:[%s268 + $0x48] sm:$0xf]
      %v374 = vld [vmem:[%s268 + $0x4c] sm:$0xf]
      %v375 = vld [vmem:[%s268 + $0x50] sm:$0xf]
      %v376 = vld [vmem:[%s268 + $0x54] sm:$0xf]
      %v377 = vld [vmem:[%s268 + $0x58] sm:$0xf]
      %v378 = vld [vmem:[%s268 + $0x5c] sm:$0xf]
      %v379 = vld [vmem:[%s268 + $0x60] sm:$0xf]
      %v380 = vld [vmem:[%s268 + $0x64] sm:$0xf]
      %v381 = vld [vmem:[%s268 + $0x68] sm:$0xf]
      %v382 = vld [vmem:[%s268 + $0x6c] sm:$0xf]
      %v383 = vld [vmem:[%s268 + $0x70] sm:$0xf]
      %v384 = vld [vmem:[%s268 + $0x74] sm:$0xf]
      %v385 = vld [vmem:[%s268 + $0x78] sm:$0xf]
      %v386 = vld [vmem:[%s268 + $0x7c] sm:$0xf]
      %v387 = vunpack.c.l.bf16 %v355
      %v388 = vunpack.c.l.bf16 %v356
      %v389 = vunpack.c.l.bf16 %v357
      %v390 = vunpack.c.l.bf16 %v358
      %v391 = vunpack.c.l.bf16 %v359
      %v392 = vunpack.c.l.bf16 %v360
      %v393 = vunpack.c.l.bf16 %v361
      %v394 = vunpack.c.l.bf16 %v362
      %v395 = vunpack.c.l.bf16 %v363
      %v396 = vunpack.c.l.bf16 %v364
      %v397 = vunpack.c.l.bf16 %v365
      %v398 = vunpack.c.l.bf16 %v366
      %v399 = vunpack.c.l.bf16 %v367
      %v400 = vunpack.c.l.bf16 %v368
      %v401 = vunpack.c.l.bf16 %v369
      %v402 = vunpack.c.l.bf16 %v370
      %v403 = vunpack.c.l.bf16 %v371
      %v404 = vunpack.c.l.bf16 %v372
      %v405 = vunpack.c.l.bf16 %v373
      %v406 = vunpack.c.l.bf16 %v374
      %v407 = vunpack.c.l.bf16 %v375
      %v408 = vunpack.c.l.bf16 %v376
      %v409 = vunpack.c.l.bf16 %v377
      %v410 = vunpack.c.l.bf16 %v378
      %v411 = vunpack.c.l.bf16 %v379
      %v412 = vunpack.c.l.bf16 %v380
      %v413 = vunpack.c.l.bf16 %v381
      %v414 = vunpack.c.l.bf16 %v382
      %v415 = vunpack.c.l.bf16 %v383
      %v416 = vunpack.c.l.bf16 %v384
      %v417 = vunpack.c.l.bf16 %v385
      %v418 = vunpack.c.l.bf16 %v386
      %v419 = vld [vmem:[%s1] sm:$0x1]
      %v421 = vlaneseq
      %v422 = vshrl.u32 %v421, 7
      %v423 = vsub.s32 0, %v422
      %v424 = vrot.slane %v419, %v423
      %v426 = vmul.f32 %v387, %v424
      %v427 = vmul.f32 %v388, %v424
      %v428 = vmul.f32 %v389, %v424
      %v429 = vmul.f32 %v390, %v424
      %v430 = vmul.f32 %v391, %v424
      %v431 = vmul.f32 %v392, %v424
      %v432 = vmul.f32 %v393, %v424
      %v433 = vmul.f32 %v394, %v424
      %v434 = vmul.f32 %v395, %v424
      %v435 = vmul.f32 %v396, %v424
      %v436 = vmul.f32 %v397, %v424
      %v437 = vmul.f32 %v398, %v424
      %v438 = vmul.f32 %v399, %v424
      %v439 = vmul.f32 %v400, %v424
      %v440 = vmul.f32 %v401, %v424
      %v441 = vmul.f32 %v402, %v424
      %v442 = vmul.f32 %v403, %v424
      %v443 = vmul.f32 %v404, %v424
      %v444 = vmul.f32 %v405, %v424
      %v445 = vmul.f32 %v406, %v424
      %v446 = vmul.f32 %v407, %v424
      %v447 = vmul.f32 %v408, %v424
      %v448 = vmul.f32 %v409, %v424
      %v449 = vmul.f32 %v410, %v424
      %v450 = vmul.f32 %v411, %v424
      %v451 = vmul.f32 %v412, %v424
      %v452 = vmul.f32 %v413, %v424
      %v453 = vmul.f32 %v414, %v424
      %v454 = vmul.f32 %v415, %v424
      %v455 = vmul.f32 %v416, %v424
      %v456 = vmul.f32 %v417, %v424
      %v457 = vmul.f32 %v418, %v424
      %v458 = vld [vmem:[%s2] sm:$0x1]
      %v460 = vlaneseq
      %v461 = vshrl.u32 %v460, 7
      %v462 = vsub.s32 0, %v461
      %v463 = vrot.slane %v458, %v462
      %v465 = vadd.f32 %v426, %v463
      %v466 = vadd.f32 %v427, %v463
      %v467 = vadd.f32 %v428, %v463
      %v468 = vadd.f32 %v429, %v463
      %v469 = vadd.f32 %v430, %v463
      %v470 = vadd.f32 %v431, %v463
      %v471 = vadd.f32 %v432, %v463
      %v472 = vadd.f32 %v433, %v463
      %v473 = vadd.f32 %v434, %v463
      %v474 = vadd.f32 %v435, %v463
      %v475 = vadd.f32 %v436, %v463
      %v476 = vadd.f32 %v437, %v463
      %v477 = vadd.f32 %v438, %v463
      %v478 = vadd.f32 %v439, %v463
      %v479 = vadd.f32 %v440, %v463
      %v480 = vadd.f32 %v441, %v463
      %v481 = vadd.f32 %v442, %v463
      %v482 = vadd.f32 %v443, %v463
      %v483 = vadd.f32 %v444, %v463
      %v484 = vadd.f32 %v445, %v463
      %v485 = vadd.f32 %v446, %v463
      %v486 = vadd.f32 %v447, %v463
      %v487 = vadd.f32 %v448, %v463
      %v488 = vadd.f32 %v449, %v463
      %v489 = vadd.f32 %v450, %v463
      %v490 = vadd.f32 %v451, %v463
      %v491 = vadd.f32 %v452, %v463
      %v492 = vadd.f32 %v453, %v463
      %v493 = vadd.f32 %v454, %v463
      %v494 = vadd.f32 %v455, %v463
      %v495 = vadd.f32 %v456, %v463
      %v496 = vadd.f32 %v457, %v463
      %v497 = vmax.f32 %v465, 0.0
      %v498 = vmax.f32 %v466, 0.0
      %v499 = vmax.f32 %v467, 0.0
      %v500 = vmax.f32 %v468, 0.0
      %v501 = vmax.f32 %v469, 0.0
      %v502 = vmax.f32 %v470, 0.0
      %v503 = vmax.f32 %v471, 0.0
      %v504 = vmax.f32 %v472, 0.0
      %v505 = vmax.f32 %v473, 0.0
      %v506 = vmax.f32 %v474, 0.0
      %v507 = vmax.f32 %v475, 0.0
      %v508 = vmax.f32 %v476, 0.0
      %v509 = vmax.f32 %v477, 0.0
      %v510 = vmax.f32 %v478, 0.0
      %v511 = vmax.f32 %v479, 0.0
      %v512 = vmax.f32 %v480, 0.0
      %v513 = vmax.f32 %v481, 0.0
      %v514 = vmax.f32 %v482, 0.0
      %v515 = vmax.f32 %v483, 0.0
      %v516 = vmax.f32 %v484, 0.0
      %v517 = vmax.f32 %v485, 0.0
      %v518 = vmax.f32 %v486, 0.0
      %v519 = vmax.f32 %v487, 0.0
      %v520 = vmax.f32 %v488, 0.0
      %v521 = vmax.f32 %v489, 0.0
      %v522 = vmax.f32 %v490, 0.0
      %v523 = vmax.f32 %v491, 0.0
      %v524 = vmax.f32 %v492, 0.0
      %v525 = vmax.f32 %v493, 0.0
      %v526 = vmax.f32 %v494, 0.0
      %v527 = vmax.f32 %v495, 0.0
      %v528 = vmax.f32 %v496, 0.0
      %s529 = scalar_lea.vmem [#allocation2], 32
      %vm530 = vcmask 31744
      %531 = vst.msk [vmem:[%s529 + $0x8] sm:$0xff] %vm530, %v497
      %532 = vst.msk [vmem:[%s529 + $0x10] sm:$0xff] %vm530, %v498
      %533 = vst.msk [vmem:[%s529 + $0x28] sm:$0xff] %vm530, %v499
      %534 = vst.msk [vmem:[%s529 + $0x30] sm:$0xff] %vm530, %v500
      %535 = vst.msk [vmem:[%s529 + $0x48] sm:$0xff] %vm530, %v501
      %536 = vst.msk [vmem:[%s529 + $0x50] sm:$0xff] %vm530, %v502
      %537 = vst.msk [vmem:[%s529 + $0x68] sm:$0xff] %vm530, %v503
      %538 = vst.msk [vmem:[%s529 + $0x70] sm:$0xff] %vm530, %v504
      %539 = vst.msk [vmem:[%s529 + $0x88] sm:$0xff] %vm530, %v505
      %540 = vst.msk [vmem:[%s529 + $0x90] sm:$0xff] %vm530, %v506
      %541 = vst.msk [vmem:[%s529 + $0xa8] sm:$0xff] %vm530, %v507
      %542 = vst.msk [vmem:[%s529 + $0xb0] sm:$0xff] %vm530, %v508
      %543 = vst.msk [vmem:[%s529 + $0xc8] sm:$0xff] %vm530, %v509
      %544 = vst.msk [vmem:[%s529 + $0xd0] sm:$0xff] %vm530, %v510
      %545 = vst.msk [vmem:[%s529 + $0xe8] sm:$0xff] %vm530, %v511
      %546 = vst.msk [vmem:[%s529 + $0xf0] sm:$0xff] %vm530, %v512
      %547 = vst.msk [vmem:[%s529 + $0x108] sm:$0xff] %vm530, %v513
      %548 = vst.msk [vmem:[%s529 + $0x110] sm:$0xff] %vm530, %v514
      %549 = vst.msk [vmem:[%s529 + $0x128] sm:$0xff] %vm530, %v515
      %550 = vst.msk [vmem:[%s529 + $0x130] sm:$0xff] %vm530, %v516
      %551 = vst.msk [vmem:[%s529 + $0x148] sm:$0xff] %vm530, %v517
      %552 = vst.msk [vmem:[%s529 + $0x150] sm:$0xff] %vm530, %v518
      %553 = vst.msk [vmem:[%s529 + $0x168] sm:$0xff] %vm530, %v519
      %554 = vst.msk [vmem:[%s529 + $0x170] sm:$0xff] %vm530, %v520
      %555 = vst.msk [vmem:[%s529 + $0x188] sm:$0xff] %vm530, %v521
      %556 = vst.msk [vmem:[%s529 + $0x190] sm:$0xff] %vm530, %v522
      %557 = vst.msk [vmem:[%s529 + $0x1a8] sm:$0xff] %vm530, %v523
      %558 = vst.msk [vmem:[%s529 + $0x1b0] sm:$0xff] %vm530, %v524
      %559 = vst.msk [vmem:[%s529 + $0x1c8] sm:$0xff] %vm530, %v525
      %560 = vst.msk [vmem:[%s529 + $0x1d0] sm:$0xff] %vm530, %v526
      %561 = vst.msk [vmem:[%s529 + $0x1e8] sm:$0xff] %vm530, %v527
      %562 = vst.msk [vmem:[%s529 + $0x1f0] sm:$0xff] %vm530, %v528
      %v563 = vld [vmem:[#allocation2 + $0x7] sm:$0xff]
      %v564 = vld [vmem:[#allocation2 + $0xf] sm:$0xff]
      %v565 = vld [vmem:[#allocation2 + $0x27] sm:$0xff]
      %v566 = vld [vmem:[#allocation2 + $0x2f] sm:$0xff]
      %v567 = vld [vmem:[#allocation2 + $0x47] sm:$0xff]
      %v568 = vld [vmem:[#allocation2 + $0x4f] sm:$0xff]
      %v569 = vld [vmem:[#allocation2 + $0x67] sm:$0xff]
      %v570 = vld [vmem:[#allocation2 + $0x6f] sm:$0xff]
      %v571 = vld [vmem:[#allocation2 + $0x87] sm:$0xff]
      %v572 = vld [vmem:[#allocation2 + $0x8f] sm:$0xff]
      %v573 = vld [vmem:[#allocation2 + $0xa7] sm:$0xff]
      %v574 = vld [vmem:[#allocation2 + $0xaf] sm:$0xff]
      %v575 = vld [vmem:[#allocation2 + $0xc7] sm:$0xff]
      %v576 = vld [vmem:[#allocation2 + $0xcf] sm:$0xff]
      %v577 = vld [vmem:[#allocation2 + $0xe7] sm:$0xff]
      %v578 = vld [vmem:[#allocation2 + $0xef] sm:$0xff]
      %v579 = vld [vmem:[#allocation2 + $0x107] sm:$0xff]
      %v580 = vld [vmem:[#allocation2 + $0x10f] sm:$0xff]
      %v581 = vld [vmem:[#allocation2 + $0x127] sm:$0xff]
      %v582 = vld [vmem:[#allocation2 + $0x12f] sm:$0xff]
      %v583 = vld [vmem:[#allocation2 + $0x147] sm:$0xff]
      %v584 = vld [vmem:[#allocation2 + $0x14f] sm:$0xff]
      %v585 = vld [vmem:[#allocation2 + $0x167] sm:$0xff]
      %v586 = vld [vmem:[#allocation2 + $0x16f] sm:$0xff]
      %v587 = vld [vmem:[#allocation2 + $0x187] sm:$0xff]
      %v588 = vld [vmem:[#allocation2 + $0x18f] sm:$0xff]
      %v589 = vld [vmem:[#allocation2 + $0x1a7] sm:$0xff]
      %v590 = vld [vmem:[#allocation2 + $0x1af] sm:$0xff]
      %v591 = vld [vmem:[#allocation2 + $0x1c7] sm:$0xff]
      %v592 = vld [vmem:[#allocation2 + $0x1cf] sm:$0xff]
      %v593 = vld [vmem:[#allocation2 + $0x1e7] sm:$0xff]
      %v594 = vld [vmem:[#allocation2 + $0x1ef] sm:$0xff]
      %v595 = vld [vmem:[#allocation2 + $0x207] sm:$0xff]
      %v596 = vld [vmem:[#allocation2 + $0x20f] sm:$0xff]
      %v597 = vld [vmem:[#allocation2 + $0x227] sm:$0xff]
      %v598 = vld [vmem:[#allocation2 + $0x22f] sm:$0xff]
      %v599 = vpack.c.bf16 %v564, %v563
      %v600 = vpack.c.bf16 %v566, %v565
      %v601 = vpack.c.bf16 %v568, %v567
      %v602 = vpack.c.bf16 %v570, %v569
      %v603 = vpack.c.bf16 %v572, %v571
      %v604 = vpack.c.bf16 %v574, %v573
      %v605 = vpack.c.bf16 %v576, %v575
      %v606 = vpack.c.bf16 %v578, %v577
      %v607 = vpack.c.bf16 %v580, %v579
      %v608 = vpack.c.bf16 %v582, %v581
      %v609 = vpack.c.bf16 %v584, %v583
      %v610 = vpack.c.bf16 %v586, %v585
      %v611 = vpack.c.bf16 %v588, %v587
      %v612 = vpack.c.bf16 %v590, %v589
      %v613 = vpack.c.bf16 %v592, %v591
      %v614 = vpack.c.bf16 %v594, %v593
      %v615 = vpack.c.bf16 %v596, %v595
      %v616 = vpack.c.bf16 %v598, %v597
      %617 = vst.msk [vmem:[#allocation3] sm:$0xff] %vm530, %v599
      %618 = vst.msk [vmem:[#allocation3 + $0x8] sm:$0xff] %vm530, %v600
      %619 = vst.msk [vmem:[#allocation3 + $0x10] sm:$0xff] %vm530, %v601
      %620 = vst.msk [vmem:[#allocation3 + $0x18] sm:$0xff] %vm530, %v602
      %621 = vst.msk [vmem:[#allocation3 + $0x20] sm:$0xff] %vm530, %v603
      %622 = vst.msk [vmem:[#allocation3 + $0x28] sm:$0xff] %vm530, %v604
      %623 = vst.msk [vmem:[#allocation3 + $0x30] sm:$0xff] %vm530, %v605
      %624 = vst.msk [vmem:[#allocation3 + $0x38] sm:$0xff] %vm530, %v606
      %625 = vst.msk [vmem:[#allocation3 + $0x40] sm:$0xff] %vm530, %v607
      %626 = vst.msk [vmem:[#allocation3 + $0x48] sm:$0xff] %vm530, %v608
      %627 = vst.msk [vmem:[#allocation3 + $0x50] sm:$0xff] %vm530, %v609
      %628 = vst.msk [vmem:[#allocation3 + $0x58] sm:$0xff] %vm530, %v610
      %629 = vst.msk [vmem:[#allocation3 + $0x60] sm:$0xff] %vm530, %v611
      %630 = vst.msk [vmem:[#allocation3 + $0x68] sm:$0xff] %vm530, %v612
      %631 = vst.msk [vmem:[#allocation3 + $0x70] sm:$0xff] %vm530, %v613
      %632 = vst.msk [vmem:[#allocation3 + $0x78] sm:$0xff] %vm530, %v614
      %633 = vst.msk [vmem:[#allocation3 + $0x80] sm:$0xff] %vm530, %v615
      %634 = vst.msk [vmem:[#allocation3 + $0x88] sm:$0xff] %vm530, %v616
      %v635 = vld [vmem:[#allocation2 + $0x8] sm:$0xff]
      %v636 = vld [vmem:[#allocation2 + $0x10] sm:$0xff]
      %v637 = vld [vmem:[#allocation2 + $0x28] sm:$0xff]
      %v638 = vld [vmem:[#allocation2 + $0x30] sm:$0xff]
      %v639 = vld [vmem:[#allocation2 + $0x48] sm:$0xff]
      %v640 = vld [vmem:[#allocation2 + $0x50] sm:$0xff]
      %v641 = vld [vmem:[#allocation2 + $0x68] sm:$0xff]
      %v642 = vld [vmem:[#allocation2 + $0x70] sm:$0xff]
      %v643 = vld [vmem:[#allocation2 + $0x88] sm:$0xff]
      %v644 = vld [vmem:[#allocation2 + $0x90] sm:$0xff]
      %v645 = vld [vmem:[#allocation2 + $0xa8] sm:$0xff]
      %v646 = vld [vmem:[#allocation2 + $0xb0] sm:$0xff]
      %v647 = vld [vmem:[#allocation2 + $0xc8] sm:$0xff]
      %v648 = vld [vmem:[#allocation2 + $0xd0] sm:$0xff]
      %v649 = vld [vmem:[#allocation2 + $0xe8] sm:$0xff]
      %v650 = vld [vmem:[#allocation2 + $0xf0] sm:$0xff]
      %v651 = vld [vmem:[#allocation2 + $0x108] sm:$0xff]
      %v652 = vld [vmem:[#allocation2 + $0x110] sm:$0xff]
      %v653 = vld [vmem:[#allocation2 + $0x128] sm:$0xff]
      %v654 = vld [vmem:[#allocation2 + $0x130] sm:$0xff]
      %v655 = vld [vmem:[#allocation2 + $0x148] sm:$0xff]
      %v656 = vld [vmem:[#allocation2 + $0x150] sm:$0xff]
      %v657 = vld [vmem:[#allocation2 + $0x168] sm:$0xff]
      %v658 = vld [vmem:[#allocation2 + $0x170] sm:$0xff]
      %v659 = vld [vmem:[#allocation2 + $0x188] sm:$0xff]
      %v660 = vld [vmem:[#allocation2 + $0x190] sm:$0xff]
      %v661 = vld [vmem:[#allocation2 + $0x1a8] sm:$0xff]
      %v662 = vld [vmem:[#allocation2 + $0x1b0] sm:$0xff]
      %v663 = vld [vmem:[#allocation2 + $0x1c8] sm:$0xff]
      %v664 = vld [vmem:[#allocation2 + $0x1d0] sm:$0xff]
      %v665 = vld [vmem:[#allocation2 + $0x1e8] sm:$0xff]
      %v666 = vld [vmem:[#allocation2 + $0x1f0] sm:$0xff]
      %v667 = vld [vmem:[#allocation2 + $0x208] sm:$0xff]
      %v668 = vld [vmem:[#allocation2 + $0x210] sm:$0xff]
      %v669 = vld [vmem:[#allocation2 + $0x228] sm:$0xff]
      %v670 = vld [vmem:[#allocation2 + $0x230] sm:$0xff]
      %v671 = vpack.c.bf16 %v636, %v635
      %v672 = vpack.c.bf16 %v638, %v637
      %v673 = vpack.c.bf16 %v640, %v639
      %v674 = vpack.c.bf16 %v642, %v641
      %v675 = vpack.c.bf16 %v644, %v643
      %v676 = vpack.c.bf16 %v646, %v645
      %v677 = vpack.c.bf16 %v648, %v647
      %v678 = vpack.c.bf16 %v650, %v649
      %v679 = vpack.c.bf16 %v652, %v651
      %v680 = vpack.c.bf16 %v654, %v653
      %v681 = vpack.c.bf16 %v656, %v655
      %v682 = vpack.c.bf16 %v658, %v657
      %v683 = vpack.c.bf16 %v660, %v659
      %v684 = vpack.c.bf16 %v662, %v661
      %v685 = vpack.c.bf16 %v664, %v663
      %v686 = vpack.c.bf16 %v666, %v665
      %v687 = vpack.c.bf16 %v668, %v667
      %v688 = vpack.c.bf16 %v670, %v669
      %s689 = scalar_lea.vmem [#allocation3], 144
      %690 = vst.msk [vmem:[%s689] sm:$0xff] %vm530, %v671
      %691 = vst.msk [vmem:[%s689 + $0x8] sm:$0xff] %vm530, %v672
      %692 = vst.msk [vmem:[%s689 + $0x10] sm:$0xff] %vm530, %v673
      %693 = vst.msk [vmem:[%s689 + $0x18] sm:$0xff] %vm530, %v674
      %694 = vst.msk [vmem:[%s689 + $0x20] sm:$0xff] %vm530, %v675
      %695 = vst.msk [vmem:[%s689 + $0x28] sm:$0xff] %vm530, %v676
      %696 = vst.msk [vmem:[%s689 + $0x30] sm:$0xff] %vm530, %v677
      %697 = vst.msk [vmem:[%s689 + $0x38] sm:$0xff] %vm530, %v678
      %698 = vst.msk [vmem:[%s689 + $0x40] sm:$0xff] %vm530, %v679
      %699 = vst.msk [vmem:[%s689 + $0x48] sm:$0xff] %vm530, %v680
      %700 = vst.msk [vmem:[%s689 + $0x50] sm:$0xff] %vm530, %v681
      %701 = vst.msk [vmem:[%s689 + $0x58] sm:$0xff] %vm530, %v682
      %702 = vst.msk [vmem:[%s689 + $0x60] sm:$0xff] %vm530, %v683
      %703 = vst.msk [vmem:[%s689 + $0x68] sm:$0xff] %vm530, %v684
      %704 = vst.msk [vmem:[%s689 + $0x70] sm:$0xff] %vm530, %v685
      %705 = vst.msk [vmem:[%s689 + $0x78] sm:$0xff] %vm530, %v686
      %706 = vst.msk [vmem:[%s689 + $0x80] sm:$0xff] %vm530, %v687
      %707 = vst.msk [vmem:[%s689 + $0x88] sm:$0xff] %vm530, %v688
      %v708 = vld [vmem:[#allocation2 + $0x9] sm:$0xff]
      %v709 = vld [vmem:[#allocation2 + $0x11] sm:$0xff]
      %v710 = vld [vmem:[#allocation2 + $0x29] sm:$0xff]
      %v711 = vld [vmem:[#allocation2 + $0x31] sm:$0xff]
      %v712 = vld [vmem:[#allocation2 + $0x49] sm:$0xff]
      %v713 = vld [vmem:[#allocation2 + $0x51] sm:$0xff]
      %v714 = vld [vmem:[#allocation2 + $0x69] sm:$0xff]
      %v715 = vld [vmem:[#allocation2 + $0x71] sm:$0xff]
      %v716 = vld [vmem:[#allocation2 + $0x89] sm:$0xff]
      %v717 = vld [vmem:[#allocation2 + $0x91] sm:$0xff]
      %v718 = vld [vmem:[#allocation2 + $0xa9] sm:$0xff]
      %v719 = vld [vmem:[#allocation2 + $0xb1] sm:$0xff]
      %v720 = vld [vmem:[#allocation2 + $0xc9] sm:$0xff]
      %v721 = vld [vmem:[#allocation2 + $0xd1] sm:$0xff]
      %v722 = vld [vmem:[#allocation2 + $0xe9] sm:$0xff]
      %v723 = vld [vmem:[#allocation2 + $0xf1] sm:$0xff]
      %v724 = vld [vmem:[#allocation2 + $0x109] sm:$0xff]
      %v725 = vld [vmem:[#allocation2 + $0x111] sm:$0xff]
      %v726 = vld [vmem:[#allocation2 + $0x129] sm:$0xff]
      %v727 = vld [vmem:[#allocation2 + $0x131] sm:$0xff]
      %v728 = vld [vmem:[#allocation2 + $0x149] sm:$0xff]
      %v729 = vld [vmem:[#allocation2 + $0x151] sm:$0xff]
      %v730 = vld [vmem:[#allocation2 + $0x169] sm:$0xff]
      %v731 = vld [vmem:[#allocation2 + $0x171] sm:$0xff]
      %v732 = vld [vmem:[#allocation2 + $0x189] sm:$0xff]
      %v733 = vld [vmem:[#allocation2 + $0x191] sm:$0xff]
      %v734 = vld [vmem:[#allocation2 + $0x1a9] sm:$0xff]
      %v735 = vld [vmem:[#allocation2 + $0x1b1] sm:$0xff]
      %v736 = vld [vmem:[#allocation2 + $0x1c9] sm:$0xff]
      %v737 = vld [vmem:[#allocation2 + $0x1d1] sm:$0xff]
      %v738 = vld [vmem:[#allocation2 + $0x1e9] sm:$0xff]
      %v739 = vld [vmem:[#allocation2 + $0x1f1] sm:$0xff]
      %v740 = vld [vmem:[#allocation2 + $0x209] sm:$0xff]
      %v741 = vld [vmem:[#allocation2 + $0x211] sm:$0xff]
      %v742 = vld [vmem:[#allocation2 + $0x229] sm:$0xff]
      %v743 = vld [vmem:[#allocation2 + $0x231] sm:$0xff]
      %v744 = vpack.c.bf16 %v709, %v708
      %v745 = vpack.c.bf16 %v711, %v710
      %v746 = vpack.c.bf16 %v713, %v712
      %v747 = vpack.c.bf16 %v715, %v714
      %v748 = vpack.c.bf16 %v717, %v716
      %v749 = vpack.c.bf16 %v719, %v718
      %v750 = vpack.c.bf16 %v721, %v720
      %v751 = vpack.c.bf16 %v723, %v722
      %v752 = vpack.c.bf16 %v725, %v724
      %v753 = vpack.c.bf16 %v727, %v726
      %v754 = vpack.c.bf16 %v729, %v728
      %v755 = vpack.c.bf16 %v731, %v730
      %v756 = vpack.c.bf16 %v733, %v732
      %v757 = vpack.c.bf16 %v735, %v734
      %v758 = vpack.c.bf16 %v737, %v736
      %v759 = vpack.c.bf16 %v739, %v738
      %v760 = vpack.c.bf16 %v741, %v740
      %v761 = vpack.c.bf16 %v743, %v742
      %s762 = scalar_lea.vmem [#allocation3], 288
      %763 = vst.msk [vmem:[%s762] sm:$0xff] %vm530, %v744
      %764 = vst.msk [vmem:[%s762 + $0x8] sm:$0xff] %vm530, %v745
      %765 = vst.msk [vmem:[%s762 + $0x10] sm:$0xff] %vm530, %v746
      %766 = vst.msk [vmem:[%s762 + $0x18] sm:$0xff] %vm530, %v747
      %767 = vst.msk [vmem:[%s762 + $0x20] sm:$0xff] %vm530, %v748
      %768 = vst.msk [vmem:[%s762 + $0x28] sm:$0xff] %vm530, %v749
      %769 = vst.msk [vmem:[%s762 + $0x30] sm:$0xff] %vm530, %v750
      %770 = vst.msk [vmem:[%s762 + $0x38] sm:$0xff] %vm530, %v751
      %771 = vst.msk [vmem:[%s762 + $0x40] sm:$0xff] %vm530, %v752
      %772 = vst.msk [vmem:[%s762 + $0x48] sm:$0xff] %vm530, %v753
      %773 = vst.msk [vmem:[%s762 + $0x50] sm:$0xff] %vm530, %v754
      %774 = vst.msk [vmem:[%s762 + $0x58] sm:$0xff] %vm530, %v755
      %775 = vst.msk [vmem:[%s762 + $0x60] sm:$0xff] %vm530, %v756
      %776 = vst.msk [vmem:[%s762 + $0x68] sm:$0xff] %vm530, %v757
      %777 = vst.msk [vmem:[%s762 + $0x70] sm:$0xff] %vm530, %v758
      %778 = vst.msk [vmem:[%s762 + $0x78] sm:$0xff] %vm530, %v759
      %779 = vst.msk [vmem:[%s762 + $0x80] sm:$0xff] %vm530, %v760
      %780 = vst.msk [vmem:[%s762 + $0x88] sm:$0xff] %vm530, %v761
      %v781 = vld [vmem:[%s4] sm:$0x1]
      %v782 = vld [vmem:[#allocation3] sm:$0xff]
      %v783 = vld [vmem:[#allocation3 + $0x8] sm:$0xff]
      %v784 = vld [vmem:[#allocation3 + $0x10] sm:$0xff]
      %v785 = vld [vmem:[#allocation3 + $0x18] sm:$0xff]
      %v786 = vld [vmem:[#allocation3 + $0x20] sm:$0xff]
      %v787 = vld [vmem:[#allocation3 + $0x28] sm:$0xff]
      %v788 = vld [vmem:[#allocation3 + $0x30] sm:$0xff]
      %v789 = vld [vmem:[#allocation3 + $0x38] sm:$0xff]
      %v790 = vld [vmem:[#allocation3 + $0x40] sm:$0xff]
      %v791 = vld [vmem:[#allocation3 + $0x48] sm:$0xff]
      %v792 = vld [vmem:[#allocation3 + $0x50] sm:$0xff]
      %v793 = vld [vmem:[#allocation3 + $0x58] sm:$0xff]
      %v794 = vld [vmem:[#allocation3 + $0x60] sm:$0xff]
      %v795 = vld [vmem:[#allocation3 + $0x68] sm:$0xff]
      %v796 = vld [vmem:[#allocation3 + $0x70] sm:$0xff]
      %v797 = vld [vmem:[#allocation3 + $0x78] sm:$0xff]
      %v798 = vld [vmem:[%s3] sm:$0x3]
      %v799 = vld [vmem:[%s689] sm:$0xff]
      %v800 = vld [vmem:[%s689 + $0x8] sm:$0xff]
      %v801 = vld [vmem:[%s689 + $0x10] sm:$0xff]
      %v802 = vld [vmem:[%s689 + $0x18] sm:$0xff]
      %v803 = vld [vmem:[%s689 + $0x20] sm:$0xff]
      %v804 = vld [vmem:[%s689 + $0x28] sm:$0xff]
      %v805 = vld [vmem:[%s689 + $0x30] sm:$0xff]
      %v806 = vld [vmem:[%s689 + $0x38] sm:$0xff]
      %v807 = vld [vmem:[%s689 + $0x40] sm:$0xff]
      %v808 = vld [vmem:[%s689 + $0x48] sm:$0xff]
      %v809 = vld [vmem:[%s689 + $0x50] sm:$0xff]
      %v810 = vld [vmem:[%s689 + $0x58] sm:$0xff]
      %v811 = vld [vmem:[%s689 + $0x60] sm:$0xff]
      %v812 = vld [vmem:[%s689 + $0x68] sm:$0xff]
      %v813 = vld [vmem:[%s689 + $0x70] sm:$0xff]
      %v814 = vld [vmem:[%s689 + $0x78] sm:$0xff]
      %s815 = scalar_lea.vmem %s3, 2
      %v816 = vld [vmem:[%s815] sm:$0x3]
      %v818 = vsel %vm530, %v799, 0
      %v821 = vsel %vm530, %v800, 0
      %v824 = vsel %vm530, %v801, 0
      %v827 = vsel %vm530, %v802, 0
      %v830 = vsel %vm530, %v803, 0
      %v833 = vsel %vm530, %v804, 0
      %v836 = vsel %vm530, %v805, 0
      %v839 = vsel %vm530, %v806, 0
      %v842 = vsel %vm530, %v807, 0
      %v845 = vsel %vm530, %v808, 0
      %v848 = vsel %vm530, %v809, 0
      %v851 = vsel %vm530, %v810, 0
      %v854 = vsel %vm530, %v811, 0
      %v857 = vsel %vm530, %v812, 0
      %v860 = vsel %vm530, %v813, 0
      %v863 = vsel %vm530, %v814, 0
      %vm865 = vcmask 1041408
      %v867 = vsel %vm865, %v816, 0
      %869 = vmatprep.subr.bf16.mxu0 0
      %870 = vmatpush1.bf16.msra.mxu0 %v867
      %871 = vmatprep.subr.bf16.mxu0 0
      %872 = vmatpush1.bf16.msra.mxu0 0
      %873 = vmatprep.subr.bf16.mxu0 0
      %874 = vmatpush1.bf16.msra.mxu0 0
      %875 = vmatprep.subr.bf16.mxu0 0
      %876 = vmatpush1.bf16.msra.mxu0 0
      %877 = vmatprep.subr.bf16.mxu0 0
      %878 = vmatpush1.bf16.msra.mxu0 0
      %879 = vmatprep.subr.bf16.mxu0 0
      %880 = vmatpush1.bf16.msra.mxu0 0
      %881 = vmatprep.subr.bf16.mxu0 0
      %882 = vmatpush1.bf16.msra.mxu0 0
      %883 = vmatprep.subr.bf16.mxu0 0
      %884 = vmatpush1.bf16.msra.mxu0 0
      %885 = vmatprep.subr.bf16.mxu0 0
      %886 = vmatpush1.bf16.msra.mxu0 0
      %887 = vmatprep.subr.bf16.mxu0 0
      %888 = vmatpush1.bf16.msra.mxu0 0
      %889 = vmatprep.subr.bf16.mxu0 0
      %890 = vmatpush1.bf16.msra.mxu0 0
      %891 = vmatprep.subr.bf16.mxu0 0
      %892 = vmatpush1.bf16.msra.mxu0 0
      %893 = vmatprep.subr.bf16.mxu0 0
      %894 = vmatpush1.bf16.msra.mxu0 0
      %895 = vmatprep.subr.bf16.mxu0 0
      %896 = vmatpush1.bf16.msra.mxu0 0
      %897 = vmatprep.subr.bf16.mxu0 0
      %898 = vmatpush1.bf16.msra.mxu0 0
      %899 = vmatprep.subr.bf16.mxu0 0
      %900 = vmatpush1.bf16.msra.mxu0 0
      %901 = vmatprep.mubr.bf16.mxu0 0
      %902 = vmatmul.mubr.bf16.gmra.mrb[0].mxu0 %v818
      %v903 = vpop.f32.mrb[0].mxu0
      %v904 = vadd.f32 0.0, %v903
      %v905 = vpop.f32.mrb[0].mxu0
      %v906 = vpop.f32.mrb[0].mxu0
      %v907 = vadd.f32 0.0, %v906
      %v908 = vpop.f32.mrb[0].mxu0
      %909 = vmatprep.mubr.bf16.mxu0 0
      %910 = vmatmul.mubr.bf16.gmra.mrb[0].mxu0 %v821
      %v911 = vpop.f32.mrb[0].mxu0
      %v912 = vadd.f32 0.0, %v911
      %v913 = vpop.f32.mrb[0].mxu0
      %v914 = vpop.f32.mrb[0].mxu0
      %v915 = vadd.f32 0.0, %v914
      %v916 = vpop.f32.mrb[0].mxu0
      %917 = vmatprep.mubr.bf16.mxu0 0
      %918 = vmatmul.mubr.bf16.gmra.mrb[0].mxu0 %v824
      %v919 = vpop.f32.mrb[0].mxu0
      %v920 = vadd.f32 0.0, %v919
      %v921 = vpop.f32.mrb[0].mxu0
      %v922 = vpop.f32.mrb[0].mxu0
      %v923 = vadd.f32 0.0, %v922
      %v924 = vpop.f32.mrb[0].mxu0
      %925 = vmatprep.mubr.bf16.mxu0 0
      %926 = vmatmul.mubr.bf16.gmra.mrb[0].mxu0 %v827
      %v927 = vpop.f32.mrb[0].mxu0
      %v928 = vadd.f32 0.0, %v927
      %v929 = vpop.f32.mrb[0].mxu0
      %v930 = vpop.f32.mrb[0].mxu0
      %v931 = vadd.f32 0.0, %v930
      %v932 = vpop.f32.mrb[0].mxu0
      %933 = vmatprep.mubr.bf16.mxu0 0
      %934 = vmatmul.mubr.bf16.gmra.mrb[0].mxu0 %v830
      %v935 = vpop.f32.mrb[0].mxu0
      %v936 = vadd.f32 0.0, %v935
      %v937 = vpop.f32.mrb[0].mxu0
      %v938 = vpop.f32.mrb[0].mxu0
      %v939 = vadd.f32 0.0, %v938
      %v940 = vpop.f32.mrb[0].mxu0
      %941 = vmatprep.mubr.bf16.mxu0 0
      %942 = vmatmul.mubr.bf16.gmra.mrb[0].mxu0 %v833
      %v943 = vpop.f32.mrb[0].mxu0
      %v944 = vadd.f32 0.0, %v943
      %v945 = vpop.f32.mrb[0].mxu0
      %v946 = vpop.f32.mrb[0].mxu0
      %v947 = vadd.f32 0.0, %v946
      %v948 = vpop.f32.mrb[0].mxu0
      %949 = vmatprep.mubr.bf16.mxu0 0
      %950 = vmatmul.mubr.bf16.gmra.mrb[0].mxu0 %v836
      %v951 = vpop.f32.mrb[0].mxu0
      %v952 = vadd.f32 0.0, %v951
      %v953 = vpop.f32.mrb[0].mxu0
      %v954 = vpop.f32.mrb[0].mxu0
      %v955 = vadd.f32 0.0, %v954
      %v956 = vpop.f32.mrb[0].mxu0
      %957 = vmatprep.mubr.bf16.mxu0 0
      %958 = vmatmul.mubr.bf16.gmra.mrb[0].mxu0 %v839
      %v959 = vpop.f32.mrb[0].mxu0
      %v960 = vadd.f32 0.0, %v959
      %v961 = vpop.f32.mrb[0].mxu0
      %v962 = vpop.f32.mrb[0].mxu0
      %v963 = vadd.f32 0.0, %v962
      %v964 = vpop.f32.mrb[0].mxu0
      %965 = vmatprep.mubr.bf16.mxu0 0
      %966 = vmatmul.mubr.bf16.gmra.mrb[0].mxu0 %v842
      %v967 = vpop.f32.mrb[0].mxu0
      %v968 = vadd.f32 0.0, %v967
      %v969 = vpop.f32.mrb[0].mxu0
      %v970 = vpop.f32.mrb[0].mxu0
      %v971 = vadd.f32 0.0, %v970
      %v972 = vpop.f32.mrb[0].mxu0
      %973 = vmatprep.mubr.bf16.mxu0 0
      %974 = vmatmul.mubr.bf16.gmra.mrb[0].mxu0 %v845
      %v975 = vpop.f32.mrb[0].mxu0
      %v976 = vadd.f32 0.0, %v975
      %v977 = vpop.f32.mrb[0].mxu0
      %v978 = vpop.f32.mrb[0].mxu0
      %v979 = vadd.f32 0.0, %v978
      %v980 = vpop.f32.mrb[0].mxu0
      %981 = vmatprep.mubr.bf16.mxu0 0
      %982 = vmatmul.mubr.bf16.gmra.mrb[0].mxu0 %v848
      %v983 = vpop.f32.mrb[0].mxu0
      %v984 = vadd.f32 0.0, %v983
      %v985 = vpop.f32.mrb[0].mxu0
      %v986 = vpop.f32.mrb[0].mxu0
      %v987 = vadd.f32 0.0, %v986
      %v988 = vpop.f32.mrb[0].mxu0
      %989 = vmatprep.mubr.bf16.mxu0 0
      %990 = vmatmul.mubr.bf16.gmra.mrb[0].mxu0 %v851
      %v991 = vpop.f32.mrb[0].mxu0
      %v992 = vadd.f32 0.0, %v991
      %v993 = vpop.f32.mrb[0].mxu0
      %v994 = vpop.f32.mrb[0].mxu0
      %v995 = vadd.f32 0.0, %v994
      %v996 = vpop.f32.mrb[0].mxu0
      %997 = vmatprep.mubr.bf16.mxu0 0
      %998 = vmatmul.mubr.bf16.gmra.mrb[0].mxu0 %v854
      %v999 = vpop.f32.mrb[0].mxu0
      %v1000 = vadd.f32 0.0, %v999
      %v1001 = vpop.f32.mrb[0].mxu0
      %v1002 = vpop.f32.mrb[0].mxu0
      %v1003 = vadd.f32 0.0, %v1002
      %v1004 = vpop.f32.mrb[0].mxu0
      %1005 = vmatprep.mubr.bf16.mxu0 0
      %1006 = vmatmul.mubr.bf16.gmra.mrb[0].mxu0 %v857
      %v1007 = vpop.f32.mrb[0].mxu0
      %v1008 = vadd.f32 0.0, %v1007
      %v1009 = vpop.f32.mrb[0].mxu0
      %v1010 = vpop.f32.mrb[0].mxu0
      %v1011 = vadd.f32 0.0, %v1010
      %v1012 = vpop.f32.mrb[0].mxu0
      %1013 = vmatprep.mubr.bf16.mxu0 0
      %1014 = vmatmul.mubr.bf16.gmra.mrb[0].mxu0 %v860
      %v1015 = vpop.f32.mrb[0].mxu0
      %v1016 = vadd.f32 0.0, %v1015
      %v1017 = vpop.f32.mrb[0].mxu0
      %v1018 = vpop.f32.mrb[0].mxu0
      %v1019 = vadd.f32 0.0, %v1018
      %v1020 = vpop.f32.mrb[0].mxu0
      %1021 = vmatprep.mubr.bf16.mxu0 0
      %1022 = vmatmul.mubr.bf16.gmra.mrb[0].mxu0 %v863
      %v1023 = vpop.f32.mrb[0].mxu0
      %v1024 = vadd.f32 0.0, %v1023
      %v1025 = vpop.f32.mrb[0].mxu0
      %v1026 = vpop.f32.mrb[0].mxu0
      %v1027 = vadd.f32 0.0, %v1026
      %v1028 = vpop.f32.mrb[0].mxu0
      %1029 = vdwg.mxu0
      %v1031 = vsel %vm530, %v782, 0
      %v1034 = vsel %vm530, %v783, 0
      %v1037 = vsel %vm530, %v784, 0
      %v1040 = vsel %vm530, %v785, 0
      %v1043 = vsel %vm530, %v786, 0
      %v1046 = vsel %vm530, %v787, 0
      %v1049 = vsel %vm530, %v788, 0
      %v1052 = vsel %vm530, %v789, 0
      %v1055 = vsel %vm530, %v790, 0
      %v1058 = vsel %vm530, %v791, 0
      %v1061 = vsel %vm530, %v792, 0
      %v1064 = vsel %vm530, %v793, 0
      %v1067 = vsel %vm530, %v794, 0
      %v1070 = vsel %vm530, %v795, 0
      %v1073 = vsel %vm530, %v796, 0
      %v1076 = vsel %vm530, %v797, 0
      %v1079 = vsel %vm865, %v798, 0
      %1081 = vmatprep.subr.bf16.mxu0 0
      %1082 = vmatpush1.bf16.msra.mxu0 %v1079
      %1083 = vmatprep.subr.bf16.mxu0 0
      %1084 = vmatpush1.bf16.msra.mxu0 0
      %1085 = vmatprep.subr.bf16.mxu0 0
      %1086 = vmatpush1.bf16.msra.mxu0 0
      %1087 = vmatprep.subr.bf16.mxu0 0
      %1088 = vmatpush1.bf16.msra.mxu0 0
      %1089 = vmatprep.subr.bf16.mxu0 0
      %1090 = vmatpush1.bf16.msra.mxu0 0
      %1091 = vmatprep.subr.bf16.mxu0 0
      %1092 = vmatpush1.bf16.msra.mxu0 0
      %1093 = vmatprep.subr.bf16.mxu0 0
      %1094 = vmatpush1.bf16.msra.mxu0 0
      %1095 = vmatprep.subr.bf16.mxu0 0
      %1096 = vmatpush1.bf16.msra.mxu0 0
      %1097 = vmatprep.subr.bf16.mxu0 0
      %1098 = vmatpush1.bf16.msra.mxu0 0
      %1099 = vmatprep.subr.bf16.mxu0 0
      %1100 = vmatpush1.bf16.msra.mxu0 0
      %1101 = vmatprep.subr.bf16.mxu0 0
      %1102 = vmatpush1.bf16.msra.mxu0 0
      %1103 = vmatprep.subr.bf16.mxu0 0
      %1104 = vmatpush1.bf16.msra.mxu0 0
      %1105 = vmatprep.subr.bf16.mxu0 0
      %1106 = vmatpush1.bf16.msra.mxu0 0
      %1107 = vmatprep.subr.bf16.mxu0 0
      %1108 = vmatpush1.bf16.msra.mxu0 0
      %1109 = vmatprep.subr.bf16.mxu0 0
      %1110 = vmatpush1.bf16.msra.mxu0 0
      %1111 = vmatprep.subr.bf16.mxu0 0
      %1112 = vmatpush1.bf16.msra.mxu0 0
      %1113 = vmatprep.mubr.bf16.mxu0 0
      %1114 = vmatmul.mubr.bf16.gmra.mrb[0].mxu0 %v1031
      %v1115 = vpop.f32.mrb[0].mxu0
      %v1116 = vadd.f32 %v904, %v1115
      %v1117 = vpop.f32.mrb[0].mxu0
      %v1118 = vpop.f32.mrb[0].mxu0
      %v1119 = vadd.f32 %v907, %v1118
      %v1120 = vpop.f32.mrb[0].mxu0
      %1121 = vmatprep.mubr.bf16.mxu0 0
      %1122 = vmatmul.mubr.bf16.gmra.mrb[0].mxu0 %v1034
      %v1123 = vpop.f32.mrb[0].mxu0
      %v1124 = vadd.f32 %v912, %v1123
      %v1125 = vpop.f32.mrb[0].mxu0
      %v1126 = vpop.f32.mrb[0].mxu0
      %v1127 = vadd.f32 %v915, %v1126
      %v1128 = vpop.f32.mrb[0].mxu0
      %1129 = vmatprep.mubr.bf16.mxu0 0
      %1130 = vmatmul.mubr.bf16.gmra.mrb[0].mxu0 %v1037
      %v1131 = vpop.f32.mrb[0].mxu0
      %v1132 = vadd.f32 %v920, %v1131
      %v1133 = vpop.f32.mrb[0].mxu0
      %v1134 = vpop.f32.mrb[0].mxu0
      %v1135 = vadd.f32 %v923, %v1134
      %v1136 = vpop.f32.mrb[0].mxu0
      %1137 = vmatprep.mubr.bf16.mxu0 0
      %1138 = vmatmul.mubr.bf16.gmra.mrb[0].mxu0 %v1040
      %v1139 = vpop.f32.mrb[0].mxu0
      %v1140 = vadd.f32 %v928, %v1139
      %v1141 = vpop.f32.mrb[0].mxu0
      %v1142 = vpop.f32.mrb[0].mxu0
      %v1143 = vadd.f32 %v931, %v1142
      %v1144 = vpop.f32.mrb[0].mxu0
      %1145 = vmatprep.mubr.bf16.mxu0 0
      %1146 = vmatmul.mubr.bf16.gmra.mrb[0].mxu0 %v1043
      %v1147 = vpop.f32.mrb[0].mxu0
      %v1148 = vadd.f32 %v936, %v1147
      %v1149 = vpop.f32.mrb[0].mxu0
      %v1150 = vpop.f32.mrb[0].mxu0
      %v1151 = vadd.f32 %v939, %v1150
      %v1152 = vpop.f32.mrb[0].mxu0
      %1153 = vmatprep.mubr.bf16.mxu0 0
      %1154 = vmatmul.mubr.bf16.gmra.mrb[0].mxu0 %v1046
      %v1155 = vpop.f32.mrb[0].mxu0
      %v1156 = vadd.f32 %v944, %v1155
      %v1157 = vpop.f32.mrb[0].mxu0
      %v1158 = vpop.f32.mrb[0].mxu0
      %v1159 = vadd.f32 %v947, %v1158
      %v1160 = vpop.f32.mrb[0].mxu0
      %1161 = vmatprep.mubr.bf16.mxu0 0
      %1162 = vmatmul.mubr.bf16.gmra.mrb[0].mxu0 %v1049
      %v1163 = vpop.f32.mrb[0].mxu0
      %v1164 = vadd.f32 %v952, %v1163
      %v1165 = vpop.f32.mrb[0].mxu0
      %v1166 = vpop.f32.mrb[0].mxu0
      %v1167 = vadd.f32 %v955, %v1166
      %v1168 = vpop.f32.mrb[0].mxu0
      %1169 = vmatprep.mubr.bf16.mxu0 0
      %1170 = vmatmul.mubr.bf16.gmra.mrb[0].mxu0 %v1052
      %v1171 = vpop.f32.mrb[0].mxu0
      %v1172 = vadd.f32 %v960, %v1171
      %v1173 = vpop.f32.mrb[0].mxu0
      %v1174 = vpop.f32.mrb[0].mxu0
      %v1175 = vadd.f32 %v963, %v1174
      %v1176 = vpop.f32.mrb[0].mxu0
      %1177 = vmatprep.mubr.bf16.mxu0 0
      %1178 = vmatmul.mubr.bf16.gmra.mrb[0].mxu0 %v1055
      %v1179 = vpop.f32.mrb[0].mxu0
      %v1180 = vadd.f32 %v968, %v1179
      %v1181 = vpop.f32.mrb[0].mxu0
      %v1182 = vpop.f32.mrb[0].mxu0
      %v1183 = vadd.f32 %v971, %v1182
      %v1184 = vpop.f32.mrb[0].mxu0
      %1185 = vmatprep.mubr.bf16.mxu0 0
      %1186 = vmatmul.mubr.bf16.gmra.mrb[0].mxu0 %v1058
      %v1187 = vpop.f32.mrb[0].mxu0
      %v1188 = vadd.f32 %v976, %v1187
      %v1189 = vpop.f32.mrb[0].mxu0
      %v1190 = vpop.f32.mrb[0].mxu0
      %v1191 = vadd.f32 %v979, %v1190
      %v1192 = vpop.f32.mrb[0].mxu0
      %1193 = vmatprep.mubr.bf16.mxu0 0
      %1194 = vmatmul.mubr.bf16.gmra.mrb[0].mxu0 %v1061
      %v1195 = vpop.f32.mrb[0].mxu0
      %v1196 = vadd.f32 %v984, %v1195
      %v1197 = vpop.f32.mrb[0].mxu0
      %v1198 = vpop.f32.mrb[0].mxu0
      %v1199 = vadd.f32 %v987, %v1198
      %v1200 = vpop.f32.mrb[0].mxu0
      %1201 = vmatprep.mubr.bf16.mxu0 0
      %1202 = vmatmul.mubr.bf16.gmra.mrb[0].mxu0 %v1064
      %v1203 = vpop.f32.mrb[0].mxu0
      %v1204 = vadd.f32 %v992, %v1203
      %v1205 = vpop.f32.mrb[0].mxu0
      %v1206 = vpop.f32.mrb[0].mxu0
      %v1207 = vadd.f32 %v995, %v1206
      %v1208 = vpop.f32.mrb[0].mxu0
      %1209 = vmatprep.mubr.bf16.mxu0 0
      %1210 = vmatmul.mubr.bf16.gmra.mrb[0].mxu0 %v1067
      %v1211 = vpop.f32.mrb[0].mxu0
      %v1212 = vadd.f32 %v1000, %v1211
      %v1213 = vpop.f32.mrb[0].mxu0
      %v1214 = vpop.f32.mrb[0].mxu0
      %v1215 = vadd.f32 %v1003, %v1214
      %v1216 = vpop.f32.mrb[0].mxu0
      %1217 = vmatprep.mubr.bf16.mxu0 0
      %1218 = vmatmul.mubr.bf16.gmra.mrb[0].mxu0 %v1070
      %v1219 = vpop.f32.mrb[0].mxu0
      %v1220 = vadd.f32 %v1008, %v1219
      %v1221 = vpop.f32.mrb[0].mxu0
      %v1222 = vpop.f32.mrb[0].mxu0
      %v1223 = vadd.f32 %v1011, %v1222
      %v1224 = vpop.f32.mrb[0].mxu0
      %1225 = vmatprep.mubr.bf16.mxu0 0
      %1226 = vmatmul.mubr.bf16.gmra.mrb[0].mxu0 %v1073
      %v1227 = vpop.f32.mrb[0].mxu0
      %v1228 = vadd.f32 %v1016, %v1227
      %v1229 = vpop.f32.mrb[0].mxu0
      %v1230 = vpop.f32.mrb[0].mxu0
      %v1231 = vadd.f32 %v1019, %v1230
      %v1232 = vpop.f32.mrb[0].mxu0
      %1233 = vmatprep.mubr.bf16.mxu0 0
      %1234 = vmatmul.mubr.bf16.gmra.mrb[0].mxu0 %v1076
      %v1235 = vpop.f32.mrb[0].mxu0
      %v1236 = vadd.f32 %v1024, %v1235
      %v1237 = vpop.f32.mrb[0].mxu0
      %v1238 = vpop.f32.mrb[0].mxu0
      %v1239 = vadd.f32 %v1027, %v1238
      %v1240 = vpop.f32.mrb[0].mxu0
      %1241 = vdwg.mxu0
      %s1242 = scalar_lea.vmem [#allocation3], 8
      %v1243 = vld [vmem:[%s1242] sm:$0xff]
      %v1244 = vld [vmem:[%s1242 + $0x8] sm:$0xff]
      %v1245 = vld [vmem:[%s1242 + $0x10] sm:$0xff]
      %v1246 = vld [vmem:[%s1242 + $0x18] sm:$0xff]
      %v1247 = vld [vmem:[%s1242 + $0x20] sm:$0xff]
      %v1248 = vld [vmem:[%s1242 + $0x28] sm:$0xff]
      %v1249 = vld [vmem:[%s1242 + $0x30] sm:$0xff]
      %v1250 = vld [vmem:[%s1242 + $0x38] sm:$0xff]
      %v1251 = vld [vmem:[%s1242 + $0x40] sm:$0xff]
      %v1252 = vld [vmem:[%s1242 + $0x48] sm:$0xff]
      %v1253 = vld [vmem:[%s1242 + $0x50] sm:$0xff]
      %v1254 = vld [vmem:[%s1242 + $0x58] sm:$0xff]
      %v1255 = vld [vmem:[%s1242 + $0x60] sm:$0xff]
      %v1256 = vld [vmem:[%s1242 + $0x68] sm:$0xff]
      %v1257 = vld [vmem:[%s1242 + $0x70] sm:$0xff]
      %v1258 = vld [vmem:[%s1242 + $0x78] sm:$0xff]
      %s1259 = scalar_lea.vmem %s3, 4
      %v1260 = vld [vmem:[%s1259] sm:$0x3]
      %v1262 = vsel %vm530, %v1243, 0
      %v1265 = vsel %vm530, %v1244, 0
      %v1268 = vsel %vm530, %v1245, 0
      %v1271 = vsel %vm530, %v1246, 0
      %v1274 = vsel %vm530, %v1247, 0
      %v1277 = vsel %vm530, %v1248, 0
      %v1280 = vsel %vm530, %v1249, 0
      %v1283 = vsel %vm530, %v1250, 0
      %v1286 = vsel %vm530, %v1251, 0
      %v1289 = vsel %vm530, %v1252, 0
      %v1292 = vsel %vm530, %v1253, 0
      %v1295 = vsel %vm530, %v1254, 0
      %v1298 = vsel %vm530, %v1255, 0
      %v1301 = vsel %vm530, %v1256, 0
      %v1304 = vsel %vm530, %v1257, 0
      %v1307 = vsel %vm530, %v1258, 0
      %v1310 = vsel %vm865, %v1260, 0
      %1312 = vmatprep.subr.bf16.mxu0 0
      %1313 = vmatpush1.bf16.msra.mxu0 %v1310
      %1314 = vmatprep.subr.bf16.mxu0 0
      %1315 = vmatpush1.bf16.msra.mxu0 0
      %1316 = vmatprep.subr.bf16.mxu0 0
      %1317 = vmatpush1.bf16.msra.mxu0 0
      %1318 = vmatprep.subr.bf16.mxu0 0
      %1319 = vmatpush1.bf16.msra.mxu0 0
      %1320 = vmatprep.subr.bf16.mxu0 0
      %1321 = vmatpush1.bf16.msra.mxu0 0
      %1322 = vmatprep.subr.bf16.mxu0 0
      %1323 = vmatpush1.bf16.msra.mxu0 0
      %1324 = vmatprep.subr.bf16.mxu0 0
      %1325 = vmatpush1.bf16.msra.mxu0 0
      %1326 = vmatprep.subr.bf16.mxu0 0
      %1327 = vmatpush1.bf16.msra.mxu0 0
      %1328 = vmatprep.subr.bf16.mxu0 0
      %1329 = vmatpush1.bf16.msra.mxu0 0
      %1330 = vmatprep.subr.bf16.mxu0 0
      %1331 = vmatpush1.bf16.msra.mxu0 0
      %1332 = vmatprep.subr.bf16.mxu0 0
      %1333 = vmatpush1.bf16.msra.mxu0 0
      %1334 = vmatprep.subr.bf16.mxu0 0
      %1335 = vmatpush1.bf16.msra.mxu0 0
      %1336 = vmatprep.subr.bf16.mxu0 0
      %1337 = vmatpush1.bf16.msra.mxu0 0
      %1338 = vmatprep.subr.bf16.mxu0 0
      %1339 = vmatpush1.bf16.msra.mxu0 0
      %1340 = vmatprep.subr.bf16.mxu0 0
      %1341 = vmatpush1.bf16.msra.mxu0 0
      %1342 = vmatprep.subr.bf16.mxu0 0
      %1343 = vmatpush1.bf16.msra.mxu0 0
      %1344 = vmatprep.mubr.bf16.mxu0 0
      %1345 = vmatmul.mubr.bf16.gmra.mrb[0].mxu0 %v1262
      %v1346 = vpop.f32.mrb[0].mxu0
      %v1347 = vadd.f32 0.0, %v1346
      %v1348 = vpop.f32.mrb[0].mxu0
      %v1349 = vpop.f32.mrb[0].mxu0
      %v1350 = vadd.f32 0.0, %v1349
      %v1351 = vpop.f32.mrb[0].mxu0
      %1352 = vmatprep.mubr.bf16.mxu0 0
      %1353 = vmatmul.mubr.bf16.gmra.mrb[0].mxu0 %v1265
      %v1354 = vpop.f32.mrb[0].mxu0
      %v1355 = vadd.f32 0.0, %v1354
      %v1356 = vpop.f32.mrb[0].mxu0
      %v1357 = vpop.f32.mrb[0].mxu0
      %v1358 = vadd.f32 0.0, %v1357
      %v1359 = vpop.f32.mrb[0].mxu0
      %1360 = vmatprep.mubr.bf16.mxu0 0
      %1361 = vmatmul.mubr.bf16.gmra.mrb[0].mxu0 %v1268
      %v1362 = vpop.f32.mrb[0].mxu0
      %v1363 = vadd.f32 0.0, %v1362
      %v1364 = vpop.f32.mrb[0].mxu0
      %v1365 = vpop.f32.mrb[0].mxu0
      %v1366 = vadd.f32 0.0, %v1365
      %v1367 = vpop.f32.mrb[0].mxu0
      %1368 = vmatprep.mubr.bf16.mxu0 0
      %1369 = vmatmul.mubr.bf16.gmra.mrb[0].mxu0 %v1271
      %v1370 = vpop.f32.mrb[0].mxu0
      %v1371 = vadd.f32 0.0, %v1370
      %v1372 = vpop.f32.mrb[0].mxu0
      %v1373 = vpop.f32.mrb[0].mxu0
      %v1374 = vadd.f32 0.0, %v1373
      %v1375 = vpop.f32.mrb[0].mxu0
      %1376 = vmatprep.mubr.bf16.mxu0 0
      %1377 = vmatmul.mubr.bf16.gmra.mrb[0].mxu0 %v1274
      %v1378 = vpop.f32.mrb[0].mxu0
      %v1379 = vadd.f32 0.0, %v1378
      %v1380 = vpop.f32.mrb[0].mxu0
      %v1381 = vpop.f32.mrb[0].mxu0
      %v1382 = vadd.f32 0.0, %v1381
      %v1383 = vpop.f32.mrb[0].mxu0
      %1384 = vmatprep.mubr.bf16.mxu0 0
      %1385 = vmatmul.mubr.bf16.gmra.mrb[0].mxu0 %v1277
      %v1386 = vpop.f32.mrb[0].mxu0
      %v1387 = vadd.f32 0.0, %v1386
      %v1388 = vpop.f32.mrb[0].mxu0
      %v1389 = vpop.f32.mrb[0].mxu0
      %v1390 = vadd.f32 0.0, %v1389
      %v1391 = vpop.f32.mrb[0].mxu0
      %1392 = vmatprep.mubr.bf16.mxu0 0
      %1393 = vmatmul.mubr.bf16.gmra.mrb[0].mxu0 %v1280
      %v1394 = vpop.f32.mrb[0].mxu0
      %v1395 = vadd.f32 0.0, %v1394
      %v1396 = vpop.f32.mrb[0].mxu0
      %v1397 = vpop.f32.mrb[0].mxu0
      %v1398 = vadd.f32 0.0, %v1397
      %v1399 = vpop.f32.mrb[0].mxu0
      %1400 = vmatprep.mubr.bf16.mxu0 0
      %1401 = vmatmul.mubr.bf16.gmra.mrb[0].mxu0 %v1283
      %v1402 = vpop.f32.mrb[0].mxu0
      %v1403 = vadd.f32 0.0, %v1402
      %v1404 = vpop.f32.mrb[0].mxu0
      %v1405 = vpop.f32.mrb[0].mxu0
      %v1406 = vadd.f32 0.0, %v1405
      %v1407 = vpop.f32.mrb[0].mxu0
      %1408 = vmatprep.mubr.bf16.mxu0 0
      %1409 = vmatmul.mubr.bf16.gmra.mrb[0].mxu0 %v1286
      %v1410 = vpop.f32.mrb[0].mxu0
      %v1411 = vadd.f32 0.0, %v1410
      %v1412 = vpop.f32.mrb[0].mxu0
      %v1413 = vpop.f32.mrb[0].mxu0
      %v1414 = vadd.f32 0.0, %v1413
      %v1415 = vpop.f32.mrb[0].mxu0
      %1416 = vmatprep.mubr.bf16.mxu0 0
      %1417 = vmatmul.mubr.bf16.gmra.mrb[0].mxu0 %v1289
      %v1418 = vpop.f32.mrb[0].mxu0
      %v1419 = vadd.f32 0.0, %v1418
      %v1420 = vpop.f32.mrb[0].mxu0
      %v1421 = vpop.f32.mrb[0].mxu0
      %v1422 = vadd.f32 0.0, %v1421
      %v1423 = vpop.f32.mrb[0].mxu0
      %1424 = vmatprep.mubr.bf16.mxu0 0
      %1425 = vmatmul.mubr.bf16.gmra.mrb[0].mxu0 %v1292
      %v1426 = vpop.f32.mrb[0].mxu0
      %v1427 = vadd.f32 0.0, %v1426
      %v1428 = vpop.f32.mrb[0].mxu0
      %v1429 = vpop.f32.mrb[0].mxu0
      %v1430 = vadd.f32 0.0, %v1429
      %v1431 = vpop.f32.mrb[0].mxu0
      %1432 = vmatprep.mubr.bf16.mxu0 0
      %1433 = vmatmul.mubr.bf16.gmra.mrb[0].mxu0 %v1295
      %v1434 = vpop.f32.mrb[0].mxu0
      %v1435 = vadd.f32 0.0, %v1434
      %v1436 = vpop.f32.mrb[0].mxu0
      %v1437 = vpop.f32.mrb[0].mxu0
      %v1438 = vadd.f32 0.0, %v1437
      %v1439 = vpop.f32.mrb[0].mxu0
      %1440 = vmatprep.mubr.bf16.mxu0 0
      %1441 = vmatmul.mubr.bf16.gmra.mrb[0].mxu0 %v1298
      %v1442 = vpop.f32.mrb[0].mxu0
      %v1443 = vadd.f32 0.0, %v1442
      %v1444 = vpop.f32.mrb[0].mxu0
      %v1445 = vpop.f32.mrb[0].mxu0
      %v1446 = vadd.f32 0.0, %v1445
      %v1447 = vpop.f32.mrb[0].mxu0
      %1448 = vmatprep.mubr.bf16.mxu0 0
      %1449 = vmatmul.mubr.bf16.gmra.mrb[0].mxu0 %v1301
      %v1450 = vpop.f32.mrb[0].mxu0
      %v1451 = vadd.f32 0.0, %v1450
      %v1452 = vpop.f32.mrb[0].mxu0
      %v1453 = vpop.f32.mrb[0].mxu0
      %v1454 = vadd.f32 0.0, %v1453
      %v1455 = vpop.f32.mrb[0].mxu0
      %1456 = vmatprep.mubr.bf16.mxu0 0
      %1457 = vmatmul.mubr.bf16.gmra.mrb[0].mxu0 %v1304
      %v1458 = vpop.f32.mrb[0].mxu0
      %v1459 = vadd.f32 0.0, %v1458
      %v1460 = vpop.f32.mrb[0].mxu0
      %v1461 = vpop.f32.mrb[0].mxu0
      %v1462 = vadd.f32 0.0, %v1461
      %v1463 = vpop.f32.mrb[0].mxu0
      %1464 = vmatprep.mubr.bf16.mxu0 0
      %1465 = vmatmul.mubr.bf16.gmra.mrb[0].mxu0 %v1307
      %v1466 = vpop.f32.mrb[0].mxu0
      %v1467 = vadd.f32 0.0, %v1466
      %v1468 = vpop.f32.mrb[0].mxu0
      %v1469 = vpop.f32.mrb[0].mxu0
      %v1470 = vadd.f32 0.0, %v1469
      %v1471 = vpop.f32.mrb[0].mxu0
      %1472 = vdwg.mxu0
      %v1473 = vadd.f32 %v1116, %v1347
      %v1474 = vadd.f32 %v1119, %v1350
      %v1475 = vadd.f32 %v1124, %v1355
      %v1476 = vadd.f32 %v1127, %v1358
      %v1477 = vadd.f32 %v1132, %v1363
      %v1478 = vadd.f32 %v1135, %v1366
      %v1479 = vadd.f32 %v1140, %v1371
      %v1480 = vadd.f32 %v1143, %v1374
      %v1481 = vadd.f32 %v1148, %v1379
      %v1482 = vadd.f32 %v1151, %v1382
      %v1483 = vadd.f32 %v1156, %v1387
      %v1484 = vadd.f32 %v1159, %v1390
      %v1485 = vadd.f32 %v1164, %v1395
      %v1486 = vadd.f32 %v1167, %v1398
      %v1487 = vadd.f32 %v1172, %v1403
      %v1488 = vadd.f32 %v1175, %v1406
      %v1489 = vadd.f32 %v1180, %v1411
      %v1490 = vadd.f32 %v1183, %v1414
      %v1491 = vadd.f32 %v1188, %v1419
      %v1492 = vadd.f32 %v1191, %v1422
      %v1493 = vadd.f32 %v1196, %v1427
      %v1494 = vadd.f32 %v1199, %v1430
      %v1495 = vadd.f32 %v1204, %v1435
      %v1496 = vadd.f32 %v1207, %v1438
      %v1497 = vadd.f32 %v1212, %v1443
      %v1498 = vadd.f32 %v1215, %v1446
      %v1499 = vadd.f32 %v1220, %v1451
      %v1500 = vadd.f32 %v1223, %v1454
      %v1501 = vadd.f32 %v1228, %v1459
      %v1502 = vadd.f32 %v1231, %v1462
      %v1503 = vadd.f32 %v1236, %v1467
      %v1504 = vadd.f32 %v1239, %v1470
      %s1505 = scalar_lea.vmem [#allocation3], 152
      %v1506 = vld [vmem:[%s1505] sm:$0xff]
      %v1507 = vld [vmem:[%s1505 + $0x8] sm:$0xff]
      %v1508 = vld [vmem:[%s1505 + $0x10] sm:$0xff]
      %v1509 = vld [vmem:[%s1505 + $0x18] sm:$0xff]
      %v1510 = vld [vmem:[%s1505 + $0x20] sm:$0xff]
      %v1511 = vld [vmem:[%s1505 + $0x28] sm:$0xff]
      %v1512 = vld [vmem:[%s1505 + $0x30] sm:$0xff]
      %v1513 = vld [vmem:[%s1505 + $0x38] sm:$0xff]
      %v1514 = vld [vmem:[%s1505 + $0x40] sm:$0xff]
      %v1515 = vld [vmem:[%s1505 + $0x48] sm:$0xff]
      %v1516 = vld [vmem:[%s1505 + $0x50] sm:$0xff]
      %v1517 = vld [vmem:[%s1505 + $0x58] sm:$0xff]
      %v1518 = vld [vmem:[%s1505 + $0x60] sm:$0xff]
      %v1519 = vld [vmem:[%s1505 + $0x68] sm:$0xff]
      %v1520 = vld [vmem:[%s1505 + $0x70] sm:$0xff]
      %v1521 = vld [vmem:[%s1505 + $0x78] sm:$0xff]
      %s1522 = scalar_lea.vmem %s3, 6
      %v1523 = vld [vmem:[%s1522] sm:$0x3]
      %v1525 = vsel %vm530, %v1506, 0
      %v1528 = vsel %vm530, %v1507, 0
      %v1531 = vsel %vm530, %v1508, 0
      %v1534 = vsel %vm530, %v1509, 0
      %v1537 = vsel %vm530, %v1510, 0
      %v1540 = vsel %vm530, %v1511, 0
      %v1543 = vsel %vm530, %v1512, 0
      %v1546 = vsel %vm530, %v1513, 0
      %v1549 = vsel %vm530, %v1514, 0
      %v1552 = vsel %vm530, %v1515, 0
      %v1555 = vsel %vm530, %v1516, 0
      %v1558 = vsel %vm530, %v1517, 0
      %v1561 = vsel %vm530, %v1518, 0
      %v1564 = vsel %vm530, %v1519, 0
      %v1567 = vsel %vm530, %v1520, 0
      %v1570 = vsel %vm530, %v1521, 0
      %v1573 = vsel %vm865, %v1523, 0
      %1575 = vmatprep.subr.bf16.mxu0 0
      %1576 = vmatpush1.bf16.msra.mxu0 %v1573
      %1577 = vmatprep.subr.bf16.mxu0 0
      %1578 = vmatpush1.bf16.msra.mxu0 0
      %1579 = vmatprep.subr.bf16.mxu0 0
      %1580 = vmatpush1.bf16.msra.mxu0 0
      %1581 = vmatprep.subr.bf16.mxu0 0
      %1582 = vmatpush1.bf16.msra.mxu0 0
      %1583 = vmatprep.subr.bf16.mxu0 0
      %1584 = vmatpush1.bf16.msra.mxu0 0
      %1585 = vmatprep.subr.bf16.mxu0 0
      %1586 = vmatpush1.bf16.msra.mxu0 0
      %1587 = vmatprep.subr.bf16.mxu0 0
      %1588 = vmatpush1.bf16.msra.mxu0 0
      %1589 = vmatprep.subr.bf16.mxu0 0
      %1590 = vmatpush1.bf16.msra.mxu0 0
      %1591 = vmatprep.subr.bf16.mxu0 0
      %1592 = vmatpush1.bf16.msra.mxu0 0
      %1593 = vmatprep.subr.bf16.mxu0 0
      %1594 = vmatpush1.bf16.msra.mxu0 0
      %1595 = vmatprep.subr.bf16.mxu0 0
      %1596 = vmatpush1.bf16.msra.mxu0 0
      %1597 = vmatprep.subr.bf16.mxu0 0
      %1598 = vmatpush1.bf16.msra.mxu0 0
      %1599 = vmatprep.subr.bf16.mxu0 0
      %1600 = vmatpush1.bf16.msra.mxu0 0
      %1601 = vmatprep.subr.bf16.mxu0 0
      %1602 = vmatpush1.bf16.msra.mxu0 0
      %1603 = vmatprep.subr.bf16.mxu0 0
      %1604 = vmatpush1.bf16.msra.mxu0 0
      %1605 = vmatprep.subr.bf16.mxu0 0
      %1606 = vmatpush1.bf16.msra.mxu0 0
      %1607 = vmatprep.mubr.bf16.mxu0 0
      %1608 = vmatmul.mubr.bf16.gmra.mrb[0].mxu0 %v1525
      %v1609 = vpop.f32.mrb[0].mxu0
      %v1610 = vadd.f32 0.0, %v1609
      %v1611 = vpop.f32.mrb[0].mxu0
      %v1612 = vpop.f32.mrb[0].mxu0
      %v1613 = vadd.f32 0.0, %v1612
      %v1614 = vpop.f32.mrb[0].mxu0
      %1615 = vmatprep.mubr.bf16.mxu0 0
      %1616 = vmatmul.mubr.bf16.gmra.mrb[0].mxu0 %v1528
      %v1617 = vpop.f32.mrb[0].mxu0
      %v1618 = vadd.f32 0.0, %v1617
      %v1619 = vpop.f32.mrb[0].mxu0
      %v1620 = vpop.f32.mrb[0].mxu0
      %v1621 = vadd.f32 0.0, %v1620
      %v1622 = vpop.f32.mrb[0].mxu0
      %1623 = vmatprep.mubr.bf16.mxu0 0
      %1624 = vmatmul.mubr.bf16.gmra.mrb[0].mxu0 %v1531
      %v1625 = vpop.f32.mrb[0].mxu0
      %v1626 = vadd.f32 0.0, %v1625
      %v1627 = vpop.f32.mrb[0].mxu0
      %v1628 = vpop.f32.mrb[0].mxu0
      %v1629 = vadd.f32 0.0, %v1628
      %v1630 = vpop.f32.mrb[0].mxu0
      %1631 = vmatprep.mubr.bf16.mxu0 0
      %1632 = vmatmul.mubr.bf16.gmra.mrb[0].mxu0 %v1534
      %v1633 = vpop.f32.mrb[0].mxu0
      %v1634 = vadd.f32 0.0, %v1633
      %v1635 = vpop.f32.mrb[0].mxu0
      %v1636 = vpop.f32.mrb[0].mxu0
      %v1637 = vadd.f32 0.0, %v1636
      %v1638 = vpop.f32.mrb[0].mxu0
      %1639 = vmatprep.mubr.bf16.mxu0 0
      %1640 = vmatmul.mubr.bf16.gmra.mrb[0].mxu0 %v1537
      %v1641 = vpop.f32.mrb[0].mxu0
      %v1642 = vadd.f32 0.0, %v1641
      %v1643 = vpop.f32.mrb[0].mxu0
      %v1644 = vpop.f32.mrb[0].mxu0
      %v1645 = vadd.f32 0.0, %v1644
      %v1646 = vpop.f32.mrb[0].mxu0
      %1647 = vmatprep.mubr.bf16.mxu0 0
      %1648 = vmatmul.mubr.bf16.gmra.mrb[0].mxu0 %v1540
      %v1649 = vpop.f32.mrb[0].mxu0
      %v1650 = vadd.f32 0.0, %v1649
      %v1651 = vpop.f32.mrb[0].mxu0
      %v1652 = vpop.f32.mrb[0].mxu0
      %v1653 = vadd.f32 0.0, %v1652
      %v1654 = vpop.f32.mrb[0].mxu0
      %1655 = vmatprep.mubr.bf16.mxu0 0
      %1656 = vmatmul.mubr.bf16.gmra.mrb[0].mxu0 %v1543
      %v1657 = vpop.f32.mrb[0].mxu0
      %v1658 = vadd.f32 0.0, %v1657
      %v1659 = vpop.f32.mrb[0].mxu0
      %v1660 = vpop.f32.mrb[0].mxu0
      %v1661 = vadd.f32 0.0, %v1660
      %v1662 = vpop.f32.mrb[0].mxu0
      %1663 = vmatprep.mubr.bf16.mxu0 0
      %1664 = vmatmul.mubr.bf16.gmra.mrb[0].mxu0 %v1546
      %v1665 = vpop.f32.mrb[0].mxu0
      %v1666 = vadd.f32 0.0, %v1665
      %v1667 = vpop.f32.mrb[0].mxu0
      %v1668 = vpop.f32.mrb[0].mxu0
      %v1669 = vadd.f32 0.0, %v1668
      %v1670 = vpop.f32.mrb[0].mxu0
      %1671 = vmatprep.mubr.bf16.mxu0 0
      %1672 = vmatmul.mubr.bf16.gmra.mrb[0].mxu0 %v1549
      %v1673 = vpop.f32.mrb[0].mxu0
      %v1674 = vadd.f32 0.0, %v1673
      %v1675 = vpop.f32.mrb[0].mxu0
      %v1676 = vpop.f32.mrb[0].mxu0
      %v1677 = vadd.f32 0.0, %v1676
      %v1678 = vpop.f32.mrb[0].mxu0
      %1679 = vmatprep.mubr.bf16.mxu0 0
      %1680 = vmatmul.mubr.bf16.gmra.mrb[0].mxu0 %v1552
      %v1681 = vpop.f32.mrb[0].mxu0
      %v1682 = vadd.f32 0.0, %v1681
      %v1683 = vpop.f32.mrb[0].mxu0
      %v1684 = vpop.f32.mrb[0].mxu0
      %v1685 = vadd.f32 0.0, %v1684
      %v1686 = vpop.f32.mrb[0].mxu0
      %1687 = vmatprep.mubr.bf16.mxu0 0
      %1688 = vmatmul.mubr.bf16.gmra.mrb[0].mxu0 %v1555
      %v1689 = vpop.f32.mrb[0].mxu0
      %v1690 = vadd.f32 0.0, %v1689
      %v1691 = vpop.f32.mrb[0].mxu0
      %v1692 = vpop.f32.mrb[0].mxu0
      %v1693 = vadd.f32 0.0, %v1692
      %v1694 = vpop.f32.mrb[0].mxu0
      %1695 = vmatprep.mubr.bf16.mxu0 0
      %1696 = vmatmul.mubr.bf16.gmra.mrb[0].mxu0 %v1558
      %v1697 = vpop.f32.mrb[0].mxu0
      %v1698 = vadd.f32 0.0, %v1697
      %v1699 = vpop.f32.mrb[0].mxu0
      %v1700 = vpop.f32.mrb[0].mxu0
      %v1701 = vadd.f32 0.0, %v1700
      %v1702 = vpop.f32.mrb[0].mxu0
      %1703 = vmatprep.mubr.bf16.mxu0 0
      %1704 = vmatmul.mubr.bf16.gmra.mrb[0].mxu0 %v1561
      %v1705 = vpop.f32.mrb[0].mxu0
      %v1706 = vadd.f32 0.0, %v1705
      %v1707 = vpop.f32.mrb[0].mxu0
      %v1708 = vpop.f32.mrb[0].mxu0
      %v1709 = vadd.f32 0.0, %v1708
      %v1710 = vpop.f32.mrb[0].mxu0
      %1711 = vmatprep.mubr.bf16.mxu0 0
      %1712 = vmatmul.mubr.bf16.gmra.mrb[0].mxu0 %v1564
      %v1713 = vpop.f32.mrb[0].mxu0
      %v1714 = vadd.f32 0.0, %v1713
      %v1715 = vpop.f32.mrb[0].mxu0
      %v1716 = vpop.f32.mrb[0].mxu0
      %v1717 = vadd.f32 0.0, %v1716
      %v1718 = vpop.f32.mrb[0].mxu0
      %1719 = vmatprep.mubr.bf16.mxu0 0
      %1720 = vmatmul.mubr.bf16.gmra.mrb[0].mxu0 %v1567
      %v1721 = vpop.f32.mrb[0].mxu0
      %v1722 = vadd.f32 0.0, %v1721
      %v1723 = vpop.f32.mrb[0].mxu0
      %v1724 = vpop.f32.mrb[0].mxu0
      %v1725 = vadd.f32 0.0, %v1724
      %v1726 = vpop.f32.mrb[0].mxu0
      %1727 = vmatprep.mubr.bf16.mxu0 0
      %1728 = vmatmul.mubr.bf16.gmra.mrb[0].mxu0 %v1570
      %v1729 = vpop.f32.mrb[0].mxu0
      %v1730 = vadd.f32 0.0, %v1729
      %v1731 = vpop.f32.mrb[0].mxu0
      %v1732 = vpop.f32.mrb[0].mxu0
      %v1733 = vadd.f32 0.0, %v1732
      %v1734 = vpop.f32.mrb[0].mxu0
      %1735 = vdwg.mxu0
      %v1736 = vadd.f32 %v1473, %v1610
      %v1737 = vadd.f32 %v1474, %v1613
      %v1738 = vadd.f32 %v1475, %v1618
      %v1739 = vadd.f32 %v1476, %v1621
      %v1740 = vadd.f32 %v1477, %v1626
      %v1741 = vadd.f32 %v1478, %v1629
      %v1742 = vadd.f32 %v1479, %v1634
      %v1743 = vadd.f32 %v1480, %v1637
      %v1744 = vadd.f32 %v1481, %v1642
      %v1745 = vadd.f32 %v1482, %v1645
      %v1746 = vadd.f32 %v1483, %v1650
      %v1747 = vadd.f32 %v1484, %v1653
      %v1748 = vadd.f32 %v1485, %v1658
      %v1749 = vadd.f32 %v1486, %v1661
      %v1750 = vadd.f32 %v1487, %v1666
      %v1751 = vadd.f32 %v1488, %v1669
      %v1752 = vadd.f32 %v1489, %v1674
      %v1753 = vadd.f32 %v1490, %v1677
      %v1754 = vadd.f32 %v1491, %v1682
      %v1755 = vadd.f32 %v1492, %v1685
      %v1756 = vadd.f32 %v1493, %v1690
      %v1757 = vadd.f32 %v1494, %v1693
      %v1758 = vadd.f32 %v1495, %v1698
      %v1759 = vadd.f32 %v1496, %v1701
      %v1760 = vadd.f32 %v1497, %v1706
      %v1761 = vadd.f32 %v1498, %v1709
      %v1762 = vadd.f32 %v1499, %v1714
      %v1763 = vadd.f32 %v1500, %v1717
      %v1764 = vadd.f32 %v1501, %v1722
      %v1765 = vadd.f32 %v1502, %v1725
      %v1766 = vadd.f32 %v1503, %v1730
      %v1767 = vadd.f32 %v1504, %v1733
      %v1769 = vlaneseq
      %v1770 = vshrl.u32 %v1769, 7
      %v1771 = vsub.s32 0, %v1770
      %v1772 = vrot.slane %v781, %v1771
      %v1774 = vadd.f32 %v1736, %v1772
      %v1775 = vadd.f32 %v1737, %v1772
      %v1776 = vadd.f32 %v1738, %v1772
      %v1777 = vadd.f32 %v1739, %v1772
      %v1778 = vadd.f32 %v1740, %v1772
      %v1779 = vadd.f32 %v1741, %v1772
      %v1780 = vadd.f32 %v1742, %v1772
      %v1781 = vadd.f32 %v1743, %v1772
      %v1782 = vadd.f32 %v1744, %v1772
      %v1783 = vadd.f32 %v1745, %v1772
      %v1784 = vadd.f32 %v1746, %v1772
      %v1785 = vadd.f32 %v1747, %v1772
      %v1786 = vadd.f32 %v1748, %v1772
      %v1787 = vadd.f32 %v1749, %v1772
      %v1788 = vadd.f32 %v1750, %v1772
      %v1789 = vadd.f32 %v1751, %v1772
      %v1790 = vadd.f32 %v1752, %v1772
      %v1791 = vadd.f32 %v1753, %v1772
      %v1792 = vadd.f32 %v1754, %v1772
      %v1793 = vadd.f32 %v1755, %v1772
      %v1794 = vadd.f32 %v1756, %v1772
      %v1795 = vadd.f32 %v1757, %v1772
      %v1796 = vadd.f32 %v1758, %v1772
      %v1797 = vadd.f32 %v1759, %v1772
      %v1798 = vadd.f32 %v1760, %v1772
      %v1799 = vadd.f32 %v1761, %v1772
      %v1800 = vadd.f32 %v1762, %v1772
      %v1801 = vadd.f32 %v1763, %v1772
      %v1802 = vadd.f32 %v1764, %v1772
      %v1803 = vadd.f32 %v1765, %v1772
      %v1804 = vadd.f32 %v1766, %v1772
      %v1805 = vadd.f32 %v1767, %v1772
      %v1806 = vpack.c.bf16 %v1775, %v1774
      %v1807 = vpack.c.bf16 %v1777, %v1776
      %v1808 = vpack.c.bf16 %v1779, %v1778
      %v1809 = vpack.c.bf16 %v1781, %v1780
      %v1810 = vpack.c.bf16 %v1783, %v1782
      %v1811 = vpack.c.bf16 %v1785, %v1784
      %v1812 = vpack.c.bf16 %v1787, %v1786
      %v1813 = vpack.c.bf16 %v1789, %v1788
      %v1814 = vpack.c.bf16 %v1791, %v1790
      %v1815 = vpack.c.bf16 %v1793, %v1792
      %v1816 = vpack.c.bf16 %v1795, %v1794
      %v1817 = vpack.c.bf16 %v1797, %v1796
      %v1818 = vpack.c.bf16 %v1799, %v1798
      %v1819 = vpack.c.bf16 %v1801, %v1800
      %v1820 = vpack.c.bf16 %v1803, %v1802
      %v1821 = vpack.c.bf16 %v1805, %v1804
      %v1838 = vunpack.c.l.b16 %v1806
      %v1839 = vunpack.c.h.b16 %v1806
      %v1840 = vunpack.c.l.b16 %v1807
      %v1841 = vunpack.c.h.b16 %v1807
      %v1842 = vunpack.c.l.b16 %v1808
      %v1843 = vunpack.c.h.b16 %v1808
      %v1844 = vunpack.c.l.b16 %v1809
      %v1845 = vunpack.c.h.b16 %v1809
      %v1846 = vunpack.c.l.b16 %v1810
      %v1847 = vunpack.c.h.b16 %v1810
      %v1848 = vunpack.c.l.b16 %v1811
      %v1849 = vunpack.c.h.b16 %v1811
      %v1850 = vunpack.c.l.b16 %v1812
      %v1851 = vunpack.c.h.b16 %v1812
      %v1852 = vunpack.c.l.b16 %v1813
      %v1853 = vunpack.c.h.b16 %v1813
      %v1854 = vunpack.c.l.b16 %v1814
      %v1855 = vunpack.c.h.b16 %v1814
      %v1856 = vunpack.c.l.b16 %v1815
      %v1857 = vunpack.c.h.b16 %v1815
      %v1858 = vunpack.c.l.b16 %v1816
      %v1859 = vunpack.c.h.b16 %v1816
      %v1860 = vunpack.c.l.b16 %v1817
      %v1861 = vunpack.c.h.b16 %v1817
      %v1862 = vunpack.c.l.b16 %v1818
      %v1863 = vunpack.c.h.b16 %v1818
      %v1864 = vunpack.c.l.b16 %v1819
      %v1865 = vunpack.c.h.b16 %v1819
      %v1866 = vunpack.c.l.b16 %v1820
      %v1867 = vunpack.c.h.b16 %v1820
      %v1868 = vunpack.c.l.b16 %v1821
      %v1869 = vunpack.c.h.b16 %v1821
      %v1870 = vpack.c.b16 %v1838, %v1838
      %v1871 = vpack.c.b16 %v1839, %v1839
      %v1872 = vpack.c.b16 %v1840, %v1840
      %v1873 = vpack.c.b16 %v1841, %v1841
      %v1874 = vpack.c.b16 %v1842, %v1842
      %v1875 = vpack.c.b16 %v1843, %v1843
      %v1876 = vpack.c.b16 %v1844, %v1844
      %v1877 = vpack.c.b16 %v1845, %v1845
      %v1878 = vpack.c.b16 %v1846, %v1846
      %v1879 = vpack.c.b16 %v1847, %v1847
      %v1880 = vpack.c.b16 %v1848, %v1848
      %v1881 = vpack.c.b16 %v1849, %v1849
      %v1882 = vpack.c.b16 %v1850, %v1850
      %v1883 = vpack.c.b16 %v1851, %v1851
      %v1884 = vpack.c.b16 %v1852, %v1852
      %v1885 = vpack.c.b16 %v1853, %v1853
      %v1886 = vpack.c.b16 %v1854, %v1854
      %v1887 = vpack.c.b16 %v1855, %v1855
      %v1888 = vpack.c.b16 %v1856, %v1856
      %v1889 = vpack.c.b16 %v1857, %v1857
      %v1890 = vpack.c.b16 %v1858, %v1858
      %v1891 = vpack.c.b16 %v1859, %v1859
      %v1892 = vpack.c.b16 %v1860, %v1860
      %v1893 = vpack.c.b16 %v1861, %v1861
      %v1894 = vpack.c.b16 %v1862, %v1862
      %v1895 = vpack.c.b16 %v1863, %v1863
      %v1896 = vpack.c.b16 %v1864, %v1864
      %v1897 = vpack.c.b16 %v1865, %v1865
      %v1898 = vpack.c.b16 %v1866, %v1866
      %v1899 = vpack.c.b16 %v1867, %v1867
      %v1900 = vpack.c.b16 %v1868, %v1868
      %v1901 = vpack.c.b16 %v1869, %v1869
      %vm1934 = vcmask 27648
      %1935 = vst.msk [vmem:[%s273] sm:$0xf] %vm1934, %v1870
      %1936 = vst.msk [vmem:[%s273 + $0x4] sm:$0xf] %vm1934, %v1871
      %1937 = vst.msk [vmem:[%s273 + $0x8] sm:$0xf] %vm1934, %v1872
      %1938 = vst.msk [vmem:[%s273 + $0xc] sm:$0xf] %vm1934, %v1873
      %1939 = vst.msk [vmem:[%s273 + $0x10] sm:$0xf] %vm1934, %v1874
      %1940 = vst.msk [vmem:[%s273 + $0x14] sm:$0xf] %vm1934, %v1875
      %1941 = vst.msk [vmem:[%s273 + $0x18] sm:$0xf] %vm1934, %v1876
      %1942 = vst.msk [vmem:[%s273 + $0x1c] sm:$0xf] %vm1934, %v1877
      %1943 = vst.msk [vmem:[%s273 + $0x20] sm:$0xf] %vm1934, %v1878
      %1944 = vst.msk [vmem:[%s273 + $0x24] sm:$0xf] %vm1934, %v1879
      %1945 = vst.msk [vmem:[%s273 + $0x28] sm:$0xf] %vm1934, %v1880
      %1946 = vst.msk [vmem:[%s273 + $0x2c] sm:$0xf] %vm1934, %v1881
      %1947 = vst.msk [vmem:[%s273 + $0x30] sm:$0xf] %vm1934, %v1882
      %1948 = vst.msk [vmem:[%s273 + $0x34] sm:$0xf] %vm1934, %v1883
      %1949 = vst.msk [vmem:[%s273 + $0x38] sm:$0xf] %vm1934, %v1884
      %1950 = vst.msk [vmem:[%s273 + $0x3c] sm:$0xf] %vm1934, %v1885
      %1951 = vst.msk [vmem:[%s273 + $0x40] sm:$0xf] %vm1934, %v1886
      %1952 = vst.msk [vmem:[%s273 + $0x44] sm:$0xf] %vm1934, %v1887
      %1953 = vst.msk [vmem:[%s273 + $0x48] sm:$0xf] %vm1934, %v1888
      %1954 = vst.msk [vmem:[%s273 + $0x4c] sm:$0xf] %vm1934, %v1889
      %1955 = vst.msk [vmem:[%s273 + $0x50] sm:$0xf] %vm1934, %v1890
      %1956 = vst.msk [vmem:[%s273 + $0x54] sm:$0xf] %vm1934, %v1891
      %1957 = vst.msk [vmem:[%s273 + $0x58] sm:$0xf] %vm1934, %v1892
      %1958 = vst.msk [vmem:[%s273 + $0x5c] sm:$0xf] %vm1934, %v1893
      %1959 = vst.msk [vmem:[%s273 + $0x60] sm:$0xf] %vm1934, %v1894
      %1960 = vst.msk [vmem:[%s273 + $0x64] sm:$0xf] %vm1934, %v1895
      %1961 = vst.msk [vmem:[%s273 + $0x68] sm:$0xf] %vm1934, %v1896
      %1962 = vst.msk [vmem:[%s273 + $0x6c] sm:$0xf] %vm1934, %v1897
      %1963 = vst.msk [vmem:[%s273 + $0x70] sm:$0xf] %vm1934, %v1898
      %1964 = vst.msk [vmem:[%s273 + $0x74] sm:$0xf] %vm1934, %v1899
      %1965 = vst.msk [vmem:[%s273 + $0x78] sm:$0xf] %vm1934, %v1900
      %1966 = vst.msk [vmem:[%s273 + $0x7c] sm:$0xf] %vm1934, %v1901
      %v1967 = vld [vmem:[%s6] sm:$0x1]
      %v1968 = vsel %vm530, %v1774, 0.0
      %v1969 = vsel %vm530, %v1775, 0.0
      %v1970 = vadd.f32 %v1968, %v1969
      %v1971 = vsel %vm530, %v1776, 0.0
      %v1972 = vadd.f32 %v1970, %v1971
      %v1973 = vsel %vm530, %v1777, 0.0
      %v1974 = vadd.f32 %v1972, %v1973
      %v1975 = vsel %vm530, %v1778, 0.0
      %v1976 = vadd.f32 %v1974, %v1975
      %v1977 = vsel %vm530, %v1779, 0.0
      %v1978 = vadd.f32 %v1976, %v1977
      %v1979 = vsel %vm530, %v1780, 0.0
      %v1980 = vadd.f32 %v1978, %v1979
      %v1981 = vsel %vm530, %v1781, 0.0
      %v1982 = vadd.f32 %v1980, %v1981
      %v1983 = vsel %vm530, %v1782, 0.0
      %v1984 = vadd.f32 %v1982, %v1983
      %v1985 = vsel %vm530, %v1783, 0.0
      %v1986 = vadd.f32 %v1984, %v1985
      %v1987 = vsel %vm530, %v1784, 0.0
      %v1988 = vadd.f32 %v1986, %v1987
      %v1989 = vsel %vm530, %v1785, 0.0
      %v1990 = vadd.f32 %v1988, %v1989
      %v1991 = vsel %vm530, %v1786, 0.0
      %v1992 = vadd.f32 %v1990, %v1991
      %v1993 = vsel %vm530, %v1787, 0.0
      %v1994 = vadd.f32 %v1992, %v1993
      %v1995 = vsel %vm530, %v1788, 0.0
      %v1996 = vadd.f32 %v1994, %v1995
      %v1997 = vsel %vm530, %v1789, 0.0
      %v1998 = vadd.f32 %v1996, %v1997
      %v1999 = vsel %vm530, %v1790, 0.0
      %v2000 = vadd.f32 %v1998, %v1999
      %v2001 = vsel %vm530, %v1791, 0.0
      %v2002 = vadd.f32 %v2000, %v2001
      %v2003 = vsel %vm530, %v1792, 0.0
      %v2004 = vadd.f32 %v2002, %v2003
      %v2005 = vsel %vm530, %v1793, 0.0
      %v2006 = vadd.f32 %v2004, %v2005
      %v2007 = vsel %vm530, %v1794, 0.0
      %v2008 = vadd.f32 %v2006, %v2007
      %v2009 = vsel %vm530, %v1795, 0.0
      %v2010 = vadd.f32 %v2008, %v2009
      %v2011 = vsel %vm530, %v1796, 0.0
      %v2012 = vadd.f32 %v2010, %v2011
      %v2013 = vsel %vm530, %v1797, 0.0
      %v2014 = vadd.f32 %v2012, %v2013
      %v2015 = vsel %vm530, %v1798, 0.0
      %v2016 = vadd.f32 %v2014, %v2015
      %v2017 = vsel %vm530, %v1799, 0.0
      %v2018 = vadd.f32 %v2016, %v2017
      %v2019 = vsel %vm530, %v1800, 0.0
      %v2020 = vadd.f32 %v2018, %v2019
      %v2021 = vsel %vm530, %v1801, 0.0
      %v2022 = vadd.f32 %v2020, %v2021
      %v2023 = vsel %vm530, %v1802, 0.0
      %v2024 = vadd.f32 %v2022, %v2023
      %v2025 = vsel %vm530, %v1803, 0.0
      %v2026 = vadd.f32 %v2024, %v2025
      %v2027 = vsel %vm530, %v1804, 0.0
      %v2028 = vadd.f32 %v2026, %v2027
      %v2029 = vsel %vm530, %v1805, 0.0
      %v2030 = vadd.f32 %v2028, %v2029
      %v2031 = vrot.slane %v2030, 4
      %v2032 = vadd.f32 %v2030, %v2031
      %v2033 = vrot.slane %v2032, 2
      %v2034 = vadd.f32 %v2032, %v2033
      %v2035 = vrot.slane %v2034, 1
      %v2036 = vadd.f32 %v2034, %v2035
      %v2037 = vadd.f32 %v1967, %v2036
      %vm2038 = vcmask 24576
      %2039 = vst.msk [vmem:[%s6] sm:$0x1] %vm2038, %v2037
      %v2040 = vld [vmem:[%s7] sm:$0x1]
      %v2041 = vmul.f32 %v1774, %v1774
      %v2042 = vmul.f32 %v1775, %v1775
      %v2043 = vmul.f32 %v1776, %v1776
      %v2044 = vmul.f32 %v1777, %v1777
      %v2045 = vmul.f32 %v1778, %v1778
      %v2046 = vmul.f32 %v1779, %v1779
      %v2047 = vmul.f32 %v1780, %v1780
      %v2048 = vmul.f32 %v1781, %v1781
      %v2049 = vmul.f32 %v1782, %v1782
      %v2050 = vmul.f32 %v1783, %v1783
      %v2051 = vmul.f32 %v1784, %v1784
      %v2052 = vmul.f32 %v1785, %v1785
      %v2053 = vmul.f32 %v1786, %v1786
      %v2054 = vmul.f32 %v1787, %v1787
      %v2055 = vmul.f32 %v1788, %v1788
      %v2056 = vmul.f32 %v1789, %v1789
      %v2057 = vmul.f32 %v1790, %v1790
      %v2058 = vmul.f32 %v1791, %v1791
      %v2059 = vmul.f32 %v1792, %v1792
      %v2060 = vmul.f32 %v1793, %v1793
      %v2061 = vmul.f32 %v1794, %v1794
      %v2062 = vmul.f32 %v1795, %v1795
      %v2063 = vmul.f32 %v1796, %v1796
      %v2064 = vmul.f32 %v1797, %v1797
      %v2065 = vmul.f32 %v1798, %v1798
      %v2066 = vmul.f32 %v1799, %v1799
      %v2067 = vmul.f32 %v1800, %v1800
      %v2068 = vmul.f32 %v1801, %v1801
      %v2069 = vmul.f32 %v1802, %v1802
      %v2070 = vmul.f32 %v1803, %v1803
      %v2071 = vmul.f32 %v1804, %v1804
      %v2072 = vmul.f32 %v1805, %v1805
      %v2073 = vsel %vm530, %v2041, 0.0
      %v2074 = vsel %vm530, %v2042, 0.0
      %v2075 = vadd.f32 %v2073, %v2074
      %v2076 = vsel %vm530, %v2043, 0.0
      %v2077 = vadd.f32 %v2075, %v2076
      %v2078 = vsel %vm530, %v2044, 0.0
      %v2079 = vadd.f32 %v2077, %v2078
      %v2080 = vsel %vm530, %v2045, 0.0
      %v2081 = vadd.f32 %v2079, %v2080
      %v2082 = vsel %vm530, %v2046, 0.0
      %v2083 = vadd.f32 %v2081, %v2082
      %v2084 = vsel %vm530, %v2047, 0.0
      %v2085 = vadd.f32 %v2083, %v2084
      %v2086 = vsel %vm530, %v2048, 0.0
      %v2087 = vadd.f32 %v2085, %v2086
      %v2088 = vsel %vm530, %v2049, 0.0
      %v2089 = vadd.f32 %v2087, %v2088
      %v2090 = vsel %vm530, %v2050, 0.0
      %v2091 = vadd.f32 %v2089, %v2090
      %v2092 = vsel %vm530, %v2051, 0.0
      %v2093 = vadd.f32 %v2091, %v2092
      %v2094 = vsel %vm530, %v2052, 0.0
      %v2095 = vadd.f32 %v2093, %v2094
      %v2096 = vsel %vm530, %v2053, 0.0
      %v2097 = vadd.f32 %v2095, %v2096
      %v2098 = vsel %vm530, %v2054, 0.0
      %v2099 = vadd.f32 %v2097, %v2098
      %v2100 = vsel %vm530, %v2055, 0.0
      %v2101 = vadd.f32 %v2099, %v2100
      %v2102 = vsel %vm530, %v2056, 0.0
      %v2103 = vadd.f32 %v2101, %v2102
      %v2104 = vsel %vm530, %v2057, 0.0
      %v2105 = vadd.f32 %v2103, %v2104
      %v2106 = vsel %vm530, %v2058, 0.0
      %v2107 = vadd.f32 %v2105, %v2106
      %v2108 = vsel %vm530, %v2059, 0.0
      %v2109 = vadd.f32 %v2107, %v2108
      %v2110 = vsel %vm530, %v2060, 0.0
      %v2111 = vadd.f32 %v2109, %v2110
      %v2112 = vsel %vm530, %v2061, 0.0
      %v2113 = vadd.f32 %v2111, %v2112
      %v2114 = vsel %vm530, %v2062, 0.0
      %v2115 = vadd.f32 %v2113, %v2114
      %v2116 = vsel %vm530, %v2063, 0.0
      %v2117 = vadd.f32 %v2115, %v2116
      %v2118 = vsel %vm530, %v2064, 0.0
      %v2119 = vadd.f32 %v2117, %v2118
      %v2120 = vsel %vm530, %v2065, 0.0
      %v2121 = vadd.f32 %v2119, %v2120
      %v2122 = vsel %vm530, %v2066, 0.0
      %v2123 = vadd.f32 %v2121, %v2122
      %v2124 = vsel %vm530, %v2067, 0.0
      %v2125 = vadd.f32 %v2123, %v2124
      %v2126 = vsel %vm530, %v2068, 0.0
      %v2127 = vadd.f32 %v2125, %v2126
      %v2128 = vsel %vm530, %v2069, 0.0
      %v2129 = vadd.f32 %v2127, %v2128
      %v2130 = vsel %vm530, %v2070, 0.0
      %v2131 = vadd.f32 %v2129, %v2130
      %v2132 = vsel %vm530, %v2071, 0.0
      %v2133 = vadd.f32 %v2131, %v2132
      %v2134 = vsel %vm530, %v2072, 0.0
      %v2135 = vadd.f32 %v2133, %v2134
      %v2136 = vrot.slane %v2135, 4
      %v2137 = vadd.f32 %v2135, %v2136
      %v2138 = vrot.slane %v2137, 2
      %v2139 = vadd.f32 %v2137, %v2138
      %v2140 = vrot.slane %v2139, 1
      %v2141 = vadd.f32 %v2139, %v2140
      %v2142 = vadd.f32 %v2040, %v2141
      %2143 = vst.msk [vmem:[%s7] sm:$0x1] %vm2038, %v2142
      %v2144 = vld [vmem:[%s689] sm:$0xff]
      %v2145 = vld [vmem:[%s689 + $0x8] sm:$0xff]
      %v2146 = vld [vmem:[%s689 + $0x10] sm:$0xff]
      %v2147 = vld [vmem:[%s689 + $0x18] sm:$0xff]
      %v2148 = vld [vmem:[%s689 + $0x20] sm:$0xff]
      %v2149 = vld [vmem:[%s689 + $0x28] sm:$0xff]
      %v2150 = vld [vmem:[%s689 + $0x30] sm:$0xff]
      %v2151 = vld [vmem:[%s689 + $0x38] sm:$0xff]
      %v2152 = vld [vmem:[%s689 + $0x40] sm:$0xff]
      %v2153 = vld [vmem:[%s689 + $0x48] sm:$0xff]
      %v2154 = vld [vmem:[%s689 + $0x50] sm:$0xff]
      %v2155 = vld [vmem:[%s689 + $0x58] sm:$0xff]
      %v2156 = vld [vmem:[%s689 + $0x60] sm:$0xff]
      %v2157 = vld [vmem:[%s689 + $0x68] sm:$0xff]
      %v2158 = vld [vmem:[%s689 + $0x70] sm:$0xff]
      %v2159 = vld [vmem:[%s689 + $0x78] sm:$0xff]
      %s2160 = scalar_lea.vmem %s3, 8
      %v2161 = vld [vmem:[%s2160] sm:$0x3]
      %v2162 = vld [vmem:[%s762] sm:$0xff]
      %v2163 = vld [vmem:[%s762 + $0x8] sm:$0xff]
      %v2164 = vld [vmem:[%s762 + $0x10] sm:$0xff]
      %v2165 = vld [vmem:[%s762 + $0x18] sm:$0xff]
      %v2166 = vld [vmem:[%s762 + $0x20] sm:$0xff]
      %v2167 = vld [vmem:[%s762 + $0x28] sm:$0xff]
      %v2168 = vld [vmem:[%s762 + $0x30] sm:$0xff]
      %v2169 = vld [vmem:[%s762 + $0x38] sm:$0xff]
      %v2170 = vld [vmem:[%s762 + $0x40] sm:$0xff]
      %v2171 = vld [vmem:[%s762 + $0x48] sm:$0xff]
      %v2172 = vld [vmem:[%s762 + $0x50] sm:$0xff]
      %v2173 = vld [vmem:[%s762 + $0x58] sm:$0xff]
      %v2174 = vld [vmem:[%s762 + $0x60] sm:$0xff]
      %v2175 = vld [vmem:[%s762 + $0x68] sm:$0xff]
      %v2176 = vld [vmem:[%s762 + $0x70] sm:$0xff]
      %v2177 = vld [vmem:[%s762 + $0x78] sm:$0xff]
      %s2178 = scalar_lea.vmem %s3, 10
      %v2179 = vld [vmem:[%s2178] sm:$0x3]
      %v2181 = vsel %vm530, %v2162, 0
      %v2184 = vsel %vm530, %v2163, 0
      %v2187 = vsel %vm530, %v2164, 0
      %v2190 = vsel %vm530, %v2165, 0
      %v2193 = vsel %vm530, %v2166, 0
      %v2196 = vsel %vm530, %v2167, 0
      %v2199 = vsel %vm530, %v2168, 0
      %v2202 = vsel %vm530, %v2169, 0
      %v2205 = vsel %vm530, %v2170, 0
      %v2208 = vsel %vm530, %v2171, 0
      %v2211 = vsel %vm530, %v2172, 0
      %v2214 = vsel %vm530, %v2173, 0
      %v2217 = vsel %vm530, %v2174, 0
      %v2220 = vsel %vm530, %v2175, 0
      %v2223 = vsel %vm530, %v2176, 0
      %v2226 = vsel %vm530, %v2177, 0
      %v2229 = vsel %vm865, %v2179, 0
      %2231 = vmatprep.subr.bf16.mxu0 0
      %2232 = vmatpush1.bf16.msra.mxu0 %v2229
      %2233 = vmatprep.subr.bf16.mxu0 0
      %2234 = vmatpush1.bf16.msra.mxu0 0
      %2235 = vmatprep.subr.bf16.mxu0 0
      %2236 = vmatpush1.bf16.msra.mxu0 0
      %2237 = vmatprep.subr.bf16.mxu0 0
      %2238 = vmatpush1.bf16.msra.mxu0 0
      %2239 = vmatprep.subr.bf16.mxu0 0
      %2240 = vmatpush1.bf16.msra.mxu0 0
      %2241 = vmatprep.subr.bf16.mxu0 0
      %2242 = vmatpush1.bf16.msra.mxu0 0
      %2243 = vmatprep.subr.bf16.mxu0 0
      %2244 = vmatpush1.bf16.msra.mxu0 0
      %2245 = vmatprep.subr.bf16.mxu0 0
      %2246 = vmatpush1.bf16.msra.mxu0 0
      %2247 = vmatprep.subr.bf16.mxu0 0
      %2248 = vmatpush1.bf16.msra.mxu0 0
      %2249 = vmatprep.subr.bf16.mxu0 0
      %2250 = vmatpush1.bf16.msra.mxu0 0
      %2251 = vmatprep.subr.bf16.mxu0 0
      %2252 = vmatpush1.bf16.msra.mxu0 0
      %2253 = vmatprep.subr.bf16.mxu0 0
      %2254 = vmatpush1.bf16.msra.mxu0 0
      %2255 = vmatprep.subr.bf16.mxu0 0
      %2256 = vmatpush1.bf16.msra.mxu0 0
      %2257 = vmatprep.subr.bf16.mxu0 0
      %2258 = vmatpush1.bf16.msra.mxu0 0
      %2259 = vmatprep.subr.bf16.mxu0 0
      %2260 = vmatpush1.bf16.msra.mxu0 0
      %2261 = vmatprep.subr.bf16.mxu0 0
      %2262 = vmatpush1.bf16.msra.mxu0 0
      %2263 = vmatprep.mubr.bf16.mxu0 0
      %2264 = vmatmul.mubr.bf16.gmra.mrb[0].mxu0 %v2181
      %v2265 = vpop.f32.mrb[0].mxu0
      %v2266 = vadd.f32 0.0, %v2265
      %v2267 = vpop.f32.mrb[0].mxu0
      %v2268 = vpop.f32.mrb[0].mxu0
      %v2269 = vadd.f32 0.0, %v2268
      %v2270 = vpop.f32.mrb[0].mxu0
      %2271 = vmatprep.mubr.bf16.mxu0 0
      %2272 = vmatmul.mubr.bf16.gmra.mrb[0].mxu0 %v2184
      %v2273 = vpop.f32.mrb[0].mxu0
      %v2274 = vadd.f32 0.0, %v2273
      %v2275 = vpop.f32.mrb[0].mxu0
      %v2276 = vpop.f32.mrb[0].mxu0
      %v2277 = vadd.f32 0.0, %v2276
      %v2278 = vpop.f32.mrb[0].mxu0
      %2279 = vmatprep.mubr.bf16.mxu0 0
      %2280 = vmatmul.mubr.bf16.gmra.mrb[0].mxu0 %v2187
      %v2281 = vpop.f32.mrb[0].mxu0
      %v2282 = vadd.f32 0.0, %v2281
      %v2283 = vpop.f32.mrb[0].mxu0
      %v2284 = vpop.f32.mrb[0].mxu0
      %v2285 = vadd.f32 0.0, %v2284
      %v2286 = vpop.f32.mrb[0].mxu0
      %2287 = vmatprep.mubr.bf16.mxu0 0
      %2288 = vmatmul.mubr.bf16.gmra.mrb[0].mxu0 %v2190
      %v2289 = vpop.f32.mrb[0].mxu0
      %v2290 = vadd.f32 0.0, %v2289
      %v2291 = vpop.f32.mrb[0].mxu0
      %v2292 = vpop.f32.mrb[0].mxu0
      %v2293 = vadd.f32 0.0, %v2292
      %v2294 = vpop.f32.mrb[0].mxu0
      %2295 = vmatprep.mubr.bf16.mxu0 0
      %2296 = vmatmul.mubr.bf16.gmra.mrb[0].mxu0 %v2193
      %v2297 = vpop.f32.mrb[0].mxu0
      %v2298 = vadd.f32 0.0, %v2297
      %v2299 = vpop.f32.mrb[0].mxu0
      %v2300 = vpop.f32.mrb[0].mxu0
      %v2301 = vadd.f32 0.0, %v2300
      %v2302 = vpop.f32.mrb[0].mxu0
      %2303 = vmatprep.mubr.bf16.mxu0 0
      %2304 = vmatmul.mubr.bf16.gmra.mrb[0].mxu0 %v2196
      %v2305 = vpop.f32.mrb[0].mxu0
      %v2306 = vadd.f32 0.0, %v2305
      %v2307 = vpop.f32.mrb[0].mxu0
      %v2308 = vpop.f32.mrb[0].mxu0
      %v2309 = vadd.f32 0.0, %v2308
      %v2310 = vpop.f32.mrb[0].mxu0
      %2311 = vmatprep.mubr.bf16.mxu0 0
      %2312 = vmatmul.mubr.bf16.gmra.mrb[0].mxu0 %v2199
      %v2313 = vpop.f32.mrb[0].mxu0
      %v2314 = vadd.f32 0.0, %v2313
      %v2315 = vpop.f32.mrb[0].mxu0
      %v2316 = vpop.f32.mrb[0].mxu0
      %v2317 = vadd.f32 0.0, %v2316
      %v2318 = vpop.f32.mrb[0].mxu0
      %2319 = vmatprep.mubr.bf16.mxu0 0
      %2320 = vmatmul.mubr.bf16.gmra.mrb[0].mxu0 %v2202
      %v2321 = vpop.f32.mrb[0].mxu0
      %v2322 = vadd.f32 0.0, %v2321
      %v2323 = vpop.f32.mrb[0].mxu0
      %v2324 = vpop.f32.mrb[0].mxu0
      %v2325 = vadd.f32 0.0, %v2324
      %v2326 = vpop.f32.mrb[0].mxu0
      %2327 = vmatprep.mubr.bf16.mxu0 0
      %2328 = vmatmul.mubr.bf16.gmra.mrb[0].mxu0 %v2205
      %v2329 = vpop.f32.mrb[0].mxu0
      %v2330 = vadd.f32 0.0, %v2329
      %v2331 = vpop.f32.mrb[0].mxu0
      %v2332 = vpop.f32.mrb[0].mxu0
      %v2333 = vadd.f32 0.0, %v2332
      %v2334 = vpop.f32.mrb[0].mxu0
      %2335 = vmatprep.mubr.bf16.mxu0 0
      %2336 = vmatmul.mubr.bf16.gmra.mrb[0].mxu0 %v2208
      %v2337 = vpop.f32.mrb[0].mxu0
      %v2338 = vadd.f32 0.0, %v2337
      %v2339 = vpop.f32.mrb[0].mxu0
      %v2340 = vpop.f32.mrb[0].mxu0
      %v2341 = vadd.f32 0.0, %v2340
      %v2342 = vpop.f32.mrb[0].mxu0
      %2343 = vmatprep.mubr.bf16.mxu0 0
      %2344 = vmatmul.mubr.bf16.gmra.mrb[0].mxu0 %v2211
      %v2345 = vpop.f32.mrb[0].mxu0
      %v2346 = vadd.f32 0.0, %v2345
      %v2347 = vpop.f32.mrb[0].mxu0
      %v2348 = vpop.f32.mrb[0].mxu0
      %v2349 = vadd.f32 0.0, %v2348
      %v2350 = vpop.f32.mrb[0].mxu0
      %2351 = vmatprep.mubr.bf16.mxu0 0
      %2352 = vmatmul.mubr.bf16.gmra.mrb[0].mxu0 %v2214
      %v2353 = vpop.f32.mrb[0].mxu0
      %v2354 = vadd.f32 0.0, %v2353
      %v2355 = vpop.f32.mrb[0].mxu0
      %v2356 = vpop.f32.mrb[0].mxu0
      %v2357 = vadd.f32 0.0, %v2356
      %v2358 = vpop.f32.mrb[0].mxu0
      %2359 = vmatprep.mubr.bf16.mxu0 0
      %2360 = vmatmul.mubr.bf16.gmra.mrb[0].mxu0 %v2217
      %v2361 = vpop.f32.mrb[0].mxu0
      %v2362 = vadd.f32 0.0, %v2361
      %v2363 = vpop.f32.mrb[0].mxu0
      %v2364 = vpop.f32.mrb[0].mxu0
      %v2365 = vadd.f32 0.0, %v2364
      %v2366 = vpop.f32.mrb[0].mxu0
      %2367 = vmatprep.mubr.bf16.mxu0 0
      %2368 = vmatmul.mubr.bf16.gmra.mrb[0].mxu0 %v2220
      %v2369 = vpop.f32.mrb[0].mxu0
      %v2370 = vadd.f32 0.0, %v2369
      %v2371 = vpop.f32.mrb[0].mxu0
      %v2372 = vpop.f32.mrb[0].mxu0
      %v2373 = vadd.f32 0.0, %v2372
      %v2374 = vpop.f32.mrb[0].mxu0
      %2375 = vmatprep.mubr.bf16.mxu0 0
      %2376 = vmatmul.mubr.bf16.gmra.mrb[0].mxu0 %v2223
      %v2377 = vpop.f32.mrb[0].mxu0
      %v2378 = vadd.f32 0.0, %v2377
      %v2379 = vpop.f32.mrb[0].mxu0
      %v2380 = vpop.f32.mrb[0].mxu0
      %v2381 = vadd.f32 0.0, %v2380
      %v2382 = vpop.f32.mrb[0].mxu0
      %2383 = vmatprep.mubr.bf16.mxu0 0
      %2384 = vmatmul.mubr.bf16.gmra.mrb[0].mxu0 %v2226
      %v2385 = vpop.f32.mrb[0].mxu0
      %v2386 = vadd.f32 0.0, %v2385
      %v2387 = vpop.f32.mrb[0].mxu0
      %v2388 = vpop.f32.mrb[0].mxu0
      %v2389 = vadd.f32 0.0, %v2388
      %v2390 = vpop.f32.mrb[0].mxu0
      %2391 = vdwg.mxu0
      %v2393 = vsel %vm530, %v2144, 0
      %v2396 = vsel %vm530, %v2145, 0
      %v2399 = vsel %vm530, %v2146, 0
      %v2402 = vsel %vm530, %v2147, 0
      %v2405 = vsel %vm530, %v2148, 0
      %v2408 = vsel %vm530, %v2149, 0
      %v2411 = vsel %vm530, %v2150, 0
      %v2414 = vsel %vm530, %v2151, 0
      %v2417 = vsel %vm530, %v2152, 0
      %v2420 = vsel %vm530, %v2153, 0
      %v2423 = vsel %vm530, %v2154, 0
      %v2426 = vsel %vm530, %v2155, 0
      %v2429 = vsel %vm530, %v2156, 0
      %v2432 = vsel %vm530, %v2157, 0
      %v2435 = vsel %vm530, %v2158, 0
      %v2438 = vsel %vm530, %v2159, 0
      %v2441 = vsel %vm865, %v2161, 0
      %2443 = vmatprep.subr.bf16.mxu0 0
      %2444 = vmatpush1.bf16.msra.mxu0 %v2441
      %2445 = vmatprep.subr.bf16.mxu0 0
      %2446 = vmatpush1.bf16.msra.mxu0 0
      %2447 = vmatprep.subr.bf16.mxu0 0
      %2448 = vmatpush1.bf16.msra.mxu0 0
      %2449 = vmatprep.subr.bf16.mxu0 0
      %2450 = vmatpush1.bf16.msra.mxu0 0
      %2451 = vmatprep.subr.bf16.mxu0 0
      %2452 = vmatpush1.bf16.msra.mxu0 0
      %2453 = vmatprep.subr.bf16.mxu0 0
      %2454 = vmatpush1.bf16.msra.mxu0 0
      %2455 = vmatprep.subr.bf16.mxu0 0
      %2456 = vmatpush1.bf16.msra.mxu0 0
      %2457 = vmatprep.subr.bf16.mxu0 0
      %2458 = vmatpush1.bf16.msra.mxu0 0
      %2459 = vmatprep.subr.bf16.mxu0 0
      %2460 = vmatpush1.bf16.msra.mxu0 0
      %2461 = vmatprep.subr.bf16.mxu0 0
      %2462 = vmatpush1.bf16.msra.mxu0 0
      %2463 = vmatprep.subr.bf16.mxu0 0
      %2464 = vmatpush1.bf16.msra.mxu0 0
      %2465 = vmatprep.subr.bf16.mxu0 0
      %2466 = vmatpush1.bf16.msra.mxu0 0
      %2467 = vmatprep.subr.bf16.mxu0 0
      %2468 = vmatpush1.bf16.msra.mxu0 0
      %2469 = vmatprep.subr.bf16.mxu0 0
      %2470 = vmatpush1.bf16.msra.mxu0 0
      %2471 = vmatprep.subr.bf16.mxu0 0
      %2472 = vmatpush1.bf16.msra.mxu0 0
      %2473 = vmatprep.subr.bf16.mxu0 0
      %2474 = vmatpush1.bf16.msra.mxu0 0
      %2475 = vmatprep.mubr.bf16.mxu0 0
      %2476 = vmatmul.mubr.bf16.gmra.mrb[0].mxu0 %v2393
      %v2477 = vpop.f32.mrb[0].mxu0
      %v2478 = vadd.f32 %v2266, %v2477
      %v2479 = vpop.f32.mrb[0].mxu0
      %v2480 = vpop.f32.mrb[0].mxu0
      %v2481 = vadd.f32 %v2269, %v2480
      %v2482 = vpop.f32.mrb[0].mxu0
      %2483 = vmatprep.mubr.bf16.mxu0 0
      %2484 = vmatmul.mubr.bf16.gmra.mrb[0].mxu0 %v2396
      %v2485 = vpop.f32.mrb[0].mxu0
      %v2486 = vadd.f32 %v2274, %v2485
      %v2487 = vpop.f32.mrb[0].mxu0
      %v2488 = vpop.f32.mrb[0].mxu0
      %v2489 = vadd.f32 %v2277, %v2488
      %v2490 = vpop.f32.mrb[0].mxu0
      %2491 = vmatprep.mubr.bf16.mxu0 0
      %2492 = vmatmul.mubr.bf16.gmra.mrb[0].mxu0 %v2399
      %v2493 = vpop.f32.mrb[0].mxu0
      %v2494 = vadd.f32 %v2282, %v2493
      %v2495 = vpop.f32.mrb[0].mxu0
      %v2496 = vpop.f32.mrb[0].mxu0
      %v2497 = vadd.f32 %v2285, %v2496
      %v2498 = vpop.f32.mrb[0].mxu0
      %2499 = vmatprep.mubr.bf16.mxu0 0
      %2500 = vmatmul.mubr.bf16.gmra.mrb[0].mxu0 %v2402
      %v2501 = vpop.f32.mrb[0].mxu0
      %v2502 = vadd.f32 %v2290, %v2501
      %v2503 = vpop.f32.mrb[0].mxu0
      %v2504 = vpop.f32.mrb[0].mxu0
      %v2505 = vadd.f32 %v2293, %v2504
      %v2506 = vpop.f32.mrb[0].mxu0
      %2507 = vmatprep.mubr.bf16.mxu0 0
      %2508 = vmatmul.mubr.bf16.gmra.mrb[0].mxu0 %v2405
      %v2509 = vpop.f32.mrb[0].mxu0
      %v2510 = vadd.f32 %v2298, %v2509
      %v2511 = vpop.f32.mrb[0].mxu0
      %v2512 = vpop.f32.mrb[0].mxu0
      %v2513 = vadd.f32 %v2301, %v2512
      %v2514 = vpop.f32.mrb[0].mxu0
      %2515 = vmatprep.mubr.bf16.mxu0 0
      %2516 = vmatmul.mubr.bf16.gmra.mrb[0].mxu0 %v2408
      %v2517 = vpop.f32.mrb[0].mxu0
      %v2518 = vadd.f32 %v2306, %v2517
      %v2519 = vpop.f32.mrb[0].mxu0
      %v2520 = vpop.f32.mrb[0].mxu0
      %v2521 = vadd.f32 %v2309, %v2520
      %v2522 = vpop.f32.mrb[0].mxu0
      %2523 = vmatprep.mubr.bf16.mxu0 0
      %2524 = vmatmul.mubr.bf16.gmra.mrb[0].mxu0 %v2411
      %v2525 = vpop.f32.mrb[0].mxu0
      %v2526 = vadd.f32 %v2314, %v2525
      %v2527 = vpop.f32.mrb[0].mxu0
      %v2528 = vpop.f32.mrb[0].mxu0
      %v2529 = vadd.f32 %v2317, %v2528
      %v2530 = vpop.f32.mrb[0].mxu0
      %2531 = vmatprep.mubr.bf16.mxu0 0
      %2532 = vmatmul.mubr.bf16.gmra.mrb[0].mxu0 %v2414
      %v2533 = vpop.f32.mrb[0].mxu0
      %v2534 = vadd.f32 %v2322, %v2533
      %v2535 = vpop.f32.mrb[0].mxu0
      %v2536 = vpop.f32.mrb[0].mxu0
      %v2537 = vadd.f32 %v2325, %v2536
      %v2538 = vpop.f32.mrb[0].mxu0
      %2539 = vmatprep.mubr.bf16.mxu0 0
      %2540 = vmatmul.mubr.bf16.gmra.mrb[0].mxu0 %v2417
      %v2541 = vpop.f32.mrb[0].mxu0
      %v2542 = vadd.f32 %v2330, %v2541
      %v2543 = vpop.f32.mrb[0].mxu0
      %v2544 = vpop.f32.mrb[0].mxu0
      %v2545 = vadd.f32 %v2333, %v2544
      %v2546 = vpop.f32.mrb[0].mxu0
      %2547 = vmatprep.mubr.bf16.mxu0 0
      %2548 = vmatmul.mubr.bf16.gmra.mrb[0].mxu0 %v2420
      %v2549 = vpop.f32.mrb[0].mxu0
      %v2550 = vadd.f32 %v2338, %v2549
      %v2551 = vpop.f32.mrb[0].mxu0
      %v2552 = vpop.f32.mrb[0].mxu0
      %v2553 = vadd.f32 %v2341, %v2552
      %v2554 = vpop.f32.mrb[0].mxu0
      %2555 = vmatprep.mubr.bf16.mxu0 0
      %2556 = vmatmul.mubr.bf16.gmra.mrb[0].mxu0 %v2423
      %v2557 = vpop.f32.mrb[0].mxu0
      %v2558 = vadd.f32 %v2346, %v2557
      %v2559 = vpop.f32.mrb[0].mxu0
      %v2560 = vpop.f32.mrb[0].mxu0
      %v2561 = vadd.f32 %v2349, %v2560
      %v2562 = vpop.f32.mrb[0].mxu0
      %2563 = vmatprep.mubr.bf16.mxu0 0
      %2564 = vmatmul.mubr.bf16.gmra.mrb[0].mxu0 %v2426
      %v2565 = vpop.f32.mrb[0].mxu0
      %v2566 = vadd.f32 %v2354, %v2565
      %v2567 = vpop.f32.mrb[0].mxu0
      %v2568 = vpop.f32.mrb[0].mxu0
      %v2569 = vadd.f32 %v2357, %v2568
      %v2570 = vpop.f32.mrb[0].mxu0
      %2571 = vmatprep.mubr.bf16.mxu0 0
      %2572 = vmatmul.mubr.bf16.gmra.mrb[0].mxu0 %v2429
      %v2573 = vpop.f32.mrb[0].mxu0
      %v2574 = vadd.f32 %v2362, %v2573
      %v2575 = vpop.f32.mrb[0].mxu0
      %v2576 = vpop.f32.mrb[0].mxu0
      %v2577 = vadd.f32 %v2365, %v2576
      %v2578 = vpop.f32.mrb[0].mxu0
      %2579 = vmatprep.mubr.bf16.mxu0 0
      %2580 = vmatmul.mubr.bf16.gmra.mrb[0].mxu0 %v2432
      %v2581 = vpop.f32.mrb[0].mxu0
      %v2582 = vadd.f32 %v2370, %v2581
      %v2583 = vpop.f32.mrb[0].mxu0
      %v2584 = vpop.f32.mrb[0].mxu0
      %v2585 = vadd.f32 %v2373, %v2584
      %v2586 = vpop.f32.mrb[0].mxu0
      %2587 = vmatprep.mubr.bf16.mxu0 0
      %2588 = vmatmul.mubr.bf16.gmra.mrb[0].mxu0 %v2435
      %v2589 = vpop.f32.mrb[0].mxu0
      %v2590 = vadd.f32 %v2378, %v2589
      %v2591 = vpop.f32.mrb[0].mxu0
      %v2592 = vpop.f32.mrb[0].mxu0
      %v2593 = vadd.f32 %v2381, %v2592
      %v2594 = vpop.f32.mrb[0].mxu0
      %2595 = vmatprep.mubr.bf16.mxu0 0
      %2596 = vmatmul.mubr.bf16.gmra.mrb[0].mxu0 %v2438
      %v2597 = vpop.f32.mrb[0].mxu0
      %v2598 = vadd.f32 %v2386, %v2597
      %v2599 = vpop.f32.mrb[0].mxu0
      %v2600 = vpop.f32.mrb[0].mxu0
      %v2601 = vadd.f32 %v2389, %v2600
      %v2602 = vpop.f32.mrb[0].mxu0
      %2603 = vdwg.mxu0
      %v2604 = vld [vmem:[%s1505] sm:$0xff]
      %v2605 = vld [vmem:[%s1505 + $0x8] sm:$0xff]
      %v2606 = vld [vmem:[%s1505 + $0x10] sm:$0xff]
      %v2607 = vld [vmem:[%s1505 + $0x18] sm:$0xff]
      %v2608 = vld [vmem:[%s1505 + $0x20] sm:$0xff]
      %v2609 = vld [vmem:[%s1505 + $0x28] sm:$0xff]
      %v2610 = vld [vmem:[%s1505 + $0x30] sm:$0xff]
      %v2611 = vld [vmem:[%s1505 + $0x38] sm:$0xff]
      %v2612 = vld [vmem:[%s1505 + $0x40] sm:$0xff]
      %v2613 = vld [vmem:[%s1505 + $0x48] sm:$0xff]
      %v2614 = vld [vmem:[%s1505 + $0x50] sm:$0xff]
      %v2615 = vld [vmem:[%s1505 + $0x58] sm:$0xff]
      %v2616 = vld [vmem:[%s1505 + $0x60] sm:$0xff]
      %v2617 = vld [vmem:[%s1505 + $0x68] sm:$0xff]
      %v2618 = vld [vmem:[%s1505 + $0x70] sm:$0xff]
      %v2619 = vld [vmem:[%s1505 + $0x78] sm:$0xff]
      %s2620 = scalar_lea.vmem %s3, 12
      %v2621 = vld [vmem:[%s2620] sm:$0x3]
      %v2623 = vsel %vm530, %v2604, 0
      %v2626 = vsel %vm530, %v2605, 0
      %v2629 = vsel %vm530, %v2606, 0
      %v2632 = vsel %vm530, %v2607, 0
      %v2635 = vsel %vm530, %v2608, 0
      %v2638 = vsel %vm530, %v2609, 0
      %v2641 = vsel %vm530, %v2610, 0
      %v2644 = vsel %vm530, %v2611, 0
      %v2647 = vsel %vm530, %v2612, 0
      %v2650 = vsel %vm530, %v2613, 0
      %v2653 = vsel %vm530, %v2614, 0
      %v2656 = vsel %vm530, %v2615, 0
      %v2659 = vsel %vm530, %v2616, 0
      %v2662 = vsel %vm530, %v2617, 0
      %v2665 = vsel %vm530, %v2618, 0
      %v2668 = vsel %vm530, %v2619, 0
      %v2671 = vsel %vm865, %v2621, 0
      %2673 = vmatprep.subr.bf16.mxu0 0
      %2674 = vmatpush1.bf16.msra.mxu0 %v2671
      %2675 = vmatprep.subr.bf16.mxu0 0
      %2676 = vmatpush1.bf16.msra.mxu0 0
      %2677 = vmatprep.subr.bf16.mxu0 0
      %2678 = vmatpush1.bf16.msra.mxu0 0
      %2679 = vmatprep.subr.bf16.mxu0 0
      %2680 = vmatpush1.bf16.msra.mxu0 0
      %2681 = vmatprep.subr.bf16.mxu0 0
      %2682 = vmatpush1.bf16.msra.mxu0 0
      %2683 = vmatprep.subr.bf16.mxu0 0
      %2684 = vmatpush1.bf16.msra.mxu0 0
      %2685 = vmatprep.subr.bf16.mxu0 0
      %2686 = vmatpush1.bf16.msra.mxu0 0
      %2687 = vmatprep.subr.bf16.mxu0 0
      %2688 = vmatpush1.bf16.msra.mxu0 0
      %2689 = vmatprep.subr.bf16.mxu0 0
      %2690 = vmatpush1.bf16.msra.mxu0 0
      %2691 = vmatprep.subr.bf16.mxu0 0
      %2692 = vmatpush1.bf16.msra.mxu0 0
      %2693 = vmatprep.subr.bf16.mxu0 0
      %2694 = vmatpush1.bf16.msra.mxu0 0
      %2695 = vmatprep.subr.bf16.mxu0 0
      %2696 = vmatpush1.bf16.msra.mxu0 0
      %2697 = vmatprep.subr.bf16.mxu0 0
      %2698 = vmatpush1.bf16.msra.mxu0 0
      %2699 = vmatprep.subr.bf16.mxu0 0
      %2700 = vmatpush1.bf16.msra.mxu0 0
      %2701 = vmatprep.subr.bf16.mxu0 0
      %2702 = vmatpush1.bf16.msra.mxu0 0
      %2703 = vmatprep.subr.bf16.mxu0 0
      %2704 = vmatpush1.bf16.msra.mxu0 0
      %2705 = vmatprep.mubr.bf16.mxu0 0
      %2706 = vmatmul.mubr.bf16.gmra.mrb[0].mxu0 %v2623
      %v2707 = vpop.f32.mrb[0].mxu0
      %v2708 = vadd.f32 0.0, %v2707
      %v2709 = vpop.f32.mrb[0].mxu0
      %v2710 = vpop.f32.mrb[0].mxu0
      %v2711 = vadd.f32 0.0, %v2710
      %v2712 = vpop.f32.mrb[0].mxu0
      %2713 = vmatprep.mubr.bf16.mxu0 0
      %2714 = vmatmul.mubr.bf16.gmra.mrb[0].mxu0 %v2626
      %v2715 = vpop.f32.mrb[0].mxu0
      %v2716 = vadd.f32 0.0, %v2715
      %v2717 = vpop.f32.mrb[0].mxu0
      %v2718 = vpop.f32.mrb[0].mxu0
      %v2719 = vadd.f32 0.0, %v2718
      %v2720 = vpop.f32.mrb[0].mxu0
      %2721 = vmatprep.mubr.bf16.mxu0 0
      %2722 = vmatmul.mubr.bf16.gmra.mrb[0].mxu0 %v2629
      %v2723 = vpop.f32.mrb[0].mxu0
      %v2724 = vadd.f32 0.0, %v2723
      %v2725 = vpop.f32.mrb[0].mxu0
      %v2726 = vpop.f32.mrb[0].mxu0
      %v2727 = vadd.f32 0.0, %v2726
      %v2728 = vpop.f32.mrb[0].mxu0
      %2729 = vmatprep.mubr.bf16.mxu0 0
      %2730 = vmatmul.mubr.bf16.gmra.mrb[0].mxu0 %v2632
      %v2731 = vpop.f32.mrb[0].mxu0
      %v2732 = vadd.f32 0.0, %v2731
      %v2733 = vpop.f32.mrb[0].mxu0
      %v2734 = vpop.f32.mrb[0].mxu0
      %v2735 = vadd.f32 0.0, %v2734
      %v2736 = vpop.f32.mrb[0].mxu0
      %2737 = vmatprep.mubr.bf16.mxu0 0
      %2738 = vmatmul.mubr.bf16.gmra.mrb[0].mxu0 %v2635
      %v2739 = vpop.f32.mrb[0].mxu0
      %v2740 = vadd.f32 0.0, %v2739
      %v2741 = vpop.f32.mrb[0].mxu0
      %v2742 = vpop.f32.mrb[0].mxu0
      %v2743 = vadd.f32 0.0, %v2742
      %v2744 = vpop.f32.mrb[0].mxu0
      %2745 = vmatprep.mubr.bf16.mxu0 0
      %2746 = vmatmul.mubr.bf16.gmra.mrb[0].mxu0 %v2638
      %v2747 = vpop.f32.mrb[0].mxu0
      %v2748 = vadd.f32 0.0, %v2747
      %v2749 = vpop.f32.mrb[0].mxu0
      %v2750 = vpop.f32.mrb[0].mxu0
      %v2751 = vadd.f32 0.0, %v2750
      %v2752 = vpop.f32.mrb[0].mxu0
      %2753 = vmatprep.mubr.bf16.mxu0 0
      %2754 = vmatmul.mubr.bf16.gmra.mrb[0].mxu0 %v2641
      %v2755 = vpop.f32.mrb[0].mxu0
      %v2756 = vadd.f32 0.0, %v2755
      %v2757 = vpop.f32.mrb[0].mxu0
      %v2758 = vpop.f32.mrb[0].mxu0
      %v2759 = vadd.f32 0.0, %v2758
      %v2760 = vpop.f32.mrb[0].mxu0
      %2761 = vmatprep.mubr.bf16.mxu0 0
      %2762 = vmatmul.mubr.bf16.gmra.mrb[0].mxu0 %v2644
      %v2763 = vpop.f32.mrb[0].mxu0
      %v2764 = vadd.f32 0.0, %v2763
      %v2765 = vpop.f32.mrb[0].mxu0
      %v2766 = vpop.f32.mrb[0].mxu0
      %v2767 = vadd.f32 0.0, %v2766
      %v2768 = vpop.f32.mrb[0].mxu0
      %2769 = vmatprep.mubr.bf16.mxu0 0
      %2770 = vmatmul.mubr.bf16.gmra.mrb[0].mxu0 %v2647
      %v2771 = vpop.f32.mrb[0].mxu0
      %v2772 = vadd.f32 0.0, %v2771
      %v2773 = vpop.f32.mrb[0].mxu0
      %v2774 = vpop.f32.mrb[0].mxu0
      %v2775 = vadd.f32 0.0, %v2774
      %v2776 = vpop.f32.mrb[0].mxu0
      %2777 = vmatprep.mubr.bf16.mxu0 0
      %2778 = vmatmul.mubr.bf16.gmra.mrb[0].mxu0 %v2650
      %v2779 = vpop.f32.mrb[0].mxu0
      %v2780 = vadd.f32 0.0, %v2779
      %v2781 = vpop.f32.mrb[0].mxu0
      %v2782 = vpop.f32.mrb[0].mxu0
      %v2783 = vadd.f32 0.0, %v2782
      %v2784 = vpop.f32.mrb[0].mxu0
      %2785 = vmatprep.mubr.bf16.mxu0 0
      %2786 = vmatmul.mubr.bf16.gmra.mrb[0].mxu0 %v2653
      %v2787 = vpop.f32.mrb[0].mxu0
      %v2788 = vadd.f32 0.0, %v2787
      %v2789 = vpop.f32.mrb[0].mxu0
      %v2790 = vpop.f32.mrb[0].mxu0
      %v2791 = vadd.f32 0.0, %v2790
      %v2792 = vpop.f32.mrb[0].mxu0
      %2793 = vmatprep.mubr.bf16.mxu0 0
      %2794 = vmatmul.mubr.bf16.gmra.mrb[0].mxu0 %v2656
      %v2795 = vpop.f32.mrb[0].mxu0
      %v2796 = vadd.f32 0.0, %v2795
      %v2797 = vpop.f32.mrb[0].mxu0
      %v2798 = vpop.f32.mrb[0].mxu0
      %v2799 = vadd.f32 0.0, %v2798
      %v2800 = vpop.f32.mrb[0].mxu0
      %2801 = vmatprep.mubr.bf16.mxu0 0
      %2802 = vmatmul.mubr.bf16.gmra.mrb[0].mxu0 %v2659
      %v2803 = vpop.f32.mrb[0].mxu0
      %v2804 = vadd.f32 0.0, %v2803
      %v2805 = vpop.f32.mrb[0].mxu0
      %v2806 = vpop.f32.mrb[0].mxu0
      %v2807 = vadd.f32 0.0, %v2806
      %v2808 = vpop.f32.mrb[0].mxu0
      %2809 = vmatprep.mubr.bf16.mxu0 0
      %2810 = vmatmul.mubr.bf16.gmra.mrb[0].mxu0 %v2662
      %v2811 = vpop.f32.mrb[0].mxu0
      %v2812 = vadd.f32 0.0, %v2811
      %v2813 = vpop.f32.mrb[0].mxu0
      %v2814 = vpop.f32.mrb[0].mxu0
      %v2815 = vadd.f32 0.0, %v2814
      %v2816 = vpop.f32.mrb[0].mxu0
      %2817 = vmatprep.mubr.bf16.mxu0 0
      %2818 = vmatmul.mubr.bf16.gmra.mrb[0].mxu0 %v2665
      %v2819 = vpop.f32.mrb[0].mxu0
      %v2820 = vadd.f32 0.0, %v2819
      %v2821 = vpop.f32.mrb[0].mxu0
      %v2822 = vpop.f32.mrb[0].mxu0
      %v2823 = vadd.f32 0.0, %v2822
      %v2824 = vpop.f32.mrb[0].mxu0
      %2825 = vmatprep.mubr.bf16.mxu0 0
      %2826 = vmatmul.mubr.bf16.gmra.mrb[0].mxu0 %v2668
      %v2827 = vpop.f32.mrb[0].mxu0
      %v2828 = vadd.f32 0.0, %v2827
      %v2829 = vpop.f32.mrb[0].mxu0
      %v2830 = vpop.f32.mrb[0].mxu0
      %v2831 = vadd.f32 0.0, %v2830
      %v2832 = vpop.f32.mrb[0].mxu0
      %2833 = vdwg.mxu0
      %v2834 = vadd.f32 %v2478, %v2708
      %v2835 = vadd.f32 %v2481, %v2711
      %v2836 = vadd.f32 %v2486, %v2716
      %v2837 = vadd.f32 %v2489, %v2719
      %v2838 = vadd.f32 %v2494, %v2724
      %v2839 = vadd.f32 %v2497, %v2727
      %v2840 = vadd.f32 %v2502, %v2732
      %v2841 = vadd.f32 %v2505, %v2735
      %v2842 = vadd.f32 %v2510, %v2740
      %v2843 = vadd.f32 %v2513, %v2743
      %v2844 = vadd.f32 %v2518, %v2748
      %v2845 = vadd.f32 %v2521, %v2751
      %v2846 = vadd.f32 %v2526, %v2756
      %v2847 = vadd.f32 %v2529, %v2759
      %v2848 = vadd.f32 %v2534, %v2764
      %v2849 = vadd.f32 %v2537, %v2767
      %v2850 = vadd.f32 %v2542, %v2772
      %v2851 = vadd.f32 %v2545, %v2775
      %v2852 = vadd.f32 %v2550, %v2780
      %v2853 = vadd.f32 %v2553, %v2783
      %v2854 = vadd.f32 %v2558, %v2788
      %v2855 = vadd.f32 %v2561, %v2791
      %v2856 = vadd.f32 %v2566, %v2796
      %v2857 = vadd.f32 %v2569, %v2799
      %v2858 = vadd.f32 %v2574, %v2804
      %v2859 = vadd.f32 %v2577, %v2807
      %v2860 = vadd.f32 %v2582, %v2812
      %v2861 = vadd.f32 %v2585, %v2815
      %v2862 = vadd.f32 %v2590, %v2820
      %v2863 = vadd.f32 %v2593, %v2823
      %v2864 = vadd.f32 %v2598, %v2828
      %v2865 = vadd.f32 %v2601, %v2831
      %s2866 = scalar_lea.vmem [#allocation3], 296
      %v2867 = vld [vmem:[%s2866] sm:$0xff]
      %v2868 = vld [vmem:[%s2866 + $0x8] sm:$0xff]
      %v2869 = vld [vmem:[%s2866 + $0x10] sm:$0xff]
      %v2870 = vld [vmem:[%s2866 + $0x18] sm:$0xff]
      %v2871 = vld [vmem:[%s2866 + $0x20] sm:$0xff]
      %v2872 = vld [vmem:[%s2866 + $0x28] sm:$0xff]
      %v2873 = vld [vmem:[%s2866 + $0x30] sm:$0xff]
      %v2874 = vld [vmem:[%s2866 + $0x38] sm:$0xff]
      %v2875 = vld [vmem:[%s2866 + $0x40] sm:$0xff]
      %v2876 = vld [vmem:[%s2866 + $0x48] sm:$0xff]
      %v2877 = vld [vmem:[%s2866 + $0x50] sm:$0xff]
      %v2878 = vld [vmem:[%s2866 + $0x58] sm:$0xff]
      %v2879 = vld [vmem:[%s2866 + $0x60] sm:$0xff]
      %v2880 = vld [vmem:[%s2866 + $0x68] sm:$0xff]
      %v2881 = vld [vmem:[%s2866 + $0x70] sm:$0xff]
      %v2882 = vld [vmem:[%s2866 + $0x78] sm:$0xff]
      %s2883 = scalar_lea.vmem %s3, 14
      %v2884 = vld [vmem:[%s2883] sm:$0x3]
      %v2886 = vsel %vm530, %v2867, 0
      %v2889 = vsel %vm530, %v2868, 0
      %v2892 = vsel %vm530, %v2869, 0
      %v2895 = vsel %vm530, %v2870, 0
      %v2898 = vsel %vm530, %v2871, 0
      %v2901 = vsel %vm530, %v2872, 0
      %v2904 = vsel %vm530, %v2873, 0
      %v2907 = vsel %vm530, %v2874, 0
      %v2910 = vsel %vm530, %v2875, 0
      %v2913 = vsel %vm530, %v2876, 0
      %v2916 = vsel %vm530, %v2877, 0
      %v2919 = vsel %vm530, %v2878, 0
      %v2922 = vsel %vm530, %v2879, 0
      %v2925 = vsel %vm530, %v2880, 0
      %v2928 = vsel %vm530, %v2881, 0
      %v2931 = vsel %vm530, %v2882, 0
      %v2934 = vsel %vm865, %v2884, 0
      %2936 = vmatprep.subr.bf16.mxu0 0
      %2937 = vmatpush1.bf16.msra.mxu0 %v2934
      %2938 = vmatprep.subr.bf16.mxu0 0
      %2939 = vmatpush1.bf16.msra.mxu0 0
      %2940 = vmatprep.subr.bf16.mxu0 0
      %2941 = vmatpush1.bf16.msra.mxu0 0
      %2942 = vmatprep.subr.bf16.mxu0 0
      %2943 = vmatpush1.bf16.msra.mxu0 0
      %2944 = vmatprep.subr.bf16.mxu0 0
      %2945 = vmatpush1.bf16.msra.mxu0 0
      %2946 = vmatprep.subr.bf16.mxu0 0
      %2947 = vmatpush1.bf16.msra.mxu0 0
      %2948 = vmatprep.subr.bf16.mxu0 0
      %2949 = vmatpush1.bf16.msra.mxu0 0
      %2950 = vmatprep.subr.bf16.mxu0 0
      %2951 = vmatpush1.bf16.msra.mxu0 0
      %2952 = vmatprep.subr.bf16.mxu0 0
      %2953 = vmatpush1.bf16.msra.mxu0 0
      %2954 = vmatprep.subr.bf16.mxu0 0
      %2955 = vmatpush1.bf16.msra.mxu0 0
      %2956 = vmatprep.subr.bf16.mxu0 0
      %2957 = vmatpush1.bf16.msra.mxu0 0
      %2958 = vmatprep.subr.bf16.mxu0 0
      %2959 = vmatpush1.bf16.msra.mxu0 0
      %2960 = vmatprep.subr.bf16.mxu0 0
      %2961 = vmatpush1.bf16.msra.mxu0 0
      %2962 = vmatprep.subr.bf16.mxu0 0
      %2963 = vmatpush1.bf16.msra.mxu0 0
      %2964 = vmatprep.subr.bf16.mxu0 0
      %2965 = vmatpush1.bf16.msra.mxu0 0
      %2966 = vmatprep.subr.bf16.mxu0 0
      %2967 = vmatpush1.bf16.msra.mxu0 0
      %2968 = vmatprep.mubr.bf16.mxu0 0
      %2969 = vmatmul.mubr.bf16.gmra.mrb[0].mxu0 %v2886
      %v2970 = vpop.f32.mrb[0].mxu0
      %v2971 = vadd.f32 0.0, %v2970
      %v2972 = vpop.f32.mrb[0].mxu0
      %v2973 = vpop.f32.mrb[0].mxu0
      %v2974 = vadd.f32 0.0, %v2973
      %v2975 = vpop.f32.mrb[0].mxu0
      %2976 = vmatprep.mubr.bf16.mxu0 0
      %2977 = vmatmul.mubr.bf16.gmra.mrb[0].mxu0 %v2889
      %v2978 = vpop.f32.mrb[0].mxu0
      %v2979 = vadd.f32 0.0, %v2978
      %v2980 = vpop.f32.mrb[0].mxu0
      %v2981 = vpop.f32.mrb[0].mxu0
      %v2982 = vadd.f32 0.0, %v2981
      %v2983 = vpop.f32.mrb[0].mxu0
      %2984 = vmatprep.mubr.bf16.mxu0 0
      %2985 = vmatmul.mubr.bf16.gmra.mrb[0].mxu0 %v2892
      %v2986 = vpop.f32.mrb[0].mxu0
      %v2987 = vadd.f32 0.0, %v2986
      %v2988 = vpop.f32.mrb[0].mxu0
      %v2989 = vpop.f32.mrb[0].mxu0
      %v2990 = vadd.f32 0.0, %v2989
      %v2991 = vpop.f32.mrb[0].mxu0
      %2992 = vmatprep.mubr.bf16.mxu0 0
      %2993 = vmatmul.mubr.bf16.gmra.mrb[0].mxu0 %v2895
      %v2994 = vpop.f32.mrb[0].mxu0
      %v2995 = vadd.f32 0.0, %v2994
      %v2996 = vpop.f32.mrb[0].mxu0
      %v2997 = vpop.f32.mrb[0].mxu0
      %v2998 = vadd.f32 0.0, %v2997
      %v2999 = vpop.f32.mrb[0].mxu0
      %3000 = vmatprep.mubr.bf16.mxu0 0
      %3001 = vmatmul.mubr.bf16.gmra.mrb[0].mxu0 %v2898
      %v3002 = vpop.f32.mrb[0].mxu0
      %v3003 = vadd.f32 0.0, %v3002
      %v3004 = vpop.f32.mrb[0].mxu0
      %v3005 = vpop.f32.mrb[0].mxu0
      %v3006 = vadd.f32 0.0, %v3005
      %v3007 = vpop.f32.mrb[0].mxu0
      %3008 = vmatprep.mubr.bf16.mxu0 0
      %3009 = vmatmul.mubr.bf16.gmra.mrb[0].mxu0 %v2901
      %v3010 = vpop.f32.mrb[0].mxu0
      %v3011 = vadd.f32 0.0, %v3010
      %v3012 = vpop.f32.mrb[0].mxu0
      %v3013 = vpop.f32.mrb[0].mxu0
      %v3014 = vadd.f32 0.0, %v3013
      %v3015 = vpop.f32.mrb[0].mxu0
      %3016 = vmatprep.mubr.bf16.mxu0 0
      %3017 = vmatmul.mubr.bf16.gmra.mrb[0].mxu0 %v2904
      %v3018 = vpop.f32.mrb[0].mxu0
      %v3019 = vadd.f32 0.0, %v3018
      %v3020 = vpop.f32.mrb[0].mxu0
      %v3021 = vpop.f32.mrb[0].mxu0
      %v3022 = vadd.f32 0.0, %v3021
      %v3023 = vpop.f32.mrb[0].mxu0
      %3024 = vmatprep.mubr.bf16.mxu0 0
      %3025 = vmatmul.mubr.bf16.gmra.mrb[0].mxu0 %v2907
      %v3026 = vpop.f32.mrb[0].mxu0
      %v3027 = vadd.f32 0.0, %v3026
      %v3028 = vpop.f32.mrb[0].mxu0
      %v3029 = vpop.f32.mrb[0].mxu0
      %v3030 = vadd.f32 0.0, %v3029
      %v3031 = vpop.f32.mrb[0].mxu0
      %3032 = vmatprep.mubr.bf16.mxu0 0
      %3033 = vmatmul.mubr.bf16.gmra.mrb[0].mxu0 %v2910
      %v3034 = vpop.f32.mrb[0].mxu0
      %v3035 = vadd.f32 0.0, %v3034
      %v3036 = vpop.f32.mrb[0].mxu0
      %v3037 = vpop.f32.mrb[0].mxu0
      %v3038 = vadd.f32 0.0, %v3037
      %v3039 = vpop.f32.mrb[0].mxu0
      %3040 = vmatprep.mubr.bf16.mxu0 0
      %3041 = vmatmul.mubr.bf16.gmra.mrb[0].mxu0 %v2913
      %v3042 = vpop.f32.mrb[0].mxu0
      %v3043 = vadd.f32 0.0, %v3042
      %v3044 = vpop.f32.mrb[0].mxu0
      %v3045 = vpop.f32.mrb[0].mxu0
      %v3046 = vadd.f32 0.0, %v3045
      %v3047 = vpop.f32.mrb[0].mxu0
      %3048 = vmatprep.mubr.bf16.mxu0 0
      %3049 = vmatmul.mubr.bf16.gmra.mrb[0].mxu0 %v2916
      %v3050 = vpop.f32.mrb[0].mxu0
      %v3051 = vadd.f32 0.0, %v3050
      %v3052 = vpop.f32.mrb[0].mxu0
      %v3053 = vpop.f32.mrb[0].mxu0
      %v3054 = vadd.f32 0.0, %v3053
      %v3055 = vpop.f32.mrb[0].mxu0
      %3056 = vmatprep.mubr.bf16.mxu0 0
      %3057 = vmatmul.mubr.bf16.gmra.mrb[0].mxu0 %v2919
      %v3058 = vpop.f32.mrb[0].mxu0
      %v3059 = vadd.f32 0.0, %v3058
      %v3060 = vpop.f32.mrb[0].mxu0
      %v3061 = vpop.f32.mrb[0].mxu0
      %v3062 = vadd.f32 0.0, %v3061
      %v3063 = vpop.f32.mrb[0].mxu0
      %3064 = vmatprep.mubr.bf16.mxu0 0
      %3065 = vmatmul.mubr.bf16.gmra.mrb[0].mxu0 %v2922
      %v3066 = vpop.f32.mrb[0].mxu0
      %v3067 = vadd.f32 0.0, %v3066
      %v3068 = vpop.f32.mrb[0].mxu0
      %v3069 = vpop.f32.mrb[0].mxu0
      %v3070 = vadd.f32 0.0, %v3069
      %v3071 = vpop.f32.mrb[0].mxu0
      %3072 = vmatprep.mubr.bf16.mxu0 0
      %3073 = vmatmul.mubr.bf16.gmra.mrb[0].mxu0 %v2925
      %v3074 = vpop.f32.mrb[0].mxu0
      %v3075 = vadd.f32 0.0, %v3074
      %v3076 = vpop.f32.mrb[0].mxu0
      %v3077 = vpop.f32.mrb[0].mxu0
      %v3078 = vadd.f32 0.0, %v3077
      %v3079 = vpop.f32.mrb[0].mxu0
      %3080 = vmatprep.mubr.bf16.mxu0 0
      %3081 = vmatmul.mubr.bf16.gmra.mrb[0].mxu0 %v2928
      %v3082 = vpop.f32.mrb[0].mxu0
      %v3083 = vadd.f32 0.0, %v3082
      %v3084 = vpop.f32.mrb[0].mxu0
      %v3085 = vpop.f32.mrb[0].mxu0
      %v3086 = vadd.f32 0.0, %v3085
      %v3087 = vpop.f32.mrb[0].mxu0
      %3088 = vmatprep.mubr.bf16.mxu0 0
      %3089 = vmatmul.mubr.bf16.gmra.mrb[0].mxu0 %v2931
      %v3090 = vpop.f32.mrb[0].mxu0
      %v3091 = vadd.f32 0.0, %v3090
      %v3092 = vpop.f32.mrb[0].mxu0
      %v3093 = vpop.f32.mrb[0].mxu0
      %v3094 = vadd.f32 0.0, %v3093
      %v3095 = vpop.f32.mrb[0].mxu0
      %3096 = vdwg.mxu0
      %v3097 = vadd.f32 %v2834, %v2971
      %v3098 = vadd.f32 %v2835, %v2974
      %v3099 = vadd.f32 %v2836, %v2979
      %v3100 = vadd.f32 %v2837, %v2982
      %v3101 = vadd.f32 %v2838, %v2987
      %v3102 = vadd.f32 %v2839, %v2990
      %v3103 = vadd.f32 %v2840, %v2995
      %v3104 = vadd.f32 %v2841, %v2998
      %v3105 = vadd.f32 %v2842, %v3003
      %v3106 = vadd.f32 %v2843, %v3006
      %v3107 = vadd.f32 %v2844, %v3011
      %v3108 = vadd.f32 %v2845, %v3014
      %v3109 = vadd.f32 %v2846, %v3019
      %v3110 = vadd.f32 %v2847, %v3022
      %v3111 = vadd.f32 %v2848, %v3027
      %v3112 = vadd.f32 %v2849, %v3030
      %v3113 = vadd.f32 %v2850, %v3035
      %v3114 = vadd.f32 %v2851, %v3038
      %v3115 = vadd.f32 %v2852, %v3043
      %v3116 = vadd.f32 %v2853, %v3046
      %v3117 = vadd.f32 %v2854, %v3051
      %v3118 = vadd.f32 %v2855, %v3054
      %v3119 = vadd.f32 %v2856, %v3059
      %v3120 = vadd.f32 %v2857, %v3062
      %v3121 = vadd.f32 %v2858, %v3067
      %v3122 = vadd.f32 %v2859, %v3070
      %v3123 = vadd.f32 %v2860, %v3075
      %v3124 = vadd.f32 %v2861, %v3078
      %v3125 = vadd.f32 %v2862, %v3083
      %v3126 = vadd.f32 %v2863, %v3086
      %v3127 = vadd.f32 %v2864, %v3091
      %v3128 = vadd.f32 %v2865, %v3094
      %v3129 = vadd.f32 %v3097, %v1772
      %v3130 = vadd.f32 %v3098, %v1772
      %v3131 = vadd.f32 %v3099, %v1772
      %v3132 = vadd.f32 %v3100, %v1772
      %v3133 = vadd.f32 %v3101, %v1772
      %v3134 = vadd.f32 %v3102, %v1772
      %v3135 = vadd.f32 %v3103, %v1772
      %v3136 = vadd.f32 %v3104, %v1772
      %v3137 = vadd.f32 %v3105, %v1772
      %v3138 = vadd.f32 %v3106, %v1772
      %v3139 = vadd.f32 %v3107, %v1772
      %v3140 = vadd.f32 %v3108, %v1772
      %v3141 = vadd.f32 %v3109, %v1772
      %v3142 = vadd.f32 %v3110, %v1772
      %v3143 = vadd.f32 %v3111, %v1772
      %v3144 = vadd.f32 %v3112, %v1772
      %v3145 = vadd.f32 %v3113, %v1772
      %v3146 = vadd.f32 %v3114, %v1772
      %v3147 = vadd.f32 %v3115, %v1772
      %v3148 = vadd.f32 %v3116, %v1772
      %v3149 = vadd.f32 %v3117, %v1772
      %v3150 = vadd.f32 %v3118, %v1772
      %v3151 = vadd.f32 %v3119, %v1772
      %v3152 = vadd.f32 %v3120, %v1772
      %v3153 = vadd.f32 %v3121, %v1772
      %v3154 = vadd.f32 %v3122, %v1772
      %v3155 = vadd.f32 %v3123, %v1772
      %v3156 = vadd.f32 %v3124, %v1772
      %v3157 = vadd.f32 %v3125, %v1772
      %v3158 = vadd.f32 %v3126, %v1772
      %v3159 = vadd.f32 %v3127, %v1772
      %v3160 = vadd.f32 %v3128, %v1772
      %v3161 = vpack.c.bf16 %v3130, %v3129
      %v3162 = vpack.c.bf16 %v3132, %v3131
      %v3163 = vpack.c.bf16 %v3134, %v3133
      %v3164 = vpack.c.bf16 %v3136, %v3135
      %v3165 = vpack.c.bf16 %v3138, %v3137
      %v3166 = vpack.c.bf16 %v3140, %v3139
      %v3167 = vpack.c.bf16 %v3142, %v3141
      %v3168 = vpack.c.bf16 %v3144, %v3143
      %v3169 = vpack.c.bf16 %v3146, %v3145
      %v3170 = vpack.c.bf16 %v3148, %v3147
      %v3171 = vpack.c.bf16 %v3150, %v3149
      %v3172 = vpack.c.bf16 %v3152, %v3151
      %v3173 = vpack.c.bf16 %v3154, %v3153
      %v3174 = vpack.c.bf16 %v3156, %v3155
      %v3175 = vpack.c.bf16 %v3158, %v3157
      %v3176 = vpack.c.bf16 %v3160, %v3159
      %v3193 = vunpack.c.l.b16 %v3161
      %v3194 = vunpack.c.h.b16 %v3161
      %v3195 = vunpack.c.l.b16 %v3162
      %v3196 = vunpack.c.h.b16 %v3162
      %v3197 = vunpack.c.l.b16 %v3163
      %v3198 = vunpack.c.h.b16 %v3163
      %v3199 = vunpack.c.l.b16 %v3164
      %v3200 = vunpack.c.h.b16 %v3164
      %v3201 = vunpack.c.l.b16 %v3165
      %v3202 = vunpack.c.h.b16 %v3165
      %v3203 = vunpack.c.l.b16 %v3166
      %v3204 = vunpack.c.h.b16 %v3166
      %v3205 = vunpack.c.l.b16 %v3167
      %v3206 = vunpack.c.h.b16 %v3167
      %v3207 = vunpack.c.l.b16 %v3168
      %v3208 = vunpack.c.h.b16 %v3168
      %v3209 = vunpack.c.l.b16 %v3169
      %v3210 = vunpack.c.h.b16 %v3169
      %v3211 = vunpack.c.l.b16 %v3170
      %v3212 = vunpack.c.h.b16 %v3170
      %v3213 = vunpack.c.l.b16 %v3171
      %v3214 = vunpack.c.h.b16 %v3171
      %v3215 = vunpack.c.l.b16 %v3172
      %v3216 = vunpack.c.h.b16 %v3172
      %v3217 = vunpack.c.l.b16 %v3173
      %v3218 = vunpack.c.h.b16 %v3173
      %v3219 = vunpack.c.l.b16 %v3174
      %v3220 = vunpack.c.h.b16 %v3174
      %v3221 = vunpack.c.l.b16 %v3175
      %v3222 = vunpack.c.h.b16 %v3175
      %v3223 = vunpack.c.l.b16 %v3176
      %v3224 = vunpack.c.h.b16 %v3176
      %v3225 = vpack.c.b16 %v3193, %v3193
      %v3226 = vpack.c.b16 %v3194, %v3194
      %v3227 = vpack.c.b16 %v3195, %v3195
      %v3228 = vpack.c.b16 %v3196, %v3196
      %v3229 = vpack.c.b16 %v3197, %v3197
      %v3230 = vpack.c.b16 %v3198, %v3198
      %v3231 = vpack.c.b16 %v3199, %v3199
      %v3232 = vpack.c.b16 %v3200, %v3200
      %v3233 = vpack.c.b16 %v3201, %v3201
      %v3234 = vpack.c.b16 %v3202, %v3202
      %v3235 = vpack.c.b16 %v3203, %v3203
      %v3236 = vpack.c.b16 %v3204, %v3204
      %v3237 = vpack.c.b16 %v3205, %v3205
      %v3238 = vpack.c.b16 %v3206, %v3206
      %v3239 = vpack.c.b16 %v3207, %v3207
      %v3240 = vpack.c.b16 %v3208, %v3208
      %v3241 = vpack.c.b16 %v3209, %v3209
      %v3242 = vpack.c.b16 %v3210, %v3210
      %v3243 = vpack.c.b16 %v3211, %v3211
      %v3244 = vpack.c.b16 %v3212, %v3212
      %v3245 = vpack.c.b16 %v3213, %v3213
      %v3246 = vpack.c.b16 %v3214, %v3214
      %v3247 = vpack.c.b16 %v3215, %v3215
      %v3248 = vpack.c.b16 %v3216, %v3216
      %v3249 = vpack.c.b16 %v3217, %v3217
      %v3250 = vpack.c.b16 %v3218, %v3218
      %v3251 = vpack.c.b16 %v3219, %v3219
      %v3252 = vpack.c.b16 %v3220, %v3220
      %v3253 = vpack.c.b16 %v3221, %v3221
      %v3254 = vpack.c.b16 %v3222, %v3222
      %v3255 = vpack.c.b16 %v3223, %v3223
      %v3256 = vpack.c.b16 %v3224, %v3224
      %s3289 = scalar_lea.vmem %s273, 128
      %3290 = vst.msk [vmem:[%s3289] sm:$0xf] %vm1934, %v3225
      %3291 = vst.msk [vmem:[%s3289 + $0x4] sm:$0xf] %vm1934, %v3226
      %3292 = vst.msk [vmem:[%s3289 + $0x8] sm:$0xf] %vm1934, %v3227
      %3293 = vst.msk [vmem:[%s3289 + $0xc] sm:$0xf] %vm1934, %v3228
      %3294 = vst.msk [vmem:[%s3289 + $0x10] sm:$0xf] %vm1934, %v3229
      %3295 = vst.msk [vmem:[%s3289 + $0x14] sm:$0xf] %vm1934, %v3230
      %3296 = vst.msk [vmem:[%s3289 + $0x18] sm:$0xf] %vm1934, %v3231
      %3297 = vst.msk [vmem:[%s3289 + $0x1c] sm:$0xf] %vm1934, %v3232
      %3298 = vst.msk [vmem:[%s3289 + $0x20] sm:$0xf] %vm1934, %v3233
      %3299 = vst.msk [vmem:[%s3289 + $0x24] sm:$0xf] %vm1934, %v3234
      %3300 = vst.msk [vmem:[%s3289 + $0x28] sm:$0xf] %vm1934, %v3235
      %3301 = vst.msk [vmem:[%s3289 + $0x2c] sm:$0xf] %vm1934, %v3236
      %3302 = vst.msk [vmem:[%s3289 + $0x30] sm:$0xf] %vm1934, %v3237
      %3303 = vst.msk [vmem:[%s3289 + $0x34] sm:$0xf] %vm1934, %v3238
      %3304 = vst.msk [vmem:[%s3289 + $0x38] sm:$0xf] %vm1934, %v3239
      %3305 = vst.msk [vmem:[%s3289 + $0x3c] sm:$0xf] %vm1934, %v3240
      %3306 = vst.msk [vmem:[%s3289 + $0x40] sm:$0xf] %vm1934, %v3241
      %3307 = vst.msk [vmem:[%s3289 + $0x44] sm:$0xf] %vm1934, %v3242
      %3308 = vst.msk [vmem:[%s3289 + $0x48] sm:$0xf] %vm1934, %v3243
      %3309 = vst.msk [vmem:[%s3289 + $0x4c] sm:$0xf] %vm1934, %v3244
      %3310 = vst.msk [vmem:[%s3289 + $0x50] sm:$0xf] %vm1934, %v3245
      %3311 = vst.msk [vmem:[%s3289 + $0x54] sm:$0xf] %vm1934, %v3246
      %3312 = vst.msk [vmem:[%s3289 + $0x58] sm:$0xf] %vm1934, %v3247
      %3313 = vst.msk [vmem:[%s3289 + $0x5c] sm:$0xf] %vm1934, %v3248
      %3314 = vst.msk [vmem:[%s3289 + $0x60] sm:$0xf] %vm1934, %v3249
      %3315 = vst.msk [vmem:[%s3289 + $0x64] sm:$0xf] %vm1934, %v3250
      %3316 = vst.msk [vmem:[%s3289 + $0x68] sm:$0xf] %vm1934, %v3251
      %3317 = vst.msk [vmem:[%s3289 + $0x6c] sm:$0xf] %vm1934, %v3252
      %3318 = vst.msk [vmem:[%s3289 + $0x70] sm:$0xf] %vm1934, %v3253
      %3319 = vst.msk [vmem:[%s3289 + $0x74] sm:$0xf] %vm1934, %v3254
      %3320 = vst.msk [vmem:[%s3289 + $0x78] sm:$0xf] %vm1934, %v3255
      %3321 = vst.msk [vmem:[%s3289 + $0x7c] sm:$0xf] %vm1934, %v3256
      %v3322 = vld [vmem:[%s6] sm:$0x1]
      %v3323 = vsel %vm530, %v3129, 0.0
      %v3324 = vsel %vm530, %v3130, 0.0
      %v3325 = vadd.f32 %v3323, %v3324
      %v3326 = vsel %vm530, %v3131, 0.0
      %v3327 = vadd.f32 %v3325, %v3326
      %v3328 = vsel %vm530, %v3132, 0.0
      %v3329 = vadd.f32 %v3327, %v3328
      %v3330 = vsel %vm530, %v3133, 0.0
      %v3331 = vadd.f32 %v3329, %v3330
      %v3332 = vsel %vm530, %v3134, 0.0
      %v3333 = vadd.f32 %v3331, %v3332
      %v3334 = vsel %vm530, %v3135, 0.0
      %v3335 = vadd.f32 %v3333, %v3334
      %v3336 = vsel %vm530, %v3136, 0.0
      %v3337 = vadd.f32 %v3335, %v3336
      %v3338 = vsel %vm530, %v3137, 0.0
      %v3339 = vadd.f32 %v3337, %v3338
      %v3340 = vsel %vm530, %v3138, 0.0
      %v3341 = vadd.f32 %v3339, %v3340
      %v3342 = vsel %vm530, %v3139, 0.0
      %v3343 = vadd.f32 %v3341, %v3342
      %v3344 = vsel %vm530, %v3140, 0.0
      %v3345 = vadd.f32 %v3343, %v3344
      %v3346 = vsel %vm530, %v3141, 0.0
      %v3347 = vadd.f32 %v3345, %v3346
      %v3348 = vsel %vm530, %v3142, 0.0
      %v3349 = vadd.f32 %v3347, %v3348
      %v3350 = vsel %vm530, %v3143, 0.0
      %v3351 = vadd.f32 %v3349, %v3350
      %v3352 = vsel %vm530, %v3144, 0.0
      %v3353 = vadd.f32 %v3351, %v3352
      %v3354 = vsel %vm530, %v3145, 0.0
      %v3355 = vadd.f32 %v3353, %v3354
      %v3356 = vsel %vm530, %v3146, 0.0
      %v3357 = vadd.f32 %v3355, %v3356
      %v3358 = vsel %vm530, %v3147, 0.0
      %v3359 = vadd.f32 %v3357, %v3358
      %v3360 = vsel %vm530, %v3148, 0.0
      %v3361 = vadd.f32 %v3359, %v3360
      %v3362 = vsel %vm530, %v3149, 0.0
      %v3363 = vadd.f32 %v3361, %v3362
      %v3364 = vsel %vm530, %v3150, 0.0
      %v3365 = vadd.f32 %v3363, %v3364
      %v3366 = vsel %vm530, %v3151, 0.0
      %v3367 = vadd.f32 %v3365, %v3366
      %v3368 = vsel %vm530, %v3152, 0.0
      %v3369 = vadd.f32 %v3367, %v3368
      %v3370 = vsel %vm530, %v3153, 0.0
      %v3371 = vadd.f32 %v3369, %v3370
      %v3372 = vsel %vm530, %v3154, 0.0
      %v3373 = vadd.f32 %v3371, %v3372
      %v3374 = vsel %vm530, %v3155, 0.0
      %v3375 = vadd.f32 %v3373, %v3374
      %v3376 = vsel %vm530, %v3156, 0.0
      %v3377 = vadd.f32 %v3375, %v3376
      %v3378 = vsel %vm530, %v3157, 0.0
      %v3379 = vadd.f32 %v3377, %v3378
      %v3380 = vsel %vm530, %v3158, 0.0
      %v3381 = vadd.f32 %v3379, %v3380
      %v3382 = vsel %vm530, %v3159, 0.0
      %v3383 = vadd.f32 %v3381, %v3382
      %v3384 = vsel %vm530, %v3160, 0.0
      %v3385 = vadd.f32 %v3383, %v3384
      %v3386 = vrot.slane %v3385, 4
      %v3387 = vadd.f32 %v3385, %v3386
      %v3388 = vrot.slane %v3387, 2
      %v3389 = vadd.f32 %v3387, %v3388
      %v3390 = vrot.slane %v3389, 1
      %v3391 = vadd.f32 %v3389, %v3390
      %v3392 = vadd.f32 %v3322, %v3391
      %3393 = vst.msk [vmem:[%s6] sm:$0x1] %vm2038, %v3392
      %v3394 = vld [vmem:[%s7] sm:$0x1]
      %v3395 = vmul.f32 %v3129, %v3129
      %v3396 = vmul.f32 %v3130, %v3130
      %v3397 = vmul.f32 %v3131, %v3131
      %v3398 = vmul.f32 %v3132, %v3132
      %v3399 = vmul.f32 %v3133, %v3133
      %v3400 = vmul.f32 %v3134, %v3134
      %v3401 = vmul.f32 %v3135, %v3135
      %v3402 = vmul.f32 %v3136, %v3136
      %v3403 = vmul.f32 %v3137, %v3137
      %v3404 = vmul.f32 %v3138, %v3138
      %v3405 = vmul.f32 %v3139, %v3139
      %v3406 = vmul.f32 %v3140, %v3140
      %v3407 = vmul.f32 %v3141, %v3141
      %v3408 = vmul.f32 %v3142, %v3142
      %v3409 = vmul.f32 %v3143, %v3143
      %v3410 = vmul.f32 %v3144, %v3144
      %v3411 = vmul.f32 %v3145, %v3145
      %v3412 = vmul.f32 %v3146, %v3146
      %v3413 = vmul.f32 %v3147, %v3147
      %v3414 = vmul.f32 %v3148, %v3148
      %v3415 = vmul.f32 %v3149, %v3149
      %v3416 = vmul.f32 %v3150, %v3150
      %v3417 = vmul.f32 %v3151, %v3151
      %v3418 = vmul.f32 %v3152, %v3152
      %v3419 = vmul.f32 %v3153, %v3153
      %v3420 = vmul.f32 %v3154, %v3154
      %v3421 = vmul.f32 %v3155, %v3155
      %v3422 = vmul.f32 %v3156, %v3156
      %v3423 = vmul.f32 %v3157, %v3157
      %v3424 = vmul.f32 %v3158, %v3158
      %v3425 = vmul.f32 %v3159, %v3159
      %v3426 = vmul.f32 %v3160, %v3160
      %v3427 = vsel %vm530, %v3395, 0.0
      %v3428 = vsel %vm530, %v3396, 0.0
      %v3429 = vadd.f32 %v3427, %v3428
      %v3430 = vsel %vm530, %v3397, 0.0
      %v3431 = vadd.f32 %v3429, %v3430
      %v3432 = vsel %vm530, %v3398, 0.0
      %v3433 = vadd.f32 %v3431, %v3432
      %v3434 = vsel %vm530, %v3399, 0.0
      %v3435 = vadd.f32 %v3433, %v3434
      %v3436 = vsel %vm530, %v3400, 0.0
      %v3437 = vadd.f32 %v3435, %v3436
      %v3438 = vsel %vm530, %v3401, 0.0
      %v3439 = vadd.f32 %v3437, %v3438
      %v3440 = vsel %vm530, %v3402, 0.0
      %v3441 = vadd.f32 %v3439, %v3440
      %v3442 = vsel %vm530, %v3403, 0.0
      %v3443 = vadd.f32 %v3441, %v3442
      %v3444 = vsel %vm530, %v3404, 0.0
      %v3445 = vadd.f32 %v3443, %v3444
      %v3446 = vsel %vm530, %v3405, 0.0
      %v3447 = vadd.f32 %v3445, %v3446
      %v3448 = vsel %vm530, %v3406, 0.0
      %v3449 = vadd.f32 %v3447, %v3448
      %v3450 = vsel %vm530, %v3407, 0.0
      %v3451 = vadd.f32 %v3449, %v3450
      %v3452 = vsel %vm530, %v3408, 0.0
      %v3453 = vadd.f32 %v3451, %v3452
      %v3454 = vsel %vm530, %v3409, 0.0
      %v3455 = vadd.f32 %v3453, %v3454
      %v3456 = vsel %vm530, %v3410, 0.0
      %v3457 = vadd.f32 %v3455, %v3456
      %v3458 = vsel %vm530, %v3411, 0.0
      %v3459 = vadd.f32 %v3457, %v3458
      %v3460 = vsel %vm530, %v3412, 0.0
      %v3461 = vadd.f32 %v3459, %v3460
      %v3462 = vsel %vm530, %v3413, 0.0
      %v3463 = vadd.f32 %v3461, %v3462
      %v3464 = vsel %vm530, %v3414, 0.0
      %v3465 = vadd.f32 %v3463, %v3464
      %v3466 = vsel %vm530, %v3415, 0.0
      %v3467 = vadd.f32 %v3465, %v3466
      %v3468 = vsel %vm530, %v3416, 0.0
      %v3469 = vadd.f32 %v3467, %v3468
      %v3470 = vsel %vm530, %v3417, 0.0
      %v3471 = vadd.f32 %v3469, %v3470
      %v3472 = vsel %vm530, %v3418, 0.0
      %v3473 = vadd.f32 %v3471, %v3472
      %v3474 = vsel %vm530, %v3419, 0.0
      %v3475 = vadd.f32 %v3473, %v3474
      %v3476 = vsel %vm530, %v3420, 0.0
      %v3477 = vadd.f32 %v3475, %v3476
      %v3478 = vsel %vm530, %v3421, 0.0
      %v3479 = vadd.f32 %v3477, %v3478
      %v3480 = vsel %vm530, %v3422, 0.0
      %v3481 = vadd.f32 %v3479, %v3480
      %v3482 = vsel %vm530, %v3423, 0.0
      %v3483 = vadd.f32 %v3481, %v3482
      %v3484 = vsel %vm530, %v3424, 0.0
      %v3485 = vadd.f32 %v3483, %v3484
      %v3486 = vsel %vm530, %v3425, 0.0
      %v3487 = vadd.f32 %v3485, %v3486
      %v3488 = vsel %vm530, %v3426, 0.0
      %v3489 = vadd.f32 %v3487, %v3488
      %v3490 = vrot.slane %v3489, 4
      %v3491 = vadd.f32 %v3489, %v3490
      %v3492 = vrot.slane %v3491, 2
      %v3493 = vadd.f32 %v3491, %v3492
      %v3494 = vrot.slane %v3493, 1
      %v3495 = vadd.f32 %v3493, %v3494
      %v3496 = vadd.f32 %v3394, %v3495
      %3497 = vst.msk [vmem:[%s7] sm:$0x1] %vm2038, %v3496
      %v3498 = vld [vmem:[%s1242] sm:$0xff]
      %v3499 = vld [vmem:[%s1242 + $0x8] sm:$0xff]
      %v3500 = vld [vmem:[%s1242 + $0x10] sm:$0xff]
      %v3501 = vld [vmem:[%s1242 + $0x18] sm:$0xff]
      %v3502 = vld [vmem:[%s1242 + $0x20] sm:$0xff]
      %v3503 = vld [vmem:[%s1242 + $0x28] sm:$0xff]
      %v3504 = vld [vmem:[%s1242 + $0x30] sm:$0xff]
      %v3505 = vld [vmem:[%s1242 + $0x38] sm:$0xff]
      %v3506 = vld [vmem:[%s1242 + $0x40] sm:$0xff]
      %v3507 = vld [vmem:[%s1242 + $0x48] sm:$0xff]
      %v3508 = vld [vmem:[%s1242 + $0x50] sm:$0xff]
      %v3509 = vld [vmem:[%s1242 + $0x58] sm:$0xff]
      %v3510 = vld [vmem:[%s1242 + $0x60] sm:$0xff]
      %v3511 = vld [vmem:[%s1242 + $0x68] sm:$0xff]
      %v3512 = vld [vmem:[%s1242 + $0x70] sm:$0xff]
      %v3513 = vld [vmem:[%s1242 + $0x78] sm:$0xff]
      %s3514 = scalar_lea.vmem %s3, 16
      %v3515 = vld [vmem:[%s3514] sm:$0x3]
      %v3516 = vld [vmem:[%s1505] sm:$0xff]
      %v3517 = vld [vmem:[%s1505 + $0x8] sm:$0xff]
      %v3518 = vld [vmem:[%s1505 + $0x10] sm:$0xff]
      %v3519 = vld [vmem:[%s1505 + $0x18] sm:$0xff]
      %v3520 = vld [vmem:[%s1505 + $0x20] sm:$0xff]
      %v3521 = vld [vmem:[%s1505 + $0x28] sm:$0xff]
      %v3522 = vld [vmem:[%s1505 + $0x30] sm:$0xff]
      %v3523 = vld [vmem:[%s1505 + $0x38] sm:$0xff]
      %v3524 = vld [vmem:[%s1505 + $0x40] sm:$0xff]
      %v3525 = vld [vmem:[%s1505 + $0x48] sm:$0xff]
      %v3526 = vld [vmem:[%s1505 + $0x50] sm:$0xff]
      %v3527 = vld [vmem:[%s1505 + $0x58] sm:$0xff]
      %v3528 = vld [vmem:[%s1505 + $0x60] sm:$0xff]
      %v3529 = vld [vmem:[%s1505 + $0x68] sm:$0xff]
      %v3530 = vld [vmem:[%s1505 + $0x70] sm:$0xff]
      %v3531 = vld [vmem:[%s1505 + $0x78] sm:$0xff]
      %s3532 = scalar_lea.vmem %s3, 18
      %v3533 = vld [vmem:[%s3532] sm:$0x3]
      %v3535 = vsel %vm530, %v3516, 0
      %v3538 = vsel %vm530, %v3517, 0
      %v3541 = vsel %vm530, %v3518, 0
      %v3544 = vsel %vm530, %v3519, 0
      %v3547 = vsel %vm530, %v3520, 0
      %v3550 = vsel %vm530, %v3521, 0
      %v3553 = vsel %vm530, %v3522, 0
      %v3556 = vsel %vm530, %v3523, 0
      %v3559 = vsel %vm530, %v3524, 0
      %v3562 = vsel %vm530, %v3525, 0
      %v3565 = vsel %vm530, %v3526, 0
      %v3568 = vsel %vm530, %v3527, 0
      %v3571 = vsel %vm530, %v3528, 0
      %v3574 = vsel %vm530, %v3529, 0
      %v3577 = vsel %vm530, %v3530, 0
      %v3580 = vsel %vm530, %v3531, 0
      %v3583 = vsel %vm865, %v3533, 0
      %3585 = vmatprep.subr.bf16.mxu0 0
      %3586 = vmatpush1.bf16.msra.mxu0 %v3583
      %3587 = vmatprep.subr.bf16.mxu0 0
      %3588 = vmatpush1.bf16.msra.mxu0 0
      %3589 = vmatprep.subr.bf16.mxu0 0
      %3590 = vmatpush1.bf16.msra.mxu0 0
      %3591 = vmatprep.subr.bf16.mxu0 0
      %3592 = vmatpush1.bf16.msra.mxu0 0
      %3593 = vmatprep.subr.bf16.mxu0 0
      %3594 = vmatpush1.bf16.msra.mxu0 0
      %3595 = vmatprep.subr.bf16.mxu0 0
      %3596 = vmatpush1.bf16.msra.mxu0 0
      %3597 = vmatprep.subr.bf16.mxu0 0
      %3598 = vmatpush1.bf16.msra.mxu0 0
      %3599 = vmatprep.subr.bf16.mxu0 0
      %3600 = vmatpush1.bf16.msra.mxu0 0
      %3601 = vmatprep.subr.bf16.mxu0 0
      %3602 = vmatpush1.bf16.msra.mxu0 0
      %3603 = vmatprep.subr.bf16.mxu0 0
      %3604 = vmatpush1.bf16.msra.mxu0 0
      %3605 = vmatprep.subr.bf16.mxu0 0
      %3606 = vmatpush1.bf16.msra.mxu0 0
      %3607 = vmatprep.subr.bf16.mxu0 0
      %3608 = vmatpush1.bf16.msra.mxu0 0
      %3609 = vmatprep.subr.bf16.mxu0 0
      %3610 = vmatpush1.bf16.msra.mxu0 0
      %3611 = vmatprep.subr.bf16.mxu0 0
      %3612 = vmatpush1.bf16.msra.mxu0 0
      %3613 = vmatprep.subr.bf16.mxu0 0
      %3614 = vmatpush1.bf16.msra.mxu0 0
      %3615 = vmatprep.subr.bf16.mxu0 0
      %3616 = vmatpush1.bf16.msra.mxu0 0
      %3617 = vmatprep.mubr.bf16.mxu0 0
      %3618 = vmatmul.mubr.bf16.gmra.mrb[0].mxu0 %v3535
      %v3619 = vpop.f32.mrb[0].mxu0
      %v3620 = vadd.f32 0.0, %v3619
      %v3621 = vpop.f32.mrb[0].mxu0
      %v3622 = vpop.f32.mrb[0].mxu0
      %v3623 = vadd.f32 0.0, %v3622
      %v3624 = vpop.f32.mrb[0].mxu0
      %3625 = vmatprep.mubr.bf16.mxu0 0
      %3626 = vmatmul.mubr.bf16.gmra.mrb[0].mxu0 %v3538
      %v3627 = vpop.f32.mrb[0].mxu0
      %v3628 = vadd.f32 0.0, %v3627
      %v3629 = vpop.f32.mrb[0].mxu0
      %v3630 = vpop.f32.mrb[0].mxu0
      %v3631 = vadd.f32 0.0, %v3630
      %v3632 = vpop.f32.mrb[0].mxu0
      %3633 = vmatprep.mubr.bf16.mxu0 0
      %3634 = vmatmul.mubr.bf16.gmra.mrb[0].mxu0 %v3541
      %v3635 = vpop.f32.mrb[0].mxu0
      %v3636 = vadd.f32 0.0, %v3635
      %v3637 = vpop.f32.mrb[0].mxu0
      %v3638 = vpop.f32.mrb[0].mxu0
      %v3639 = vadd.f32 0.0, %v3638
      %v3640 = vpop.f32.mrb[0].mxu0
      %3641 = vmatprep.mubr.bf16.mxu0 0
      %3642 = vmatmul.mubr.bf16.gmra.mrb[0].mxu0 %v3544
      %v3643 = vpop.f32.mrb[0].mxu0
      %v3644 = vadd.f32 0.0, %v3643
      %v3645 = vpop.f32.mrb[0].mxu0
      %v3646 = vpop.f32.mrb[0].mxu0
      %v3647 = vadd.f32 0.0, %v3646
      %v3648 = vpop.f32.mrb[0].mxu0
      %3649 = vmatprep.mubr.bf16.mxu0 0
      %3650 = vmatmul.mubr.bf16.gmra.mrb[0].mxu0 %v3547
      %v3651 = vpop.f32.mrb[0].mxu0
      %v3652 = vadd.f32 0.0, %v3651
      %v3653 = vpop.f32.mrb[0].mxu0
      %v3654 = vpop.f32.mrb[0].mxu0
      %v3655 = vadd.f32 0.0, %v3654
      %v3656 = vpop.f32.mrb[0].mxu0
      %3657 = vmatprep.mubr.bf16.mxu0 0
      %3658 = vmatmul.mubr.bf16.gmra.mrb[0].mxu0 %v3550
      %v3659 = vpop.f32.mrb[0].mxu0
      %v3660 = vadd.f32 0.0, %v3659
      %v3661 = vpop.f32.mrb[0].mxu0
      %v3662 = vpop.f32.mrb[0].mxu0
      %v3663 = vadd.f32 0.0, %v3662
      %v3664 = vpop.f32.mrb[0].mxu0
      %3665 = vmatprep.mubr.bf16.mxu0 0
      %3666 = vmatmul.mubr.bf16.gmra.mrb[0].mxu0 %v3553
      %v3667 = vpop.f32.mrb[0].mxu0
      %v3668 = vadd.f32 0.0, %v3667
      %v3669 = vpop.f32.mrb[0].mxu0
      %v3670 = vpop.f32.mrb[0].mxu0
      %v3671 = vadd.f32 0.0, %v3670
      %v3672 = vpop.f32.mrb[0].mxu0
      %3673 = vmatprep.mubr.bf16.mxu0 0
      %3674 = vmatmul.mubr.bf16.gmra.mrb[0].mxu0 %v3556
      %v3675 = vpop.f32.mrb[0].mxu0
      %v3676 = vadd.f32 0.0, %v3675
      %v3677 = vpop.f32.mrb[0].mxu0
      %v3678 = vpop.f32.mrb[0].mxu0
      %v3679 = vadd.f32 0.0, %v3678
      %v3680 = vpop.f32.mrb[0].mxu0
      %3681 = vmatprep.mubr.bf16.mxu0 0
      %3682 = vmatmul.mubr.bf16.gmra.mrb[0].mxu0 %v3559
      %v3683 = vpop.f32.mrb[0].mxu0
      %v3684 = vadd.f32 0.0, %v3683
      %v3685 = vpop.f32.mrb[0].mxu0
      %v3686 = vpop.f32.mrb[0].mxu0
      %v3687 = vadd.f32 0.0, %v3686
      %v3688 = vpop.f32.mrb[0].mxu0
      %3689 = vmatprep.mubr.bf16.mxu0 0
      %3690 = vmatmul.mubr.bf16.gmra.mrb[0].mxu0 %v3562
      %v3691 = vpop.f32.mrb[0].mxu0
      %v3692 = vadd.f32 0.0, %v3691
      %v3693 = vpop.f32.mrb[0].mxu0
      %v3694 = vpop.f32.mrb[0].mxu0
      %v3695 = vadd.f32 0.0, %v3694
      %v3696 = vpop.f32.mrb[0].mxu0
      %3697 = vmatprep.mubr.bf16.mxu0 0
      %3698 = vmatmul.mubr.bf16.gmra.mrb[0].mxu0 %v3565
      %v3699 = vpop.f32.mrb[0].mxu0
      %v3700 = vadd.f32 0.0, %v3699
      %v3701 = vpop.f32.mrb[0].mxu0
      %v3702 = vpop.f32.mrb[0].mxu0
      %v3703 = vadd.f32 0.0, %v3702
      %v3704 = vpop.f32.mrb[0].mxu0
      %3705 = vmatprep.mubr.bf16.mxu0 0
      %3706 = vmatmul.mubr.bf16.gmra.mrb[0].mxu0 %v3568
      %v3707 = vpop.f32.mrb[0].mxu0
      %v3708 = vadd.f32 0.0, %v3707
      %v3709 = vpop.f32.mrb[0].mxu0
      %v3710 = vpop.f32.mrb[0].mxu0
      %v3711 = vadd.f32 0.0, %v3710
      %v3712 = vpop.f32.mrb[0].mxu0
      %3713 = vmatprep.mubr.bf16.mxu0 0
      %3714 = vmatmul.mubr.bf16.gmra.mrb[0].mxu0 %v3571
      %v3715 = vpop.f32.mrb[0].mxu0
      %v3716 = vadd.f32 0.0, %v3715
      %v3717 = vpop.f32.mrb[0].mxu0
      %v3718 = vpop.f32.mrb[0].mxu0
      %v3719 = vadd.f32 0.0, %v3718
      %v3720 = vpop.f32.mrb[0].mxu0
      %3721 = vmatprep.mubr.bf16.mxu0 0
      %3722 = vmatmul.mubr.bf16.gmra.mrb[0].mxu0 %v3574
      %v3723 = vpop.f32.mrb[0].mxu0
      %v3724 = vadd.f32 0.0, %v3723
      %v3725 = vpop.f32.mrb[0].mxu0
      %v3726 = vpop.f32.mrb[0].mxu0
      %v3727 = vadd.f32 0.0, %v3726
      %v3728 = vpop.f32.mrb[0].mxu0
      %3729 = vmatprep.mubr.bf16.mxu0 0
      %3730 = vmatmul.mubr.bf16.gmra.mrb[0].mxu0 %v3577
      %v3731 = vpop.f32.mrb[0].mxu0
      %v3732 = vadd.f32 0.0, %v3731
      %v3733 = vpop.f32.mrb[0].mxu0
      %v3734 = vpop.f32.mrb[0].mxu0
      %v3735 = vadd.f32 0.0, %v3734
      %v3736 = vpop.f32.mrb[0].mxu0
      %3737 = vmatprep.mubr.bf16.mxu0 0
      %3738 = vmatmul.mubr.bf16.gmra.mrb[0].mxu0 %v3580
      %v3739 = vpop.f32.mrb[0].mxu0
      %v3740 = vadd.f32 0.0, %v3739
      %v3741 = vpop.f32.mrb[0].mxu0
      %v3742 = vpop.f32.mrb[0].mxu0
      %v3743 = vadd.f32 0.0, %v3742
      %v3744 = vpop.f32.mrb[0].mxu0
      %3745 = vdwg.mxu0
      %v3747 = vsel %vm530, %v3498, 0
      %v3750 = vsel %vm530, %v3499, 0
      %v3753 = vsel %vm530, %v3500, 0
      %v3756 = vsel %vm530, %v3501, 0
      %v3759 = vsel %vm530, %v3502, 0
      %v3762 = vsel %vm530, %v3503, 0
      %v3765 = vsel %vm530, %v3504, 0
      %v3768 = vsel %vm530, %v3505, 0
      %v3771 = vsel %vm530, %v3506, 0
      %v3774 = vsel %vm530, %v3507, 0
      %v3777 = vsel %vm530, %v3508, 0
      %v3780 = vsel %vm530, %v3509, 0
      %v3783 = vsel %vm530, %v3510, 0
      %v3786 = vsel %vm530, %v3511, 0
      %v3789 = vsel %vm530, %v3512, 0
      %v3792 = vsel %vm530, %v3513, 0
      %v3795 = vsel %vm865, %v3515, 0
      %3797 = vmatprep.subr.bf16.mxu0 0
      %3798 = vmatpush1.bf16.msra.mxu0 %v3795
      %3799 = vmatprep.subr.bf16.mxu0 0
      %3800 = vmatpush1.bf16.msra.mxu0 0
      %3801 = vmatprep.subr.bf16.mxu0 0
      %3802 = vmatpush1.bf16.msra.mxu0 0
      %3803 = vmatprep.subr.bf16.mxu0 0
      %3804 = vmatpush1.bf16.msra.mxu0 0
      %3805 = vmatprep.subr.bf16.mxu0 0
      %3806 = vmatpush1.bf16.msra.mxu0 0
      %3807 = vmatprep.subr.bf16.mxu0 0
      %3808 = vmatpush1.bf16.msra.mxu0 0
      %3809 = vmatprep.subr.bf16.mxu0 0
      %3810 = vmatpush1.bf16.msra.mxu0 0
      %3811 = vmatprep.subr.bf16.mxu0 0
      %3812 = vmatpush1.bf16.msra.mxu0 0
      %3813 = vmatprep.subr.bf16.mxu0 0
      %3814 = vmatpush1.bf16.msra.mxu0 0
      %3815 = vmatprep.subr.bf16.mxu0 0
      %3816 = vmatpush1.bf16.msra.mxu0 0
      %3817 = vmatprep.subr.bf16.mxu0 0
      %3818 = vmatpush1.bf16.msra.mxu0 0
      %3819 = vmatprep.subr.bf16.mxu0 0
      %3820 = vmatpush1.bf16.msra.mxu0 0
      %3821 = vmatprep.subr.bf16.mxu0 0
      %3822 = vmatpush1.bf16.msra.mxu0 0
      %3823 = vmatprep.subr.bf16.mxu0 0
      %3824 = vmatpush1.bf16.msra.mxu0 0
      %3825 = vmatprep.subr.bf16.mxu0 0
      %3826 = vmatpush1.bf16.msra.mxu0 0
      %3827 = vmatprep.subr.bf16.mxu0 0
      %3828 = vmatpush1.bf16.msra.mxu0 0
      %3829 = vmatprep.mubr.bf16.mxu0 0
      %3830 = vmatmul.mubr.bf16.gmra.mrb[0].mxu0 %v3747
      %v3831 = vpop.f32.mrb[0].mxu0
      %v3832 = vadd.f32 %v3620, %v3831
      %v3833 = vpop.f32.mrb[0].mxu0
      %v3834 = vpop.f32.mrb[0].mxu0
      %v3835 = vadd.f32 %v3623, %v3834
      %v3836 = vpop.f32.mrb[0].mxu0
      %3837 = vmatprep.mubr.bf16.mxu0 0
      %3838 = vmatmul.mubr.bf16.gmra.mrb[0].mxu0 %v3750
      %v3839 = vpop.f32.mrb[0].mxu0
      %v3840 = vadd.f32 %v3628, %v3839
      %v3841 = vpop.f32.mrb[0].mxu0
      %v3842 = vpop.f32.mrb[0].mxu0
      %v3843 = vadd.f32 %v3631, %v3842
      %v3844 = vpop.f32.mrb[0].mxu0
      %3845 = vmatprep.mubr.bf16.mxu0 0
      %3846 = vmatmul.mubr.bf16.gmra.mrb[0].mxu0 %v3753
      %v3847 = vpop.f32.mrb[0].mxu0
      %v3848 = vadd.f32 %v3636, %v3847
      %v3849 = vpop.f32.mrb[0].mxu0
      %v3850 = vpop.f32.mrb[0].mxu0
      %v3851 = vadd.f32 %v3639, %v3850
      %v3852 = vpop.f32.mrb[0].mxu0
      %3853 = vmatprep.mubr.bf16.mxu0 0
      %3854 = vmatmul.mubr.bf16.gmra.mrb[0].mxu0 %v3756
      %v3855 = vpop.f32.mrb[0].mxu0
      %v3856 = vadd.f32 %v3644, %v3855
      %v3857 = vpop.f32.mrb[0].mxu0
      %v3858 = vpop.f32.mrb[0].mxu0
      %v3859 = vadd.f32 %v3647, %v3858
      %v3860 = vpop.f32.mrb[0].mxu0
      %3861 = vmatprep.mubr.bf16.mxu0 0
      %3862 = vmatmul.mubr.bf16.gmra.mrb[0].mxu0 %v3759
      %v3863 = vpop.f32.mrb[0].mxu0
      %v3864 = vadd.f32 %v3652, %v3863
      %v3865 = vpop.f32.mrb[0].mxu0
      %v3866 = vpop.f32.mrb[0].mxu0
      %v3867 = vadd.f32 %v3655, %v3866
      %v3868 = vpop.f32.mrb[0].mxu0
      %3869 = vmatprep.mubr.bf16.mxu0 0
      %3870 = vmatmul.mubr.bf16.gmra.mrb[0].mxu0 %v3762
      %v3871 = vpop.f32.mrb[0].mxu0
      %v3872 = vadd.f32 %v3660, %v3871
      %v3873 = vpop.f32.mrb[0].mxu0
      %v3874 = vpop.f32.mrb[0].mxu0
      %v3875 = vadd.f32 %v3663, %v3874
      %v3876 = vpop.f32.mrb[0].mxu0
      %3877 = vmatprep.mubr.bf16.mxu0 0
      %3878 = vmatmul.mubr.bf16.gmra.mrb[0].mxu0 %v3765
      %v3879 = vpop.f32.mrb[0].mxu0
      %v3880 = vadd.f32 %v3668, %v3879
      %v3881 = vpop.f32.mrb[0].mxu0
      %v3882 = vpop.f32.mrb[0].mxu0
      %v3883 = vadd.f32 %v3671, %v3882
      %v3884 = vpop.f32.mrb[0].mxu0
      %3885 = vmatprep.mubr.bf16.mxu0 0
      %3886 = vmatmul.mubr.bf16.gmra.mrb[0].mxu0 %v3768
      %v3887 = vpop.f32.mrb[0].mxu0
      %v3888 = vadd.f32 %v3676, %v3887
      %v3889 = vpop.f32.mrb[0].mxu0
      %v3890 = vpop.f32.mrb[0].mxu0
      %v3891 = vadd.f32 %v3679, %v3890
      %v3892 = vpop.f32.mrb[0].mxu0
      %3893 = vmatprep.mubr.bf16.mxu0 0
      %3894 = vmatmul.mubr.bf16.gmra.mrb[0].mxu0 %v3771
      %v3895 = vpop.f32.mrb[0].mxu0
      %v3896 = vadd.f32 %v3684, %v3895
      %v3897 = vpop.f32.mrb[0].mxu0
      %v3898 = vpop.f32.mrb[0].mxu0
      %v3899 = vadd.f32 %v3687, %v3898
      %v3900 = vpop.f32.mrb[0].mxu0
      %3901 = vmatprep.mubr.bf16.mxu0 0
      %3902 = vmatmul.mubr.bf16.gmra.mrb[0].mxu0 %v3774
      %v3903 = vpop.f32.mrb[0].mxu0
      %v3904 = vadd.f32 %v3692, %v3903
      %v3905 = vpop.f32.mrb[0].mxu0
      %v3906 = vpop.f32.mrb[0].mxu0
      %v3907 = vadd.f32 %v3695, %v3906
      %v3908 = vpop.f32.mrb[0].mxu0
      %3909 = vmatprep.mubr.bf16.mxu0 0
      %3910 = vmatmul.mubr.bf16.gmra.mrb[0].mxu0 %v3777
      %v3911 = vpop.f32.mrb[0].mxu0
      %v3912 = vadd.f32 %v3700, %v3911
      %v3913 = vpop.f32.mrb[0].mxu0
      %v3914 = vpop.f32.mrb[0].mxu0
      %v3915 = vadd.f32 %v3703, %v3914
      %v3916 = vpop.f32.mrb[0].mxu0
      %3917 = vmatprep.mubr.bf16.mxu0 0
      %3918 = vmatmul.mubr.bf16.gmra.mrb[0].mxu0 %v3780
      %v3919 = vpop.f32.mrb[0].mxu0
      %v3920 = vadd.f32 %v3708, %v3919
      %v3921 = vpop.f32.mrb[0].mxu0
      %v3922 = vpop.f32.mrb[0].mxu0
      %v3923 = vadd.f32 %v3711, %v3922
      %v3924 = vpop.f32.mrb[0].mxu0
      %3925 = vmatprep.mubr.bf16.mxu0 0
      %3926 = vmatmul.mubr.bf16.gmra.mrb[0].mxu0 %v3783
      %v3927 = vpop.f32.mrb[0].mxu0
      %v3928 = vadd.f32 %v3716, %v3927
      %v3929 = vpop.f32.mrb[0].mxu0
      %v3930 = vpop.f32.mrb[0].mxu0
      %v3931 = vadd.f32 %v3719, %v3930
      %v3932 = vpop.f32.mrb[0].mxu0
      %3933 = vmatprep.mubr.bf16.mxu0 0
      %3934 = vmatmul.mubr.bf16.gmra.mrb[0].mxu0 %v3786
      %v3935 = vpop.f32.mrb[0].mxu0
      %v3936 = vadd.f32 %v3724, %v3935
      %v3937 = vpop.f32.mrb[0].mxu0
      %v3938 = vpop.f32.mrb[0].mxu0
      %v3939 = vadd.f32 %v3727, %v3938
      %v3940 = vpop.f32.mrb[0].mxu0
      %3941 = vmatprep.mubr.bf16.mxu0 0
      %3942 = vmatmul.mubr.bf16.gmra.mrb[0].mxu0 %v3789
      %v3943 = vpop.f32.mrb[0].mxu0
      %v3944 = vadd.f32 %v3732, %v3943
      %v3945 = vpop.f32.mrb[0].mxu0
      %v3946 = vpop.f32.mrb[0].mxu0
      %v3947 = vadd.f32 %v3735, %v3946
      %v3948 = vpop.f32.mrb[0].mxu0
      %3949 = vmatprep.mubr.bf16.mxu0 0
      %3950 = vmatmul.mubr.bf16.gmra.mrb[0].mxu0 %v3792
      %v3951 = vpop.f32.mrb[0].mxu0
      %v3952 = vadd.f32 %v3740, %v3951
      %v3953 = vpop.f32.mrb[0].mxu0
      %v3954 = vpop.f32.mrb[0].mxu0
      %v3955 = vadd.f32 %v3743, %v3954
      %v3956 = vpop.f32.mrb[0].mxu0
      %3957 = vdwg.mxu0
      %s3958 = scalar_lea.vmem [#allocation3], 16
      %v3959 = vld [vmem:[%s3958] sm:$0xff]
      %v3960 = vld [vmem:[%s3958 + $0x8] sm:$0xff]
      %v3961 = vld [vmem:[%s3958 + $0x10] sm:$0xff]
      %v3962 = vld [vmem:[%s3958 + $0x18] sm:$0xff]
      %v3963 = vld [vmem:[%s3958 + $0x20] sm:$0xff]
      %v3964 = vld [vmem:[%s3958 + $0x28] sm:$0xff]
      %v3965 = vld [vmem:[%s3958 + $0x30] sm:$0xff]
      %v3966 = vld [vmem:[%s3958 + $0x38] sm:$0xff]
      %v3967 = vld [vmem:[%s3958 + $0x40] sm:$0xff]
      %v3968 = vld [vmem:[%s3958 + $0x48] sm:$0xff]
      %v3969 = vld [vmem:[%s3958 + $0x50] sm:$0xff]
      %v3970 = vld [vmem:[%s3958 + $0x58] sm:$0xff]
      %v3971 = vld [vmem:[%s3958 + $0x60] sm:$0xff]
      %v3972 = vld [vmem:[%s3958 + $0x68] sm:$0xff]
      %v3973 = vld [vmem:[%s3958 + $0x70] sm:$0xff]
      %v3974 = vld [vmem:[%s3958 + $0x78] sm:$0xff]
      %s3975 = scalar_lea.vmem %s3, 20
      %v3976 = vld [vmem:[%s3975] sm:$0x3]
      %v3978 = vsel %vm530, %v3959, 0
      %v3981 = vsel %vm530, %v3960, 0
      %v3984 = vsel %vm530, %v3961, 0
      %v3987 = vsel %vm530, %v3962, 0
      %v3990 = vsel %vm530, %v3963, 0
      %v3993 = vsel %vm530, %v3964, 0
      %v3996 = vsel %vm530, %v3965, 0
      %v3999 = vsel %vm530, %v3966, 0
      %v4002 = vsel %vm530, %v3967, 0
      %v4005 = vsel %vm530, %v3968, 0
      %v4008 = vsel %vm530, %v3969, 0
      %v4011 = vsel %vm530, %v3970, 0
      %v4014 = vsel %vm530, %v3971, 0
      %v4017 = vsel %vm530, %v3972, 0
      %v4020 = vsel %vm530, %v3973, 0
      %v4023 = vsel %vm530, %v3974, 0
      %v4026 = vsel %vm865, %v3976, 0
      %4028 = vmatprep.subr.bf16.mxu0 0
      %4029 = vmatpush1.bf16.msra.mxu0 %v4026
      %4030 = vmatprep.subr.bf16.mxu0 0
      %4031 = vmatpush1.bf16.msra.mxu0 0
      %4032 = vmatprep.subr.bf16.mxu0 0
      %4033 = vmatpush1.bf16.msra.mxu0 0
      %4034 = vmatprep.subr.bf16.mxu0 0
      %4035 = vmatpush1.bf16.msra.mxu0 0
      %4036 = vmatprep.subr.bf16.mxu0 0
      %4037 = vmatpush1.bf16.msra.mxu0 0
      %4038 = vmatprep.subr.bf16.mxu0 0
      %4039 = vmatpush1.bf16.msra.mxu0 0
      %4040 = vmatprep.subr.bf16.mxu0 0
      %4041 = vmatpush1.bf16.msra.mxu0 0
      %4042 = vmatprep.subr.bf16.mxu0 0
      %4043 = vmatpush1.bf16.msra.mxu0 0
      %4044 = vmatprep.subr.bf16.mxu0 0
      %4045 = vmatpush1.bf16.msra.mxu0 0
      %4046 = vmatprep.subr.bf16.mxu0 0
      %4047 = vmatpush1.bf16.msra.mxu0 0
      %4048 = vmatprep.subr.bf16.mxu0 0
      %4049 = vmatpush1.bf16.msra.mxu0 0
      %4050 = vmatprep.subr.bf16.mxu0 0
      %4051 = vmatpush1.bf16.msra.mxu0 0
      %4052 = vmatprep.subr.bf16.mxu0 0
      %4053 = vmatpush1.bf16.msra.mxu0 0
      %4054 = vmatprep.subr.bf16.mxu0 0
      %4055 = vmatpush1.bf16.msra.mxu0 0
      %4056 = vmatprep.subr.bf16.mxu0 0
      %4057 = vmatpush1.bf16.msra.mxu0 0
      %4058 = vmatprep.subr.bf16.mxu0 0
      %4059 = vmatpush1.bf16.msra.mxu0 0
      %4060 = vmatprep.mubr.bf16.mxu0 0
      %4061 = vmatmul.mubr.bf16.gmra.mrb[0].mxu0 %v3978
      %v4062 = vpop.f32.mrb[0].mxu0
      %v4063 = vadd.f32 0.0, %v4062
      %v4064 = vpop.f32.mrb[0].mxu0
      %v4065 = vpop.f32.mrb[0].mxu0
      %v4066 = vadd.f32 0.0, %v4065
      %v4067 = vpop.f32.mrb[0].mxu0
      %4068 = vmatprep.mubr.bf16.mxu0 0
      %4069 = vmatmul.mubr.bf16.gmra.mrb[0].mxu0 %v3981
      %v4070 = vpop.f32.mrb[0].mxu0
      %v4071 = vadd.f32 0.0, %v4070
      %v4072 = vpop.f32.mrb[0].mxu0
      %v4073 = vpop.f32.mrb[0].mxu0
      %v4074 = vadd.f32 0.0, %v4073
      %v4075 = vpop.f32.mrb[0].mxu0
      %4076 = vmatprep.mubr.bf16.mxu0 0
      %4077 = vmatmul.mubr.bf16.gmra.mrb[0].mxu0 %v3984
      %v4078 = vpop.f32.mrb[0].mxu0
      %v4079 = vadd.f32 0.0, %v4078
      %v4080 = vpop.f32.mrb[0].mxu0
      %v4081 = vpop.f32.mrb[0].mxu0
      %v4082 = vadd.f32 0.0, %v4081
      %v4083 = vpop.f32.mrb[0].mxu0
      %4084 = vmatprep.mubr.bf16.mxu0 0
      %4085 = vmatmul.mubr.bf16.gmra.mrb[0].mxu0 %v3987
      %v4086 = vpop.f32.mrb[0].mxu0
      %v4087 = vadd.f32 0.0, %v4086
      %v4088 = vpop.f32.mrb[0].mxu0
      %v4089 = vpop.f32.mrb[0].mxu0
      %v4090 = vadd.f32 0.0, %v4089
      %v4091 = vpop.f32.mrb[0].mxu0
      %4092 = vmatprep.mubr.bf16.mxu0 0
      %4093 = vmatmul.mubr.bf16.gmra.mrb[0].mxu0 %v3990
      %v4094 = vpop.f32.mrb[0].mxu0
      %v4095 = vadd.f32 0.0, %v4094
      %v4096 = vpop.f32.mrb[0].mxu0
      %v4097 = vpop.f32.mrb[0].mxu0
      %v4098 = vadd.f32 0.0, %v4097
      %v4099 = vpop.f32.mrb[0].mxu0
      %4100 = vmatprep.mubr.bf16.mxu0 0
      %4101 = vmatmul.mubr.bf16.gmra.mrb[0].mxu0 %v3993
      %v4102 = vpop.f32.mrb[0].mxu0
      %v4103 = vadd.f32 0.0, %v4102
      %v4104 = vpop.f32.mrb[0].mxu0
      %v4105 = vpop.f32.mrb[0].mxu0
      %v4106 = vadd.f32 0.0, %v4105
      %v4107 = vpop.f32.mrb[0].mxu0
      %4108 = vmatprep.mubr.bf16.mxu0 0
      %4109 = vmatmul.mubr.bf16.gmra.mrb[0].mxu0 %v3996
      %v4110 = vpop.f32.mrb[0].mxu0
      %v4111 = vadd.f32 0.0, %v4110
      %v4112 = vpop.f32.mrb[0].mxu0
      %v4113 = vpop.f32.mrb[0].mxu0
      %v4114 = vadd.f32 0.0, %v4113
      %v4115 = vpop.f32.mrb[0].mxu0
      %4116 = vmatprep.mubr.bf16.mxu0 0
      %4117 = vmatmul.mubr.bf16.gmra.mrb[0].mxu0 %v3999
      %v4118 = vpop.f32.mrb[0].mxu0
      %v4119 = vadd.f32 0.0, %v4118
      %v4120 = vpop.f32.mrb[0].mxu0
      %v4121 = vpop.f32.mrb[0].mxu0
      %v4122 = vadd.f32 0.0, %v4121
      %v4123 = vpop.f32.mrb[0].mxu0
      %4124 = vmatprep.mubr.bf16.mxu0 0
      %4125 = vmatmul.mubr.bf16.gmra.mrb[0].mxu0 %v4002
      %v4126 = vpop.f32.mrb[0].mxu0
      %v4127 = vadd.f32 0.0, %v4126
      %v4128 = vpop.f32.mrb[0].mxu0
      %v4129 = vpop.f32.mrb[0].mxu0
      %v4130 = vadd.f32 0.0, %v4129
      %v4131 = vpop.f32.mrb[0].mxu0
      %4132 = vmatprep.mubr.bf16.mxu0 0
      %4133 = vmatmul.mubr.bf16.gmra.mrb[0].mxu0 %v4005
      %v4134 = vpop.f32.mrb[0].mxu0
      %v4135 = vadd.f32 0.0, %v4134
      %v4136 = vpop.f32.mrb[0].mxu0
      %v4137 = vpop.f32.mrb[0].mxu0
      %v4138 = vadd.f32 0.0, %v4137
      %v4139 = vpop.f32.mrb[0].mxu0
      %4140 = vmatprep.mubr.bf16.mxu0 0
      %4141 = vmatmul.mubr.bf16.gmra.mrb[0].mxu0 %v4008
      %v4142 = vpop.f32.mrb[0].mxu0
      %v4143 = vadd.f32 0.0, %v4142
      %v4144 = vpop.f32.mrb[0].mxu0
      %v4145 = vpop.f32.mrb[0].mxu0
      %v4146 = vadd.f32 0.0, %v4145
      %v4147 = vpop.f32.mrb[0].mxu0
      %4148 = vmatprep.mubr.bf16.mxu0 0
      %4149 = vmatmul.mubr.bf16.gmra.mrb[0].mxu0 %v4011
      %v4150 = vpop.f32.mrb[0].mxu0
      %v4151 = vadd.f32 0.0, %v4150
      %v4152 = vpop.f32.mrb[0].mxu0
      %v4153 = vpop.f32.mrb[0].mxu0
      %v4154 = vadd.f32 0.0, %v4153
      %v4155 = vpop.f32.mrb[0].mxu0
      %4156 = vmatprep.mubr.bf16.mxu0 0
      %4157 = vmatmul.mubr.bf16.gmra.mrb[0].mxu0 %v4014
      %v4158 = vpop.f32.mrb[0].mxu0
      %v4159 = vadd.f32 0.0, %v4158
      %v4160 = vpop.f32.mrb[0].mxu0
      %v4161 = vpop.f32.mrb[0].mxu0
      %v4162 = vadd.f32 0.0, %v4161
      %v4163 = vpop.f32.mrb[0].mxu0
      %4164 = vmatprep.mubr.bf16.mxu0 0
      %4165 = vmatmul.mubr.bf16.gmra.mrb[0].mxu0 %v4017
      %v4166 = vpop.f32.mrb[0].mxu0
      %v4167 = vadd.f32 0.0, %v4166
      %v4168 = vpop.f32.mrb[0].mxu0
      %v4169 = vpop.f32.mrb[0].mxu0
      %v4170 = vadd.f32 0.0, %v4169
      %v4171 = vpop.f32.mrb[0].mxu0
      %4172 = vmatprep.mubr.bf16.mxu0 0
      %4173 = vmatmul.mubr.bf16.gmra.mrb[0].mxu0 %v4020
      %v4174 = vpop.f32.mrb[0].mxu0
      %v4175 = vadd.f32 0.0, %v4174
      %v4176 = vpop.f32.mrb[0].mxu0
      %v4177 = vpop.f32.mrb[0].mxu0
      %v4178 = vadd.f32 0.0, %v4177
      %v4179 = vpop.f32.mrb[0].mxu0
      %4180 = vmatprep.mubr.bf16.mxu0 0
      %4181 = vmatmul.mubr.bf16.gmra.mrb[0].mxu0 %v4023
      %v4182 = vpop.f32.mrb[0].mxu0
      %v4183 = vadd.f32 0.0, %v4182
      %v4184 = vpop.f32.mrb[0].mxu0
      %v4185 = vpop.f32.mrb[0].mxu0
      %v4186 = vadd.f32 0.0, %v4185
      %v4187 = vpop.f32.mrb[0].mxu0
      %4188 = vdwg.mxu0
      %v4189 = vadd.f32 %v3832, %v4063
      %v4190 = vadd.f32 %v3835, %v4066
      %v4191 = vadd.f32 %v3840, %v4071
      %v4192 = vadd.f32 %v3843, %v4074
      %v4193 = vadd.f32 %v3848, %v4079
      %v4194 = vadd.f32 %v3851, %v4082
      %v4195 = vadd.f32 %v3856, %v4087
      %v4196 = vadd.f32 %v3859, %v4090
      %v4197 = vadd.f32 %v3864, %v4095
      %v4198 = vadd.f32 %v3867, %v4098
      %v4199 = vadd.f32 %v3872, %v4103
      %v4200 = vadd.f32 %v3875, %v4106
      %v4201 = vadd.f32 %v3880, %v4111
      %v4202 = vadd.f32 %v3883, %v4114
      %v4203 = vadd.f32 %v3888, %v4119
      %v4204 = vadd.f32 %v3891, %v4122
      %v4205 = vadd.f32 %v3896, %v4127
      %v4206 = vadd.f32 %v3899, %v4130
      %v4207 = vadd.f32 %v3904, %v4135
      %v4208 = vadd.f32 %v3907, %v4138
      %v4209 = vadd.f32 %v3912, %v4143
      %v4210 = vadd.f32 %v3915, %v4146
      %v4211 = vadd.f32 %v3920, %v4151
      %v4212 = vadd.f32 %v3923, %v4154
      %v4213 = vadd.f32 %v3928, %v4159
      %v4214 = vadd.f32 %v3931, %v4162
      %v4215 = vadd.f32 %v3936, %v4167
      %v4216 = vadd.f32 %v3939, %v4170
      %v4217 = vadd.f32 %v3944, %v4175
      %v4218 = vadd.f32 %v3947, %v4178
      %v4219 = vadd.f32 %v3952, %v4183
      %v4220 = vadd.f32 %v3955, %v4186
      %s4221 = scalar_lea.vmem [#allocation3], 160
      %v4222 = vld [vmem:[%s4221] sm:$0xff]
      %v4223 = vld [vmem:[%s4221 + $0x8] sm:$0xff]
      %v4224 = vld [vmem:[%s4221 + $0x10] sm:$0xff]
      %v4225 = vld [vmem:[%s4221 + $0x18] sm:$0xff]
      %v4226 = vld [vmem:[%s4221 + $0x20] sm:$0xff]
      %v4227 = vld [vmem:[%s4221 + $0x28] sm:$0xff]
      %v4228 = vld [vmem:[%s4221 + $0x30] sm:$0xff]
      %v4229 = vld [vmem:[%s4221 + $0x38] sm:$0xff]
      %v4230 = vld [vmem:[%s4221 + $0x40] sm:$0xff]
      %v4231 = vld [vmem:[%s4221 + $0x48] sm:$0xff]
      %v4232 = vld [vmem:[%s4221 + $0x50] sm:$0xff]
      %v4233 = vld [vmem:[%s4221 + $0x58] sm:$0xff]
      %v4234 = vld [vmem:[%s4221 + $0x60] sm:$0xff]
      %v4235 = vld [vmem:[%s4221 + $0x68] sm:$0xff]
      %v4236 = vld [vmem:[%s4221 + $0x70] sm:$0xff]
      %v4237 = vld [vmem:[%s4221 + $0x78] sm:$0xff]
      %s4238 = scalar_lea.vmem %s3, 22
      %v4239 = vld [vmem:[%s4238] sm:$0x3]
      %v4241 = vsel %vm530, %v4222, 0
      %v4244 = vsel %vm530, %v4223, 0
      %v4247 = vsel %vm530, %v4224, 0
      %v4250 = vsel %vm530, %v4225, 0
      %v4253 = vsel %vm530, %v4226, 0
      %v4256 = vsel %vm530, %v4227, 0
      %v4259 = vsel %vm530, %v4228, 0
      %v4262 = vsel %vm530, %v4229, 0
      %v4265 = vsel %vm530, %v4230, 0
      %v4268 = vsel %vm530, %v4231, 0
      %v4271 = vsel %vm530, %v4232, 0
      %v4274 = vsel %vm530, %v4233, 0
      %v4277 = vsel %vm530, %v4234, 0
      %v4280 = vsel %vm530, %v4235, 0
      %v4283 = vsel %vm530, %v4236, 0
      %v4286 = vsel %vm530, %v4237, 0
      %v4289 = vsel %vm865, %v4239, 0
      %4291 = vmatprep.subr.bf16.mxu0 0
      %4292 = vmatpush1.bf16.msra.mxu0 %v4289
      %4293 = vmatprep.subr.bf16.mxu0 0
      %4294 = vmatpush1.bf16.msra.mxu0 0
      %4295 = vmatprep.subr.bf16.mxu0 0
      %4296 = vmatpush1.bf16.msra.mxu0 0
      %4297 = vmatprep.subr.bf16.mxu0 0
      %4298 = vmatpush1.bf16.msra.mxu0 0
      %4299 = vmatprep.subr.bf16.mxu0 0
      %4300 = vmatpush1.bf16.msra.mxu0 0
      %4301 = vmatprep.subr.bf16.mxu0 0
      %4302 = vmatpush1.bf16.msra.mxu0 0
      %4303 = vmatprep.subr.bf16.mxu0 0
      %4304 = vmatpush1.bf16.msra.mxu0 0
      %4305 = vmatprep.subr.bf16.mxu0 0
      %4306 = vmatpush1.bf16.msra.mxu0 0
      %4307 = vmatprep.subr.bf16.mxu0 0
      %4308 = vmatpush1.bf16.msra.mxu0 0
      %4309 = vmatprep.subr.bf16.mxu0 0
      %4310 = vmatpush1.bf16.msra.mxu0 0
      %4311 = vmatprep.subr.bf16.mxu0 0
      %4312 = vmatpush1.bf16.msra.mxu0 0
      %4313 = vmatprep.subr.bf16.mxu0 0
      %4314 = vmatpush1.bf16.msra.mxu0 0
      %4315 = vmatprep.subr.bf16.mxu0 0
      %4316 = vmatpush1.bf16.msra.mxu0 0
      %4317 = vmatprep.subr.bf16.mxu0 0
      %4318 = vmatpush1.bf16.msra.mxu0 0
      %4319 = vmatprep.subr.bf16.mxu0 0
      %4320 = vmatpush1.bf16.msra.mxu0 0
      %4321 = vmatprep.subr.bf16.mxu0 0
      %4322 = vmatpush1.bf16.msra.mxu0 0
      %4323 = vmatprep.mubr.bf16.mxu0 0
      %4324 = vmatmul.mubr.bf16.gmra.mrb[0].mxu0 %v4241
      %v4325 = vpop.f32.mrb[0].mxu0
      %v4326 = vadd.f32 0.0, %v4325
      %v4327 = vpop.f32.mrb[0].mxu0
      %v4328 = vpop.f32.mrb[0].mxu0
      %v4329 = vadd.f32 0.0, %v4328
      %v4330 = vpop.f32.mrb[0].mxu0
      %4331 = vmatprep.mubr.bf16.mxu0 0
      %4332 = vmatmul.mubr.bf16.gmra.mrb[0].mxu0 %v4244
      %v4333 = vpop.f32.mrb[0].mxu0
      %v4334 = vadd.f32 0.0, %v4333
      %v4335 = vpop.f32.mrb[0].mxu0
      %v4336 = vpop.f32.mrb[0].mxu0
      %v4337 = vadd.f32 0.0, %v4336
      %v4338 = vpop.f32.mrb[0].mxu0
      %4339 = vmatprep.mubr.bf16.mxu0 0
      %4340 = vmatmul.mubr.bf16.gmra.mrb[0].mxu0 %v4247
      %v4341 = vpop.f32.mrb[0].mxu0
      %v4342 = vadd.f32 0.0, %v4341
      %v4343 = vpop.f32.mrb[0].mxu0
      %v4344 = vpop.f32.mrb[0].mxu0
      %v4345 = vadd.f32 0.0, %v4344
      %v4346 = vpop.f32.mrb[0].mxu0
      %4347 = vmatprep.mubr.bf16.mxu0 0
      %4348 = vmatmul.mubr.bf16.gmra.mrb[0].mxu0 %v4250
      %v4349 = vpop.f32.mrb[0].mxu0
      %v4350 = vadd.f32 0.0, %v4349
      %v4351 = vpop.f32.mrb[0].mxu0
      %v4352 = vpop.f32.mrb[0].mxu0
      %v4353 = vadd.f32 0.0, %v4352
      %v4354 = vpop.f32.mrb[0].mxu0
      %4355 = vmatprep.mubr.bf16.mxu0 0
      %4356 = vmatmul.mubr.bf16.gmra.mrb[0].mxu0 %v4253
      %v4357 = vpop.f32.mrb[0].mxu0
      %v4358 = vadd.f32 0.0, %v4357
      %v4359 = vpop.f32.mrb[0].mxu0
      %v4360 = vpop.f32.mrb[0].mxu0
      %v4361 = vadd.f32 0.0, %v4360
      %v4362 = vpop.f32.mrb[0].mxu0
      %4363 = vmatprep.mubr.bf16.mxu0 0
      %4364 = vmatmul.mubr.bf16.gmra.mrb[0].mxu0 %v4256
      %v4365 = vpop.f32.mrb[0].mxu0
      %v4366 = vadd.f32 0.0, %v4365
      %v4367 = vpop.f32.mrb[0].mxu0
      %v4368 = vpop.f32.mrb[0].mxu0
      %v4369 = vadd.f32 0.0, %v4368
      %v4370 = vpop.f32.mrb[0].mxu0
      %4371 = vmatprep.mubr.bf16.mxu0 0
      %4372 = vmatmul.mubr.bf16.gmra.mrb[0].mxu0 %v4259
      %v4373 = vpop.f32.mrb[0].mxu0
      %v4374 = vadd.f32 0.0, %v4373
      %v4375 = vpop.f32.mrb[0].mxu0
      %v4376 = vpop.f32.mrb[0].mxu0
      %v4377 = vadd.f32 0.0, %v4376
      %v4378 = vpop.f32.mrb[0].mxu0
      %4379 = vmatprep.mubr.bf16.mxu0 0
      %4380 = vmatmul.mubr.bf16.gmra.mrb[0].mxu0 %v4262
      %v4381 = vpop.f32.mrb[0].mxu0
      %v4382 = vadd.f32 0.0, %v4381
      %v4383 = vpop.f32.mrb[0].mxu0
      %v4384 = vpop.f32.mrb[0].mxu0
      %v4385 = vadd.f32 0.0, %v4384
      %v4386 = vpop.f32.mrb[0].mxu0
      %4387 = vmatprep.mubr.bf16.mxu0 0
      %4388 = vmatmul.mubr.bf16.gmra.mrb[0].mxu0 %v4265
      %v4389 = vpop.f32.mrb[0].mxu0
      %v4390 = vadd.f32 0.0, %v4389
      %v4391 = vpop.f32.mrb[0].mxu0
      %v4392 = vpop.f32.mrb[0].mxu0
      %v4393 = vadd.f32 0.0, %v4392
      %v4394 = vpop.f32.mrb[0].mxu0
      %4395 = vmatprep.mubr.bf16.mxu0 0
      %4396 = vmatmul.mubr.bf16.gmra.mrb[0].mxu0 %v4268
      %v4397 = vpop.f32.mrb[0].mxu0
      %v4398 = vadd.f32 0.0, %v4397
      %v4399 = vpop.f32.mrb[0].mxu0
      %v4400 = vpop.f32.mrb[0].mxu0
      %v4401 = vadd.f32 0.0, %v4400
      %v4402 = vpop.f32.mrb[0].mxu0
      %4403 = vmatprep.mubr.bf16.mxu0 0
      %4404 = vmatmul.mubr.bf16.gmra.mrb[0].mxu0 %v4271
      %v4405 = vpop.f32.mrb[0].mxu0
      %v4406 = vadd.f32 0.0, %v4405
      %v4407 = vpop.f32.mrb[0].mxu0
      %v4408 = vpop.f32.mrb[0].mxu0
      %v4409 = vadd.f32 0.0, %v4408
      %v4410 = vpop.f32.mrb[0].mxu0
      %4411 = vmatprep.mubr.bf16.mxu0 0
      %4412 = vmatmul.mubr.bf16.gmra.mrb[0].mxu0 %v4274
      %v4413 = vpop.f32.mrb[0].mxu0
      %v4414 = vadd.f32 0.0, %v4413
      %v4415 = vpop.f32.mrb[0].mxu0
      %v4416 = vpop.f32.mrb[0].mxu0
      %v4417 = vadd.f32 0.0, %v4416
      %v4418 = vpop.f32.mrb[0].mxu0
      %4419 = vmatprep.mubr.bf16.mxu0 0
      %4420 = vmatmul.mubr.bf16.gmra.mrb[0].mxu0 %v4277
      %v4421 = vpop.f32.mrb[0].mxu0
      %v4422 = vadd.f32 0.0, %v4421
      %v4423 = vpop.f32.mrb[0].mxu0
      %v4424 = vpop.f32.mrb[0].mxu0
      %v4425 = vadd.f32 0.0, %v4424
      %v4426 = vpop.f32.mrb[0].mxu0
      %4427 = vmatprep.mubr.bf16.mxu0 0
      %4428 = vmatmul.mubr.bf16.gmra.mrb[0].mxu0 %v4280
      %v4429 = vpop.f32.mrb[0].mxu0
      %v4430 = vadd.f32 0.0, %v4429
      %v4431 = vpop.f32.mrb[0].mxu0
      %v4432 = vpop.f32.mrb[0].mxu0
      %v4433 = vadd.f32 0.0, %v4432
      %v4434 = vpop.f32.mrb[0].mxu0
      %4435 = vmatprep.mubr.bf16.mxu0 0
      %4436 = vmatmul.mubr.bf16.gmra.mrb[0].mxu0 %v4283
      %v4437 = vpop.f32.mrb[0].mxu0
      %v4438 = vadd.f32 0.0, %v4437
      %v4439 = vpop.f32.mrb[0].mxu0
      %v4440 = vpop.f32.mrb[0].mxu0
      %v4441 = vadd.f32 0.0, %v4440
      %v4442 = vpop.f32.mrb[0].mxu0
      %4443 = vmatprep.mubr.bf16.mxu0 0
      %4444 = vmatmul.mubr.bf16.gmra.mrb[0].mxu0 %v4286
      %v4445 = vpop.f32.mrb[0].mxu0
      %v4446 = vadd.f32 0.0, %v4445
      %v4447 = vpop.f32.mrb[0].mxu0
      %v4448 = vpop.f32.mrb[0].mxu0
      %v4449 = vadd.f32 0.0, %v4448
      %v4450 = vpop.f32.mrb[0].mxu0
      %4451 = vdwg.mxu0
      %v4452 = vadd.f32 %v4189, %v4326
      %v4453 = vadd.f32 %v4190, %v4329
      %v4454 = vadd.f32 %v4191, %v4334
      %v4455 = vadd.f32 %v4192, %v4337
      %v4456 = vadd.f32 %v4193, %v4342
      %v4457 = vadd.f32 %v4194, %v4345
      %v4458 = vadd.f32 %v4195, %v4350
      %v4459 = vadd.f32 %v4196, %v4353
      %v4460 = vadd.f32 %v4197, %v4358
      %v4461 = vadd.f32 %v4198, %v4361
      %v4462 = vadd.f32 %v4199, %v4366
      %v4463 = vadd.f32 %v4200, %v4369
      %v4464 = vadd.f32 %v4201, %v4374
      %v4465 = vadd.f32 %v4202, %v4377
      %v4466 = vadd.f32 %v4203, %v4382
      %v4467 = vadd.f32 %v4204, %v4385
      %v4468 = vadd.f32 %v4205, %v4390
      %v4469 = vadd.f32 %v4206, %v4393
      %v4470 = vadd.f32 %v4207, %v4398
      %v4471 = vadd.f32 %v4208, %v4401
      %v4472 = vadd.f32 %v4209, %v4406
      %v4473 = vadd.f32 %v4210, %v4409
      %v4474 = vadd.f32 %v4211, %v4414
      %v4475 = vadd.f32 %v4212, %v4417
      %v4476 = vadd.f32 %v4213, %v4422
      %v4477 = vadd.f32 %v4214, %v4425
      %v4478 = vadd.f32 %v4215, %v4430
      %v4479 = vadd.f32 %v4216, %v4433
      %v4480 = vadd.f32 %v4217, %v4438
      %v4481 = vadd.f32 %v4218, %v4441
      %v4482 = vadd.f32 %v4219, %v4446
      %v4483 = vadd.f32 %v4220, %v4449
      %v4484 = vadd.f32 %v4452, %v1772
      %v4485 = vadd.f32 %v4453, %v1772
      %v4486 = vadd.f32 %v4454, %v1772
      %v4487 = vadd.f32 %v4455, %v1772
      %v4488 = vadd.f32 %v4456, %v1772
      %v4489 = vadd.f32 %v4457, %v1772
      %v4490 = vadd.f32 %v4458, %v1772
      %v4491 = vadd.f32 %v4459, %v1772
      %v4492 = vadd.f32 %v4460, %v1772
      %v4493 = vadd.f32 %v4461, %v1772
      %v4494 = vadd.f32 %v4462, %v1772
      %v4495 = vadd.f32 %v4463, %v1772
      %v4496 = vadd.f32 %v4464, %v1772
      %v4497 = vadd.f32 %v4465, %v1772
      %v4498 = vadd.f32 %v4466, %v1772
      %v4499 = vadd.f32 %v4467, %v1772
      %v4500 = vadd.f32 %v4468, %v1772
      %v4501 = vadd.f32 %v4469, %v1772
      %v4502 = vadd.f32 %v4470, %v1772
      %v4503 = vadd.f32 %v4471, %v1772
      %v4504 = vadd.f32 %v4472, %v1772
      %v4505 = vadd.f32 %v4473, %v1772
      %v4506 = vadd.f32 %v4474, %v1772
      %v4507 = vadd.f32 %v4475, %v1772
      %v4508 = vadd.f32 %v4476, %v1772
      %v4509 = vadd.f32 %v4477, %v1772
      %v4510 = vadd.f32 %v4478, %v1772
      %v4511 = vadd.f32 %v4479, %v1772
      %v4512 = vadd.f32 %v4480, %v1772
      %v4513 = vadd.f32 %v4481, %v1772
      %v4514 = vadd.f32 %v4482, %v1772
      %v4515 = vadd.f32 %v4483, %v1772
      %v4516 = vpack.c.bf16 %v4485, %v4484
      %v4517 = vpack.c.bf16 %v4487, %v4486
      %v4518 = vpack.c.bf16 %v4489, %v4488
      %v4519 = vpack.c.bf16 %v4491, %v4490
      %v4520 = vpack.c.bf16 %v4493, %v4492
      %v4521 = vpack.c.bf16 %v4495, %v4494
      %v4522 = vpack.c.bf16 %v4497, %v4496
      %v4523 = vpack.c.bf16 %v4499, %v4498
      %v4524 = vpack.c.bf16 %v4501, %v4500
      %v4525 = vpack.c.bf16 %v4503, %v4502
      %v4526 = vpack.c.bf16 %v4505, %v4504
      %v4527 = vpack.c.bf16 %v4507, %v4506
      %v4528 = vpack.c.bf16 %v4509, %v4508
      %v4529 = vpack.c.bf16 %v4511, %v4510
      %v4530 = vpack.c.bf16 %v4513, %v4512
      %v4531 = vpack.c.bf16 %v4515, %v4514
      %v4548 = vunpack.c.l.b16 %v4516
      %v4549 = vunpack.c.h.b16 %v4516
      %v4550 = vunpack.c.l.b16 %v4517
      %v4551 = vunpack.c.h.b16 %v4517
      %v4552 = vunpack.c.l.b16 %v4518
      %v4553 = vunpack.c.h.b16 %v4518
      %v4554 = vunpack.c.l.b16 %v4519
      %v4555 = vunpack.c.h.b16 %v4519
      %v4556 = vunpack.c.l.b16 %v4520
      %v4557 = vunpack.c.h.b16 %v4520
      %v4558 = vunpack.c.l.b16 %v4521
      %v4559 = vunpack.c.h.b16 %v4521
      %v4560 = vunpack.c.l.b16 %v4522
      %v4561 = vunpack.c.h.b16 %v4522
      %v4562 = vunpack.c.l.b16 %v4523
      %v4563 = vunpack.c.h.b16 %v4523
      %v4564 = vunpack.c.l.b16 %v4524
      %v4565 = vunpack.c.h.b16 %v4524
      %v4566 = vunpack.c.l.b16 %v4525
      %v4567 = vunpack.c.h.b16 %v4525
      %v4568 = vunpack.c.l.b16 %v4526
      %v4569 = vunpack.c.h.b16 %v4526
      %v4570 = vunpack.c.l.b16 %v4527
      %v4571 = vunpack.c.h.b16 %v4527
      %v4572 = vunpack.c.l.b16 %v4528
      %v4573 = vunpack.c.h.b16 %v4528
      %v4574 = vunpack.c.l.b16 %v4529
      %v4575 = vunpack.c.h.b16 %v4529
      %v4576 = vunpack.c.l.b16 %v4530
      %v4577 = vunpack.c.h.b16 %v4530
      %v4578 = vunpack.c.l.b16 %v4531
      %v4579 = vunpack.c.h.b16 %v4531
      %v4580 = vpack.c.b16 %v4548, %v4548
      %v4581 = vpack.c.b16 %v4549, %v4549
      %v4582 = vpack.c.b16 %v4550, %v4550
      %v4583 = vpack.c.b16 %v4551, %v4551
      %v4584 = vpack.c.b16 %v4552, %v4552
      %v4585 = vpack.c.b16 %v4553, %v4553
      %v4586 = vpack.c.b16 %v4554, %v4554
      %v4587 = vpack.c.b16 %v4555, %v4555
      %v4588 = vpack.c.b16 %v4556, %v4556
      %v4589 = vpack.c.b16 %v4557, %v4557
      %v4590 = vpack.c.b16 %v4558, %v4558
      %v4591 = vpack.c.b16 %v4559, %v4559
      %v4592 = vpack.c.b16 %v4560, %v4560
      %v4593 = vpack.c.b16 %v4561, %v4561
      %v4594 = vpack.c.b16 %v4562, %v4562
      %v4595 = vpack.c.b16 %v4563, %v4563
      %v4596 = vpack.c.b16 %v4564, %v4564
      %v4597 = vpack.c.b16 %v4565, %v4565
      %v4598 = vpack.c.b16 %v4566, %v4566
      %v4599 = vpack.c.b16 %v4567, %v4567
      %v4600 = vpack.c.b16 %v4568, %v4568
      %v4601 = vpack.c.b16 %v4569, %v4569
      %v4602 = vpack.c.b16 %v4570, %v4570
      %v4603 = vpack.c.b16 %v4571, %v4571
      %v4604 = vpack.c.b16 %v4572, %v4572
      %v4605 = vpack.c.b16 %v4573, %v4573
      %v4606 = vpack.c.b16 %v4574, %v4574
      %v4607 = vpack.c.b16 %v4575, %v4575
      %v4608 = vpack.c.b16 %v4576, %v4576
      %v4609 = vpack.c.b16 %v4577, %v4577
      %v4610 = vpack.c.b16 %v4578, %v4578
      %v4611 = vpack.c.b16 %v4579, %v4579
      %s4644 = scalar_lea.vmem %s273, 256
      %4645 = vst.msk [vmem:[%s4644] sm:$0xf] %vm1934, %v4580
      %4646 = vst.msk [vmem:[%s4644 + $0x4] sm:$0xf] %vm1934, %v4581
      %4647 = vst.msk [vmem:[%s4644 + $0x8] sm:$0xf] %vm1934, %v4582
      %4648 = vst.msk [vmem:[%s4644 + $0xc] sm:$0xf] %vm1934, %v4583
      %4649 = vst.msk [vmem:[%s4644 + $0x10] sm:$0xf] %vm1934, %v4584
      %4650 = vst.msk [vmem:[%s4644 + $0x14] sm:$0xf] %vm1934, %v4585
      %4651 = vst.msk [vmem:[%s4644 + $0x18] sm:$0xf] %vm1934, %v4586
      %4652 = vst.msk [vmem:[%s4644 + $0x1c] sm:$0xf] %vm1934, %v4587
      %4653 = vst.msk [vmem:[%s4644 + $0x20] sm:$0xf] %vm1934, %v4588
      %4654 = vst.msk [vmem:[%s4644 + $0x24] sm:$0xf] %vm1934, %v4589
      %4655 = vst.msk [vmem:[%s4644 + $0x28] sm:$0xf] %vm1934, %v4590
      %4656 = vst.msk [vmem:[%s4644 + $0x2c] sm:$0xf] %vm1934, %v4591
      %4657 = vst.msk [vmem:[%s4644 + $0x30] sm:$0xf] %vm1934, %v4592
      %4658 = vst.msk [vmem:[%s4644 + $0x34] sm:$0xf] %vm1934, %v4593
      %4659 = vst.msk [vmem:[%s4644 + $0x38] sm:$0xf] %vm1934, %v4594
      %4660 = vst.msk [vmem:[%s4644 + $0x3c] sm:$0xf] %vm1934, %v4595
      %4661 = vst.msk [vmem:[%s4644 + $0x40] sm:$0xf] %vm1934, %v4596
      %4662 = vst.msk [vmem:[%s4644 + $0x44] sm:$0xf] %vm1934, %v4597
      %4663 = vst.msk [vmem:[%s4644 + $0x48] sm:$0xf] %vm1934, %v4598
      %4664 = vst.msk [vmem:[%s4644 + $0x4c] sm:$0xf] %vm1934, %v4599
      %4665 = vst.msk [vmem:[%s4644 + $0x50] sm:$0xf] %vm1934, %v4600
      %4666 = vst.msk [vmem:[%s4644 + $0x54] sm:$0xf] %vm1934, %v4601
      %4667 = vst.msk [vmem:[%s4644 + $0x58] sm:$0xf] %vm1934, %v4602
      %4668 = vst.msk [vmem:[%s4644 + $0x5c] sm:$0xf] %vm1934, %v4603
      %4669 = vst.msk [vmem:[%s4644 + $0x60] sm:$0xf] %vm1934, %v4604
      %4670 = vst.msk [vmem:[%s4644 + $0x64] sm:$0xf] %vm1934, %v4605
      %4671 = vst.msk [vmem:[%s4644 + $0x68] sm:$0xf] %vm1934, %v4606
      %4672 = vst.msk [vmem:[%s4644 + $0x6c] sm:$0xf] %vm1934, %v4607
      %4673 = vst.msk [vmem:[%s4644 + $0x70] sm:$0xf] %vm1934, %v4608
      %4674 = vst.msk [vmem:[%s4644 + $0x74] sm:$0xf] %vm1934, %v4609
      %4675 = vst.msk [vmem:[%s4644 + $0x78] sm:$0xf] %vm1934, %v4610
      %4676 = vst.msk [vmem:[%s4644 + $0x7c] sm:$0xf] %vm1934, %v4611
      %v4677 = vld [vmem:[%s6] sm:$0x1]
      %v4678 = vsel %vm530, %v4484, 0.0
      %v4679 = vsel %vm530, %v4485, 0.0
      %v4680 = vadd.f32 %v4678, %v4679
      %v4681 = vsel %vm530, %v4486, 0.0
      %v4682 = vadd.f32 %v4680, %v4681
      %v4683 = vsel %vm530, %v4487, 0.0
      %v4684 = vadd.f32 %v4682, %v4683
      %v4685 = vsel %vm530, %v4488, 0.0
      %v4686 = vadd.f32 %v4684, %v4685
      %v4687 = vsel %vm530, %v4489, 0.0
      %v4688 = vadd.f32 %v4686, %v4687
      %v4689 = vsel %vm530, %v4490, 0.0
      %v4690 = vadd.f32 %v4688, %v4689
      %v4691 = vsel %vm530, %v4491, 0.0
      %v4692 = vadd.f32 %v4690, %v4691
      %v4693 = vsel %vm530, %v4492, 0.0
      %v4694 = vadd.f32 %v4692, %v4693
      %v4695 = vsel %vm530, %v4493, 0.0
      %v4696 = vadd.f32 %v4694, %v4695
      %v4697 = vsel %vm530, %v4494, 0.0
      %v4698 = vadd.f32 %v4696, %v4697
      %v4699 = vsel %vm530, %v4495, 0.0
      %v4700 = vadd.f32 %v4698, %v4699
      %v4701 = vsel %vm530, %v4496, 0.0
      %v4702 = vadd.f32 %v4700, %v4701
      %v4703 = vsel %vm530, %v4497, 0.0
      %v4704 = vadd.f32 %v4702, %v4703
      %v4705 = vsel %vm530, %v4498, 0.0
      %v4706 = vadd.f32 %v4704, %v4705
      %v4707 = vsel %vm530, %v4499, 0.0
      %v4708 = vadd.f32 %v4706, %v4707
      %v4709 = vsel %vm530, %v4500, 0.0
      %v4710 = vadd.f32 %v4708, %v4709
      %v4711 = vsel %vm530, %v4501, 0.0
      %v4712 = vadd.f32 %v4710, %v4711
      %v4713 = vsel %vm530, %v4502, 0.0
      %v4714 = vadd.f32 %v4712, %v4713
      %v4715 = vsel %vm530, %v4503, 0.0
      %v4716 = vadd.f32 %v4714, %v4715
      %v4717 = vsel %vm530, %v4504, 0.0
      %v4718 = vadd.f32 %v4716, %v4717
      %v4719 = vsel %vm530, %v4505, 0.0
      %v4720 = vadd.f32 %v4718, %v4719
      %v4721 = vsel %vm530, %v4506, 0.0
      %v4722 = vadd.f32 %v4720, %v4721
      %v4723 = vsel %vm530, %v4507, 0.0
      %v4724 = vadd.f32 %v4722, %v4723
      %v4725 = vsel %vm530, %v4508, 0.0
      %v4726 = vadd.f32 %v4724, %v4725
      %v4727 = vsel %vm530, %v4509, 0.0
      %v4728 = vadd.f32 %v4726, %v4727
      %v4729 = vsel %vm530, %v4510, 0.0
      %v4730 = vadd.f32 %v4728, %v4729
      %v4731 = vsel %vm530, %v4511, 0.0
      %v4732 = vadd.f32 %v4730, %v4731
      %v4733 = vsel %vm530, %v4512, 0.0
      %v4734 = vadd.f32 %v4732, %v4733
      %v4735 = vsel %vm530, %v4513, 0.0
      %v4736 = vadd.f32 %v4734, %v4735
      %v4737 = vsel %vm530, %v4514, 0.0
      %v4738 = vadd.f32 %v4736, %v4737
      %v4739 = vsel %vm530, %v4515, 0.0
      %v4740 = vadd.f32 %v4738, %v4739
      %v4741 = vrot.slane %v4740, 4
      %v4742 = vadd.f32 %v4740, %v4741
      %v4743 = vrot.slane %v4742, 2
      %v4744 = vadd.f32 %v4742, %v4743
      %v4745 = vrot.slane %v4744, 1
      %v4746 = vadd.f32 %v4744, %v4745
      %v4747 = vadd.f32 %v4677, %v4746
      %4748 = vst.msk [vmem:[%s6] sm:$0x1] %vm2038, %v4747
      %v4749 = vld [vmem:[%s7] sm:$0x1]
      %v4750 = vmul.f32 %v4484, %v4484
      %v4751 = vmul.f32 %v4485, %v4485
      %v4752 = vmul.f32 %v4486, %v4486
      %v4753 = vmul.f32 %v4487, %v4487
      %v4754 = vmul.f32 %v4488, %v4488
      %v4755 = vmul.f32 %v4489, %v4489
      %v4756 = vmul.f32 %v4490, %v4490
      %v4757 = vmul.f32 %v4491, %v4491
      %v4758 = vmul.f32 %v4492, %v4492
      %v4759 = vmul.f32 %v4493, %v4493
      %v4760 = vmul.f32 %v4494, %v4494
      %v4761 = vmul.f32 %v4495, %v4495
      %v4762 = vmul.f32 %v4496, %v4496
      %v4763 = vmul.f32 %v4497, %v4497
      %v4764 = vmul.f32 %v4498, %v4498
      %v4765 = vmul.f32 %v4499, %v4499
      %v4766 = vmul.f32 %v4500, %v4500
      %v4767 = vmul.f32 %v4501, %v4501
      %v4768 = vmul.f32 %v4502, %v4502
      %v4769 = vmul.f32 %v4503, %v4503
      %v4770 = vmul.f32 %v4504, %v4504
      %v4771 = vmul.f32 %v4505, %v4505
      %v4772 = vmul.f32 %v4506, %v4506
      %v4773 = vmul.f32 %v4507, %v4507
      %v4774 = vmul.f32 %v4508, %v4508
      %v4775 = vmul.f32 %v4509, %v4509
      %v4776 = vmul.f32 %v4510, %v4510
      %v4777 = vmul.f32 %v4511, %v4511
      %v4778 = vmul.f32 %v4512, %v4512
      %v4779 = vmul.f32 %v4513, %v4513
      %v4780 = vmul.f32 %v4514, %v4514
      %v4781 = vmul.f32 %v4515, %v4515
      %v4782 = vsel %vm530, %v4750, 0.0
      %v4783 = vsel %vm530, %v4751, 0.0
      %v4784 = vadd.f32 %v4782, %v4783
      %v4785 = vsel %vm530, %v4752, 0.0
      %v4786 = vadd.f32 %v4784, %v4785
      %v4787 = vsel %vm530, %v4753, 0.0
      %v4788 = vadd.f32 %v4786, %v4787
      %v4789 = vsel %vm530, %v4754, 0.0
      %v4790 = vadd.f32 %v4788, %v4789
      %v4791 = vsel %vm530, %v4755, 0.0
      %v4792 = vadd.f32 %v4790, %v4791
      %v4793 = vsel %vm530, %v4756, 0.0
      %v4794 = vadd.f32 %v4792, %v4793
      %v4795 = vsel %vm530, %v4757, 0.0
      %v4796 = vadd.f32 %v4794, %v4795
      %v4797 = vsel %vm530, %v4758, 0.0
      %v4798 = vadd.f32 %v4796, %v4797
      %v4799 = vsel %vm530, %v4759, 0.0
      %v4800 = vadd.f32 %v4798, %v4799
      %v4801 = vsel %vm530, %v4760, 0.0
      %v4802 = vadd.f32 %v4800, %v4801
      %v4803 = vsel %vm530, %v4761, 0.0
      %v4804 = vadd.f32 %v4802, %v4803
      %v4805 = vsel %vm530, %v4762, 0.0
      %v4806 = vadd.f32 %v4804, %v4805
      %v4807 = vsel %vm530, %v4763, 0.0
      %v4808 = vadd.f32 %v4806, %v4807
      %v4809 = vsel %vm530, %v4764, 0.0
      %v4810 = vadd.f32 %v4808, %v4809
      %v4811 = vsel %vm530, %v4765, 0.0
      %v4812 = vadd.f32 %v4810, %v4811
      %v4813 = vsel %vm530, %v4766, 0.0
      %v4814 = vadd.f32 %v4812, %v4813
      %v4815 = vsel %vm530, %v4767, 0.0
      %v4816 = vadd.f32 %v4814, %v4815
      %v4817 = vsel %vm530, %v4768, 0.0
      %v4818 = vadd.f32 %v4816, %v4817
      %v4819 = vsel %vm530, %v4769, 0.0
      %v4820 = vadd.f32 %v4818, %v4819
      %v4821 = vsel %vm530, %v4770, 0.0
      %v4822 = vadd.f32 %v4820, %v4821
      %v4823 = vsel %vm530, %v4771, 0.0
      %v4824 = vadd.f32 %v4822, %v4823
      %v4825 = vsel %vm530, %v4772, 0.0
      %v4826 = vadd.f32 %v4824, %v4825
      %v4827 = vsel %vm530, %v4773, 0.0
      %v4828 = vadd.f32 %v4826, %v4827
      %v4829 = vsel %vm530, %v4774, 0.0
      %v4830 = vadd.f32 %v4828, %v4829
      %v4831 = vsel %vm530, %v4775, 0.0
      %v4832 = vadd.f32 %v4830, %v4831
      %v4833 = vsel %vm530, %v4776, 0.0
      %v4834 = vadd.f32 %v4832, %v4833
      %v4835 = vsel %vm530, %v4777, 0.0
      %v4836 = vadd.f32 %v4834, %v4835
      %v4837 = vsel %vm530, %v4778, 0.0
      %v4838 = vadd.f32 %v4836, %v4837
      %v4839 = vsel %vm530, %v4779, 0.0
      %v4840 = vadd.f32 %v4838, %v4839
      %v4841 = vsel %vm530, %v4780, 0.0
      %v4842 = vadd.f32 %v4840, %v4841
      %v4843 = vsel %vm530, %v4781, 0.0
      %v4844 = vadd.f32 %v4842, %v4843
      %v4845 = vrot.slane %v4844, 4
      %v4846 = vadd.f32 %v4844, %v4845
      %v4847 = vrot.slane %v4846, 2
      %v4848 = vadd.f32 %v4846, %v4847
      %v4849 = vrot.slane %v4848, 1
      %v4850 = vadd.f32 %v4848, %v4849
      %v4851 = vadd.f32 %v4749, %v4850
      %4852 = vst.msk [vmem:[%s7] sm:$0x1] %vm2038, %v4851
      %v4853 = vld [vmem:[%s1505] sm:$0xff]
      %v4854 = vld [vmem:[%s1505 + $0x8] sm:$0xff]
      %v4855 = vld [vmem:[%s1505 + $0x10] sm:$0xff]
      %v4856 = vld [vmem:[%s1505 + $0x18] sm:$0xff]
      %v4857 = vld [vmem:[%s1505 + $0x20] sm:$0xff]
      %v4858 = vld [vmem:[%s1505 + $0x28] sm:$0xff]
      %v4859 = vld [vmem:[%s1505 + $0x30] sm:$0xff]
      %v4860 = vld [vmem:[%s1505 + $0x38] sm:$0xff]
      %v4861 = vld [vmem:[%s1505 + $0x40] sm:$0xff]
      %v4862 = vld [vmem:[%s1505 + $0x48] sm:$0xff]
      %v4863 = vld [vmem:[%s1505 + $0x50] sm:$0xff]
      %v4864 = vld [vmem:[%s1505 + $0x58] sm:$0xff]
      %v4865 = vld [vmem:[%s1505 + $0x60] sm:$0xff]
      %v4866 = vld [vmem:[%s1505 + $0x68] sm:$0xff]
      %v4867 = vld [vmem:[%s1505 + $0x70] sm:$0xff]
      %v4868 = vld [vmem:[%s1505 + $0x78] sm:$0xff]
      %s4869 = scalar_lea.vmem %s3, 24
      %v4870 = vld [vmem:[%s4869] sm:$0x3]
      %v4871 = vld [vmem:[%s2866] sm:$0xff]
      %v4872 = vld [vmem:[%s2866 + $0x8] sm:$0xff]
      %v4873 = vld [vmem:[%s2866 + $0x10] sm:$0xff]
      %v4874 = vld [vmem:[%s2866 + $0x18] sm:$0xff]
      %v4875 = vld [vmem:[%s2866 + $0x20] sm:$0xff]
      %v4876 = vld [vmem:[%s2866 + $0x28] sm:$0xff]
      %v4877 = vld [vmem:[%s2866 + $0x30] sm:$0xff]
      %v4878 = vld [vmem:[%s2866 + $0x38] sm:$0xff]
      %v4879 = vld [vmem:[%s2866 + $0x40] sm:$0xff]
      %v4880 = vld [vmem:[%s2866 + $0x48] sm:$0xff]
      %v4881 = vld [vmem:[%s2866 + $0x50] sm:$0xff]
      %v4882 = vld [vmem:[%s2866 + $0x58] sm:$0xff]
      %v4883 = vld [vmem:[%s2866 + $0x60] sm:$0xff]
      %v4884 = vld [vmem:[%s2866 + $0x68] sm:$0xff]
      %v4885 = vld [vmem:[%s2866 + $0x70] sm:$0xff]
      %v4886 = vld [vmem:[%s2866 + $0x78] sm:$0xff]
      %s4887 = scalar_lea.vmem %s3, 26
      %v4888 = vld [vmem:[%s4887] sm:$0x3]
      %v4890 = vsel %vm530, %v4871, 0
      %v4893 = vsel %vm530, %v4872, 0
      %v4896 = vsel %vm530, %v4873, 0
      %v4899 = vsel %vm530, %v4874, 0
      %v4902 = vsel %vm530, %v4875, 0
      %v4905 = vsel %vm530, %v4876, 0
      %v4908 = vsel %vm530, %v4877, 0
      %v4911 = vsel %vm530, %v4878, 0
      %v4914 = vsel %vm530, %v4879, 0
      %v4917 = vsel %vm530, %v4880, 0
      %v4920 = vsel %vm530, %v4881, 0
      %v4923 = vsel %vm530, %v4882, 0
      %v4926 = vsel %vm530, %v4883, 0
      %v4929 = vsel %vm530, %v4884, 0
      %v4932 = vsel %vm530, %v4885, 0
      %v4935 = vsel %vm530, %v4886, 0
      %v4938 = vsel %vm865, %v4888, 0
      %4940 = vmatprep.subr.bf16.mxu0 0
      %4941 = vmatpush1.bf16.msra.mxu0 %v4938
      %4942 = vmatprep.subr.bf16.mxu0 0
      %4943 = vmatpush1.bf16.msra.mxu0 0
      %4944 = vmatprep.subr.bf16.mxu0 0
      %4945 = vmatpush1.bf16.msra.mxu0 0
      %4946 = vmatprep.subr.bf16.mxu0 0
      %4947 = vmatpush1.bf16.msra.mxu0 0
      %4948 = vmatprep.subr.bf16.mxu0 0
      %4949 = vmatpush1.bf16.msra.mxu0 0
      %4950 = vmatprep.subr.bf16.mxu0 0
      %4951 = vmatpush1.bf16.msra.mxu0 0
      %4952 = vmatprep.subr.bf16.mxu0 0
      %4953 = vmatpush1.bf16.msra.mxu0 0
      %4954 = vmatprep.subr.bf16.mxu0 0
      %4955 = vmatpush1.bf16.msra.mxu0 0
      %4956 = vmatprep.subr.bf16.mxu0 0
      %4957 = vmatpush1.bf16.msra.mxu0 0
      %4958 = vmatprep.subr.bf16.mxu0 0
      %4959 = vmatpush1.bf16.msra.mxu0 0
      %4960 = vmatprep.subr.bf16.mxu0 0
      %4961 = vmatpush1.bf16.msra.mxu0 0
      %4962 = vmatprep.subr.bf16.mxu0 0
      %4963 = vmatpush1.bf16.msra.mxu0 0
      %4964 = vmatprep.subr.bf16.mxu0 0
      %4965 = vmatpush1.bf16.msra.mxu0 0
      %4966 = vmatprep.subr.bf16.mxu0 0
      %4967 = vmatpush1.bf16.msra.mxu0 0
      %4968 = vmatprep.subr.bf16.mxu0 0
      %4969 = vmatpush1.bf16.msra.mxu0 0
      %4970 = vmatprep.subr.bf16.mxu0 0
      %4971 = vmatpush1.bf16.msra.mxu0 0
      %4972 = vmatprep.mubr.bf16.mxu0 0
      %4973 = vmatmul.mubr.bf16.gmra.mrb[0].mxu0 %v4890
      %v4974 = vpop.f32.mrb[0].mxu0
      %v4975 = vadd.f32 0.0, %v4974
      %v4976 = vpop.f32.mrb[0].mxu0
      %v4977 = vpop.f32.mrb[0].mxu0
      %v4978 = vadd.f32 0.0, %v4977
      %v4979 = vpop.f32.mrb[0].mxu0
      %4980 = vmatprep.mubr.bf16.mxu0 0
      %4981 = vmatmul.mubr.bf16.gmra.mrb[0].mxu0 %v4893
      %v4982 = vpop.f32.mrb[0].mxu0
      %v4983 = vadd.f32 0.0, %v4982
      %v4984 = vpop.f32.mrb[0].mxu0
      %v4985 = vpop.f32.mrb[0].mxu0
      %v4986 = vadd.f32 0.0, %v4985
      %v4987 = vpop.f32.mrb[0].mxu0
      %4988 = vmatprep.mubr.bf16.mxu0 0
      %4989 = vmatmul.mubr.bf16.gmra.mrb[0].mxu0 %v4896
      %v4990 = vpop.f32.mrb[0].mxu0
      %v4991 = vadd.f32 0.0, %v4990
      %v4992 = vpop.f32.mrb[0].mxu0
      %v4993 = vpop.f32.mrb[0].mxu0
      %v4994 = vadd.f32 0.0, %v4993
      %v4995 = vpop.f32.mrb[0].mxu0
      %4996 = vmatprep.mubr.bf16.mxu0 0
      %4997 = vmatmul.mubr.bf16.gmra.mrb[0].mxu0 %v4899
      %v4998 = vpop.f32.mrb[0].mxu0
      %v4999 = vadd.f32 0.0, %v4998
      %v5000 = vpop.f32.mrb[0].mxu0
      %v5001 = vpop.f32.mrb[0].mxu0
      %v5002 = vadd.f32 0.0, %v5001
      %v5003 = vpop.f32.mrb[0].mxu0
      %5004 = vmatprep.mubr.bf16.mxu0 0
      %5005 = vmatmul.mubr.bf16.gmra.mrb[0].mxu0 %v4902
      %v5006 = vpop.f32.mrb[0].mxu0
      %v5007 = vadd.f32 0.0, %v5006
      %v5008 = vpop.f32.mrb[0].mxu0
      %v5009 = vpop.f32.mrb[0].mxu0
      %v5010 = vadd.f32 0.0, %v5009
      %v5011 = vpop.f32.mrb[0].mxu0
      %5012 = vmatprep.mubr.bf16.mxu0 0
      %5013 = vmatmul.mubr.bf16.gmra.mrb[0].mxu0 %v4905
      %v5014 = vpop.f32.mrb[0].mxu0
      %v5015 = vadd.f32 0.0, %v5014
      %v5016 = vpop.f32.mrb[0].mxu0
      %v5017 = vpop.f32.mrb[0].mxu0
      %v5018 = vadd.f32 0.0, %v5017
      %v5019 = vpop.f32.mrb[0].mxu0
      %5020 = vmatprep.mubr.bf16.mxu0 0
      %5021 = vmatmul.mubr.bf16.gmra.mrb[0].mxu0 %v4908
      %v5022 = vpop.f32.mrb[0].mxu0
      %v5023 = vadd.f32 0.0, %v5022
      %v5024 = vpop.f32.mrb[0].mxu0
      %v5025 = vpop.f32.mrb[0].mxu0
      %v5026 = vadd.f32 0.0, %v5025
      %v5027 = vpop.f32.mrb[0].mxu0
      %5028 = vmatprep.mubr.bf16.mxu0 0
      %5029 = vmatmul.mubr.bf16.gmra.mrb[0].mxu0 %v4911
      %v5030 = vpop.f32.mrb[0].mxu0
      %v5031 = vadd.f32 0.0, %v5030
      %v5032 = vpop.f32.mrb[0].mxu0
      %v5033 = vpop.f32.mrb[0].mxu0
      %v5034 = vadd.f32 0.0, %v5033
      %v5035 = vpop.f32.mrb[0].mxu0
      %5036 = vmatprep.mubr.bf16.mxu0 0
      %5037 = vmatmul.mubr.bf16.gmra.mrb[0].mxu0 %v4914
      %v5038 = vpop.f32.mrb[0].mxu0
      %v5039 = vadd.f32 0.0, %v5038
      %v5040 = vpop.f32.mrb[0].mxu0
      %v5041 = vpop.f32.mrb[0].mxu0
      %v5042 = vadd.f32 0.0, %v5041
      %v5043 = vpop.f32.mrb[0].mxu0
      %5044 = vmatprep.mubr.bf16.mxu0 0
      %5045 = vmatmul.mubr.bf16.gmra.mrb[0].mxu0 %v4917
      %v5046 = vpop.f32.mrb[0].mxu0
      %v5047 = vadd.f32 0.0, %v5046
      %v5048 = vpop.f32.mrb[0].mxu0
      %v5049 = vpop.f32.mrb[0].mxu0
      %v5050 = vadd.f32 0.0, %v5049
      %v5051 = vpop.f32.mrb[0].mxu0
      %5052 = vmatprep.mubr.bf16.mxu0 0
      %5053 = vmatmul.mubr.bf16.gmra.mrb[0].mxu0 %v4920
      %v5054 = vpop.f32.mrb[0].mxu0
      %v5055 = vadd.f32 0.0, %v5054
      %v5056 = vpop.f32.mrb[0].mxu0
      %v5057 = vpop.f32.mrb[0].mxu0
      %v5058 = vadd.f32 0.0, %v5057
      %v5059 = vpop.f32.mrb[0].mxu0
      %5060 = vmatprep.mubr.bf16.mxu0 0
      %5061 = vmatmul.mubr.bf16.gmra.mrb[0].mxu0 %v4923
      %v5062 = vpop.f32.mrb[0].mxu0
      %v5063 = vadd.f32 0.0, %v5062
      %v5064 = vpop.f32.mrb[0].mxu0
      %v5065 = vpop.f32.mrb[0].mxu0
      %v5066 = vadd.f32 0.0, %v5065
      %v5067 = vpop.f32.mrb[0].mxu0
      %5068 = vmatprep.mubr.bf16.mxu0 0
      %5069 = vmatmul.mubr.bf16.gmra.mrb[0].mxu0 %v4926
      %v5070 = vpop.f32.mrb[0].mxu0
      %v5071 = vadd.f32 0.0, %v5070
      %v5072 = vpop.f32.mrb[0].mxu0
      %v5073 = vpop.f32.mrb[0].mxu0
      %v5074 = vadd.f32 0.0, %v5073
      %v5075 = vpop.f32.mrb[0].mxu0
      %5076 = vmatprep.mubr.bf16.mxu0 0
      %5077 = vmatmul.mubr.bf16.gmra.mrb[0].mxu0 %v4929
      %v5078 = vpop.f32.mrb[0].mxu0
      %v5079 = vadd.f32 0.0, %v5078
      %v5080 = vpop.f32.mrb[0].mxu0
      %v5081 = vpop.f32.mrb[0].mxu0
      %v5082 = vadd.f32 0.0, %v5081
      %v5083 = vpop.f32.mrb[0].mxu0
      %5084 = vmatprep.mubr.bf16.mxu0 0
      %5085 = vmatmul.mubr.bf16.gmra.mrb[0].mxu0 %v4932
      %v5086 = vpop.f32.mrb[0].mxu0
      %v5087 = vadd.f32 0.0, %v5086
      %v5088 = vpop.f32.mrb[0].mxu0
      %v5089 = vpop.f32.mrb[0].mxu0
      %v5090 = vadd.f32 0.0, %v5089
      %v5091 = vpop.f32.mrb[0].mxu0
      %5092 = vmatprep.mubr.bf16.mxu0 0
      %5093 = vmatmul.mubr.bf16.gmra.mrb[0].mxu0 %v4935
      %v5094 = vpop.f32.mrb[0].mxu0
      %v5095 = vadd.f32 0.0, %v5094
      %v5096 = vpop.f32.mrb[0].mxu0
      %v5097 = vpop.f32.mrb[0].mxu0
      %v5098 = vadd.f32 0.0, %v5097
      %v5099 = vpop.f32.mrb[0].mxu0
      %5100 = vdwg.mxu0
      %v5102 = vsel %vm530, %v4853, 0
      %v5105 = vsel %vm530, %v4854, 0
      %v5108 = vsel %vm530, %v4855, 0
      %v5111 = vsel %vm530, %v4856, 0
      %v5114 = vsel %vm530, %v4857, 0
      %v5117 = vsel %vm530, %v4858, 0
      %v5120 = vsel %vm530, %v4859, 0
      %v5123 = vsel %vm530, %v4860, 0
      %v5126 = vsel %vm530, %v4861, 0
      %v5129 = vsel %vm530, %v4862, 0
      %v5132 = vsel %vm530, %v4863, 0
      %v5135 = vsel %vm530, %v4864, 0
      %v5138 = vsel %vm530, %v4865, 0
      %v5141 = vsel %vm530, %v4866, 0
      %v5144 = vsel %vm530, %v4867, 0
      %v5147 = vsel %vm530, %v4868, 0
      %v5150 = vsel %vm865, %v4870, 0
      %5152 = vmatprep.subr.bf16.mxu0 0
      %5153 = vmatpush1.bf16.msra.mxu0 %v5150
      %5154 = vmatprep.subr.bf16.mxu0 0
      %5155 = vmatpush1.bf16.msra.mxu0 0
      %5156 = vmatprep.subr.bf16.mxu0 0
      %5157 = vmatpush1.bf16.msra.mxu0 0
      %5158 = vmatprep.subr.bf16.mxu0 0
      %5159 = vmatpush1.bf16.msra.mxu0 0
      %5160 = vmatprep.subr.bf16.mxu0 0
      %5161 = vmatpush1.bf16.msra.mxu0 0
      %5162 = vmatprep.subr.bf16.mxu0 0
      %5163 = vmatpush1.bf16.msra.mxu0 0
      %5164 = vmatprep.subr.bf16.mxu0 0
      %5165 = vmatpush1.bf16.msra.mxu0 0
      %5166 = vmatprep.subr.bf16.mxu0 0
      %5167 = vmatpush1.bf16.msra.mxu0 0
      %5168 = vmatprep.subr.bf16.mxu0 0
      %5169 = vmatpush1.bf16.msra.mxu0 0
      %5170 = vmatprep.subr.bf16.mxu0 0
      %5171 = vmatpush1.bf16.msra.mxu0 0
      %5172 = vmatprep.subr.bf16.mxu0 0
      %5173 = vmatpush1.bf16.msra.mxu0 0
      %5174 = vmatprep.subr.bf16.mxu0 0
      %5175 = vmatpush1.bf16.msra.mxu0 0
      %5176 = vmatprep.subr.bf16.mxu0 0
      %5177 = vmatpush1.bf16.msra.mxu0 0
      %5178 = vmatprep.subr.bf16.mxu0 0
      %5179 = vmatpush1.bf16.msra.mxu0 0
      %5180 = vmatprep.subr.bf16.mxu0 0
      %5181 = vmatpush1.bf16.msra.mxu0 0
      %5182 = vmatprep.subr.bf16.mxu0 0
      %5183 = vmatpush1.bf16.msra.mxu0 0
      %5184 = vmatprep.mubr.bf16.mxu0 0
      %5185 = vmatmul.mubr.bf16.gmra.mrb[0].mxu0 %v5102
      %v5186 = vpop.f32.mrb[0].mxu0
      %v5187 = vadd.f32 %v4975, %v5186
      %v5188 = vpop.f32.mrb[0].mxu0
      %v5189 = vpop.f32.mrb[0].mxu0
      %v5190 = vadd.f32 %v4978, %v5189
      %v5191 = vpop.f32.mrb[0].mxu0
      %5192 = vmatprep.mubr.bf16.mxu0 0
      %5193 = vmatmul.mubr.bf16.gmra.mrb[0].mxu0 %v5105
      %v5194 = vpop.f32.mrb[0].mxu0
      %v5195 = vadd.f32 %v4983, %v5194
      %v5196 = vpop.f32.mrb[0].mxu0
      %v5197 = vpop.f32.mrb[0].mxu0
      %v5198 = vadd.f32 %v4986, %v5197
      %v5199 = vpop.f32.mrb[0].mxu0
      %5200 = vmatprep.mubr.bf16.mxu0 0
      %5201 = vmatmul.mubr.bf16.gmra.mrb[0].mxu0 %v5108
      %v5202 = vpop.f32.mrb[0].mxu0
      %v5203 = vadd.f32 %v4991, %v5202
      %v5204 = vpop.f32.mrb[0].mxu0
      %v5205 = vpop.f32.mrb[0].mxu0
      %v5206 = vadd.f32 %v4994, %v5205
      %v5207 = vpop.f32.mrb[0].mxu0
      %5208 = vmatprep.mubr.bf16.mxu0 0
      %5209 = vmatmul.mubr.bf16.gmra.mrb[0].mxu0 %v5111
      %v5210 = vpop.f32.mrb[0].mxu0
      %v5211 = vadd.f32 %v4999, %v5210
      %v5212 = vpop.f32.mrb[0].mxu0
      %v5213 = vpop.f32.mrb[0].mxu0
      %v5214 = vadd.f32 %v5002, %v5213
      %v5215 = vpop.f32.mrb[0].mxu0
      %5216 = vmatprep.mubr.bf16.mxu0 0
      %5217 = vmatmul.mubr.bf16.gmra.mrb[0].mxu0 %v5114
      %v5218 = vpop.f32.mrb[0].mxu0
      %v5219 = vadd.f32 %v5007, %v5218
      %v5220 = vpop.f32.mrb[0].mxu0
      %v5221 = vpop.f32.mrb[0].mxu0
      %v5222 = vadd.f32 %v5010, %v5221
      %v5223 = vpop.f32.mrb[0].mxu0
      %5224 = vmatprep.mubr.bf16.mxu0 0
      %5225 = vmatmul.mubr.bf16.gmra.mrb[0].mxu0 %v5117
      %v5226 = vpop.f32.mrb[0].mxu0
      %v5227 = vadd.f32 %v5015, %v5226
      %v5228 = vpop.f32.mrb[0].mxu0
      %v5229 = vpop.f32.mrb[0].mxu0
      %v5230 = vadd.f32 %v5018, %v5229
      %v5231 = vpop.f32.mrb[0].mxu0
      %5232 = vmatprep.mubr.bf16.mxu0 0
      %5233 = vmatmul.mubr.bf16.gmra.mrb[0].mxu0 %v5120
      %v5234 = vpop.f32.mrb[0].mxu0
      %v5235 = vadd.f32 %v5023, %v5234
      %v5236 = vpop.f32.mrb[0].mxu0
      %v5237 = vpop.f32.mrb[0].mxu0
      %v5238 = vadd.f32 %v5026, %v5237
      %v5239 = vpop.f32.mrb[0].mxu0
      %5240 = vmatprep.mubr.bf16.mxu0 0
      %5241 = vmatmul.mubr.bf16.gmra.mrb[0].mxu0 %v5123
      %v5242 = vpop.f32.mrb[0].mxu0
      %v5243 = vadd.f32 %v5031, %v5242
      %v5244 = vpop.f32.mrb[0].mxu0
      %v5245 = vpop.f32.mrb[0].mxu0
      %v5246 = vadd.f32 %v5034, %v5245
      %v5247 = vpop.f32.mrb[0].mxu0
      %5248 = vmatprep.mubr.bf16.mxu0 0
      %5249 = vmatmul.mubr.bf16.gmra.mrb[0].mxu0 %v5126
      %v5250 = vpop.f32.mrb[0].mxu0
      %v5251 = vadd.f32 %v5039, %v5250
      %v5252 = vpop.f32.mrb[0].mxu0
      %v5253 = vpop.f32.mrb[0].mxu0
      %v5254 = vadd.f32 %v5042, %v5253
      %v5255 = vpop.f32.mrb[0].mxu0
      %5256 = vmatprep.mubr.bf16.mxu0 0
      %5257 = vmatmul.mubr.bf16.gmra.mrb[0].mxu0 %v5129
      %v5258 = vpop.f32.mrb[0].mxu0
      %v5259 = vadd.f32 %v5047, %v5258
      %v5260 = vpop.f32.mrb[0].mxu0
      %v5261 = vpop.f32.mrb[0].mxu0
      %v5262 = vadd.f32 %v5050, %v5261
      %v5263 = vpop.f32.mrb[0].mxu0
      %5264 = vmatprep.mubr.bf16.mxu0 0
      %5265 = vmatmul.mubr.bf16.gmra.mrb[0].mxu0 %v5132
      %v5266 = vpop.f32.mrb[0].mxu0
      %v5267 = vadd.f32 %v5055, %v5266
      %v5268 = vpop.f32.mrb[0].mxu0
      %v5269 = vpop.f32.mrb[0].mxu0
      %v5270 = vadd.f32 %v5058, %v5269
      %v5271 = vpop.f32.mrb[0].mxu0
      %5272 = vmatprep.mubr.bf16.mxu0 0
      %5273 = vmatmul.mubr.bf16.gmra.mrb[0].mxu0 %v5135
      %v5274 = vpop.f32.mrb[0].mxu0
      %v5275 = vadd.f32 %v5063, %v5274
      %v5276 = vpop.f32.mrb[0].mxu0
      %v5277 = vpop.f32.mrb[0].mxu0
      %v5278 = vadd.f32 %v5066, %v5277
      %v5279 = vpop.f32.mrb[0].mxu0
      %5280 = vmatprep.mubr.bf16.mxu0 0
      %5281 = vmatmul.mubr.bf16.gmra.mrb[0].mxu0 %v5138
      %v5282 = vpop.f32.mrb[0].mxu0
      %v5283 = vadd.f32 %v5071, %v5282
      %v5284 = vpop.f32.mrb[0].mxu0
      %v5285 = vpop.f32.mrb[0].mxu0
      %v5286 = vadd.f32 %v5074, %v5285
      %v5287 = vpop.f32.mrb[0].mxu0
      %5288 = vmatprep.mubr.bf16.mxu0 0
      %5289 = vmatmul.mubr.bf16.gmra.mrb[0].mxu0 %v5141
      %v5290 = vpop.f32.mrb[0].mxu0
      %v5291 = vadd.f32 %v5079, %v5290
      %v5292 = vpop.f32.mrb[0].mxu0
      %v5293 = vpop.f32.mrb[0].mxu0
      %v5294 = vadd.f32 %v5082, %v5293
      %v5295 = vpop.f32.mrb[0].mxu0
      %5296 = vmatprep.mubr.bf16.mxu0 0
      %5297 = vmatmul.mubr.bf16.gmra.mrb[0].mxu0 %v5144
      %v5298 = vpop.f32.mrb[0].mxu0
      %v5299 = vadd.f32 %v5087, %v5298
      %v5300 = vpop.f32.mrb[0].mxu0
      %v5301 = vpop.f32.mrb[0].mxu0
      %v5302 = vadd.f32 %v5090, %v5301
      %v5303 = vpop.f32.mrb[0].mxu0
      %5304 = vmatprep.mubr.bf16.mxu0 0
      %5305 = vmatmul.mubr.bf16.gmra.mrb[0].mxu0 %v5147
      %v5306 = vpop.f32.mrb[0].mxu0
      %v5307 = vadd.f32 %v5095, %v5306
      %v5308 = vpop.f32.mrb[0].mxu0
      %v5309 = vpop.f32.mrb[0].mxu0
      %v5310 = vadd.f32 %v5098, %v5309
      %v5311 = vpop.f32.mrb[0].mxu0
      %5312 = vdwg.mxu0
      %v5313 = vld [vmem:[%s4221] sm:$0xff]
      %v5314 = vld [vmem:[%s4221 + $0x8] sm:$0xff]
      %v5315 = vld [vmem:[%s4221 + $0x10] sm:$0xff]
      %v5316 = vld [vmem:[%s4221 + $0x18] sm:$0xff]
      %v5317 = vld [vmem:[%s4221 + $0x20] sm:$0xff]
      %v5318 = vld [vmem:[%s4221 + $0x28] sm:$0xff]
      %v5319 = vld [vmem:[%s4221 + $0x30] sm:$0xff]
      %v5320 = vld [vmem:[%s4221 + $0x38] sm:$0xff]
      %v5321 = vld [vmem:[%s4221 + $0x40] sm:$0xff]
      %v5322 = vld [vmem:[%s4221 + $0x48] sm:$0xff]
      %v5323 = vld [vmem:[%s4221 + $0x50] sm:$0xff]
      %v5324 = vld [vmem:[%s4221 + $0x58] sm:$0xff]
      %v5325 = vld [vmem:[%s4221 + $0x60] sm:$0xff]
      %v5326 = vld [vmem:[%s4221 + $0x68] sm:$0xff]
      %v5327 = vld [vmem:[%s4221 + $0x70] sm:$0xff]
      %v5328 = vld [vmem:[%s4221 + $0x78] sm:$0xff]
      %s5329 = scalar_lea.vmem %s3, 28
      %v5330 = vld [vmem:[%s5329] sm:$0x3]
      %v5332 = vsel %vm530, %v5313, 0
      %v5335 = vsel %vm530, %v5314, 0
      %v5338 = vsel %vm530, %v5315, 0
      %v5341 = vsel %vm530, %v5316, 0
      %v5344 = vsel %vm530, %v5317, 0
      %v5347 = vsel %vm530, %v5318, 0
      %v5350 = vsel %vm530, %v5319, 0
      %v5353 = vsel %vm530, %v5320, 0
      %v5356 = vsel %vm530, %v5321, 0
      %v5359 = vsel %vm530, %v5322, 0
      %v5362 = vsel %vm530, %v5323, 0
      %v5365 = vsel %vm530, %v5324, 0
      %v5368 = vsel %vm530, %v5325, 0
      %v5371 = vsel %vm530, %v5326, 0
      %v5374 = vsel %vm530, %v5327, 0
      %v5377 = vsel %vm530, %v5328, 0
      %v5380 = vsel %vm865, %v5330, 0
      %5382 = vmatprep.subr.bf16.mxu0 0
      %5383 = vmatpush1.bf16.msra.mxu0 %v5380
      %5384 = vmatprep.subr.bf16.mxu0 0
      %5385 = vmatpush1.bf16.msra.mxu0 0
      %5386 = vmatprep.subr.bf16.mxu0 0
      %5387 = vmatpush1.bf16.msra.mxu0 0
      %5388 = vmatprep.subr.bf16.mxu0 0
      %5389 = vmatpush1.bf16.msra.mxu0 0
      %5390 = vmatprep.subr.bf16.mxu0 0
      %5391 = vmatpush1.bf16.msra.mxu0 0
      %5392 = vmatprep.subr.bf16.mxu0 0
      %5393 = vmatpush1.bf16.msra.mxu0 0
      %5394 = vmatprep.subr.bf16.mxu0 0
      %5395 = vmatpush1.bf16.msra.mxu0 0
      %5396 = vmatprep.subr.bf16.mxu0 0
      %5397 = vmatpush1.bf16.msra.mxu0 0
      %5398 = vmatprep.subr.bf16.mxu0 0
      %5399 = vmatpush1.bf16.msra.mxu0 0
      %5400 = vmatprep.subr.bf16.mxu0 0
      %5401 = vmatpush1.bf16.msra.mxu0 0
      %5402 = vmatprep.subr.bf16.mxu0 0
      %5403 = vmatpush1.bf16.msra.mxu0 0
      %5404 = vmatprep.subr.bf16.mxu0 0
      %5405 = vmatpush1.bf16.msra.mxu0 0
      %5406 = vmatprep.subr.bf16.mxu0 0
      %5407 = vmatpush1.bf16.msra.mxu0 0
      %5408 = vmatprep.subr.bf16.mxu0 0
      %5409 = vmatpush1.bf16.msra.mxu0 0
      %5410 = vmatprep.subr.bf16.mxu0 0
      %5411 = vmatpush1.bf16.msra.mxu0 0
      %5412 = vmatprep.subr.bf16.mxu0 0
      %5413 = vmatpush1.bf16.msra.mxu0 0
      %5414 = vmatprep.mubr.bf16.mxu0 0
      %5415 = vmatmul.mubr.bf16.gmra.mrb[0].mxu0 %v5332
      %v5416 = vpop.f32.mrb[0].mxu0
      %v5417 = vadd.f32 0.0, %v5416
      %v5418 = vpop.f32.mrb[0].mxu0
      %v5419 = vpop.f32.mrb[0].mxu0
      %v5420 = vadd.f32 0.0, %v5419
      %v5421 = vpop.f32.mrb[0].mxu0
      %5422 = vmatprep.mubr.bf16.mxu0 0
      %5423 = vmatmul.mubr.bf16.gmra.mrb[0].mxu0 %v5335
      %v5424 = vpop.f32.mrb[0].mxu0
      %v5425 = vadd.f32 0.0, %v5424
      %v5426 = vpop.f32.mrb[0].mxu0
      %v5427 = vpop.f32.mrb[0].mxu0
      %v5428 = vadd.f32 0.0, %v5427
      %v5429 = vpop.f32.mrb[0].mxu0
      %5430 = vmatprep.mubr.bf16.mxu0 0
      %5431 = vmatmul.mubr.bf16.gmra.mrb[0].mxu0 %v5338
      %v5432 = vpop.f32.mrb[0].mxu0
      %v5433 = vadd.f32 0.0, %v5432
      %v5434 = vpop.f32.mrb[0].mxu0
      %v5435 = vpop.f32.mrb[0].mxu0
      %v5436 = vadd.f32 0.0, %v5435
      %v5437 = vpop.f32.mrb[0].mxu0
      %5438 = vmatprep.mubr.bf16.mxu0 0
      %5439 = vmatmul.mubr.bf16.gmra.mrb[0].mxu0 %v5341
      %v5440 = vpop.f32.mrb[0].mxu0
      %v5441 = vadd.f32 0.0, %v5440
      %v5442 = vpop.f32.mrb[0].mxu0
      %v5443 = vpop.f32.mrb[0].mxu0
      %v5444 = vadd.f32 0.0, %v5443
      %v5445 = vpop.f32.mrb[0].mxu0
      %5446 = vmatprep.mubr.bf16.mxu0 0
      %5447 = vmatmul.mubr.bf16.gmra.mrb[0].mxu0 %v5344
      %v5448 = vpop.f32.mrb[0].mxu0
      %v5449 = vadd.f32 0.0, %v5448
      %v5450 = vpop.f32.mrb[0].mxu0
      %v5451 = vpop.f32.mrb[0].mxu0
      %v5452 = vadd.f32 0.0, %v5451
      %v5453 = vpop.f32.mrb[0].mxu0
      %5454 = vmatprep.mubr.bf16.mxu0 0
      %5455 = vmatmul.mubr.bf16.gmra.mrb[0].mxu0 %v5347
      %v5456 = vpop.f32.mrb[0].mxu0
      %v5457 = vadd.f32 0.0, %v5456
      %v5458 = vpop.f32.mrb[0].mxu0
      %v5459 = vpop.f32.mrb[0].mxu0
      %v5460 = vadd.f32 0.0, %v5459
      %v5461 = vpop.f32.mrb[0].mxu0
      %5462 = vmatprep.mubr.bf16.mxu0 0
      %5463 = vmatmul.mubr.bf16.gmra.mrb[0].mxu0 %v5350
      %v5464 = vpop.f32.mrb[0].mxu0
      %v5465 = vadd.f32 0.0, %v5464
      %v5466 = vpop.f32.mrb[0].mxu0
      %v5467 = vpop.f32.mrb[0].mxu0
      %v5468 = vadd.f32 0.0, %v5467
      %v5469 = vpop.f32.mrb[0].mxu0
      %5470 = vmatprep.mubr.bf16.mxu0 0
      %5471 = vmatmul.mubr.bf16.gmra.mrb[0].mxu0 %v5353
      %v5472 = vpop.f32.mrb[0].mxu0
      %v5473 = vadd.f32 0.0, %v5472
      %v5474 = vpop.f32.mrb[0].mxu0
      %v5475 = vpop.f32.mrb[0].mxu0
      %v5476 = vadd.f32 0.0, %v5475
      %v5477 = vpop.f32.mrb[0].mxu0
      %5478 = vmatprep.mubr.bf16.mxu0 0
      %5479 = vmatmul.mubr.bf16.gmra.mrb[0].mxu0 %v5356
      %v5480 = vpop.f32.mrb[0].mxu0
      %v5481 = vadd.f32 0.0, %v5480
      %v5482 = vpop.f32.mrb[0].mxu0
      %v5483 = vpop.f32.mrb[0].mxu0
      %v5484 = vadd.f32 0.0, %v5483
      %v5485 = vpop.f32.mrb[0].mxu0
      %5486 = vmatprep.mubr.bf16.mxu0 0
      %5487 = vmatmul.mubr.bf16.gmra.mrb[0].mxu0 %v5359
      %v5488 = vpop.f32.mrb[0].mxu0
      %v5489 = vadd.f32 0.0, %v5488
      %v5490 = vpop.f32.mrb[0].mxu0
      %v5491 = vpop.f32.mrb[0].mxu0
      %v5492 = vadd.f32 0.0, %v5491
      %v5493 = vpop.f32.mrb[0].mxu0
      %5494 = vmatprep.mubr.bf16.mxu0 0
      %5495 = vmatmul.mubr.bf16.gmra.mrb[0].mxu0 %v5362
      %v5496 = vpop.f32.mrb[0].mxu0
      %v5497 = vadd.f32 0.0, %v5496
      %v5498 = vpop.f32.mrb[0].mxu0
      %v5499 = vpop.f32.mrb[0].mxu0
      %v5500 = vadd.f32 0.0, %v5499
      %v5501 = vpop.f32.mrb[0].mxu0
      %5502 = vmatprep.mubr.bf16.mxu0 0
      %5503 = vmatmul.mubr.bf16.gmra.mrb[0].mxu0 %v5365
      %v5504 = vpop.f32.mrb[0].mxu0
      %v5505 = vadd.f32 0.0, %v5504
      %v5506 = vpop.f32.mrb[0].mxu0
      %v5507 = vpop.f32.mrb[0].mxu0
      %v5508 = vadd.f32 0.0, %v5507
      %v5509 = vpop.f32.mrb[0].mxu0
      %5510 = vmatprep.mubr.bf16.mxu0 0
      %5511 = vmatmul.mubr.bf16.gmra.mrb[0].mxu0 %v5368
      %v5512 = vpop.f32.mrb[0].mxu0
      %v5513 = vadd.f32 0.0, %v5512
      %v5514 = vpop.f32.mrb[0].mxu0
      %v5515 = vpop.f32.mrb[0].mxu0
      %v5516 = vadd.f32 0.0, %v5515
      %v5517 = vpop.f32.mrb[0].mxu0
      %5518 = vmatprep.mubr.bf16.mxu0 0
      %5519 = vmatmul.mubr.bf16.gmra.mrb[0].mxu0 %v5371
      %v5520 = vpop.f32.mrb[0].mxu0
      %v5521 = vadd.f32 0.0, %v5520
      %v5522 = vpop.f32.mrb[0].mxu0
      %v5523 = vpop.f32.mrb[0].mxu0
      %v5524 = vadd.f32 0.0, %v5523
      %v5525 = vpop.f32.mrb[0].mxu0
      %5526 = vmatprep.mubr.bf16.mxu0 0
      %5527 = vmatmul.mubr.bf16.gmra.mrb[0].mxu0 %v5374
      %v5528 = vpop.f32.mrb[0].mxu0
      %v5529 = vadd.f32 0.0, %v5528
      %v5530 = vpop.f32.mrb[0].mxu0
      %v5531 = vpop.f32.mrb[0].mxu0
      %v5532 = vadd.f32 0.0, %v5531
      %v5533 = vpop.f32.mrb[0].mxu0
      %5534 = vmatprep.mubr.bf16.mxu0 0
      %5535 = vmatmul.mubr.bf16.gmra.mrb[0].mxu0 %v5377
      %v5536 = vpop.f32.mrb[0].mxu0
      %v5537 = vadd.f32 0.0, %v5536
      %v5538 = vpop.f32.mrb[0].mxu0
      %v5539 = vpop.f32.mrb[0].mxu0
      %v5540 = vadd.f32 0.0, %v5539
      %v5541 = vpop.f32.mrb[0].mxu0
      %5542 = vdwg.mxu0
      %v5543 = vadd.f32 %v5187, %v5417
      %v5544 = vadd.f32 %v5190, %v5420
      %v5545 = vadd.f32 %v5195, %v5425
      %v5546 = vadd.f32 %v5198, %v5428
      %v5547 = vadd.f32 %v5203, %v5433
      %v5548 = vadd.f32 %v5206, %v5436
      %v5549 = vadd.f32 %v5211, %v5441
      %v5550 = vadd.f32 %v5214, %v5444
      %v5551 = vadd.f32 %v5219, %v5449
      %v5552 = vadd.f32 %v5222, %v5452
      %v5553 = vadd.f32 %v5227, %v5457
      %v5554 = vadd.f32 %v5230, %v5460
      %v5555 = vadd.f32 %v5235, %v5465
      %v5556 = vadd.f32 %v5238, %v5468
      %v5557 = vadd.f32 %v5243, %v5473
      %v5558 = vadd.f32 %v5246, %v5476
      %v5559 = vadd.f32 %v5251, %v5481
      %v5560 = vadd.f32 %v5254, %v5484
      %v5561 = vadd.f32 %v5259, %v5489
      %v5562 = vadd.f32 %v5262, %v5492
      %v5563 = vadd.f32 %v5267, %v5497
      %v5564 = vadd.f32 %v5270, %v5500
      %v5565 = vadd.f32 %v5275, %v5505
      %v5566 = vadd.f32 %v5278, %v5508
      %v5567 = vadd.f32 %v5283, %v5513
      %v5568 = vadd.f32 %v5286, %v5516
      %v5569 = vadd.f32 %v5291, %v5521
      %v5570 = vadd.f32 %v5294, %v5524
      %v5571 = vadd.f32 %v5299, %v5529
      %v5572 = vadd.f32 %v5302, %v5532
      %v5573 = vadd.f32 %v5307, %v5537
      %v5574 = vadd.f32 %v5310, %v5540
      %s5575 = scalar_lea.vmem [#allocation3], 304
      %v5576 = vld [vmem:[%s5575] sm:$0xff]
      %v5577 = vld [vmem:[%s5575 + $0x8] sm:$0xff]
      %v5578 = vld [vmem:[%s5575 + $0x10] sm:$0xff]
      %v5579 = vld [vmem:[%s5575 + $0x18] sm:$0xff]
      %v5580 = vld [vmem:[%s5575 + $0x20] sm:$0xff]
      %v5581 = vld [vmem:[%s5575 + $0x28] sm:$0xff]
      %v5582 = vld [vmem:[%s5575 + $0x30] sm:$0xff]
      %v5583 = vld [vmem:[%s5575 + $0x38] sm:$0xff]
      %v5584 = vld [vmem:[%s5575 + $0x40] sm:$0xff]
      %v5585 = vld [vmem:[%s5575 + $0x48] sm:$0xff]
      %v5586 = vld [vmem:[%s5575 + $0x50] sm:$0xff]
      %v5587 = vld [vmem:[%s5575 + $0x58] sm:$0xff]
      %v5588 = vld [vmem:[%s5575 + $0x60] sm:$0xff]
      %v5589 = vld [vmem:[%s5575 + $0x68] sm:$0xff]
      %v5590 = vld [vmem:[%s5575 + $0x70] sm:$0xff]
      %v5591 = vld [vmem:[%s5575 + $0x78] sm:$0xff]
      %s5592 = scalar_lea.vmem %s3, 30
      %v5593 = vld [vmem:[%s5592] sm:$0x3]
      %v5595 = vsel %vm530, %v5576, 0
      %v5598 = vsel %vm530, %v5577, 0
      %v5601 = vsel %vm530, %v5578, 0
      %v5604 = vsel %vm530, %v5579, 0
      %v5607 = vsel %vm530, %v5580, 0
      %v5610 = vsel %vm530, %v5581, 0
      %v5613 = vsel %vm530, %v5582, 0
      %v5616 = vsel %vm530, %v5583, 0
      %v5619 = vsel %vm530, %v5584, 0
      %v5622 = vsel %vm530, %v5585, 0
      %v5625 = vsel %vm530, %v5586, 0
      %v5628 = vsel %vm530, %v5587, 0
      %v5631 = vsel %vm530, %v5588, 0
      %v5634 = vsel %vm530, %v5589, 0
      %v5637 = vsel %vm530, %v5590, 0
      %v5640 = vsel %vm530, %v5591, 0
      %v5643 = vsel %vm865, %v5593, 0
      %5645 = vmatprep.subr.bf16.mxu0 0
      %5646 = vmatpush1.bf16.msra.mxu0 %v5643
      %5647 = vmatprep.subr.bf16.mxu0 0
      %5648 = vmatpush1.bf16.msra.mxu0 0
      %5649 = vmatprep.subr.bf16.mxu0 0
      %5650 = vmatpush1.bf16.msra.mxu0 0
      %5651 = vmatprep.subr.bf16.mxu0 0
      %5652 = vmatpush1.bf16.msra.mxu0 0
      %5653 = vmatprep.subr.bf16.mxu0 0
      %5654 = vmatpush1.bf16.msra.mxu0 0
      %5655 = vmatprep.subr.bf16.mxu0 0
      %5656 = vmatpush1.bf16.msra.mxu0 0
      %5657 = vmatprep.subr.bf16.mxu0 0
      %5658 = vmatpush1.bf16.msra.mxu0 0
      %5659 = vmatprep.subr.bf16.mxu0 0
      %5660 = vmatpush1.bf16.msra.mxu0 0
      %5661 = vmatprep.subr.bf16.mxu0 0
      %5662 = vmatpush1.bf16.msra.mxu0 0
      %5663 = vmatprep.subr.bf16.mxu0 0
      %5664 = vmatpush1.bf16.msra.mxu0 0
      %5665 = vmatprep.subr.bf16.mxu0 0
      %5666 = vmatpush1.bf16.msra.mxu0 0
      %5667 = vmatprep.subr.bf16.mxu0 0
      %5668 = vmatpush1.bf16.msra.mxu0 0
      %5669 = vmatprep.subr.bf16.mxu0 0
      %5670 = vmatpush1.bf16.msra.mxu0 0
      %5671 = vmatprep.subr.bf16.mxu0 0
      %5672 = vmatpush1.bf16.msra.mxu0 0
      %5673 = vmatprep.subr.bf16.mxu0 0
      %5674 = vmatpush1.bf16.msra.mxu0 0
      %5675 = vmatprep.subr.bf16.mxu0 0
      %5676 = vmatpush1.bf16.msra.mxu0 0
      %5677 = vmatprep.mubr.bf16.mxu0 0
      %5678 = vmatmul.mubr.bf16.gmra.mrb[0].mxu0 %v5595
      %v5679 = vpop.f32.mrb[0].mxu0
      %v5680 = vadd.f32 0.0, %v5679
      %v5681 = vpop.f32.mrb[0].mxu0
      %v5682 = vpop.f32.mrb[0].mxu0
      %v5683 = vadd.f32 0.0, %v5682
      %v5684 = vpop.f32.mrb[0].mxu0
      %5685 = vmatprep.mubr.bf16.mxu0 0
      %5686 = vmatmul.mubr.bf16.gmra.mrb[0].mxu0 %v5598
      %v5687 = vpop.f32.mrb[0].mxu0
      %v5688 = vadd.f32 0.0, %v5687
      %v5689 = vpop.f32.mrb[0].mxu0
      %v5690 = vpop.f32.mrb[0].mxu0
      %v5691 = vadd.f32 0.0, %v5690
      %v5692 = vpop.f32.mrb[0].mxu0
      %5693 = vmatprep.mubr.bf16.mxu0 0
      %5694 = vmatmul.mubr.bf16.gmra.mrb[0].mxu0 %v5601
      %v5695 = vpop.f32.mrb[0].mxu0
      %v5696 = vadd.f32 0.0, %v5695
      %v5697 = vpop.f32.mrb[0].mxu0
      %v5698 = vpop.f32.mrb[0].mxu0
      %v5699 = vadd.f32 0.0, %v5698
      %v5700 = vpop.f32.mrb[0].mxu0
      %5701 = vmatprep.mubr.bf16.mxu0 0
      %5702 = vmatmul.mubr.bf16.gmra.mrb[0].mxu0 %v5604
      %v5703 = vpop.f32.mrb[0].mxu0
      %v5704 = vadd.f32 0.0, %v5703
      %v5705 = vpop.f32.mrb[0].mxu0
      %v5706 = vpop.f32.mrb[0].mxu0
      %v5707 = vadd.f32 0.0, %v5706
      %v5708 = vpop.f32.mrb[0].mxu0
      %5709 = vmatprep.mubr.bf16.mxu0 0
      %5710 = vmatmul.mubr.bf16.gmra.mrb[0].mxu0 %v5607
      %v5711 = vpop.f32.mrb[0].mxu0
      %v5712 = vadd.f32 0.0, %v5711
      %v5713 = vpop.f32.mrb[0].mxu0
      %v5714 = vpop.f32.mrb[0].mxu0
      %v5715 = vadd.f32 0.0, %v5714
      %v5716 = vpop.f32.mrb[0].mxu0
      %5717 = vmatprep.mubr.bf16.mxu0 0
      %5718 = vmatmul.mubr.bf16.gmra.mrb[0].mxu0 %v5610
      %v5719 = vpop.f32.mrb[0].mxu0
      %v5720 = vadd.f32 0.0, %v5719
      %v5721 = vpop.f32.mrb[0].mxu0
      %v5722 = vpop.f32.mrb[0].mxu0
      %v5723 = vadd.f32 0.0, %v5722
      %v5724 = vpop.f32.mrb[0].mxu0
      %5725 = vmatprep.mubr.bf16.mxu0 0
      %5726 = vmatmul.mubr.bf16.gmra.mrb[0].mxu0 %v5613
      %v5727 = vpop.f32.mrb[0].mxu0
      %v5728 = vadd.f32 0.0, %v5727
      %v5729 = vpop.f32.mrb[0].mxu0
      %v5730 = vpop.f32.mrb[0].mxu0
      %v5731 = vadd.f32 0.0, %v5730
      %v5732 = vpop.f32.mrb[0].mxu0
      %5733 = vmatprep.mubr.bf16.mxu0 0
      %5734 = vmatmul.mubr.bf16.gmra.mrb[0].mxu0 %v5616
      %v5735 = vpop.f32.mrb[0].mxu0
      %v5736 = vadd.f32 0.0, %v5735
      %v5737 = vpop.f32.mrb[0].mxu0
      %v5738 = vpop.f32.mrb[0].mxu0
      %v5739 = vadd.f32 0.0, %v5738
      %v5740 = vpop.f32.mrb[0].mxu0
      %5741 = vmatprep.mubr.bf16.mxu0 0
      %5742 = vmatmul.mubr.bf16.gmra.mrb[0].mxu0 %v5619
      %v5743 = vpop.f32.mrb[0].mxu0
      %v5744 = vadd.f32 0.0, %v5743
      %v5745 = vpop.f32.mrb[0].mxu0
      %v5746 = vpop.f32.mrb[0].mxu0
      %v5747 = vadd.f32 0.0, %v5746
      %v5748 = vpop.f32.mrb[0].mxu0
      %5749 = vmatprep.mubr.bf16.mxu0 0
      %5750 = vmatmul.mubr.bf16.gmra.mrb[0].mxu0 %v5622
      %v5751 = vpop.f32.mrb[0].mxu0
      %v5752 = vadd.f32 0.0, %v5751
      %v5753 = vpop.f32.mrb[0].mxu0
      %v5754 = vpop.f32.mrb[0].mxu0
      %v5755 = vadd.f32 0.0, %v5754
      %v5756 = vpop.f32.mrb[0].mxu0
      %5757 = vmatprep.mubr.bf16.mxu0 0
      %5758 = vmatmul.mubr.bf16.gmra.mrb[0].mxu0 %v5625
      %v5759 = vpop.f32.mrb[0].mxu0
      %v5760 = vadd.f32 0.0, %v5759
      %v5761 = vpop.f32.mrb[0].mxu0
      %v5762 = vpop.f32.mrb[0].mxu0
      %v5763 = vadd.f32 0.0, %v5762
      %v5764 = vpop.f32.mrb[0].mxu0
      %5765 = vmatprep.mubr.bf16.mxu0 0
      %5766 = vmatmul.mubr.bf16.gmra.mrb[0].mxu0 %v5628
      %v5767 = vpop.f32.mrb[0].mxu0
      %v5768 = vadd.f32 0.0, %v5767
      %v5769 = vpop.f32.mrb[0].mxu0
      %v5770 = vpop.f32.mrb[0].mxu0
      %v5771 = vadd.f32 0.0, %v5770
      %v5772 = vpop.f32.mrb[0].mxu0
      %5773 = vmatprep.mubr.bf16.mxu0 0
      %5774 = vmatmul.mubr.bf16.gmra.mrb[0].mxu0 %v5631
      %v5775 = vpop.f32.mrb[0].mxu0
      %v5776 = vadd.f32 0.0, %v5775
      %v5777 = vpop.f32.mrb[0].mxu0
      %v5778 = vpop.f32.mrb[0].mxu0
      %v5779 = vadd.f32 0.0, %v5778
      %v5780 = vpop.f32.mrb[0].mxu0
      %5781 = vmatprep.mubr.bf16.mxu0 0
      %5782 = vmatmul.mubr.bf16.gmra.mrb[0].mxu0 %v5634
      %v5783 = vpop.f32.mrb[0].mxu0
      %v5784 = vadd.f32 0.0, %v5783
      %v5785 = vpop.f32.mrb[0].mxu0
      %v5786 = vpop.f32.mrb[0].mxu0
      %v5787 = vadd.f32 0.0, %v5786
      %v5788 = vpop.f32.mrb[0].mxu0
      %5789 = vmatprep.mubr.bf16.mxu0 0
      %5790 = vmatmul.mubr.bf16.gmra.mrb[0].mxu0 %v5637
      %v5791 = vpop.f32.mrb[0].mxu0
      %v5792 = vadd.f32 0.0, %v5791
      %v5793 = vpop.f32.mrb[0].mxu0
      %v5794 = vpop.f32.mrb[0].mxu0
      %v5795 = vadd.f32 0.0, %v5794
      %v5796 = vpop.f32.mrb[0].mxu0
      %5797 = vmatprep.mubr.bf16.mxu0 0
      %5798 = vmatmul.mubr.bf16.gmra.mrb[0].mxu0 %v5640
      %v5799 = vpop.f32.mrb[0].mxu0
      %v5800 = vadd.f32 0.0, %v5799
      %v5801 = vpop.f32.mrb[0].mxu0
      %v5802 = vpop.f32.mrb[0].mxu0
      %v5803 = vadd.f32 0.0, %v5802
      %v5804 = vpop.f32.mrb[0].mxu0
      %5805 = vdwg.mxu0
      %v5806 = vadd.f32 %v5543, %v5680
      %v5807 = vadd.f32 %v5544, %v5683
      %v5808 = vadd.f32 %v5545, %v5688
      %v5809 = vadd.f32 %v5546, %v5691
      %v5810 = vadd.f32 %v5547, %v5696
      %v5811 = vadd.f32 %v5548, %v5699
      %v5812 = vadd.f32 %v5549, %v5704
      %v5813 = vadd.f32 %v5550, %v5707
      %v5814 = vadd.f32 %v5551, %v5712
      %v5815 = vadd.f32 %v5552, %v5715
      %v5816 = vadd.f32 %v5553, %v5720
      %v5817 = vadd.f32 %v5554, %v5723
      %v5818 = vadd.f32 %v5555, %v5728
      %v5819 = vadd.f32 %v5556, %v5731
      %v5820 = vadd.f32 %v5557, %v5736
      %v5821 = vadd.f32 %v5558, %v5739
      %v5822 = vadd.f32 %v5559, %v5744
      %v5823 = vadd.f32 %v5560, %v5747
      %v5824 = vadd.f32 %v5561, %v5752
      %v5825 = vadd.f32 %v5562, %v5755
      %v5826 = vadd.f32 %v5563, %v5760
      %v5827 = vadd.f32 %v5564, %v5763
      %v5828 = vadd.f32 %v5565, %v5768
      %v5829 = vadd.f32 %v5566, %v5771
      %v5830 = vadd.f32 %v5567, %v5776
      %v5831 = vadd.f32 %v5568, %v5779
      %v5832 = vadd.f32 %v5569, %v5784
      %v5833 = vadd.f32 %v5570, %v5787
      %v5834 = vadd.f32 %v5571, %v5792
      %v5835 = vadd.f32 %v5572, %v5795
      %v5836 = vadd.f32 %v5573, %v5800
      %v5837 = vadd.f32 %v5574, %v5803
      %v5838 = vadd.f32 %v5806, %v1772
      %v5839 = vadd.f32 %v5807, %v1772
      %v5840 = vadd.f32 %v5808, %v1772
      %v5841 = vadd.f32 %v5809, %v1772
      %v5842 = vadd.f32 %v5810, %v1772
      %v5843 = vadd.f32 %v5811, %v1772
      %v5844 = vadd.f32 %v5812, %v1772
      %v5845 = vadd.f32 %v5813, %v1772
      %v5846 = vadd.f32 %v5814, %v1772
      %v5847 = vadd.f32 %v5815, %v1772
      %v5848 = vadd.f32 %v5816, %v1772
      %v5849 = vadd.f32 %v5817, %v1772
      %v5850 = vadd.f32 %v5818, %v1772
      %v5851 = vadd.f32 %v5819, %v1772
      %v5852 = vadd.f32 %v5820, %v1772
      %v5853 = vadd.f32 %v5821, %v1772
      %v5854 = vadd.f32 %v5822, %v1772
      %v5855 = vadd.f32 %v5823, %v1772
      %v5856 = vadd.f32 %v5824, %v1772
      %v5857 = vadd.f32 %v5825, %v1772
      %v5858 = vadd.f32 %v5826, %v1772
      %v5859 = vadd.f32 %v5827, %v1772
      %v5860 = vadd.f32 %v5828, %v1772
      %v5861 = vadd.f32 %v5829, %v1772
      %v5862 = vadd.f32 %v5830, %v1772
      %v5863 = vadd.f32 %v5831, %v1772
      %v5864 = vadd.f32 %v5832, %v1772
      %v5865 = vadd.f32 %v5833, %v1772
      %v5866 = vadd.f32 %v5834, %v1772
      %v5867 = vadd.f32 %v5835, %v1772
      %v5868 = vadd.f32 %v5836, %v1772
      %v5869 = vadd.f32 %v5837, %v1772
      %v5870 = vpack.c.bf16 %v5839, %v5838
      %v5871 = vpack.c.bf16 %v5841, %v5840
      %v5872 = vpack.c.bf16 %v5843, %v5842
      %v5873 = vpack.c.bf16 %v5845, %v5844
      %v5874 = vpack.c.bf16 %v5847, %v5846
      %v5875 = vpack.c.bf16 %v5849, %v5848
      %v5876 = vpack.c.bf16 %v5851, %v5850
      %v5877 = vpack.c.bf16 %v5853, %v5852
      %v5878 = vpack.c.bf16 %v5855, %v5854
      %v5879 = vpack.c.bf16 %v5857, %v5856
      %v5880 = vpack.c.bf16 %v5859, %v5858
      %v5881 = vpack.c.bf16 %v5861, %v5860
      %v5882 = vpack.c.bf16 %v5863, %v5862
      %v5883 = vpack.c.bf16 %v5865, %v5864
      %v5884 = vpack.c.bf16 %v5867, %v5866
      %v5885 = vpack.c.bf16 %v5869, %v5868
      %v5902 = vunpack.c.l.b16 %v5870
      %v5903 = vunpack.c.h.b16 %v5870
      %v5904 = vunpack.c.l.b16 %v5871
      %v5905 = vunpack.c.h.b16 %v5871
      %v5906 = vunpack.c.l.b16 %v5872
      %v5907 = vunpack.c.h.b16 %v5872
      %v5908 = vunpack.c.l.b16 %v5873
      %v5909 = vunpack.c.h.b16 %v5873
      %v5910 = vunpack.c.l.b16 %v5874
      %v5911 = vunpack.c.h.b16 %v5874
      %v5912 = vunpack.c.l.b16 %v5875
      %v5913 = vunpack.c.h.b16 %v5875
      %v5914 = vunpack.c.l.b16 %v5876
      %v5915 = vunpack.c.h.b16 %v5876
      %v5916 = vunpack.c.l.b16 %v5877
      %v5917 = vunpack.c.h.b16 %v5877
      %v5918 = vunpack.c.l.b16 %v5878
      %v5919 = vunpack.c.h.b16 %v5878
      %v5920 = vunpack.c.l.b16 %v5879
      %v5921 = vunpack.c.h.b16 %v5879
      %v5922 = vunpack.c.l.b16 %v5880
      %v5923 = vunpack.c.h.b16 %v5880
      %v5924 = vunpack.c.l.b16 %v5881
      %v5925 = vunpack.c.h.b16 %v5881
      %v5926 = vunpack.c.l.b16 %v5882
      %v5927 = vunpack.c.h.b16 %v5882
      %v5928 = vunpack.c.l.b16 %v5883
      %v5929 = vunpack.c.h.b16 %v5883
      %v5930 = vunpack.c.l.b16 %v5884
      %v5931 = vunpack.c.h.b16 %v5884
      %v5932 = vunpack.c.l.b16 %v5885
      %v5933 = vunpack.c.h.b16 %v5885
      %v5934 = vpack.c.b16 %v5902, %v5902
      %v5935 = vpack.c.b16 %v5903, %v5903
      %v5936 = vpack.c.b16 %v5904, %v5904
      %v5937 = vpack.c.b16 %v5905, %v5905
      %v5938 = vpack.c.b16 %v5906, %v5906
      %v5939 = vpack.c.b16 %v5907, %v5907
      %v5940 = vpack.c.b16 %v5908, %v5908
      %v5941 = vpack.c.b16 %v5909, %v5909
      %v5942 = vpack.c.b16 %v5910, %v5910
      %v5943 = vpack.c.b16 %v5911, %v5911
      %v5944 = vpack.c.b16 %v5912, %v5912
      %v5945 = vpack.c.b16 %v5913, %v5913
      %v5946 = vpack.c.b16 %v5914, %v5914
      %v5947 = vpack.c.b16 %v5915, %v5915
      %v5948 = vpack.c.b16 %v5916, %v5916
      %v5949 = vpack.c.b16 %v5917, %v5917
      %v5950 = vpack.c.b16 %v5918, %v5918
      %v5951 = vpack.c.b16 %v5919, %v5919
      %v5952 = vpack.c.b16 %v5920, %v5920
      %v5953 = vpack.c.b16 %v5921, %v5921
      %v5954 = vpack.c.b16 %v5922, %v5922
      %v5955 = vpack.c.b16 %v5923, %v5923
      %v5956 = vpack.c.b16 %v5924, %v5924
      %v5957 = vpack.c.b16 %v5925, %v5925
      %v5958 = vpack.c.b16 %v5926, %v5926
      %v5959 = vpack.c.b16 %v5927, %v5927
      %v5960 = vpack.c.b16 %v5928, %v5928
      %v5961 = vpack.c.b16 %v5929, %v5929
      %v5962 = vpack.c.b16 %v5930, %v5930
      %v5963 = vpack.c.b16 %v5931, %v5931
      %v5964 = vpack.c.b16 %v5932, %v5932
      %v5965 = vpack.c.b16 %v5933, %v5933
      %s5998 = scalar_lea.vmem %s273, 384
      %5999 = vst.msk [vmem:[%s5998] sm:$0xf] %vm1934, %v5934
      %6000 = vst.msk [vmem:[%s5998 + $0x4] sm:$0xf] %vm1934, %v5935
      %6001 = vst.msk [vmem:[%s5998 + $0x8] sm:$0xf] %vm1934, %v5936
      %6002 = vst.msk [vmem:[%s5998 + $0xc] sm:$0xf] %vm1934, %v5937
      %6003 = vst.msk [vmem:[%s5998 + $0x10] sm:$0xf] %vm1934, %v5938
      %6004 = vst.msk [vmem:[%s5998 + $0x14] sm:$0xf] %vm1934, %v5939
      %6005 = vst.msk [vmem:[%s5998 + $0x18] sm:$0xf] %vm1934, %v5940
      %6006 = vst.msk [vmem:[%s5998 + $0x1c] sm:$0xf] %vm1934, %v5941
      %6007 = vst.msk [vmem:[%s5998 + $0x20] sm:$0xf] %vm1934, %v5942
      %6008 = vst.msk [vmem:[%s5998 + $0x24] sm:$0xf] %vm1934, %v5943
      %6009 = vst.msk [vmem:[%s5998 + $0x28] sm:$0xf] %vm1934, %v5944
      %6010 = vst.msk [vmem:[%s5998 + $0x2c] sm:$0xf] %vm1934, %v5945
      %6011 = vst.msk [vmem:[%s5998 + $0x30] sm:$0xf] %vm1934, %v5946
      %6012 = vst.msk [vmem:[%s5998 + $0x34] sm:$0xf] %vm1934, %v5947
      %6013 = vst.msk [vmem:[%s5998 + $0x38] sm:$0xf] %vm1934, %v5948
      %6014 = vst.msk [vmem:[%s5998 + $0x3c] sm:$0xf] %vm1934, %v5949
      %6015 = vst.msk [vmem:[%s5998 + $0x40] sm:$0xf] %vm1934, %v5950
      %6016 = vst.msk [vmem:[%s5998 + $0x44] sm:$0xf] %vm1934, %v5951
      %6017 = vst.msk [vmem:[%s5998 + $0x48] sm:$0xf] %vm1934, %v5952
      %6018 = vst.msk [vmem:[%s5998 + $0x4c] sm:$0xf] %vm1934, %v5953
      %6019 = vst.msk [vmem:[%s5998 + $0x50] sm:$0xf] %vm1934, %v5954
      %6020 = vst.msk [vmem:[%s5998 + $0x54] sm:$0xf] %vm1934, %v5955
      %6021 = vst.msk [vmem:[%s5998 + $0x58] sm:$0xf] %vm1934, %v5956
      %6022 = vst.msk [vmem:[%s5998 + $0x5c] sm:$0xf] %vm1934, %v5957
      %6023 = vst.msk [vmem:[%s5998 + $0x60] sm:$0xf] %vm1934, %v5958
      %6024 = vst.msk [vmem:[%s5998 + $0x64] sm:$0xf] %vm1934, %v5959
      %6025 = vst.msk [vmem:[%s5998 + $0x68] sm:$0xf] %vm1934, %v5960
      %6026 = vst.msk [vmem:[%s5998 + $0x6c] sm:$0xf] %vm1934, %v5961
      %6027 = vst.msk [vmem:[%s5998 + $0x70] sm:$0xf] %vm1934, %v5962
      %6028 = vst.msk [vmem:[%s5998 + $0x74] sm:$0xf] %vm1934, %v5963
      %6029 = vst.msk [vmem:[%s5998 + $0x78] sm:$0xf] %vm1934, %v5964
      %6030 = vst.msk [vmem:[%s5998 + $0x7c] sm:$0xf] %vm1934, %v5965
      %v6031 = vld [vmem:[%s6] sm:$0x1]
      %v6032 = vsel %vm530, %v5838, 0.0
      %v6033 = vsel %vm530, %v5839, 0.0
      %v6034 = vadd.f32 %v6032, %v6033
      %v6035 = vsel %vm530, %v5840, 0.0
      %v6036 = vadd.f32 %v6034, %v6035
      %v6037 = vsel %vm530, %v5841, 0.0
      %v6038 = vadd.f32 %v6036, %v6037
      %v6039 = vsel %vm530, %v5842, 0.0
      %v6040 = vadd.f32 %v6038, %v6039
      %v6041 = vsel %vm530, %v5843, 0.0
      %v6042 = vadd.f32 %v6040, %v6041
      %v6043 = vsel %vm530, %v5844, 0.0
      %v6044 = vadd.f32 %v6042, %v6043
      %v6045 = vsel %vm530, %v5845, 0.0
      %v6046 = vadd.f32 %v6044, %v6045
      %v6047 = vsel %vm530, %v5846, 0.0
      %v6048 = vadd.f32 %v6046, %v6047
      %v6049 = vsel %vm530, %v5847, 0.0
      %v6050 = vadd.f32 %v6048, %v6049
      %v6051 = vsel %vm530, %v5848, 0.0
      %v6052 = vadd.f32 %v6050, %v6051
      %v6053 = vsel %vm530, %v5849, 0.0
      %v6054 = vadd.f32 %v6052, %v6053
      %v6055 = vsel %vm530, %v5850, 0.0
      %v6056 = vadd.f32 %v6054, %v6055
      %v6057 = vsel %vm530, %v5851, 0.0
      %v6058 = vadd.f32 %v6056, %v6057
      %v6059 = vsel %vm530, %v5852, 0.0
      %v6060 = vadd.f32 %v6058, %v6059
      %v6061 = vsel %vm530, %v5853, 0.0
      %v6062 = vadd.f32 %v6060, %v6061
      %v6063 = vsel %vm530, %v5854, 0.0
      %v6064 = vadd.f32 %v6062, %v6063
      %v6065 = vsel %vm530, %v5855, 0.0
      %v6066 = vadd.f32 %v6064, %v6065
      %v6067 = vsel %vm530, %v5856, 0.0
      %v6068 = vadd.f32 %v6066, %v6067
      %v6069 = vsel %vm530, %v5857, 0.0
      %v6070 = vadd.f32 %v6068, %v6069
      %v6071 = vsel %vm530, %v5858, 0.0
      %v6072 = vadd.f32 %v6070, %v6071
      %v6073 = vsel %vm530, %v5859, 0.0
      %v6074 = vadd.f32 %v6072, %v6073
      %v6075 = vsel %vm530, %v5860, 0.0
      %v6076 = vadd.f32 %v6074, %v6075
      %v6077 = vsel %vm530, %v5861, 0.0
      %v6078 = vadd.f32 %v6076, %v6077
      %v6079 = vsel %vm530, %v5862, 0.0
      %v6080 = vadd.f32 %v6078, %v6079
      %v6081 = vsel %vm530, %v5863, 0.0
      %v6082 = vadd.f32 %v6080, %v6081
      %v6083 = vsel %vm530, %v5864, 0.0
      %v6084 = vadd.f32 %v6082, %v6083
      %v6085 = vsel %vm530, %v5865, 0.0
      %v6086 = vadd.f32 %v6084, %v6085
      %v6087 = vsel %vm530, %v5866, 0.0
      %v6088 = vadd.f32 %v6086, %v6087
      %v6089 = vsel %vm530, %v5867, 0.0
      %v6090 = vadd.f32 %v6088, %v6089
      %v6091 = vsel %vm530, %v5868, 0.0
      %v6092 = vadd.f32 %v6090, %v6091
      %v6093 = vsel %vm530, %v5869, 0.0
      %v6094 = vadd.f32 %v6092, %v6093
      %v6095 = vrot.slane %v6094, 4
      %v6096 = vadd.f32 %v6094, %v6095
      %v6097 = vrot.slane %v6096, 2
      %v6098 = vadd.f32 %v6096, %v6097
      %v6099 = vrot.slane %v6098, 1
      %v6100 = vadd.f32 %v6098, %v6099
      %v6101 = vadd.f32 %v6031, %v6100
      %6102 = vst.msk [vmem:[%s6] sm:$0x1] %vm2038, %v6101
      %v6103 = vld [vmem:[%s7] sm:$0x1]
      %v6104 = vmul.f32 %v5838, %v5838
      %v6105 = vmul.f32 %v5839, %v5839
      %v6106 = vmul.f32 %v5840, %v5840
      %v6107 = vmul.f32 %v5841, %v5841
      %v6108 = vmul.f32 %v5842, %v5842
      %v6109 = vmul.f32 %v5843, %v5843
      %v6110 = vmul.f32 %v5844, %v5844
      %v6111 = vmul.f32 %v5845, %v5845
      %v6112 = vmul.f32 %v5846, %v5846
      %v6113 = vmul.f32 %v5847, %v5847
      %v6114 = vmul.f32 %v5848, %v5848
      %v6115 = vmul.f32 %v5849, %v5849
      %v6116 = vmul.f32 %v5850, %v5850
      %v6117 = vmul.f32 %v5851, %v5851
      %v6118 = vmul.f32 %v5852, %v5852
      %v6119 = vmul.f32 %v5853, %v5853
      %v6120 = vmul.f32 %v5854, %v5854
      %v6121 = vmul.f32 %v5855, %v5855
      %v6122 = vmul.f32 %v5856, %v5856
      %v6123 = vmul.f32 %v5857, %v5857
      %v6124 = vmul.f32 %v5858, %v5858
      %v6125 = vmul.f32 %v5859, %v5859
      %v6126 = vmul.f32 %v5860, %v5860
      %v6127 = vmul.f32 %v5861, %v5861
      %v6128 = vmul.f32 %v5862, %v5862
      %v6129 = vmul.f32 %v5863, %v5863
      %v6130 = vmul.f32 %v5864, %v5864
      %v6131 = vmul.f32 %v5865, %v5865
      %v6132 = vmul.f32 %v5866, %v5866
      %v6133 = vmul.f32 %v5867, %v5867
      %v6134 = vmul.f32 %v5868, %v5868
      %v6135 = vmul.f32 %v5869, %v5869
      %v6136 = vsel %vm530, %v6104, 0.0
      %v6137 = vsel %vm530, %v6105, 0.0
      %v6138 = vadd.f32 %v6136, %v6137
      %v6139 = vsel %vm530, %v6106, 0.0
      %v6140 = vadd.f32 %v6138, %v6139
      %v6141 = vsel %vm530, %v6107, 0.0
      %v6142 = vadd.f32 %v6140, %v6141
      %v6143 = vsel %vm530, %v6108, 0.0
      %v6144 = vadd.f32 %v6142, %v6143
      %v6145 = vsel %vm530, %v6109, 0.0
      %v6146 = vadd.f32 %v6144, %v6145
      %v6147 = vsel %vm530, %v6110, 0.0
      %v6148 = vadd.f32 %v6146, %v6147
      %v6149 = vsel %vm530, %v6111, 0.0
      %v6150 = vadd.f32 %v6148, %v6149
      %v6151 = vsel %vm530, %v6112, 0.0
      %v6152 = vadd.f32 %v6150, %v6151
      %v6153 = vsel %vm530, %v6113, 0.0
      %v6154 = vadd.f32 %v6152, %v6153
      %v6155 = vsel %vm530, %v6114, 0.0
      %v6156 = vadd.f32 %v6154, %v6155
      %v6157 = vsel %vm530, %v6115, 0.0
      %v6158 = vadd.f32 %v6156, %v6157
      %v6159 = vsel %vm530, %v6116, 0.0
      %v6160 = vadd.f32 %v6158, %v6159
      %v6161 = vsel %vm530, %v6117, 0.0
      %v6162 = vadd.f32 %v6160, %v6161
      %v6163 = vsel %vm530, %v6118, 0.0
      %v6164 = vadd.f32 %v6162, %v6163
      %v6165 = vsel %vm530, %v6119, 0.0
      %v6166 = vadd.f32 %v6164, %v6165
      %v6167 = vsel %vm530, %v6120, 0.0
      %v6168 = vadd.f32 %v6166, %v6167
      %v6169 = vsel %vm530, %v6121, 0.0
      %v6170 = vadd.f32 %v6168, %v6169
      %v6171 = vsel %vm530, %v6122, 0.0
      %v6172 = vadd.f32 %v6170, %v6171
      %v6173 = vsel %vm530, %v6123, 0.0
      %v6174 = vadd.f32 %v6172, %v6173
      %v6175 = vsel %vm530, %v6124, 0.0
      %v6176 = vadd.f32 %v6174, %v6175
      %v6177 = vsel %vm530, %v6125, 0.0
      %v6178 = vadd.f32 %v6176, %v6177
      %v6179 = vsel %vm530, %v6126, 0.0
      %v6180 = vadd.f32 %v6178, %v6179
      %v6181 = vsel %vm530, %v6127, 0.0
      %v6182 = vadd.f32 %v6180, %v6181
      %v6183 = vsel %vm530, %v6128, 0.0
      %v6184 = vadd.f32 %v6182, %v6183
      %v6185 = vsel %vm530, %v6129, 0.0
      %v6186 = vadd.f32 %v6184, %v6185
      %v6187 = vsel %vm530, %v6130, 0.0
      %v6188 = vadd.f32 %v6186, %v6187
      %v6189 = vsel %vm530, %v6131, 0.0
      %v6190 = vadd.f32 %v6188, %v6189
      %v6191 = vsel %vm530, %v6132, 0.0
      %v6192 = vadd.f32 %v6190, %v6191
      %v6193 = vsel %vm530, %v6133, 0.0
      %v6194 = vadd.f32 %v6192, %v6193
      %v6195 = vsel %vm530, %v6134, 0.0
      %v6196 = vadd.f32 %v6194, %v6195
      %v6197 = vsel %vm530, %v6135, 0.0
      %v6198 = vadd.f32 %v6196, %v6197
      %v6199 = vrot.slane %v6198, 4
      %v6200 = vadd.f32 %v6198, %v6199
      %v6201 = vrot.slane %v6200, 2
      %v6202 = vadd.f32 %v6200, %v6201
      %v6203 = vrot.slane %v6202, 1
      %v6204 = vadd.f32 %v6202, %v6203
      %v6205 = vadd.f32 %v6103, %v6204
      %6206 = vst.msk [vmem:[%s7] sm:$0x1] %vm2038, %v6205
      %p6207 = scmp.lt.s32.totalorder %s19, 1
      %s6208 = scalar_select %p6207, %s19, 1
      %s6209 = smul.addr %s6208, 128
      %s6210 = smul.addr %s6209, 4
      %s6211 = scalar_lea.vmem %s5, %s6210
      // Predicated region
      $region45: #{decoder_block_forward.5} parent=39 // pred_check
        %p6212 = pneg %p147
      $region46: #{decoder_block_forward.5} parent=39 // pred_check_branch
        %6214 = sbr.rel (%p6212) target = $region48
      $region47: #{decoder_block_forward.5} parent=39 // pred_region
        _
      $region48: #{decoder_block_forward.5} parent=39 // pred_fallthru
        _
      // Predicated region
      $region49: #{decoder_block_forward.5} parent=39 // pred_check
        %p6215 = pneg %p168
      $region50: #{decoder_block_forward.5} parent=39 // pred_check_branch
        %6217 = sbr.rel (%p6215) target = $region52
      $region51: #{decoder_block_forward.5} parent=39 // pred_region
        _
      $region52: #{decoder_block_forward.5} parent=39 // pred_fallthru
        _
      // Predicated region
      $region53: #{decoder_block_forward.5} parent=39 // pred_check
        %p6218 = pneg %p189
      $region54: #{decoder_block_forward.5} parent=39 // pred_check_branch
        %6220 = sbr.rel (%p6218) target = $region56
      $region55: #{decoder_block_forward.5} parent=39 // pred_region
        _
      $region56: #{decoder_block_forward.5} parent=39 // pred_fallthru
        _
      // Predicated region
      $region57: #{decoder_block_forward.5} parent=39 // pred_check
        %p6221 = pneg %p168
      $region58: #{decoder_block_forward.5} parent=39 // pred_check_branch
        %6223 = sbr.rel (%p6221) target = $region60
      $region59: #{decoder_block_forward.5} parent=39 // pred_region
        _
      $region60: #{decoder_block_forward.5} parent=39 // pred_fallthru
        _
      // Predicated region
      $region61: #{decoder_block_forward.5} parent=39 // pred_check
        %p6224 = pneg %p189
      $region62: #{decoder_block_forward.5} parent=39 // pred_check_branch
        %6226 = sbr.rel (%p6224) target = $region64
      $region63: #{decoder_block_forward.5} parent=39 // pred_region
        _
      $region64: #{decoder_block_forward.5} parent=39 // pred_fallthru
        _
    $region40: #{decoder_block_forward.5} parent=5 // pred_fallthru
      _
    %p6227 = scmp.le.s32.totalorder 2, %s14
    // Predicated region
    $region65: #{decoder_block_forward.5} parent=5 // pred_check
      %p6228 = pneg %p6227
    $region66: #{decoder_block_forward.5} parent=5 // pred_check_branch
      %6230 = sbr.rel (%p6228) target = $region68
    $region67: #{decoder_block_forward.5} parent=5 // pred_region
      %s6231 = ssub.s32 %s14, 2
      // Predicated region
      $region69: #{decoder_block_forward.5} parent=67 // pred_check
        %p6232 = pneg %p153
      $region70: #{decoder_block_forward.5} parent=67 // pred_check_branch
        %6234 = sbr.rel (%p6232) target = $region72
      $region71: #{decoder_block_forward.5} parent=67 // pred_region
        %p6235 = scmp.lt.s32.totalorder %s20, 1
        %s6236 = scalar_select %p6235, %s20, 1
        %s6237 = smul.addr %s6236, 128
        %s6238 = smul.addr %s6237, 4
        %s6239 = scalar_lea.vmem %s5, %s6238
      $region72: #{decoder_block_forward.5} parent=67 // pred_fallthru
        _
    $region68: #{decoder_block_forward.5} parent=5 // pred_fallthru
      _
  $region6: #{decoder_block_forward.5} parent=0 // loop_footer
    %s18 = sadd.s32 1, %s14
  $region7: #{decoder_block_forward.5} parent=0 // loop_footer_branch
    %13 = sbr.rel target = $region3
  $region8: #{decoder_block_forward.5} parent=0 // loop_exit
    _

</llo_original>
